<compile_context>
chip_gen: v6e
topology: v6e:2x2x1
jax: 0.10.0
libtpu: 0.0.40
codegen_flags: <defaults>
</compile_context>

<pallas_src>
import jax
import jax.numpy as jnp
import numpy as np
from jax.experimental import pallas as pl
from jax.experimental.pallas import tpu as pltpu


# ----------------------------- Pallas kernel --------------------------------
def time_encode_kernel(t_ref, wb_ref, out_ref):
    t = t_ref[...]            # (blk, 1)   float32 timestamps
    w = wb_ref[0:1, :]        # (1, dim)   frequencies (Linear weight, squeezed)
    b = wb_ref[1:2, :]        # (1, dim)   bias
    # Rank-1 outer product via broadcast (VPU) + cos (EUP); no MXU matmul.
    out_ref[...] = jnp.cos(t * w + b)


# ----------------------------- wrapper ---------------------------------------
def time_encode_pallas(t, w_row, b_row, *, block_rows=512):
    """t: any shape; w_row/b_row: (dim,).  Returns (t.size, dim) float32."""
    t2 = jnp.asarray(t, jnp.float32).reshape(-1, 1)              # (N, 1)
    n = t2.shape[0]
    dim = int(w_row.shape[-1])

    # Lane-dense output: pad feature dim to a multiple of 128 (full `vst`).
    dim_pad = pl.cdiv(dim, 128) * 128

    # Row blocking: multiple of 8 sublanes, at most `block_rows`.
    blk = min(block_rows, max(8, pl.cdiv(n, 8) * 8))
    n_pad = pl.cdiv(n, blk) * blk
    if n_pad != n:
        t2 = jnp.pad(t2, ((0, n_pad - n), (0, 0)))

    # Pack weight + bias into one slab -> single parameter DMA, VMEM-resident.
    w_full = jnp.zeros((dim_pad,), jnp.float32).at[:dim].set(
        jnp.asarray(w_row, jnp.float32).reshape(dim))
    b_full = jnp.zeros((dim_pad,), jnp.float32).at[:dim].set(
        jnp.asarray(b_row, jnp.float32).reshape(dim))
    wb = jnp.stack([w_full, b_full], axis=0)                     # (2, dim_pad)

    out = pl.pallas_call(
        time_encode_kernel,
        out_shape=jax.ShapeDtypeStruct((n_pad, dim_pad), jnp.float32),
        grid_spec=pltpu.PrefetchScalarGridSpec(
            num_scalar_prefetch=0,
            grid=(n_pad // blk,),
            in_specs=[
                pl.BlockSpec((blk, 1), lambda i: (i, 0)),        # per-block times
                pl.BlockSpec((2, dim_pad), lambda i: (0, 0)),    # resident params
            ],
            out_specs=pl.BlockSpec((blk, dim_pad), lambda i: (i, 0)),
        ),
        compiler_params=pltpu.CompilerParams(
            dimension_semantics=("parallel",)),
    )(t2, wb)
    return out[:n, :dim]


# ----------------------------- pure-JAX reference ----------------------------
def time_encode_ref(t, w_weight, bias):
    # Mirrors torch: cos(self.w(t.reshape(-1, 1))) with self.w = Linear(1, dim).
    return jnp.cos(jnp.asarray(t, jnp.float32).reshape(-1, 1) @ w_weight.T + bias)


# ----------------------------- main ------------------------------------------
if __name__ == "__main__":
    DIM = 128      # dim_time (lane-dense in the demo; wrapper handles any dim)
    N = 1000       # number of timestamps (exercises the row-padding path)

    key = jax.random.PRNGKey(0)
    t = jax.random.uniform(key, (N,), jnp.float32) * 100.0       # timestamps / dt

    # Exact TimeEncode initialization from the module:
    #   weight = 1 / 10 ** linspace(0, 9, dim)  (shape (dim, 1)),  bias = 0
    w_weight = jnp.asarray(
        1.0 / 10 ** np.linspace(0, 9, DIM, dtype=np.float32)).reshape(DIM, 1)
    bias = jnp.zeros((DIM,), jnp.float32)

    out = time_encode_pallas(t, w_weight[:, 0], bias)
    out = jax.block_until_ready(out)

    ref = time_encode_ref(t, w_weight, bias)
    np.testing.assert_allclose(np.asarray(out), np.asarray(ref),
                               rtol=1e-4, atol=1e-4)

    print("KERNEL_OK")
</pallas_src>

<mosaic_0001>
module attributes {stable_mosaic.version = 11 : i64} {
  func.func @time_encode_kernel(%arg0: i32, %arg1: memref<512x1xf32, #tpu.memory_space<vmem>>, %arg2: memref<2x128xf32, #tpu.memory_space<vmem>>, %arg3: memref<512x128xf32, #tpu.memory_space<vmem>>) attributes {dimension_semantics = [#tpu.dimension_semantics<parallel>], iteration_bounds = array<i64: 2>, scalar_prefetch = 0 : i64, scratch_operands = 0 : i64, tpu.core_type = #tpu.core_type<tc>, window_params = [{transform_indices = @transform_0, window_bounds = array<i64: 512, 1>}, {pipeline_mode = #tpu.pipeline_mode<synchronous>, transform_indices = @transform_1, window_bounds = array<i64: 2, 128>}, {transform_indices = @transform_2, window_bounds = array<i64: 512, 128>}]} {
    %c0 = arith.constant 0 : index
    %c0_0 = arith.constant 0 : index
    %0 = vector.load %arg1[%c0, %c0_0] : memref<512x1xf32, #tpu.memory_space<vmem>>, vector<512x1xf32>
    %c0_1 = arith.constant 0 : index
    %c0_2 = arith.constant 0 : index
    %1 = vector.load %arg2[%c0_1, %c0_2] : memref<2x128xf32, #tpu.memory_space<vmem>>, vector<1x128xf32>
    %c1 = arith.constant 1 : index
    %c0_3 = arith.constant 0 : index
    %2 = vector.load %arg2[%c1, %c0_3] : memref<2x128xf32, #tpu.memory_space<vmem>>, vector<1x128xf32>
    %3 = vector.broadcast %0 : vector<512x1xf32> to vector<512x128xf32>
    %4 = vector.broadcast %1 : vector<1x128xf32> to vector<512x128xf32>
    %5 = arith.mulf %3, %4 : vector<512x128xf32>
    %6 = vector.broadcast %2 : vector<1x128xf32> to vector<512x128xf32>
    %7 = arith.addf %5, %6 : vector<512x128xf32>
    %8 = math.cos %7 : vector<512x128xf32>
    %c0_4 = arith.constant 0 : index
    %c0_5 = arith.constant 0 : index
    %9 = vector.load %arg3[%c0_4, %c0_5] : memref<512x128xf32, #tpu.memory_space<vmem>>, vector<512x128xf32>
    tpu.vector_store %arg3[%c0_4, %c0_5], %8 {strides = array<i32>} : memref<512x128xf32, #tpu.memory_space<vmem>>, vector<512x128xf32>,
    return
  }
  func.func @transform_0(%arg0: i32) -> (i32, i32) {
    %c0_i32 = arith.constant 0 : i32
    %c0_i32_0 = arith.constant 0 : i32
    return %arg0, %c0_i32 : i32, i32
  }
  func.func @transform_1(%arg0: i32) -> (i32, i32) {
    %c0_i32 = arith.constant 0 : i32
    %c0_i32_0 = arith.constant 0 : i32
    %c0_i32_1 = arith.constant 0 : i32
    return %c0_i32, %c0_i32_0 : i32, i32
  }
  func.func @transform_2(%arg0: i32) -> (i32, i32) {
    %c0_i32 = arith.constant 0 : i32
    %c0_i32_0 = arith.constant 0 : i32
    return %arg0, %c0_i32 : i32, i32
  }
}

</mosaic_0001>

<llo_original>
// kernel: tpu_custom_call.1
$region0: #{tpu_custom_call.1}
  #allocation0 [shape = 'u32[]', space=smem, size = 0x4, offset = 0x4, fixed_abs, tag = 'smem constant byte address 0x4 - core index']
  #allocation1 [shape = 'u32[144,128]{1,0:T(1,128)}', space=vmem, size = 0x12000, scoped, tag = 'internal scratch']
  %s0 = inlined_call_operand.vmem [shape: f32[1024,1], index: 0, kind: input, shape index: {}]
  %s1 = inlined_call_operand.vmem [shape: f32[2,128], index: 1, kind: input, shape index: {}]
  %s2 = inlined_call_operand.hbm [shape: f32[1024,128], index: 2, kind: output, shape index: {}]
  %s3 = sld [smem:[#allocation0]]
  $region41: #{tpu_custom_call.1} parent=0
    _
  %s5 = ssub.s32 1, %s3
  %s6 = scalar_select 0, %s5, %s3
  $region1: #{tpu_custom_call.1} parent=0
    #allocation2 [shape = 'u8[524288]{0}', space=vmem, size = 0x80000, scoped, tag = 'output window, operand 0']
    #allocation3 [shape = 's32[2]{0}', space=sflag, size = 0x8, scoped, tag = 'scoped memory for tpu_custom_call.1']
    %7 = vsyncpa [#allocation3], 0
    %s8 = scalar_lea.sflag [#allocation3], 1
    %9 = vsyncpa %s8, 0
    loop: start=0, step=1, limit=4
    $region2: #{tpu_custom_call.1} parent=1 // loop_pre_header
      _
    $region3: #{tpu_custom_call.1} parent=1 // loop_header
      %s11 = sphi 0, %s15
      %p12 = scmp.ge.s32.totalorder %s11, 4
      %s21 = sphi 0, %s23
      %s24 = sphi 0, %s21
      %s25 = sphi 0, %s24
      %s41 = sphi 0, %s25
      %s45 = sphi 0, %s45
      %s47 = sphi 0, %s45
      %s48 = sphi 0, %s47
      %s62 = sphi 0, %s48
      %s68 = sphi 0, %s70
      %s71 = sphi 0, %s68
      %s72 = sphi 0, %s71
      %s88 = sphi 0, %s72
    $region4: #{tpu_custom_call.1} parent=1 // loop_header_branch
      %14 = sbr.rel (%p12) target = $region8
    $region5: #{tpu_custom_call.1} parent=1 // loop_body
      %s16 = ssub.s32 %s11, 1
      %s17 = ssub.s32 %s11, 2
      %s18 = sadd.s32 %s11, 1
      %s19 = ssub.s32 %s11, %s18
      %p20 = scmp.eq.s32.totalorder %s19, 0
      %s22 = sadd.s32 %s21, 1
      %s23 = scalar_select %p20, %s21, %s22
      %p26 = pneg %p20
      %p27 = scmp.eq.s32.totalorder %s11, 1
      %p28 = por %p26, %p27
      %p29 = scmp.ne.s32.totalorder %s21, %s24
      %p30 = scmp.eq.s32.totalorder %s11, 0
      %p31 = por %p29, %p30
      %p32 = scmp.ne.s32.totalorder %s21, %s24
      %p33 = scmp.eq.s32.totalorder %s16, 1
      %p34 = por %p32, %p33
      %p35 = scmp.ne.s32.totalorder %s24, %s25
      %p36 = scmp.eq.s32.totalorder %s16, 0
      %p37 = por %p35, %p36
      %p38 = scmp.ne.s32.totalorder %s24, %s25
      %p39 = scmp.eq.s32.totalorder %s17, 1
      %p40 = por %p38, %p39
      %p42 = scmp.ne.s32.totalorder %s25, %s41
      %p43 = scmp.eq.s32.totalorder %s17, 0
      %p44 = por %p42, %p43
      %s46 = sadd.s32 %s45, 1
      %p49 = scmp.eq.s32.totalorder %s11, 1
      %p50 = scmp.ne.s32.totalorder %s45, %s47
      %p51 = scmp.eq.s32.totalorder %s11, 0
      %p52 = por %p50, %p51
      %p53 = scmp.ne.s32.totalorder %s45, %s47
      %p54 = scmp.eq.s32.totalorder %s16, 1
      %p55 = por %p53, %p54
      %p56 = scmp.ne.s32.totalorder %s47, %s48
      %p57 = scmp.eq.s32.totalorder %s16, 0
      %p58 = por %p56, %p57
      %p59 = scmp.ne.s32.totalorder %s47, %s48
      %p60 = scmp.eq.s32.totalorder %s17, 1
      %p61 = por %p59, %p60
      %p63 = scmp.ne.s32.totalorder %s48, %s62
      %p64 = scmp.eq.s32.totalorder %s17, 0
      %p65 = por %p63, %p64
      %s66 = ssub.s32 %s11, %s18
      %p67 = scmp.eq.s32.totalorder %s66, 0
      %s69 = sadd.s32 %s68, 1
      %s70 = scalar_select %p67, %s68, %s69
      %p73 = pneg %p67
      %p74 = scmp.eq.s32.totalorder %s11, 1
      %p75 = por %p73, %p74
      %p76 = scmp.ne.s32.totalorder %s68, %s71
      %p77 = scmp.eq.s32.totalorder %s11, 0
      %p78 = por %p76, %p77
      %p79 = scmp.ne.s32.totalorder %s68, %s71
      %p80 = scmp.eq.s32.totalorder %s16, 1
      %p81 = por %p79, %p80
      %p82 = scmp.ne.s32.totalorder %s71, %s72
      %p83 = scmp.eq.s32.totalorder %s16, 0
      %p84 = por %p82, %p83
      %p85 = scmp.ne.s32.totalorder %s71, %s72
      %p86 = scmp.eq.s32.totalorder %s17, 1
      %p87 = por %p85, %p86
      %p89 = scmp.ne.s32.totalorder %s72, %s88
      %p90 = scmp.eq.s32.totalorder %s17, 0
      %p91 = por %p89, %p90
      %p92 = scmp.le.s32.totalorder 1, %s11
      %p93 = scmp.lt.s32.totalorder %s11, 3
      %p94 = pnand %p92, %p93
      %p95 = pneg %p94
      // Predicated region
      $region9: #{tpu_custom_call.1} parent=5 // pred_check
        _
      $region10: #{tpu_custom_call.1} parent=5 // pred_check_branch
        %97 = sbr.rel (%p94) target = $region12
      $region11: #{tpu_custom_call.1} parent=5 // pred_region
        %s98 = ssub.s32 %s11, 1
        // Predicated region
        $region13: #{tpu_custom_call.1} parent=11 // pred_check
          %p99 = pneg %p58
        $region14: #{tpu_custom_call.1} parent=11 // pred_check_branch
          %101 = sbr.rel (%p99) target = $region16
        $region15: #{tpu_custom_call.1} parent=11 // pred_region
          _
        $region16: #{tpu_custom_call.1} parent=11 // pred_fallthru
          _
      $region12: #{tpu_custom_call.1} parent=5 // pred_fallthru
        _
      %p102 = scmp.lt.s32.totalorder %s11, 2
      // Predicated region
      $region17: #{tpu_custom_call.1} parent=5 // pred_check
        %p103 = pneg %p102
      $region18: #{tpu_custom_call.1} parent=5 // pred_check_branch
        %105 = sbr.rel (%p103) target = $region20
      $region19: #{tpu_custom_call.1} parent=5 // pred_region
        // Predicated region
        $region21: #{tpu_custom_call.1} parent=19 // pred_check
          %p106 = pneg %p31
        $region22: #{tpu_custom_call.1} parent=19 // pred_check_branch
          %108 = sbr.rel (%p106) target = $region24
        $region23: #{tpu_custom_call.1} parent=19 // pred_region
          %s109 = smul.u32 64, %s11
          %p110 = scmp.lt.s32.totalorder %s109, 127
          %s111 = scalar_select %p110, %s109, 127
          %s112 = smul.addr %s111, 8
          %s113 = scalar_lea.vmem %s0, %s112
          %s114 = smul.u32 64, %s11
        $region24: #{tpu_custom_call.1} parent=19 // pred_fallthru
          _
      $region20: #{tpu_custom_call.1} parent=5 // pred_fallthru
        _
      %p115 = scmp.le.s32.totalorder 1, %s11
      %p116 = scmp.lt.s32.totalorder %s11, 3
      %p117 = pnand %p115, %p116
      %p118 = pneg %p117
      // Predicated region
      $region25: #{tpu_custom_call.1} parent=5 // pred_check
        _
      $region26: #{tpu_custom_call.1} parent=5 // pred_check_branch
        %120 = sbr.rel (%p117) target = $region28
      $region27: #{tpu_custom_call.1} parent=5 // pred_region
        %s121 = ssub.s32 %s11, 1
        %s122 = smul.u32 64, %s16
        %p123 = scmp.lt.s32.totalorder %s122, 127
        %s124 = scalar_select %p123, %s122, 127
        %s125 = smul.addr %s124, 8
        %s126 = scalar_lea.vmem %s0, %s125
        %p127 = pneg %p37
        %p128 = pneg %p34
        %p129 = pneg %p58
        %p130 = pneg %p55
        %p131 = pneg %p84
        %p132 = pneg %p81
        %s133 = sand.u32 %s71, 1
        %s134 = scalar_lea.sflag [#allocation3], %s133
        %s135 = sand.u32 %s71, 1
        %s136 = smul.addr %s135, 512
        %s137 = scalar_lea.vmem [#allocation2], %s136
        %s138 = smul.u32 64, %s16
        %p139 = scmp.lt.s32.totalorder %s138, 127
        %s140 = scalar_select %p139, %s138, 127
        %s141 = smul.addr %s140, 8
        %s142 = scalar_lea.vmem %s0, %s141
        %s143 = smul.u32 64, %s16
        %s144 = smul.u32 64, %s16
        %v145 = vld [vmem:[%s142] sm:$0xff]
        %v146 = vld [vmem:[%s142 + $0x8] sm:$0xff]
        %v147 = vld [vmem:[%s142 + $0x10] sm:$0xff]
        %v148 = vld [vmem:[%s142 + $0x18] sm:$0xff]
        %v149 = vld [vmem:[%s142 + $0x20] sm:$0xff]
        %v150 = vld [vmem:[%s142 + $0x28] sm:$0xff]
        %v151 = vld [vmem:[%s142 + $0x30] sm:$0xff]
        %v152 = vld [vmem:[%s142 + $0x38] sm:$0xff]
        %v153 = vld [vmem:[%s142 + $0x40] sm:$0xff]
        %v154 = vld [vmem:[%s142 + $0x48] sm:$0xff]
        %v155 = vld [vmem:[%s142 + $0x50] sm:$0xff]
        %v156 = vld [vmem:[%s142 + $0x58] sm:$0xff]
        %v157 = vld [vmem:[%s142 + $0x60] sm:$0xff]
        %v158 = vld [vmem:[%s142 + $0x68] sm:$0xff]
        %v159 = vld [vmem:[%s142 + $0x70] sm:$0xff]
        %v160 = vld [vmem:[%s142 + $0x78] sm:$0xff]
        %v161 = vld [vmem:[%s142 + $0x80] sm:$0xff]
        %v162 = vld [vmem:[%s142 + $0x88] sm:$0xff]
        %v163 = vld [vmem:[%s142 + $0x90] sm:$0xff]
        %v164 = vld [vmem:[%s142 + $0x98] sm:$0xff]
        %v165 = vld [vmem:[%s142 + $0xa0] sm:$0xff]
        %v166 = vld [vmem:[%s142 + $0xa8] sm:$0xff]
        %v167 = vld [vmem:[%s142 + $0xb0] sm:$0xff]
        %v168 = vld [vmem:[%s142 + $0xb8] sm:$0xff]
        %v169 = vld [vmem:[%s142 + $0xc0] sm:$0xff]
        %v170 = vld [vmem:[%s142 + $0xc8] sm:$0xff]
        %v171 = vld [vmem:[%s142 + $0xd0] sm:$0xff]
        %v172 = vld [vmem:[%s142 + $0xd8] sm:$0xff]
        %v173 = vld [vmem:[%s142 + $0xe0] sm:$0xff]
        %v174 = vld [vmem:[%s142 + $0xe8] sm:$0xff]
        %v175 = vld [vmem:[%s142 + $0xf0] sm:$0xff]
        %v176 = vld [vmem:[%s142 + $0xf8] sm:$0xff]
        %v177 = vld [vmem:[%s142 + $0x100] sm:$0xff]
        %v178 = vld [vmem:[%s142 + $0x108] sm:$0xff]
        %v179 = vld [vmem:[%s142 + $0x110] sm:$0xff]
        %v180 = vld [vmem:[%s142 + $0x118] sm:$0xff]
        %v181 = vld [vmem:[%s142 + $0x120] sm:$0xff]
        %v182 = vld [vmem:[%s142 + $0x128] sm:$0xff]
        %v183 = vld [vmem:[%s142 + $0x130] sm:$0xff]
        %v184 = vld [vmem:[%s142 + $0x138] sm:$0xff]
        %v185 = vld [vmem:[%s142 + $0x140] sm:$0xff]
        %v186 = vld [vmem:[%s142 + $0x148] sm:$0xff]
        %v187 = vld [vmem:[%s142 + $0x150] sm:$0xff]
        %v188 = vld [vmem:[%s142 + $0x158] sm:$0xff]
        %v189 = vld [vmem:[%s142 + $0x160] sm:$0xff]
        %v190 = vld [vmem:[%s142 + $0x168] sm:$0xff]
        %v191 = vld [vmem:[%s142 + $0x170] sm:$0xff]
        %v192 = vld [vmem:[%s142 + $0x178] sm:$0xff]
        %v193 = vld [vmem:[%s142 + $0x180] sm:$0xff]
        %v194 = vld [vmem:[%s142 + $0x188] sm:$0xff]
        %v195 = vld [vmem:[%s142 + $0x190] sm:$0xff]
        %v196 = vld [vmem:[%s142 + $0x198] sm:$0xff]
        %v197 = vld [vmem:[%s142 + $0x1a0] sm:$0xff]
        %v198 = vld [vmem:[%s142 + $0x1a8] sm:$0xff]
        %v199 = vld [vmem:[%s142 + $0x1b0] sm:$0xff]
        %v200 = vld [vmem:[%s142 + $0x1b8] sm:$0xff]
        %v201 = vld [vmem:[%s142 + $0x1c0] sm:$0xff]
        %v202 = vld [vmem:[%s142 + $0x1c8] sm:$0xff]
        %v203 = vld [vmem:[%s142 + $0x1d0] sm:$0xff]
        %v204 = vld [vmem:[%s142 + $0x1d8] sm:$0xff]
        %v205 = vld [vmem:[%s142 + $0x1e0] sm:$0xff]
        %v206 = vld [vmem:[%s142 + $0x1e8] sm:$0xff]
        %v207 = vld [vmem:[%s142 + $0x1f0] sm:$0xff]
        %v208 = vld [vmem:[%s142 + $0x1f8] sm:$0xff]
        %v209 = vld [vmem:[%s1] sm:$0x1]
        %v210 = vld [vmem:[%s1 + $0x1] sm:$0x1]
        %212 = vset.pattern.permute.xlu0 0
        %213 = vperm.xlu0 %212, %v145
        %v214 = vpop.permute.xlu0 %213
        %217 = vset.pattern.permute.xlu0 0
        %218 = vperm.xlu0 %217, %v146
        %v219 = vpop.permute.xlu0 %218
        %222 = vset.pattern.permute.xlu0 0
        %223 = vperm.xlu0 %222, %v147
        %v224 = vpop.permute.xlu0 %223
        %227 = vset.pattern.permute.xlu0 0
        %228 = vperm.xlu0 %227, %v148
        %v229 = vpop.permute.xlu0 %228
        %232 = vset.pattern.permute.xlu0 0
        %233 = vperm.xlu0 %232, %v149
        %v234 = vpop.permute.xlu0 %233
        %237 = vset.pattern.permute.xlu0 0
        %238 = vperm.xlu0 %237, %v150
        %v239 = vpop.permute.xlu0 %238
        %242 = vset.pattern.permute.xlu0 0
        %243 = vperm.xlu0 %242, %v151
        %v244 = vpop.permute.xlu0 %243
        %247 = vset.pattern.permute.xlu0 0
        %248 = vperm.xlu0 %247, %v152
        %v249 = vpop.permute.xlu0 %248
        %252 = vset.pattern.permute.xlu0 0
        %253 = vperm.xlu0 %252, %v153
        %v254 = vpop.permute.xlu0 %253
        %257 = vset.pattern.permute.xlu0 0
        %258 = vperm.xlu0 %257, %v154
        %v259 = vpop.permute.xlu0 %258
        %262 = vset.pattern.permute.xlu0 0
        %263 = vperm.xlu0 %262, %v155
        %v264 = vpop.permute.xlu0 %263
        %267 = vset.pattern.permute.xlu0 0
        %268 = vperm.xlu0 %267, %v156
        %v269 = vpop.permute.xlu0 %268
        %272 = vset.pattern.permute.xlu0 0
        %273 = vperm.xlu0 %272, %v157
        %v274 = vpop.permute.xlu0 %273
        %277 = vset.pattern.permute.xlu0 0
        %278 = vperm.xlu0 %277, %v158
        %v279 = vpop.permute.xlu0 %278
        %282 = vset.pattern.permute.xlu0 0
        %283 = vperm.xlu0 %282, %v159
        %v284 = vpop.permute.xlu0 %283
        %287 = vset.pattern.permute.xlu0 0
        %288 = vperm.xlu0 %287, %v160
        %v289 = vpop.permute.xlu0 %288
        %292 = vset.pattern.permute.xlu0 0
        %293 = vperm.xlu0 %292, %v161
        %v294 = vpop.permute.xlu0 %293
        %297 = vset.pattern.permute.xlu0 0
        %298 = vperm.xlu0 %297, %v162
        %v299 = vpop.permute.xlu0 %298
        %302 = vset.pattern.permute.xlu0 0
        %303 = vperm.xlu0 %302, %v163
        %v304 = vpop.permute.xlu0 %303
        %307 = vset.pattern.permute.xlu0 0
        %308 = vperm.xlu0 %307, %v164
        %v309 = vpop.permute.xlu0 %308
        %312 = vset.pattern.permute.xlu0 0
        %313 = vperm.xlu0 %312, %v165
        %v314 = vpop.permute.xlu0 %313
        %317 = vset.pattern.permute.xlu0 0
        %318 = vperm.xlu0 %317, %v166
        %v319 = vpop.permute.xlu0 %318
        %322 = vset.pattern.permute.xlu0 0
        %323 = vperm.xlu0 %322, %v167
        %v324 = vpop.permute.xlu0 %323
        %327 = vset.pattern.permute.xlu0 0
        %328 = vperm.xlu0 %327, %v168
        %v329 = vpop.permute.xlu0 %328
        %332 = vset.pattern.permute.xlu0 0
        %333 = vperm.xlu0 %332, %v169
        %v334 = vpop.permute.xlu0 %333
        %337 = vset.pattern.permute.xlu0 0
        %338 = vperm.xlu0 %337, %v170
        %v339 = vpop.permute.xlu0 %338
        %342 = vset.pattern.permute.xlu0 0
        %343 = vperm.xlu0 %342, %v171
        %v344 = vpop.permute.xlu0 %343
        %347 = vset.pattern.permute.xlu0 0
        %348 = vperm.xlu0 %347, %v172
        %v349 = vpop.permute.xlu0 %348
        %352 = vset.pattern.permute.xlu0 0
        %353 = vperm.xlu0 %352, %v173
        %v354 = vpop.permute.xlu0 %353
        %357 = vset.pattern.permute.xlu0 0
        %358 = vperm.xlu0 %357, %v174
        %v359 = vpop.permute.xlu0 %358
        %362 = vset.pattern.permute.xlu0 0
        %363 = vperm.xlu0 %362, %v175
        %v364 = vpop.permute.xlu0 %363
        %367 = vset.pattern.permute.xlu0 0
        %368 = vperm.xlu0 %367, %v176
        %v369 = vpop.permute.xlu0 %368
        %372 = vset.pattern.permute.xlu0 0
        %373 = vperm.xlu0 %372, %v177
        %v374 = vpop.permute.xlu0 %373
        %377 = vset.pattern.permute.xlu0 0
        %378 = vperm.xlu0 %377, %v178
        %v379 = vpop.permute.xlu0 %378
        %382 = vset.pattern.permute.xlu0 0
        %383 = vperm.xlu0 %382, %v179
        %v384 = vpop.permute.xlu0 %383
        %387 = vset.pattern.permute.xlu0 0
        %388 = vperm.xlu0 %387, %v180
        %v389 = vpop.permute.xlu0 %388
        %392 = vset.pattern.permute.xlu0 0
        %393 = vperm.xlu0 %392, %v181
        %v394 = vpop.permute.xlu0 %393
        %397 = vset.pattern.permute.xlu0 0
        %398 = vperm.xlu0 %397, %v182
        %v399 = vpop.permute.xlu0 %398
        %402 = vset.pattern.permute.xlu0 0
        %403 = vperm.xlu0 %402, %v183
        %v404 = vpop.permute.xlu0 %403
        %407 = vset.pattern.permute.xlu0 0
        %408 = vperm.xlu0 %407, %v184
        %v409 = vpop.permute.xlu0 %408
        %412 = vset.pattern.permute.xlu0 0
        %413 = vperm.xlu0 %412, %v185
        %v414 = vpop.permute.xlu0 %413
        %417 = vset.pattern.permute.xlu0 0
        %418 = vperm.xlu0 %417, %v186
        %v419 = vpop.permute.xlu0 %418
        %422 = vset.pattern.permute.xlu0 0
        %423 = vperm.xlu0 %422, %v187
        %v424 = vpop.permute.xlu0 %423
        %427 = vset.pattern.permute.xlu0 0
        %428 = vperm.xlu0 %427, %v188
        %v429 = vpop.permute.xlu0 %428
        %432 = vset.pattern.permute.xlu0 0
        %433 = vperm.xlu0 %432, %v189
        %v434 = vpop.permute.xlu0 %433
        %437 = vset.pattern.permute.xlu0 0
        %438 = vperm.xlu0 %437, %v190
        %v439 = vpop.permute.xlu0 %438
        %442 = vset.pattern.permute.xlu0 0
        %443 = vperm.xlu0 %442, %v191
        %v444 = vpop.permute.xlu0 %443
        %447 = vset.pattern.permute.xlu0 0
        %448 = vperm.xlu0 %447, %v192
        %v449 = vpop.permute.xlu0 %448
        %452 = vset.pattern.permute.xlu0 0
        %453 = vperm.xlu0 %452, %v193
        %v454 = vpop.permute.xlu0 %453
        %457 = vset.pattern.permute.xlu0 0
        %458 = vperm.xlu0 %457, %v194
        %v459 = vpop.permute.xlu0 %458
        %462 = vset.pattern.permute.xlu0 0
        %463 = vperm.xlu0 %462, %v195
        %v464 = vpop.permute.xlu0 %463
        %467 = vset.pattern.permute.xlu0 0
        %468 = vperm.xlu0 %467, %v196
        %v469 = vpop.permute.xlu0 %468
        %472 = vset.pattern.permute.xlu0 0
        %473 = vperm.xlu0 %472, %v197
        %v474 = vpop.permute.xlu0 %473
        %477 = vset.pattern.permute.xlu0 0
        %478 = vperm.xlu0 %477, %v198
        %v479 = vpop.permute.xlu0 %478
        %482 = vset.pattern.permute.xlu0 0
        %483 = vperm.xlu0 %482, %v199
        %v484 = vpop.permute.xlu0 %483
        %487 = vset.pattern.permute.xlu0 0
        %488 = vperm.xlu0 %487, %v200
        %v489 = vpop.permute.xlu0 %488
        %492 = vset.pattern.permute.xlu0 0
        %493 = vperm.xlu0 %492, %v201
        %v494 = vpop.permute.xlu0 %493
        %497 = vset.pattern.permute.xlu0 0
        %498 = vperm.xlu0 %497, %v202
        %v499 = vpop.permute.xlu0 %498
        %502 = vset.pattern.permute.xlu0 0
        %503 = vperm.xlu0 %502, %v203
        %v504 = vpop.permute.xlu0 %503
        %507 = vset.pattern.permute.xlu0 0
        %508 = vperm.xlu0 %507, %v204
        %v509 = vpop.permute.xlu0 %508
        %512 = vset.pattern.permute.xlu0 0
        %513 = vperm.xlu0 %512, %v205
        %v514 = vpop.permute.xlu0 %513
        %517 = vset.pattern.permute.xlu0 0
        %518 = vperm.xlu0 %517, %v206
        %v519 = vpop.permute.xlu0 %518
        %522 = vset.pattern.permute.xlu0 0
        %523 = vperm.xlu0 %522, %v207
        %v524 = vpop.permute.xlu0 %523
        %527 = vset.pattern.permute.xlu0 0
        %528 = vperm.xlu0 %527, %v208
        %v529 = vpop.permute.xlu0 %528
        %v531 = vlaneseq
        %v532 = vshrl.u32 %v531, 7
        %v533 = vsub.s32 0, %v532
        %v534 = vrot.slane %v209, %v533
        %v535 = vmul.f32 %v214, %v534
        %v536 = vmul.f32 %v219, %v534
        %v537 = vmul.f32 %v224, %v534
        %v538 = vmul.f32 %v229, %v534
        %v539 = vmul.f32 %v234, %v534
        %v540 = vmul.f32 %v239, %v534
        %v541 = vmul.f32 %v244, %v534
        %v542 = vmul.f32 %v249, %v534
        %v543 = vmul.f32 %v254, %v534
        %v544 = vmul.f32 %v259, %v534
        %v545 = vmul.f32 %v264, %v534
        %v546 = vmul.f32 %v269, %v534
        %v547 = vmul.f32 %v274, %v534
        %v548 = vmul.f32 %v279, %v534
        %v549 = vmul.f32 %v284, %v534
        %v550 = vmul.f32 %v289, %v534
        %v551 = vmul.f32 %v294, %v534
        %v552 = vmul.f32 %v299, %v534
        %v553 = vmul.f32 %v304, %v534
        %v554 = vmul.f32 %v309, %v534
        %v555 = vmul.f32 %v314, %v534
        %v556 = vmul.f32 %v319, %v534
        %v557 = vmul.f32 %v324, %v534
        %v558 = vmul.f32 %v329, %v534
        %v559 = vmul.f32 %v334, %v534
        %v560 = vmul.f32 %v339, %v534
        %v561 = vmul.f32 %v344, %v534
        %v562 = vmul.f32 %v349, %v534
        %v563 = vmul.f32 %v354, %v534
        %v564 = vmul.f32 %v359, %v534
        %v565 = vmul.f32 %v364, %v534
        %v566 = vmul.f32 %v369, %v534
        %v567 = vmul.f32 %v374, %v534
        %v568 = vmul.f32 %v379, %v534
        %v569 = vmul.f32 %v384, %v534
        %v570 = vmul.f32 %v389, %v534
        %v571 = vmul.f32 %v394, %v534
        %v572 = vmul.f32 %v399, %v534
        %v573 = vmul.f32 %v404, %v534
        %v574 = vmul.f32 %v409, %v534
        %v575 = vmul.f32 %v414, %v534
        %v576 = vmul.f32 %v419, %v534
        %v577 = vmul.f32 %v424, %v534
        %v578 = vmul.f32 %v429, %v534
        %v579 = vmul.f32 %v434, %v534
        %v580 = vmul.f32 %v439, %v534
        %v581 = vmul.f32 %v444, %v534
        %v582 = vmul.f32 %v449, %v534
        %v583 = vmul.f32 %v454, %v534
        %v584 = vmul.f32 %v459, %v534
        %v585 = vmul.f32 %v464, %v534
        %v586 = vmul.f32 %v469, %v534
        %v587 = vmul.f32 %v474, %v534
        %v588 = vmul.f32 %v479, %v534
        %v589 = vmul.f32 %v484, %v534
        %v590 = vmul.f32 %v489, %v534
        %v591 = vmul.f32 %v494, %v534
        %v592 = vmul.f32 %v499, %v534
        %v593 = vmul.f32 %v504, %v534
        %v594 = vmul.f32 %v509, %v534
        %v595 = vmul.f32 %v514, %v534
        %v596 = vmul.f32 %v519, %v534
        %v597 = vmul.f32 %v524, %v534
        %v598 = vmul.f32 %v529, %v534
        %v599 = vlaneseq
        %v600 = vshrl.u32 %v599, 7
        %v601 = vsub.s32 0, %v600
        %v602 = vrot.slane %v210, %v601
        %v603 = vadd.f32 %v535, %v602
        %v604 = vadd.f32 %v536, %v602
        %v605 = vadd.f32 %v537, %v602
        %v606 = vadd.f32 %v538, %v602
        %v607 = vadd.f32 %v539, %v602
        %v608 = vadd.f32 %v540, %v602
        %v609 = vadd.f32 %v541, %v602
        %v610 = vadd.f32 %v542, %v602
        %v611 = vadd.f32 %v543, %v602
        %v612 = vadd.f32 %v544, %v602
        %v613 = vadd.f32 %v545, %v602
        %v614 = vadd.f32 %v546, %v602
        %v615 = vadd.f32 %v547, %v602
        %v616 = vadd.f32 %v548, %v602
        %v617 = vadd.f32 %v549, %v602
        %v618 = vadd.f32 %v550, %v602
        %v619 = vadd.f32 %v551, %v602
        %v620 = vadd.f32 %v552, %v602
        %v621 = vadd.f32 %v553, %v602
        %v622 = vadd.f32 %v554, %v602
        %v623 = vadd.f32 %v555, %v602
        %v624 = vadd.f32 %v556, %v602
        %v625 = vadd.f32 %v557, %v602
        %v626 = vadd.f32 %v558, %v602
        %v627 = vadd.f32 %v559, %v602
        %v628 = vadd.f32 %v560, %v602
        %v629 = vadd.f32 %v561, %v602
        %v630 = vadd.f32 %v562, %v602
        %v631 = vadd.f32 %v563, %v602
        %v632 = vadd.f32 %v564, %v602
        %v633 = vadd.f32 %v565, %v602
        %v634 = vadd.f32 %v566, %v602
        %v635 = vadd.f32 %v567, %v602
        %v636 = vadd.f32 %v568, %v602
        %v637 = vadd.f32 %v569, %v602
        %v638 = vadd.f32 %v570, %v602
        %v639 = vadd.f32 %v571, %v602
        %v640 = vadd.f32 %v572, %v602
        %v641 = vadd.f32 %v573, %v602
        %v642 = vadd.f32 %v574, %v602
        %v643 = vadd.f32 %v575, %v602
        %v644 = vadd.f32 %v576, %v602
        %v645 = vadd.f32 %v577, %v602
        %v646 = vadd.f32 %v578, %v602
        %v647 = vadd.f32 %v579, %v602
        %v648 = vadd.f32 %v580, %v602
        %v649 = vadd.f32 %v581, %v602
        %v650 = vadd.f32 %v582, %v602
        %v651 = vadd.f32 %v583, %v602
        %v652 = vadd.f32 %v584, %v602
        %v653 = vadd.f32 %v585, %v602
        %v654 = vadd.f32 %v586, %v602
        %v655 = vadd.f32 %v587, %v602
        %v656 = vadd.f32 %v588, %v602
        %v657 = vadd.f32 %v589, %v602
        %v658 = vadd.f32 %v590, %v602
        %v659 = vadd.f32 %v591, %v602
        %v660 = vadd.f32 %v592, %v602
        %v661 = vadd.f32 %v593, %v602
        %v662 = vadd.f32 %v594, %v602
        %v663 = vadd.f32 %v595, %v602
        %v664 = vadd.f32 %v596, %v602
        %v665 = vadd.f32 %v597, %v602
        %v666 = vadd.f32 %v598, %v602
        %v667 = vand.u32 2147483647, %v603
        %vm668 = vcmp.le.f32.partialorder %v667, 0.7853982
        %vm669 = vcmp.lt.s32.totalorder %v603, 0
        %v670 = vand.u32 %v603, 2139095040
        %v671 = vshrl.u32 %v670, 23
        %v672 = vsub.s32 %v671, 127
        %v673 = vand.u32 2147483647, %v603
        %v674 = vand.u32 %v673, 8388607
        %v675 = vor.u32 %v674, 8388608
        %v676 = vsub.s32 0, %v675
        %v677 = vadd.s32 %v672, 1
        %vm678 = vcmp.gt.s32.totalorder %v677, 0
        %v679 = vsel %vm678, %v677, 0
        %v680 = vshrl.u32 %v679, 5
        %v681 = vand.u32 %v679, 31
        %v682 = vsub.s32 32, %v681
        %v683 = vshrl.u32 683565275, %v682
        %v684 = vshll.u32 683565275, %v681
        %v685 = vshrl.u32 2475754826, %v682
        %v686 = vor.u32 %v684, %v685
        %v687 = vshll.u32 2475754826, %v681
        %v688 = vshrl.u32 2131351028, %v682
        %v689 = vor.u32 %v687, %v688
        %v690 = vshll.u32 2131351028, %v681
        %v691 = vshrl.u32 2102212464, %v682
        %v692 = vor.u32 %v690, %v691
        %v693 = vshll.u32 2102212464, %v681
        %v694 = vshrl.u32 920167782, %v682
        %v695 = vor.u32 %v693, %v694
        %v696 = vshll.u32 920167782, %v681
        %v697 = vshrl.u32 1326507024, %v682
        %v698 = vor.u32 %v696, %v697
        %vm699 = vcmp.lt.s32.totalorder %v680, 1
        %vm700 = vcmp.lt.s32.totalorder %v680, 2
        %vm701 = vcmp.lt.s32.totalorder %v680, 3
        %vm702 = vcmp.lt.s32.totalorder %v680, 4
        %v703 = vsel %vm699, %v683, %v686
        %v704 = vsel %vm702, %v692, 2102212464
        %v705 = vsel %vm701, %v689, %v704
        %v706 = vsel %vm700, %v703, %v705
        %v707 = vsel %vm699, %v686, %v689
        %v708 = vsel %vm702, %v695, 920167782
        %v709 = vsel %vm701, %v692, %v708
        %v710 = vsel %vm700, %v707, %v709
        %v711 = vsel %vm699, %v689, %v692
        %v712 = vsel %vm702, %v698, 1326507024
        %v713 = vsel %vm701, %v695, %v712
        %v714 = vsel %vm700, %v711, %v713
        %v715 = vshll.u32 %v675, 8
        %v716 = vmul.u32.u64.compose %v715, %v714
        %v717 = vextract.low.u32 %v716
        %v718 = vextract.high.u32 %v716
        %v719 = vmul.u32.u64.compose %v715, %v710
        %v720 = vextract.low.u32 %v719
        %v721 = vextract.high.u32 %v719
        %v722 = vmul.u32 %v715, %v706
        %v723 = vadd.s32 %v718, %v720
        %vm724 = vc.u32 %v718, %v720
        %v725 = vadd.s32 %v721, 1
        %v726 = vsel %vm724, %v725, %v721
        %v727 = vadd.s32 %v722, %v726
        %v728 = vadd.s32 %v727, 536870912
        %v729 = vshrl.u32 %v728, 30
        %v730 = vshll.u32 %v729, 30
        %v731 = vsub.s32 %v727, %v730
        %vm732 = vcmp.lt.s32.totalorder %v731, 0
        %v733 = vsub.s32 0, %v731
        %v734 = vsel %vm732, %v733, %v731
        %v735 = vclz %v734
        %v736 = vsub.s32 %v735, 2
        %vm737 = vcmp.gt.s32.totalorder 0, %v736
        %v738 = vsel %vm737, 0, %v736
        %v739 = vsub.s32 32, %v738
        %v740 = vshll.u32 %v731, %v738
        %v741 = vshrl.u32 %v723, %v739
        %v742 = vor.u32 %v740, %v741
        %v743 = vsub.s32 4294967266, %v738
        %v744 = vadd.s32 %v743, 127
        %v745 = vshll.u32 %v744, 23
        %v746 = vor.u32 4788187, %v745
        %v747 = vand.u32 2147483647, %v746
        %v749 = vcvt.s32.f32 %v742
        %v750 = vmul.f32 %v749, %v747
        %v751 = vxor.u32 %v750, 2147483648
        %v752 = vsel %vm669, %v751, %v750
        %v753 = vsub.s32 4, %v729
        %v754 = vsel %vm669, %v753, %v729
        %v755 = vsel %vm668, %v603, %v752
        %v756 = vsel %vm668, 0, %v754
        %v757 = vcosq.f32.pop %v755
        %v758 = vsinq.f32.pop %v755
        %vm759 = vweird.f32 %v603
        %v760 = vand.u32 %v756, 3
        %vm761 = vcmp.lt.s32.totalorder %v760, 2
        %vm762 = vcmp.eq.s32.totalorder %v760, 0
        %v763 = vxor.u32 %v758, 2147483648
        %v764 = vsel %vm762, %v757, %v763
        %vm765 = vcmp.eq.s32.totalorder %v760, 2
        %v766 = vxor.u32 %v757, 2147483648
        %v767 = vsel %vm765, %v766, %v758
        %v768 = vsel %vm761, %v764, %v767
        %v769 = vsel %vm759, nan, %v768
        %v770 = vand.u32 2147483647, %v604
        %vm771 = vcmp.le.f32.partialorder %v770, 0.7853982
        %vm772 = vcmp.lt.s32.totalorder %v604, 0
        %v773 = vand.u32 %v604, 2139095040
        %v774 = vshrl.u32 %v773, 23
        %v775 = vsub.s32 %v774, 127
        %v776 = vand.u32 2147483647, %v604
        %v777 = vand.u32 %v776, 8388607
        %v778 = vor.u32 %v777, 8388608
        %v779 = vsub.s32 0, %v778
        %v780 = vadd.s32 %v775, 1
        %vm781 = vcmp.gt.s32.totalorder %v780, 0
        %v782 = vsel %vm781, %v780, 0
        %v783 = vshrl.u32 %v782, 5
        %v784 = vand.u32 %v782, 31
        %v785 = vsub.s32 32, %v784
        %v786 = vshrl.u32 683565275, %v785
        %v787 = vshll.u32 683565275, %v784
        %v788 = vshrl.u32 2475754826, %v785
        %v789 = vor.u32 %v787, %v788
        %v790 = vshll.u32 2475754826, %v784
        %v791 = vshrl.u32 2131351028, %v785
        %v792 = vor.u32 %v790, %v791
        %v793 = vshll.u32 2131351028, %v784
        %v794 = vshrl.u32 2102212464, %v785
        %v795 = vor.u32 %v793, %v794
        %v796 = vshll.u32 2102212464, %v784
        %v797 = vshrl.u32 920167782, %v785
        %v798 = vor.u32 %v796, %v797
        %v799 = vshll.u32 920167782, %v784
        %v800 = vshrl.u32 1326507024, %v785
        %v801 = vor.u32 %v799, %v800
        %vm802 = vcmp.lt.s32.totalorder %v783, 1
        %vm803 = vcmp.lt.s32.totalorder %v783, 2
        %vm804 = vcmp.lt.s32.totalorder %v783, 3
        %vm805 = vcmp.lt.s32.totalorder %v783, 4
        %v806 = vsel %vm802, %v786, %v789
        %v807 = vsel %vm805, %v795, 2102212464
        %v808 = vsel %vm804, %v792, %v807
        %v809 = vsel %vm803, %v806, %v808
        %v810 = vsel %vm802, %v789, %v792
        %v811 = vsel %vm805, %v798, 920167782
        %v812 = vsel %vm804, %v795, %v811
        %v813 = vsel %vm803, %v810, %v812
        %v814 = vsel %vm802, %v792, %v795
        %v815 = vsel %vm805, %v801, 1326507024
        %v816 = vsel %vm804, %v798, %v815
        %v817 = vsel %vm803, %v814, %v816
        %v818 = vshll.u32 %v778, 8
        %v819 = vmul.u32.u64.compose %v818, %v817
        %v820 = vextract.low.u32 %v819
        %v821 = vextract.high.u32 %v819
        %v822 = vmul.u32.u64.compose %v818, %v813
        %v823 = vextract.low.u32 %v822
        %v824 = vextract.high.u32 %v822
        %v825 = vmul.u32 %v818, %v809
        %v826 = vadd.s32 %v821, %v823
        %vm827 = vc.u32 %v821, %v823
        %v828 = vadd.s32 %v824, 1
        %v829 = vsel %vm827, %v828, %v824
        %v830 = vadd.s32 %v825, %v829
        %v831 = vadd.s32 %v830, 536870912
        %v832 = vshrl.u32 %v831, 30
        %v833 = vshll.u32 %v832, 30
        %v834 = vsub.s32 %v830, %v833
        %vm835 = vcmp.lt.s32.totalorder %v834, 0
        %v836 = vsub.s32 0, %v834
        %v837 = vsel %vm835, %v836, %v834
        %v838 = vclz %v837
        %v839 = vsub.s32 %v838, 2
        %vm840 = vcmp.gt.s32.totalorder 0, %v839
        %v841 = vsel %vm840, 0, %v839
        %v842 = vsub.s32 32, %v841
        %v843 = vshll.u32 %v834, %v841
        %v844 = vshrl.u32 %v826, %v842
        %v845 = vor.u32 %v843, %v844
        %v846 = vsub.s32 4294967266, %v841
        %v847 = vadd.s32 %v846, 127
        %v848 = vshll.u32 %v847, 23
        %v849 = vor.u32 4788187, %v848
        %v850 = vand.u32 2147483647, %v849
        %v852 = vcvt.s32.f32 %v845
        %v853 = vmul.f32 %v852, %v850
        %v854 = vxor.u32 %v853, 2147483648
        %v855 = vsel %vm772, %v854, %v853
        %v856 = vsub.s32 4, %v832
        %v857 = vsel %vm772, %v856, %v832
        %v858 = vsel %vm771, %v604, %v855
        %v859 = vsel %vm771, 0, %v857
        %v860 = vcosq.f32.pop %v858
        %v861 = vsinq.f32.pop %v858
        %vm862 = vweird.f32 %v604
        %v863 = vand.u32 %v859, 3
        %vm864 = vcmp.lt.s32.totalorder %v863, 2
        %vm865 = vcmp.eq.s32.totalorder %v863, 0
        %v866 = vxor.u32 %v861, 2147483648
        %v867 = vsel %vm865, %v860, %v866
        %vm868 = vcmp.eq.s32.totalorder %v863, 2
        %v869 = vxor.u32 %v860, 2147483648
        %v870 = vsel %vm868, %v869, %v861
        %v871 = vsel %vm864, %v867, %v870
        %v872 = vsel %vm862, nan, %v871
        %v873 = vand.u32 2147483647, %v605
        %vm874 = vcmp.le.f32.partialorder %v873, 0.7853982
        %vm875 = vcmp.lt.s32.totalorder %v605, 0
        %v876 = vand.u32 %v605, 2139095040
        %v877 = vshrl.u32 %v876, 23
        %v878 = vsub.s32 %v877, 127
        %v879 = vand.u32 2147483647, %v605
        %v880 = vand.u32 %v879, 8388607
        %v881 = vor.u32 %v880, 8388608
        %v882 = vsub.s32 0, %v881
        %v883 = vadd.s32 %v878, 1
        %vm884 = vcmp.gt.s32.totalorder %v883, 0
        %v885 = vsel %vm884, %v883, 0
        %v886 = vshrl.u32 %v885, 5
        %v887 = vand.u32 %v885, 31
        %v888 = vsub.s32 32, %v887
        %v889 = vshrl.u32 683565275, %v888
        %v890 = vshll.u32 683565275, %v887
        %v891 = vshrl.u32 2475754826, %v888
        %v892 = vor.u32 %v890, %v891
        %v893 = vshll.u32 2475754826, %v887
        %v894 = vshrl.u32 2131351028, %v888
        %v895 = vor.u32 %v893, %v894
        %v896 = vshll.u32 2131351028, %v887
        %v897 = vshrl.u32 2102212464, %v888
        %v898 = vor.u32 %v896, %v897
        %v899 = vshll.u32 2102212464, %v887
        %v900 = vshrl.u32 920167782, %v888
        %v901 = vor.u32 %v899, %v900
        %v902 = vshll.u32 920167782, %v887
        %v903 = vshrl.u32 1326507024, %v888
        %v904 = vor.u32 %v902, %v903
        %vm905 = vcmp.lt.s32.totalorder %v886, 1
        %vm906 = vcmp.lt.s32.totalorder %v886, 2
        %vm907 = vcmp.lt.s32.totalorder %v886, 3
        %vm908 = vcmp.lt.s32.totalorder %v886, 4
        %v909 = vsel %vm905, %v889, %v892
        %v910 = vsel %vm908, %v898, 2102212464
        %v911 = vsel %vm907, %v895, %v910
        %v912 = vsel %vm906, %v909, %v911
        %v913 = vsel %vm905, %v892, %v895
        %v914 = vsel %vm908, %v901, 920167782
        %v915 = vsel %vm907, %v898, %v914
        %v916 = vsel %vm906, %v913, %v915
        %v917 = vsel %vm905, %v895, %v898
        %v918 = vsel %vm908, %v904, 1326507024
        %v919 = vsel %vm907, %v901, %v918
        %v920 = vsel %vm906, %v917, %v919
        %v921 = vshll.u32 %v881, 8
        %v922 = vmul.u32.u64.compose %v921, %v920
        %v923 = vextract.low.u32 %v922
        %v924 = vextract.high.u32 %v922
        %v925 = vmul.u32.u64.compose %v921, %v916
        %v926 = vextract.low.u32 %v925
        %v927 = vextract.high.u32 %v925
        %v928 = vmul.u32 %v921, %v912
        %v929 = vadd.s32 %v924, %v926
        %vm930 = vc.u32 %v924, %v926
        %v931 = vadd.s32 %v927, 1
        %v932 = vsel %vm930, %v931, %v927
        %v933 = vadd.s32 %v928, %v932
        %v934 = vadd.s32 %v933, 536870912
        %v935 = vshrl.u32 %v934, 30
        %v936 = vshll.u32 %v935, 30
        %v937 = vsub.s32 %v933, %v936
        %vm938 = vcmp.lt.s32.totalorder %v937, 0
        %v939 = vsub.s32 0, %v937
        %v940 = vsel %vm938, %v939, %v937
        %v941 = vclz %v940
        %v942 = vsub.s32 %v941, 2
        %vm943 = vcmp.gt.s32.totalorder 0, %v942
        %v944 = vsel %vm943, 0, %v942
        %v945 = vsub.s32 32, %v944
        %v946 = vshll.u32 %v937, %v944
        %v947 = vshrl.u32 %v929, %v945
        %v948 = vor.u32 %v946, %v947
        %v949 = vsub.s32 4294967266, %v944
        %v950 = vadd.s32 %v949, 127
        %v951 = vshll.u32 %v950, 23
        %v952 = vor.u32 4788187, %v951
        %v953 = vand.u32 2147483647, %v952
        %v955 = vcvt.s32.f32 %v948
        %v956 = vmul.f32 %v955, %v953
        %v957 = vxor.u32 %v956, 2147483648
        %v958 = vsel %vm875, %v957, %v956
        %v959 = vsub.s32 4, %v935
        %v960 = vsel %vm875, %v959, %v935
        %v961 = vsel %vm874, %v605, %v958
        %v962 = vsel %vm874, 0, %v960
        %v963 = vcosq.f32.pop %v961
        %v964 = vsinq.f32.pop %v961
        %vm965 = vweird.f32 %v605
        %v966 = vand.u32 %v962, 3
        %vm967 = vcmp.lt.s32.totalorder %v966, 2
        %vm968 = vcmp.eq.s32.totalorder %v966, 0
        %v969 = vxor.u32 %v964, 2147483648
        %v970 = vsel %vm968, %v963, %v969
        %vm971 = vcmp.eq.s32.totalorder %v966, 2
        %v972 = vxor.u32 %v963, 2147483648
        %v973 = vsel %vm971, %v972, %v964
        %v974 = vsel %vm967, %v970, %v973
        %v975 = vsel %vm965, nan, %v974
        %v976 = vand.u32 2147483647, %v606
        %vm977 = vcmp.le.f32.partialorder %v976, 0.7853982
        %vm978 = vcmp.lt.s32.totalorder %v606, 0
        %v979 = vand.u32 %v606, 2139095040
        %v980 = vshrl.u32 %v979, 23
        %v981 = vsub.s32 %v980, 127
        %v982 = vand.u32 2147483647, %v606
        %v983 = vand.u32 %v982, 8388607
        %v984 = vor.u32 %v983, 8388608
        %v985 = vsub.s32 0, %v984
        %v986 = vadd.s32 %v981, 1
        %vm987 = vcmp.gt.s32.totalorder %v986, 0
        %v988 = vsel %vm987, %v986, 0
        %v989 = vshrl.u32 %v988, 5
        %v990 = vand.u32 %v988, 31
        %v991 = vsub.s32 32, %v990
        %v992 = vshrl.u32 683565275, %v991
        %v993 = vshll.u32 683565275, %v990
        %v994 = vshrl.u32 2475754826, %v991
        %v995 = vor.u32 %v993, %v994
        %v996 = vshll.u32 2475754826, %v990
        %v997 = vshrl.u32 2131351028, %v991
        %v998 = vor.u32 %v996, %v997
        %v999 = vshll.u32 2131351028, %v990
        %v1000 = vshrl.u32 2102212464, %v991
        %v1001 = vor.u32 %v999, %v1000
        %v1002 = vshll.u32 2102212464, %v990
        %v1003 = vshrl.u32 920167782, %v991
        %v1004 = vor.u32 %v1002, %v1003
        %v1005 = vshll.u32 920167782, %v990
        %v1006 = vshrl.u32 1326507024, %v991
        %v1007 = vor.u32 %v1005, %v1006
        %vm1008 = vcmp.lt.s32.totalorder %v989, 1
        %vm1009 = vcmp.lt.s32.totalorder %v989, 2
        %vm1010 = vcmp.lt.s32.totalorder %v989, 3
        %vm1011 = vcmp.lt.s32.totalorder %v989, 4
        %v1012 = vsel %vm1008, %v992, %v995
        %v1013 = vsel %vm1011, %v1001, 2102212464
        %v1014 = vsel %vm1010, %v998, %v1013
        %v1015 = vsel %vm1009, %v1012, %v1014
        %v1016 = vsel %vm1008, %v995, %v998
        %v1017 = vsel %vm1011, %v1004, 920167782
        %v1018 = vsel %vm1010, %v1001, %v1017
        %v1019 = vsel %vm1009, %v1016, %v1018
        %v1020 = vsel %vm1008, %v998, %v1001
        %v1021 = vsel %vm1011, %v1007, 1326507024
        %v1022 = vsel %vm1010, %v1004, %v1021
        %v1023 = vsel %vm1009, %v1020, %v1022
        %v1024 = vshll.u32 %v984, 8
        %v1025 = vmul.u32.u64.compose %v1024, %v1023
        %v1026 = vextract.low.u32 %v1025
        %v1027 = vextract.high.u32 %v1025
        %v1028 = vmul.u32.u64.compose %v1024, %v1019
        %v1029 = vextract.low.u32 %v1028
        %v1030 = vextract.high.u32 %v1028
        %v1031 = vmul.u32 %v1024, %v1015
        %v1032 = vadd.s32 %v1027, %v1029
        %vm1033 = vc.u32 %v1027, %v1029
        %v1034 = vadd.s32 %v1030, 1
        %v1035 = vsel %vm1033, %v1034, %v1030
        %v1036 = vadd.s32 %v1031, %v1035
        %v1037 = vadd.s32 %v1036, 536870912
        %v1038 = vshrl.u32 %v1037, 30
        %v1039 = vshll.u32 %v1038, 30
        %v1040 = vsub.s32 %v1036, %v1039
        %vm1041 = vcmp.lt.s32.totalorder %v1040, 0
        %v1042 = vsub.s32 0, %v1040
        %v1043 = vsel %vm1041, %v1042, %v1040
        %v1044 = vclz %v1043
        %v1045 = vsub.s32 %v1044, 2
        %vm1046 = vcmp.gt.s32.totalorder 0, %v1045
        %v1047 = vsel %vm1046, 0, %v1045
        %v1048 = vsub.s32 32, %v1047
        %v1049 = vshll.u32 %v1040, %v1047
        %v1050 = vshrl.u32 %v1032, %v1048
        %v1051 = vor.u32 %v1049, %v1050
        %v1052 = vsub.s32 4294967266, %v1047
        %v1053 = vadd.s32 %v1052, 127
        %v1054 = vshll.u32 %v1053, 23
        %v1055 = vor.u32 4788187, %v1054
        %v1056 = vand.u32 2147483647, %v1055
        %v1058 = vcvt.s32.f32 %v1051
        %v1059 = vmul.f32 %v1058, %v1056
        %v1060 = vxor.u32 %v1059, 2147483648
        %v1061 = vsel %vm978, %v1060, %v1059
        %v1062 = vsub.s32 4, %v1038
        %v1063 = vsel %vm978, %v1062, %v1038
        %v1064 = vsel %vm977, %v606, %v1061
        %v1065 = vsel %vm977, 0, %v1063
        %v1066 = vcosq.f32.pop %v1064
        %v1067 = vsinq.f32.pop %v1064
        %vm1068 = vweird.f32 %v606
        %v1069 = vand.u32 %v1065, 3
        %vm1070 = vcmp.lt.s32.totalorder %v1069, 2
        %vm1071 = vcmp.eq.s32.totalorder %v1069, 0
        %v1072 = vxor.u32 %v1067, 2147483648
        %v1073 = vsel %vm1071, %v1066, %v1072
        %vm1074 = vcmp.eq.s32.totalorder %v1069, 2
        %v1075 = vxor.u32 %v1066, 2147483648
        %v1076 = vsel %vm1074, %v1075, %v1067
        %v1077 = vsel %vm1070, %v1073, %v1076
        %v1078 = vsel %vm1068, nan, %v1077
        %v1079 = vand.u32 2147483647, %v607
        %vm1080 = vcmp.le.f32.partialorder %v1079, 0.7853982
        %vm1081 = vcmp.lt.s32.totalorder %v607, 0
        %v1082 = vand.u32 %v607, 2139095040
        %v1083 = vshrl.u32 %v1082, 23
        %v1084 = vsub.s32 %v1083, 127
        %v1085 = vand.u32 2147483647, %v607
        %v1086 = vand.u32 %v1085, 8388607
        %v1087 = vor.u32 %v1086, 8388608
        %v1088 = vsub.s32 0, %v1087
        %v1089 = vadd.s32 %v1084, 1
        %vm1090 = vcmp.gt.s32.totalorder %v1089, 0
        %v1091 = vsel %vm1090, %v1089, 0
        %v1092 = vshrl.u32 %v1091, 5
        %v1093 = vand.u32 %v1091, 31
        %v1094 = vsub.s32 32, %v1093
        %v1095 = vshrl.u32 683565275, %v1094
        %v1096 = vshll.u32 683565275, %v1093
        %v1097 = vshrl.u32 2475754826, %v1094
        %v1098 = vor.u32 %v1096, %v1097
        %v1099 = vshll.u32 2475754826, %v1093
        %v1100 = vshrl.u32 2131351028, %v1094
        %v1101 = vor.u32 %v1099, %v1100
        %v1102 = vshll.u32 2131351028, %v1093
        %v1103 = vshrl.u32 2102212464, %v1094
        %v1104 = vor.u32 %v1102, %v1103
        %v1105 = vshll.u32 2102212464, %v1093
        %v1106 = vshrl.u32 920167782, %v1094
        %v1107 = vor.u32 %v1105, %v1106
        %v1108 = vshll.u32 920167782, %v1093
        %v1109 = vshrl.u32 1326507024, %v1094
        %v1110 = vor.u32 %v1108, %v1109
        %vm1111 = vcmp.lt.s32.totalorder %v1092, 1
        %vm1112 = vcmp.lt.s32.totalorder %v1092, 2
        %vm1113 = vcmp.lt.s32.totalorder %v1092, 3
        %vm1114 = vcmp.lt.s32.totalorder %v1092, 4
        %v1115 = vsel %vm1111, %v1095, %v1098
        %v1116 = vsel %vm1114, %v1104, 2102212464
        %v1117 = vsel %vm1113, %v1101, %v1116
        %v1118 = vsel %vm1112, %v1115, %v1117
        %v1119 = vsel %vm1111, %v1098, %v1101
        %v1120 = vsel %vm1114, %v1107, 920167782
        %v1121 = vsel %vm1113, %v1104, %v1120
        %v1122 = vsel %vm1112, %v1119, %v1121
        %v1123 = vsel %vm1111, %v1101, %v1104
        %v1124 = vsel %vm1114, %v1110, 1326507024
        %v1125 = vsel %vm1113, %v1107, %v1124
        %v1126 = vsel %vm1112, %v1123, %v1125
        %v1127 = vshll.u32 %v1087, 8
        %v1128 = vmul.u32.u64.compose %v1127, %v1126
        %v1129 = vextract.low.u32 %v1128
        %v1130 = vextract.high.u32 %v1128
        %v1131 = vmul.u32.u64.compose %v1127, %v1122
        %v1132 = vextract.low.u32 %v1131
        %v1133 = vextract.high.u32 %v1131
        %v1134 = vmul.u32 %v1127, %v1118
        %v1135 = vadd.s32 %v1130, %v1132
        %vm1136 = vc.u32 %v1130, %v1132
        %v1137 = vadd.s32 %v1133, 1
        %v1138 = vsel %vm1136, %v1137, %v1133
        %v1139 = vadd.s32 %v1134, %v1138
        %v1140 = vadd.s32 %v1139, 536870912
        %v1141 = vshrl.u32 %v1140, 30
        %v1142 = vshll.u32 %v1141, 30
        %v1143 = vsub.s32 %v1139, %v1142
        %vm1144 = vcmp.lt.s32.totalorder %v1143, 0
        %v1145 = vsub.s32 0, %v1143
        %v1146 = vsel %vm1144, %v1145, %v1143
        %v1147 = vclz %v1146
        %v1148 = vsub.s32 %v1147, 2
        %vm1149 = vcmp.gt.s32.totalorder 0, %v1148
        %v1150 = vsel %vm1149, 0, %v1148
        %v1151 = vsub.s32 32, %v1150
        %v1152 = vshll.u32 %v1143, %v1150
        %v1153 = vshrl.u32 %v1135, %v1151
        %v1154 = vor.u32 %v1152, %v1153
        %v1155 = vsub.s32 4294967266, %v1150
        %v1156 = vadd.s32 %v1155, 127
        %v1157 = vshll.u32 %v1156, 23
        %v1158 = vor.u32 4788187, %v1157
        %v1159 = vand.u32 2147483647, %v1158
        %v1161 = vcvt.s32.f32 %v1154
        %v1162 = vmul.f32 %v1161, %v1159
        %v1163 = vxor.u32 %v1162, 2147483648
        %v1164 = vsel %vm1081, %v1163, %v1162
        %v1165 = vsub.s32 4, %v1141
        %v1166 = vsel %vm1081, %v1165, %v1141
        %v1167 = vsel %vm1080, %v607, %v1164
        %v1168 = vsel %vm1080, 0, %v1166
        %v1169 = vcosq.f32.pop %v1167
        %v1170 = vsinq.f32.pop %v1167
        %vm1171 = vweird.f32 %v607
        %v1172 = vand.u32 %v1168, 3
        %vm1173 = vcmp.lt.s32.totalorder %v1172, 2
        %vm1174 = vcmp.eq.s32.totalorder %v1172, 0
        %v1175 = vxor.u32 %v1170, 2147483648
        %v1176 = vsel %vm1174, %v1169, %v1175
        %vm1177 = vcmp.eq.s32.totalorder %v1172, 2
        %v1178 = vxor.u32 %v1169, 2147483648
        %v1179 = vsel %vm1177, %v1178, %v1170
        %v1180 = vsel %vm1173, %v1176, %v1179
        %v1181 = vsel %vm1171, nan, %v1180
        %v1182 = vand.u32 2147483647, %v608
        %vm1183 = vcmp.le.f32.partialorder %v1182, 0.7853982
        %vm1184 = vcmp.lt.s32.totalorder %v608, 0
        %v1185 = vand.u32 %v608, 2139095040
        %v1186 = vshrl.u32 %v1185, 23
        %v1187 = vsub.s32 %v1186, 127
        %v1188 = vand.u32 2147483647, %v608
        %v1189 = vand.u32 %v1188, 8388607
        %v1190 = vor.u32 %v1189, 8388608
        %v1191 = vsub.s32 0, %v1190
        %v1192 = vadd.s32 %v1187, 1
        %vm1193 = vcmp.gt.s32.totalorder %v1192, 0
        %v1194 = vsel %vm1193, %v1192, 0
        %v1195 = vshrl.u32 %v1194, 5
        %v1196 = vand.u32 %v1194, 31
        %v1197 = vsub.s32 32, %v1196
        %v1198 = vshrl.u32 683565275, %v1197
        %v1199 = vshll.u32 683565275, %v1196
        %v1200 = vshrl.u32 2475754826, %v1197
        %v1201 = vor.u32 %v1199, %v1200
        %v1202 = vshll.u32 2475754826, %v1196
        %v1203 = vshrl.u32 2131351028, %v1197
        %v1204 = vor.u32 %v1202, %v1203
        %v1205 = vshll.u32 2131351028, %v1196
        %v1206 = vshrl.u32 2102212464, %v1197
        %v1207 = vor.u32 %v1205, %v1206
        %v1208 = vshll.u32 2102212464, %v1196
        %v1209 = vshrl.u32 920167782, %v1197
        %v1210 = vor.u32 %v1208, %v1209
        %v1211 = vshll.u32 920167782, %v1196
        %v1212 = vshrl.u32 1326507024, %v1197
        %v1213 = vor.u32 %v1211, %v1212
        %vm1214 = vcmp.lt.s32.totalorder %v1195, 1
        %vm1215 = vcmp.lt.s32.totalorder %v1195, 2
        %vm1216 = vcmp.lt.s32.totalorder %v1195, 3
        %vm1217 = vcmp.lt.s32.totalorder %v1195, 4
        %v1218 = vsel %vm1214, %v1198, %v1201
        %v1219 = vsel %vm1217, %v1207, 2102212464
        %v1220 = vsel %vm1216, %v1204, %v1219
        %v1221 = vsel %vm1215, %v1218, %v1220
        %v1222 = vsel %vm1214, %v1201, %v1204
        %v1223 = vsel %vm1217, %v1210, 920167782
        %v1224 = vsel %vm1216, %v1207, %v1223
        %v1225 = vsel %vm1215, %v1222, %v1224
        %v1226 = vsel %vm1214, %v1204, %v1207
        %v1227 = vsel %vm1217, %v1213, 1326507024
        %v1228 = vsel %vm1216, %v1210, %v1227
        %v1229 = vsel %vm1215, %v1226, %v1228
        %v1230 = vshll.u32 %v1190, 8
        %v1231 = vmul.u32.u64.compose %v1230, %v1229
        %v1232 = vextract.low.u32 %v1231
        %v1233 = vextract.high.u32 %v1231
        %v1234 = vmul.u32.u64.compose %v1230, %v1225
        %v1235 = vextract.low.u32 %v1234
        %v1236 = vextract.high.u32 %v1234
        %v1237 = vmul.u32 %v1230, %v1221
        %v1238 = vadd.s32 %v1233, %v1235
        %vm1239 = vc.u32 %v1233, %v1235
        %v1240 = vadd.s32 %v1236, 1
        %v1241 = vsel %vm1239, %v1240, %v1236
        %v1242 = vadd.s32 %v1237, %v1241
        %v1243 = vadd.s32 %v1242, 536870912
        %v1244 = vshrl.u32 %v1243, 30
        %v1245 = vshll.u32 %v1244, 30
        %v1246 = vsub.s32 %v1242, %v1245
        %vm1247 = vcmp.lt.s32.totalorder %v1246, 0
        %v1248 = vsub.s32 0, %v1246
        %v1249 = vsel %vm1247, %v1248, %v1246
        %v1250 = vclz %v1249
        %v1251 = vsub.s32 %v1250, 2
        %vm1252 = vcmp.gt.s32.totalorder 0, %v1251
        %v1253 = vsel %vm1252, 0, %v1251
        %v1254 = vsub.s32 32, %v1253
        %v1255 = vshll.u32 %v1246, %v1253
        %v1256 = vshrl.u32 %v1238, %v1254
        %v1257 = vor.u32 %v1255, %v1256
        %v1258 = vsub.s32 4294967266, %v1253
        %v1259 = vadd.s32 %v1258, 127
        %v1260 = vshll.u32 %v1259, 23
        %v1261 = vor.u32 4788187, %v1260
        %v1262 = vand.u32 2147483647, %v1261
        %v1264 = vcvt.s32.f32 %v1257
        %v1265 = vmul.f32 %v1264, %v1262
        %v1266 = vxor.u32 %v1265, 2147483648
        %v1267 = vsel %vm1184, %v1266, %v1265
        %v1268 = vsub.s32 4, %v1244
        %v1269 = vsel %vm1184, %v1268, %v1244
        %v1270 = vsel %vm1183, %v608, %v1267
        %v1271 = vsel %vm1183, 0, %v1269
        %v1272 = vcosq.f32.pop %v1270
        %v1273 = vsinq.f32.pop %v1270
        %vm1274 = vweird.f32 %v608
        %v1275 = vand.u32 %v1271, 3
        %vm1276 = vcmp.lt.s32.totalorder %v1275, 2
        %vm1277 = vcmp.eq.s32.totalorder %v1275, 0
        %v1278 = vxor.u32 %v1273, 2147483648
        %v1279 = vsel %vm1277, %v1272, %v1278
        %vm1280 = vcmp.eq.s32.totalorder %v1275, 2
        %v1281 = vxor.u32 %v1272, 2147483648
        %v1282 = vsel %vm1280, %v1281, %v1273
        %v1283 = vsel %vm1276, %v1279, %v1282
        %v1284 = vsel %vm1274, nan, %v1283
        %v1285 = vand.u32 2147483647, %v609
        %vm1286 = vcmp.le.f32.partialorder %v1285, 0.7853982
        %vm1287 = vcmp.lt.s32.totalorder %v609, 0
        %v1288 = vand.u32 %v609, 2139095040
        %v1289 = vshrl.u32 %v1288, 23
        %v1290 = vsub.s32 %v1289, 127
        %v1291 = vand.u32 2147483647, %v609
        %v1292 = vand.u32 %v1291, 8388607
        %v1293 = vor.u32 %v1292, 8388608
        %v1294 = vsub.s32 0, %v1293
        %v1295 = vadd.s32 %v1290, 1
        %vm1296 = vcmp.gt.s32.totalorder %v1295, 0
        %v1297 = vsel %vm1296, %v1295, 0
        %v1298 = vshrl.u32 %v1297, 5
        %v1299 = vand.u32 %v1297, 31
        %v1300 = vsub.s32 32, %v1299
        %v1301 = vshrl.u32 683565275, %v1300
        %v1302 = vshll.u32 683565275, %v1299
        %v1303 = vshrl.u32 2475754826, %v1300
        %v1304 = vor.u32 %v1302, %v1303
        %v1305 = vshll.u32 2475754826, %v1299
        %v1306 = vshrl.u32 2131351028, %v1300
        %v1307 = vor.u32 %v1305, %v1306
        %v1308 = vshll.u32 2131351028, %v1299
        %v1309 = vshrl.u32 2102212464, %v1300
        %v1310 = vor.u32 %v1308, %v1309
        %v1311 = vshll.u32 2102212464, %v1299
        %v1312 = vshrl.u32 920167782, %v1300
        %v1313 = vor.u32 %v1311, %v1312
        %v1314 = vshll.u32 920167782, %v1299
        %v1315 = vshrl.u32 1326507024, %v1300
        %v1316 = vor.u32 %v1314, %v1315
        %vm1317 = vcmp.lt.s32.totalorder %v1298, 1
        %vm1318 = vcmp.lt.s32.totalorder %v1298, 2
        %vm1319 = vcmp.lt.s32.totalorder %v1298, 3
        %vm1320 = vcmp.lt.s32.totalorder %v1298, 4
        %v1321 = vsel %vm1317, %v1301, %v1304
        %v1322 = vsel %vm1320, %v1310, 2102212464
        %v1323 = vsel %vm1319, %v1307, %v1322
        %v1324 = vsel %vm1318, %v1321, %v1323
        %v1325 = vsel %vm1317, %v1304, %v1307
        %v1326 = vsel %vm1320, %v1313, 920167782
        %v1327 = vsel %vm1319, %v1310, %v1326
        %v1328 = vsel %vm1318, %v1325, %v1327
        %v1329 = vsel %vm1317, %v1307, %v1310
        %v1330 = vsel %vm1320, %v1316, 1326507024
        %v1331 = vsel %vm1319, %v1313, %v1330
        %v1332 = vsel %vm1318, %v1329, %v1331
        %v1333 = vshll.u32 %v1293, 8
        %v1334 = vmul.u32.u64.compose %v1333, %v1332
        %v1335 = vextract.low.u32 %v1334
        %v1336 = vextract.high.u32 %v1334
        %v1337 = vmul.u32.u64.compose %v1333, %v1328
        %v1338 = vextract.low.u32 %v1337
        %v1339 = vextract.high.u32 %v1337
        %v1340 = vmul.u32 %v1333, %v1324
        %v1341 = vadd.s32 %v1336, %v1338
        %vm1342 = vc.u32 %v1336, %v1338
        %v1343 = vadd.s32 %v1339, 1
        %v1344 = vsel %vm1342, %v1343, %v1339
        %v1345 = vadd.s32 %v1340, %v1344
        %v1346 = vadd.s32 %v1345, 536870912
        %v1347 = vshrl.u32 %v1346, 30
        %v1348 = vshll.u32 %v1347, 30
        %v1349 = vsub.s32 %v1345, %v1348
        %vm1350 = vcmp.lt.s32.totalorder %v1349, 0
        %v1351 = vsub.s32 0, %v1349
        %v1352 = vsel %vm1350, %v1351, %v1349
        %v1353 = vclz %v1352
        %v1354 = vsub.s32 %v1353, 2
        %vm1355 = vcmp.gt.s32.totalorder 0, %v1354
        %v1356 = vsel %vm1355, 0, %v1354
        %v1357 = vsub.s32 32, %v1356
        %v1358 = vshll.u32 %v1349, %v1356
        %v1359 = vshrl.u32 %v1341, %v1357
        %v1360 = vor.u32 %v1358, %v1359
        %v1361 = vsub.s32 4294967266, %v1356
        %v1362 = vadd.s32 %v1361, 127
        %v1363 = vshll.u32 %v1362, 23
        %v1364 = vor.u32 4788187, %v1363
        %v1365 = vand.u32 2147483647, %v1364
        %v1367 = vcvt.s32.f32 %v1360
        %v1368 = vmul.f32 %v1367, %v1365
        %v1369 = vxor.u32 %v1368, 2147483648
        %v1370 = vsel %vm1287, %v1369, %v1368
        %v1371 = vsub.s32 4, %v1347
        %v1372 = vsel %vm1287, %v1371, %v1347
        %v1373 = vsel %vm1286, %v609, %v1370
        %v1374 = vsel %vm1286, 0, %v1372
        %v1375 = vcosq.f32.pop %v1373
        %v1376 = vsinq.f32.pop %v1373
        %vm1377 = vweird.f32 %v609
        %v1378 = vand.u32 %v1374, 3
        %vm1379 = vcmp.lt.s32.totalorder %v1378, 2
        %vm1380 = vcmp.eq.s32.totalorder %v1378, 0
        %v1381 = vxor.u32 %v1376, 2147483648
        %v1382 = vsel %vm1380, %v1375, %v1381
        %vm1383 = vcmp.eq.s32.totalorder %v1378, 2
        %v1384 = vxor.u32 %v1375, 2147483648
        %v1385 = vsel %vm1383, %v1384, %v1376
        %v1386 = vsel %vm1379, %v1382, %v1385
        %v1387 = vsel %vm1377, nan, %v1386
        %v1388 = vand.u32 2147483647, %v610
        %vm1389 = vcmp.le.f32.partialorder %v1388, 0.7853982
        %vm1390 = vcmp.lt.s32.totalorder %v610, 0
        %v1391 = vand.u32 %v610, 2139095040
        %v1392 = vshrl.u32 %v1391, 23
        %v1393 = vsub.s32 %v1392, 127
        %v1394 = vand.u32 2147483647, %v610
        %v1395 = vand.u32 %v1394, 8388607
        %v1396 = vor.u32 %v1395, 8388608
        %v1397 = vsub.s32 0, %v1396
        %v1398 = vadd.s32 %v1393, 1
        %vm1399 = vcmp.gt.s32.totalorder %v1398, 0
        %v1400 = vsel %vm1399, %v1398, 0
        %v1401 = vshrl.u32 %v1400, 5
        %v1402 = vand.u32 %v1400, 31
        %v1403 = vsub.s32 32, %v1402
        %v1404 = vshrl.u32 683565275, %v1403
        %v1405 = vshll.u32 683565275, %v1402
        %v1406 = vshrl.u32 2475754826, %v1403
        %v1407 = vor.u32 %v1405, %v1406
        %v1408 = vshll.u32 2475754826, %v1402
        %v1409 = vshrl.u32 2131351028, %v1403
        %v1410 = vor.u32 %v1408, %v1409
        %v1411 = vshll.u32 2131351028, %v1402
        %v1412 = vshrl.u32 2102212464, %v1403
        %v1413 = vor.u32 %v1411, %v1412
        %v1414 = vshll.u32 2102212464, %v1402
        %v1415 = vshrl.u32 920167782, %v1403
        %v1416 = vor.u32 %v1414, %v1415
        %v1417 = vshll.u32 920167782, %v1402
        %v1418 = vshrl.u32 1326507024, %v1403
        %v1419 = vor.u32 %v1417, %v1418
        %vm1420 = vcmp.lt.s32.totalorder %v1401, 1
        %vm1421 = vcmp.lt.s32.totalorder %v1401, 2
        %vm1422 = vcmp.lt.s32.totalorder %v1401, 3
        %vm1423 = vcmp.lt.s32.totalorder %v1401, 4
        %v1424 = vsel %vm1420, %v1404, %v1407
        %v1425 = vsel %vm1423, %v1413, 2102212464
        %v1426 = vsel %vm1422, %v1410, %v1425
        %v1427 = vsel %vm1421, %v1424, %v1426
        %v1428 = vsel %vm1420, %v1407, %v1410
        %v1429 = vsel %vm1423, %v1416, 920167782
        %v1430 = vsel %vm1422, %v1413, %v1429
        %v1431 = vsel %vm1421, %v1428, %v1430
        %v1432 = vsel %vm1420, %v1410, %v1413
        %v1433 = vsel %vm1423, %v1419, 1326507024
        %v1434 = vsel %vm1422, %v1416, %v1433
        %v1435 = vsel %vm1421, %v1432, %v1434
        %v1436 = vshll.u32 %v1396, 8
        %v1437 = vmul.u32.u64.compose %v1436, %v1435
        %v1438 = vextract.low.u32 %v1437
        %v1439 = vextract.high.u32 %v1437
        %v1440 = vmul.u32.u64.compose %v1436, %v1431
        %v1441 = vextract.low.u32 %v1440
        %v1442 = vextract.high.u32 %v1440
        %v1443 = vmul.u32 %v1436, %v1427
        %v1444 = vadd.s32 %v1439, %v1441
        %vm1445 = vc.u32 %v1439, %v1441
        %v1446 = vadd.s32 %v1442, 1
        %v1447 = vsel %vm1445, %v1446, %v1442
        %v1448 = vadd.s32 %v1443, %v1447
        %v1449 = vadd.s32 %v1448, 536870912
        %v1450 = vshrl.u32 %v1449, 30
        %v1451 = vshll.u32 %v1450, 30
        %v1452 = vsub.s32 %v1448, %v1451
        %vm1453 = vcmp.lt.s32.totalorder %v1452, 0
        %v1454 = vsub.s32 0, %v1452
        %v1455 = vsel %vm1453, %v1454, %v1452
        %v1456 = vclz %v1455
        %v1457 = vsub.s32 %v1456, 2
        %vm1458 = vcmp.gt.s32.totalorder 0, %v1457
        %v1459 = vsel %vm1458, 0, %v1457
        %v1460 = vsub.s32 32, %v1459
        %v1461 = vshll.u32 %v1452, %v1459
        %v1462 = vshrl.u32 %v1444, %v1460
        %v1463 = vor.u32 %v1461, %v1462
        %v1464 = vsub.s32 4294967266, %v1459
        %v1465 = vadd.s32 %v1464, 127
        %v1466 = vshll.u32 %v1465, 23
        %v1467 = vor.u32 4788187, %v1466
        %v1468 = vand.u32 2147483647, %v1467
        %v1470 = vcvt.s32.f32 %v1463
        %v1471 = vmul.f32 %v1470, %v1468
        %v1472 = vxor.u32 %v1471, 2147483648
        %v1473 = vsel %vm1390, %v1472, %v1471
        %v1474 = vsub.s32 4, %v1450
        %v1475 = vsel %vm1390, %v1474, %v1450
        %v1476 = vsel %vm1389, %v610, %v1473
        %v1477 = vsel %vm1389, 0, %v1475
        %v1478 = vcosq.f32.pop %v1476
        %v1479 = vsinq.f32.pop %v1476
        %vm1480 = vweird.f32 %v610
        %v1481 = vand.u32 %v1477, 3
        %vm1482 = vcmp.lt.s32.totalorder %v1481, 2
        %vm1483 = vcmp.eq.s32.totalorder %v1481, 0
        %v1484 = vxor.u32 %v1479, 2147483648
        %v1485 = vsel %vm1483, %v1478, %v1484
        %vm1486 = vcmp.eq.s32.totalorder %v1481, 2
        %v1487 = vxor.u32 %v1478, 2147483648
        %v1488 = vsel %vm1486, %v1487, %v1479
        %v1489 = vsel %vm1482, %v1485, %v1488
        %v1490 = vsel %vm1480, nan, %v1489
        %v1491 = vand.u32 2147483647, %v611
        %vm1492 = vcmp.le.f32.partialorder %v1491, 0.7853982
        %vm1493 = vcmp.lt.s32.totalorder %v611, 0
        %v1494 = vand.u32 %v611, 2139095040
        %v1495 = vshrl.u32 %v1494, 23
        %v1496 = vsub.s32 %v1495, 127
        %v1497 = vand.u32 2147483647, %v611
        %v1498 = vand.u32 %v1497, 8388607
        %v1499 = vor.u32 %v1498, 8388608
        %v1500 = vsub.s32 0, %v1499
        %v1501 = vadd.s32 %v1496, 1
        %vm1502 = vcmp.gt.s32.totalorder %v1501, 0
        %v1503 = vsel %vm1502, %v1501, 0
        %v1504 = vshrl.u32 %v1503, 5
        %v1505 = vand.u32 %v1503, 31
        %v1506 = vsub.s32 32, %v1505
        %v1507 = vshrl.u32 683565275, %v1506
        %v1508 = vshll.u32 683565275, %v1505
        %v1509 = vshrl.u32 2475754826, %v1506
        %v1510 = vor.u32 %v1508, %v1509
        %v1511 = vshll.u32 2475754826, %v1505
        %v1512 = vshrl.u32 2131351028, %v1506
        %v1513 = vor.u32 %v1511, %v1512
        %v1514 = vshll.u32 2131351028, %v1505
        %v1515 = vshrl.u32 2102212464, %v1506
        %v1516 = vor.u32 %v1514, %v1515
        %v1517 = vshll.u32 2102212464, %v1505
        %v1518 = vshrl.u32 920167782, %v1506
        %v1519 = vor.u32 %v1517, %v1518
        %v1520 = vshll.u32 920167782, %v1505
        %v1521 = vshrl.u32 1326507024, %v1506
        %v1522 = vor.u32 %v1520, %v1521
        %vm1523 = vcmp.lt.s32.totalorder %v1504, 1
        %vm1524 = vcmp.lt.s32.totalorder %v1504, 2
        %vm1525 = vcmp.lt.s32.totalorder %v1504, 3
        %vm1526 = vcmp.lt.s32.totalorder %v1504, 4
        %v1527 = vsel %vm1523, %v1507, %v1510
        %v1528 = vsel %vm1526, %v1516, 2102212464
        %v1529 = vsel %vm1525, %v1513, %v1528
        %v1530 = vsel %vm1524, %v1527, %v1529
        %v1531 = vsel %vm1523, %v1510, %v1513
        %v1532 = vsel %vm1526, %v1519, 920167782
        %v1533 = vsel %vm1525, %v1516, %v1532
        %v1534 = vsel %vm1524, %v1531, %v1533
        %v1535 = vsel %vm1523, %v1513, %v1516
        %v1536 = vsel %vm1526, %v1522, 1326507024
        %v1537 = vsel %vm1525, %v1519, %v1536
        %v1538 = vsel %vm1524, %v1535, %v1537
        %v1539 = vshll.u32 %v1499, 8
        %v1540 = vmul.u32.u64.compose %v1539, %v1538
        %v1541 = vextract.low.u32 %v1540
        %v1542 = vextract.high.u32 %v1540
        %v1543 = vmul.u32.u64.compose %v1539, %v1534
        %v1544 = vextract.low.u32 %v1543
        %v1545 = vextract.high.u32 %v1543
        %v1546 = vmul.u32 %v1539, %v1530
        %v1547 = vadd.s32 %v1542, %v1544
        %vm1548 = vc.u32 %v1542, %v1544
        %v1549 = vadd.s32 %v1545, 1
        %v1550 = vsel %vm1548, %v1549, %v1545
        %v1551 = vadd.s32 %v1546, %v1550
        %v1552 = vadd.s32 %v1551, 536870912
        %v1553 = vshrl.u32 %v1552, 30
        %v1554 = vshll.u32 %v1553, 30
        %v1555 = vsub.s32 %v1551, %v1554
        %vm1556 = vcmp.lt.s32.totalorder %v1555, 0
        %v1557 = vsub.s32 0, %v1555
        %v1558 = vsel %vm1556, %v1557, %v1555
        %v1559 = vclz %v1558
        %v1560 = vsub.s32 %v1559, 2
        %vm1561 = vcmp.gt.s32.totalorder 0, %v1560
        %v1562 = vsel %vm1561, 0, %v1560
        %v1563 = vsub.s32 32, %v1562
        %v1564 = vshll.u32 %v1555, %v1562
        %v1565 = vshrl.u32 %v1547, %v1563
        %v1566 = vor.u32 %v1564, %v1565
        %v1567 = vsub.s32 4294967266, %v1562
        %v1568 = vadd.s32 %v1567, 127
        %v1569 = vshll.u32 %v1568, 23
        %v1570 = vor.u32 4788187, %v1569
        %v1571 = vand.u32 2147483647, %v1570
        %v1573 = vcvt.s32.f32 %v1566
        %v1574 = vmul.f32 %v1573, %v1571
        %v1575 = vxor.u32 %v1574, 2147483648
        %v1576 = vsel %vm1493, %v1575, %v1574
        %v1577 = vsub.s32 4, %v1553
        %v1578 = vsel %vm1493, %v1577, %v1553
        %v1579 = vsel %vm1492, %v611, %v1576
        %v1580 = vsel %vm1492, 0, %v1578
        %v1581 = vcosq.f32.pop %v1579
        %v1582 = vsinq.f32.pop %v1579
        %vm1583 = vweird.f32 %v611
        %v1584 = vand.u32 %v1580, 3
        %vm1585 = vcmp.lt.s32.totalorder %v1584, 2
        %vm1586 = vcmp.eq.s32.totalorder %v1584, 0
        %v1587 = vxor.u32 %v1582, 2147483648
        %v1588 = vsel %vm1586, %v1581, %v1587
        %vm1589 = vcmp.eq.s32.totalorder %v1584, 2
        %v1590 = vxor.u32 %v1581, 2147483648
        %v1591 = vsel %vm1589, %v1590, %v1582
        %v1592 = vsel %vm1585, %v1588, %v1591
        %v1593 = vsel %vm1583, nan, %v1592
        %v1594 = vand.u32 2147483647, %v612
        %vm1595 = vcmp.le.f32.partialorder %v1594, 0.7853982
        %vm1596 = vcmp.lt.s32.totalorder %v612, 0
        %v1597 = vand.u32 %v612, 2139095040
        %v1598 = vshrl.u32 %v1597, 23
        %v1599 = vsub.s32 %v1598, 127
        %v1600 = vand.u32 2147483647, %v612
        %v1601 = vand.u32 %v1600, 8388607
        %v1602 = vor.u32 %v1601, 8388608
        %v1603 = vsub.s32 0, %v1602
        %v1604 = vadd.s32 %v1599, 1
        %vm1605 = vcmp.gt.s32.totalorder %v1604, 0
        %v1606 = vsel %vm1605, %v1604, 0
        %v1607 = vshrl.u32 %v1606, 5
        %v1608 = vand.u32 %v1606, 31
        %v1609 = vsub.s32 32, %v1608
        %v1610 = vshrl.u32 683565275, %v1609
        %v1611 = vshll.u32 683565275, %v1608
        %v1612 = vshrl.u32 2475754826, %v1609
        %v1613 = vor.u32 %v1611, %v1612
        %v1614 = vshll.u32 2475754826, %v1608
        %v1615 = vshrl.u32 2131351028, %v1609
        %v1616 = vor.u32 %v1614, %v1615
        %v1617 = vshll.u32 2131351028, %v1608
        %v1618 = vshrl.u32 2102212464, %v1609
        %v1619 = vor.u32 %v1617, %v1618
        %v1620 = vshll.u32 2102212464, %v1608
        %v1621 = vshrl.u32 920167782, %v1609
        %v1622 = vor.u32 %v1620, %v1621
        %v1623 = vshll.u32 920167782, %v1608
        %v1624 = vshrl.u32 1326507024, %v1609
        %v1625 = vor.u32 %v1623, %v1624
        %vm1626 = vcmp.lt.s32.totalorder %v1607, 1
        %vm1627 = vcmp.lt.s32.totalorder %v1607, 2
        %vm1628 = vcmp.lt.s32.totalorder %v1607, 3
        %vm1629 = vcmp.lt.s32.totalorder %v1607, 4
        %v1630 = vsel %vm1626, %v1610, %v1613
        %v1631 = vsel %vm1629, %v1619, 2102212464
        %v1632 = vsel %vm1628, %v1616, %v1631
        %v1633 = vsel %vm1627, %v1630, %v1632
        %v1634 = vsel %vm1626, %v1613, %v1616
        %v1635 = vsel %vm1629, %v1622, 920167782
        %v1636 = vsel %vm1628, %v1619, %v1635
        %v1637 = vsel %vm1627, %v1634, %v1636
        %v1638 = vsel %vm1626, %v1616, %v1619
        %v1639 = vsel %vm1629, %v1625, 1326507024
        %v1640 = vsel %vm1628, %v1622, %v1639
        %v1641 = vsel %vm1627, %v1638, %v1640
        %v1642 = vshll.u32 %v1602, 8
        %v1643 = vmul.u32.u64.compose %v1642, %v1641
        %v1644 = vextract.low.u32 %v1643
        %v1645 = vextract.high.u32 %v1643
        %v1646 = vmul.u32.u64.compose %v1642, %v1637
        %v1647 = vextract.low.u32 %v1646
        %v1648 = vextract.high.u32 %v1646
        %v1649 = vmul.u32 %v1642, %v1633
        %v1650 = vadd.s32 %v1645, %v1647
        %vm1651 = vc.u32 %v1645, %v1647
        %v1652 = vadd.s32 %v1648, 1
        %v1653 = vsel %vm1651, %v1652, %v1648
        %v1654 = vadd.s32 %v1649, %v1653
        %v1655 = vadd.s32 %v1654, 536870912
        %v1656 = vshrl.u32 %v1655, 30
        %v1657 = vshll.u32 %v1656, 30
        %v1658 = vsub.s32 %v1654, %v1657
        %vm1659 = vcmp.lt.s32.totalorder %v1658, 0
        %v1660 = vsub.s32 0, %v1658
        %v1661 = vsel %vm1659, %v1660, %v1658
        %v1662 = vclz %v1661
        %v1663 = vsub.s32 %v1662, 2
        %vm1664 = vcmp.gt.s32.totalorder 0, %v1663
        %v1665 = vsel %vm1664, 0, %v1663
        %v1666 = vsub.s32 32, %v1665
        %v1667 = vshll.u32 %v1658, %v1665
        %v1668 = vshrl.u32 %v1650, %v1666
        %v1669 = vor.u32 %v1667, %v1668
        %v1670 = vsub.s32 4294967266, %v1665
        %v1671 = vadd.s32 %v1670, 127
        %v1672 = vshll.u32 %v1671, 23
        %v1673 = vor.u32 4788187, %v1672
        %v1674 = vand.u32 2147483647, %v1673
        %v1676 = vcvt.s32.f32 %v1669
        %v1677 = vmul.f32 %v1676, %v1674
        %v1678 = vxor.u32 %v1677, 2147483648
        %v1679 = vsel %vm1596, %v1678, %v1677
        %v1680 = vsub.s32 4, %v1656
        %v1681 = vsel %vm1596, %v1680, %v1656
        %v1682 = vsel %vm1595, %v612, %v1679
        %v1683 = vsel %vm1595, 0, %v1681
        %v1684 = vcosq.f32.pop %v1682
        %v1685 = vsinq.f32.pop %v1682
        %vm1686 = vweird.f32 %v612
        %v1687 = vand.u32 %v1683, 3
        %vm1688 = vcmp.lt.s32.totalorder %v1687, 2
        %vm1689 = vcmp.eq.s32.totalorder %v1687, 0
        %v1690 = vxor.u32 %v1685, 2147483648
        %v1691 = vsel %vm1689, %v1684, %v1690
        %vm1692 = vcmp.eq.s32.totalorder %v1687, 2
        %v1693 = vxor.u32 %v1684, 2147483648
        %v1694 = vsel %vm1692, %v1693, %v1685
        %v1695 = vsel %vm1688, %v1691, %v1694
        %v1696 = vsel %vm1686, nan, %v1695
        %v1697 = vand.u32 2147483647, %v613
        %vm1698 = vcmp.le.f32.partialorder %v1697, 0.7853982
        %vm1699 = vcmp.lt.s32.totalorder %v613, 0
        %v1700 = vand.u32 %v613, 2139095040
        %v1701 = vshrl.u32 %v1700, 23
        %v1702 = vsub.s32 %v1701, 127
        %v1703 = vand.u32 2147483647, %v613
        %v1704 = vand.u32 %v1703, 8388607
        %v1705 = vor.u32 %v1704, 8388608
        %v1706 = vsub.s32 0, %v1705
        %v1707 = vadd.s32 %v1702, 1
        %vm1708 = vcmp.gt.s32.totalorder %v1707, 0
        %v1709 = vsel %vm1708, %v1707, 0
        %v1710 = vshrl.u32 %v1709, 5
        %v1711 = vand.u32 %v1709, 31
        %v1712 = vsub.s32 32, %v1711
        %v1713 = vshrl.u32 683565275, %v1712
        %v1714 = vshll.u32 683565275, %v1711
        %v1715 = vshrl.u32 2475754826, %v1712
        %v1716 = vor.u32 %v1714, %v1715
        %v1717 = vshll.u32 2475754826, %v1711
        %v1718 = vshrl.u32 2131351028, %v1712
        %v1719 = vor.u32 %v1717, %v1718
        %v1720 = vshll.u32 2131351028, %v1711
        %v1721 = vshrl.u32 2102212464, %v1712
        %v1722 = vor.u32 %v1720, %v1721
        %v1723 = vshll.u32 2102212464, %v1711
        %v1724 = vshrl.u32 920167782, %v1712
        %v1725 = vor.u32 %v1723, %v1724
        %v1726 = vshll.u32 920167782, %v1711
        %v1727 = vshrl.u32 1326507024, %v1712
        %v1728 = vor.u32 %v1726, %v1727
        %vm1729 = vcmp.lt.s32.totalorder %v1710, 1
        %vm1730 = vcmp.lt.s32.totalorder %v1710, 2
        %vm1731 = vcmp.lt.s32.totalorder %v1710, 3
        %vm1732 = vcmp.lt.s32.totalorder %v1710, 4
        %v1733 = vsel %vm1729, %v1713, %v1716
        %v1734 = vsel %vm1732, %v1722, 2102212464
        %v1735 = vsel %vm1731, %v1719, %v1734
        %v1736 = vsel %vm1730, %v1733, %v1735
        %v1737 = vsel %vm1729, %v1716, %v1719
        %v1738 = vsel %vm1732, %v1725, 920167782
        %v1739 = vsel %vm1731, %v1722, %v1738
        %v1740 = vsel %vm1730, %v1737, %v1739
        %v1741 = vsel %vm1729, %v1719, %v1722
        %v1742 = vsel %vm1732, %v1728, 1326507024
        %v1743 = vsel %vm1731, %v1725, %v1742
        %v1744 = vsel %vm1730, %v1741, %v1743
        %v1745 = vshll.u32 %v1705, 8
        %v1746 = vmul.u32.u64.compose %v1745, %v1744
        %v1747 = vextract.low.u32 %v1746
        %v1748 = vextract.high.u32 %v1746
        %v1749 = vmul.u32.u64.compose %v1745, %v1740
        %v1750 = vextract.low.u32 %v1749
        %v1751 = vextract.high.u32 %v1749
        %v1752 = vmul.u32 %v1745, %v1736
        %v1753 = vadd.s32 %v1748, %v1750
        %vm1754 = vc.u32 %v1748, %v1750
        %v1755 = vadd.s32 %v1751, 1
        %v1756 = vsel %vm1754, %v1755, %v1751
        %v1757 = vadd.s32 %v1752, %v1756
        %v1758 = vadd.s32 %v1757, 536870912
        %v1759 = vshrl.u32 %v1758, 30
        %v1760 = vshll.u32 %v1759, 30
        %v1761 = vsub.s32 %v1757, %v1760
        %vm1762 = vcmp.lt.s32.totalorder %v1761, 0
        %v1763 = vsub.s32 0, %v1761
        %v1764 = vsel %vm1762, %v1763, %v1761
        %v1765 = vclz %v1764
        %v1766 = vsub.s32 %v1765, 2
        %vm1767 = vcmp.gt.s32.totalorder 0, %v1766
        %v1768 = vsel %vm1767, 0, %v1766
        %v1769 = vsub.s32 32, %v1768
        %v1770 = vshll.u32 %v1761, %v1768
        %v1771 = vshrl.u32 %v1753, %v1769
        %v1772 = vor.u32 %v1770, %v1771
        %v1773 = vsub.s32 4294967266, %v1768
        %v1774 = vadd.s32 %v1773, 127
        %v1775 = vshll.u32 %v1774, 23
        %v1776 = vor.u32 4788187, %v1775
        %v1777 = vand.u32 2147483647, %v1776
        %v1779 = vcvt.s32.f32 %v1772
        %v1780 = vmul.f32 %v1779, %v1777
        %v1781 = vxor.u32 %v1780, 2147483648
        %v1782 = vsel %vm1699, %v1781, %v1780
        %v1783 = vsub.s32 4, %v1759
        %v1784 = vsel %vm1699, %v1783, %v1759
        %v1785 = vsel %vm1698, %v613, %v1782
        %v1786 = vsel %vm1698, 0, %v1784
        %v1787 = vcosq.f32.pop %v1785
        %v1788 = vsinq.f32.pop %v1785
        %vm1789 = vweird.f32 %v613
        %v1790 = vand.u32 %v1786, 3
        %vm1791 = vcmp.lt.s32.totalorder %v1790, 2
        %vm1792 = vcmp.eq.s32.totalorder %v1790, 0
        %v1793 = vxor.u32 %v1788, 2147483648
        %v1794 = vsel %vm1792, %v1787, %v1793
        %vm1795 = vcmp.eq.s32.totalorder %v1790, 2
        %v1796 = vxor.u32 %v1787, 2147483648
        %v1797 = vsel %vm1795, %v1796, %v1788
        %v1798 = vsel %vm1791, %v1794, %v1797
        %v1799 = vsel %vm1789, nan, %v1798
        %v1800 = vand.u32 2147483647, %v614
        %vm1801 = vcmp.le.f32.partialorder %v1800, 0.7853982
        %vm1802 = vcmp.lt.s32.totalorder %v614, 0
        %v1803 = vand.u32 %v614, 2139095040
        %v1804 = vshrl.u32 %v1803, 23
        %v1805 = vsub.s32 %v1804, 127
        %v1806 = vand.u32 2147483647, %v614
        %v1807 = vand.u32 %v1806, 8388607
        %v1808 = vor.u32 %v1807, 8388608
        %v1809 = vsub.s32 0, %v1808
        %v1810 = vadd.s32 %v1805, 1
        %vm1811 = vcmp.gt.s32.totalorder %v1810, 0
        %v1812 = vsel %vm1811, %v1810, 0
        %v1813 = vshrl.u32 %v1812, 5
        %v1814 = vand.u32 %v1812, 31
        %v1815 = vsub.s32 32, %v1814
        %v1816 = vshrl.u32 683565275, %v1815
        %v1817 = vshll.u32 683565275, %v1814
        %v1818 = vshrl.u32 2475754826, %v1815
        %v1819 = vor.u32 %v1817, %v1818
        %v1820 = vshll.u32 2475754826, %v1814
        %v1821 = vshrl.u32 2131351028, %v1815
        %v1822 = vor.u32 %v1820, %v1821
        %v1823 = vshll.u32 2131351028, %v1814
        %v1824 = vshrl.u32 2102212464, %v1815
        %v1825 = vor.u32 %v1823, %v1824
        %v1826 = vshll.u32 2102212464, %v1814
        %v1827 = vshrl.u32 920167782, %v1815
        %v1828 = vor.u32 %v1826, %v1827
        %v1829 = vshll.u32 920167782, %v1814
        %v1830 = vshrl.u32 1326507024, %v1815
        %v1831 = vor.u32 %v1829, %v1830
        %vm1832 = vcmp.lt.s32.totalorder %v1813, 1
        %vm1833 = vcmp.lt.s32.totalorder %v1813, 2
        %vm1834 = vcmp.lt.s32.totalorder %v1813, 3
        %vm1835 = vcmp.lt.s32.totalorder %v1813, 4
        %v1836 = vsel %vm1832, %v1816, %v1819
        %v1837 = vsel %vm1835, %v1825, 2102212464
        %v1838 = vsel %vm1834, %v1822, %v1837
        %v1839 = vsel %vm1833, %v1836, %v1838
        %v1840 = vsel %vm1832, %v1819, %v1822
        %v1841 = vsel %vm1835, %v1828, 920167782
        %v1842 = vsel %vm1834, %v1825, %v1841
        %v1843 = vsel %vm1833, %v1840, %v1842
        %v1844 = vsel %vm1832, %v1822, %v1825
        %v1845 = vsel %vm1835, %v1831, 1326507024
        %v1846 = vsel %vm1834, %v1828, %v1845
        %v1847 = vsel %vm1833, %v1844, %v1846
        %v1848 = vshll.u32 %v1808, 8
        %v1849 = vmul.u32.u64.compose %v1848, %v1847
        %v1850 = vextract.low.u32 %v1849
        %v1851 = vextract.high.u32 %v1849
        %v1852 = vmul.u32.u64.compose %v1848, %v1843
        %v1853 = vextract.low.u32 %v1852
        %v1854 = vextract.high.u32 %v1852
        %v1855 = vmul.u32 %v1848, %v1839
        %v1856 = vadd.s32 %v1851, %v1853
        %vm1857 = vc.u32 %v1851, %v1853
        %v1858 = vadd.s32 %v1854, 1
        %v1859 = vsel %vm1857, %v1858, %v1854
        %v1860 = vadd.s32 %v1855, %v1859
        %v1861 = vadd.s32 %v1860, 536870912
        %v1862 = vshrl.u32 %v1861, 30
        %v1863 = vshll.u32 %v1862, 30
        %v1864 = vsub.s32 %v1860, %v1863
        %vm1865 = vcmp.lt.s32.totalorder %v1864, 0
        %v1866 = vsub.s32 0, %v1864
        %v1867 = vsel %vm1865, %v1866, %v1864
        %v1868 = vclz %v1867
        %v1869 = vsub.s32 %v1868, 2
        %vm1870 = vcmp.gt.s32.totalorder 0, %v1869
        %v1871 = vsel %vm1870, 0, %v1869
        %v1872 = vsub.s32 32, %v1871
        %v1873 = vshll.u32 %v1864, %v1871
        %v1874 = vshrl.u32 %v1856, %v1872
        %v1875 = vor.u32 %v1873, %v1874
        %v1876 = vsub.s32 4294967266, %v1871
        %v1877 = vadd.s32 %v1876, 127
        %v1878 = vshll.u32 %v1877, 23
        %v1879 = vor.u32 4788187, %v1878
        %v1880 = vand.u32 2147483647, %v1879
        %v1882 = vcvt.s32.f32 %v1875
        %v1883 = vmul.f32 %v1882, %v1880
        %v1884 = vxor.u32 %v1883, 2147483648
        %v1885 = vsel %vm1802, %v1884, %v1883
        %v1886 = vsub.s32 4, %v1862
        %v1887 = vsel %vm1802, %v1886, %v1862
        %v1888 = vsel %vm1801, %v614, %v1885
        %v1889 = vsel %vm1801, 0, %v1887
        %v1890 = vcosq.f32.pop %v1888
        %v1891 = vsinq.f32.pop %v1888
        %vm1892 = vweird.f32 %v614
        %v1893 = vand.u32 %v1889, 3
        %vm1894 = vcmp.lt.s32.totalorder %v1893, 2
        %vm1895 = vcmp.eq.s32.totalorder %v1893, 0
        %v1896 = vxor.u32 %v1891, 2147483648
        %v1897 = vsel %vm1895, %v1890, %v1896
        %vm1898 = vcmp.eq.s32.totalorder %v1893, 2
        %v1899 = vxor.u32 %v1890, 2147483648
        %v1900 = vsel %vm1898, %v1899, %v1891
        %v1901 = vsel %vm1894, %v1897, %v1900
        %v1902 = vsel %vm1892, nan, %v1901
        %v1903 = vand.u32 2147483647, %v615
        %vm1904 = vcmp.le.f32.partialorder %v1903, 0.7853982
        %vm1905 = vcmp.lt.s32.totalorder %v615, 0
        %v1906 = vand.u32 %v615, 2139095040
        %v1907 = vshrl.u32 %v1906, 23
        %v1908 = vsub.s32 %v1907, 127
        %v1909 = vand.u32 2147483647, %v615
        %v1910 = vand.u32 %v1909, 8388607
        %v1911 = vor.u32 %v1910, 8388608
        %v1912 = vsub.s32 0, %v1911
        %v1913 = vadd.s32 %v1908, 1
        %vm1914 = vcmp.gt.s32.totalorder %v1913, 0
        %v1915 = vsel %vm1914, %v1913, 0
        %v1916 = vshrl.u32 %v1915, 5
        %v1917 = vand.u32 %v1915, 31
        %v1918 = vsub.s32 32, %v1917
        %v1919 = vshrl.u32 683565275, %v1918
        %v1920 = vshll.u32 683565275, %v1917
        %v1921 = vshrl.u32 2475754826, %v1918
        %v1922 = vor.u32 %v1920, %v1921
        %v1923 = vshll.u32 2475754826, %v1917
        %v1924 = vshrl.u32 2131351028, %v1918
        %v1925 = vor.u32 %v1923, %v1924
        %v1926 = vshll.u32 2131351028, %v1917
        %v1927 = vshrl.u32 2102212464, %v1918
        %v1928 = vor.u32 %v1926, %v1927
        %v1929 = vshll.u32 2102212464, %v1917
        %v1930 = vshrl.u32 920167782, %v1918
        %v1931 = vor.u32 %v1929, %v1930
        %v1932 = vshll.u32 920167782, %v1917
        %v1933 = vshrl.u32 1326507024, %v1918
        %v1934 = vor.u32 %v1932, %v1933
        %vm1935 = vcmp.lt.s32.totalorder %v1916, 1
        %vm1936 = vcmp.lt.s32.totalorder %v1916, 2
        %vm1937 = vcmp.lt.s32.totalorder %v1916, 3
        %vm1938 = vcmp.lt.s32.totalorder %v1916, 4
        %v1939 = vsel %vm1935, %v1919, %v1922
        %v1940 = vsel %vm1938, %v1928, 2102212464
        %v1941 = vsel %vm1937, %v1925, %v1940
        %v1942 = vsel %vm1936, %v1939, %v1941
        %v1943 = vsel %vm1935, %v1922, %v1925
        %v1944 = vsel %vm1938, %v1931, 920167782
        %v1945 = vsel %vm1937, %v1928, %v1944
        %v1946 = vsel %vm1936, %v1943, %v1945
        %v1947 = vsel %vm1935, %v1925, %v1928
        %v1948 = vsel %vm1938, %v1934, 1326507024
        %v1949 = vsel %vm1937, %v1931, %v1948
        %v1950 = vsel %vm1936, %v1947, %v1949
        %v1951 = vshll.u32 %v1911, 8
        %v1952 = vmul.u32.u64.compose %v1951, %v1950
        %v1953 = vextract.low.u32 %v1952
        %v1954 = vextract.high.u32 %v1952
        %v1955 = vmul.u32.u64.compose %v1951, %v1946
        %v1956 = vextract.low.u32 %v1955
        %v1957 = vextract.high.u32 %v1955
        %v1958 = vmul.u32 %v1951, %v1942
        %v1959 = vadd.s32 %v1954, %v1956
        %vm1960 = vc.u32 %v1954, %v1956
        %v1961 = vadd.s32 %v1957, 1
        %v1962 = vsel %vm1960, %v1961, %v1957
        %v1963 = vadd.s32 %v1958, %v1962
        %v1964 = vadd.s32 %v1963, 536870912
        %v1965 = vshrl.u32 %v1964, 30
        %v1966 = vshll.u32 %v1965, 30
        %v1967 = vsub.s32 %v1963, %v1966
        %vm1968 = vcmp.lt.s32.totalorder %v1967, 0
        %v1969 = vsub.s32 0, %v1967
        %v1970 = vsel %vm1968, %v1969, %v1967
        %v1971 = vclz %v1970
        %v1972 = vsub.s32 %v1971, 2
        %vm1973 = vcmp.gt.s32.totalorder 0, %v1972
        %v1974 = vsel %vm1973, 0, %v1972
        %v1975 = vsub.s32 32, %v1974
        %v1976 = vshll.u32 %v1967, %v1974
        %v1977 = vshrl.u32 %v1959, %v1975
        %v1978 = vor.u32 %v1976, %v1977
        %v1979 = vsub.s32 4294967266, %v1974
        %v1980 = vadd.s32 %v1979, 127
        %v1981 = vshll.u32 %v1980, 23
        %v1982 = vor.u32 4788187, %v1981
        %v1983 = vand.u32 2147483647, %v1982
        %v1985 = vcvt.s32.f32 %v1978
        %v1986 = vmul.f32 %v1985, %v1983
        %v1987 = vxor.u32 %v1986, 2147483648
        %v1988 = vsel %vm1905, %v1987, %v1986
        %v1989 = vsub.s32 4, %v1965
        %v1990 = vsel %vm1905, %v1989, %v1965
        %v1991 = vsel %vm1904, %v615, %v1988
        %v1992 = vsel %vm1904, 0, %v1990
        %v1993 = vcosq.f32.pop %v1991
        %v1994 = vsinq.f32.pop %v1991
        %vm1995 = vweird.f32 %v615
        %v1996 = vand.u32 %v1992, 3
        %vm1997 = vcmp.lt.s32.totalorder %v1996, 2
        %vm1998 = vcmp.eq.s32.totalorder %v1996, 0
        %v1999 = vxor.u32 %v1994, 2147483648
        %v2000 = vsel %vm1998, %v1993, %v1999
        %vm2001 = vcmp.eq.s32.totalorder %v1996, 2
        %v2002 = vxor.u32 %v1993, 2147483648
        %v2003 = vsel %vm2001, %v2002, %v1994
        %v2004 = vsel %vm1997, %v2000, %v2003
        %v2005 = vsel %vm1995, nan, %v2004
        %v2006 = vand.u32 2147483647, %v616
        %vm2007 = vcmp.le.f32.partialorder %v2006, 0.7853982
        %vm2008 = vcmp.lt.s32.totalorder %v616, 0
        %v2009 = vand.u32 %v616, 2139095040
        %v2010 = vshrl.u32 %v2009, 23
        %v2011 = vsub.s32 %v2010, 127
        %v2012 = vand.u32 2147483647, %v616
        %v2013 = vand.u32 %v2012, 8388607
        %v2014 = vor.u32 %v2013, 8388608
        %v2015 = vsub.s32 0, %v2014
        %v2016 = vadd.s32 %v2011, 1
        %vm2017 = vcmp.gt.s32.totalorder %v2016, 0
        %v2018 = vsel %vm2017, %v2016, 0
        %v2019 = vshrl.u32 %v2018, 5
        %v2020 = vand.u32 %v2018, 31
        %v2021 = vsub.s32 32, %v2020
        %v2022 = vshrl.u32 683565275, %v2021
        %v2023 = vshll.u32 683565275, %v2020
        %v2024 = vshrl.u32 2475754826, %v2021
        %v2025 = vor.u32 %v2023, %v2024
        %v2026 = vshll.u32 2475754826, %v2020
        %v2027 = vshrl.u32 2131351028, %v2021
        %v2028 = vor.u32 %v2026, %v2027
        %v2029 = vshll.u32 2131351028, %v2020
        %v2030 = vshrl.u32 2102212464, %v2021
        %v2031 = vor.u32 %v2029, %v2030
        %v2032 = vshll.u32 2102212464, %v2020
        %v2033 = vshrl.u32 920167782, %v2021
        %v2034 = vor.u32 %v2032, %v2033
        %v2035 = vshll.u32 920167782, %v2020
        %v2036 = vshrl.u32 1326507024, %v2021
        %v2037 = vor.u32 %v2035, %v2036
        %vm2038 = vcmp.lt.s32.totalorder %v2019, 1
        %vm2039 = vcmp.lt.s32.totalorder %v2019, 2
        %vm2040 = vcmp.lt.s32.totalorder %v2019, 3
        %vm2041 = vcmp.lt.s32.totalorder %v2019, 4
        %v2042 = vsel %vm2038, %v2022, %v2025
        %v2043 = vsel %vm2041, %v2031, 2102212464
        %v2044 = vsel %vm2040, %v2028, %v2043
        %v2045 = vsel %vm2039, %v2042, %v2044
        %v2046 = vsel %vm2038, %v2025, %v2028
        %v2047 = vsel %vm2041, %v2034, 920167782
        %v2048 = vsel %vm2040, %v2031, %v2047
        %v2049 = vsel %vm2039, %v2046, %v2048
        %v2050 = vsel %vm2038, %v2028, %v2031
        %v2051 = vsel %vm2041, %v2037, 1326507024
        %v2052 = vsel %vm2040, %v2034, %v2051
        %v2053 = vsel %vm2039, %v2050, %v2052
        %v2054 = vshll.u32 %v2014, 8
        %v2055 = vmul.u32.u64.compose %v2054, %v2053
        %v2056 = vextract.low.u32 %v2055
        %v2057 = vextract.high.u32 %v2055
        %v2058 = vmul.u32.u64.compose %v2054, %v2049
        %v2059 = vextract.low.u32 %v2058
        %v2060 = vextract.high.u32 %v2058
        %v2061 = vmul.u32 %v2054, %v2045
        %v2062 = vadd.s32 %v2057, %v2059
        %vm2063 = vc.u32 %v2057, %v2059
        %v2064 = vadd.s32 %v2060, 1
        %v2065 = vsel %vm2063, %v2064, %v2060
        %v2066 = vadd.s32 %v2061, %v2065
        %v2067 = vadd.s32 %v2066, 536870912
        %v2068 = vshrl.u32 %v2067, 30
        %v2069 = vshll.u32 %v2068, 30
        %v2070 = vsub.s32 %v2066, %v2069
        %vm2071 = vcmp.lt.s32.totalorder %v2070, 0
        %v2072 = vsub.s32 0, %v2070
        %v2073 = vsel %vm2071, %v2072, %v2070
        %v2074 = vclz %v2073
        %v2075 = vsub.s32 %v2074, 2
        %vm2076 = vcmp.gt.s32.totalorder 0, %v2075
        %v2077 = vsel %vm2076, 0, %v2075
        %v2078 = vsub.s32 32, %v2077
        %v2079 = vshll.u32 %v2070, %v2077
        %v2080 = vshrl.u32 %v2062, %v2078
        %v2081 = vor.u32 %v2079, %v2080
        %v2082 = vsub.s32 4294967266, %v2077
        %v2083 = vadd.s32 %v2082, 127
        %v2084 = vshll.u32 %v2083, 23
        %v2085 = vor.u32 4788187, %v2084
        %v2086 = vand.u32 2147483647, %v2085
        %v2088 = vcvt.s32.f32 %v2081
        %v2089 = vmul.f32 %v2088, %v2086
        %v2090 = vxor.u32 %v2089, 2147483648
        %v2091 = vsel %vm2008, %v2090, %v2089
        %v2092 = vsub.s32 4, %v2068
        %v2093 = vsel %vm2008, %v2092, %v2068
        %v2094 = vsel %vm2007, %v616, %v2091
        %v2095 = vsel %vm2007, 0, %v2093
        %v2096 = vcosq.f32.pop %v2094
        %v2097 = vsinq.f32.pop %v2094
        %vm2098 = vweird.f32 %v616
        %v2099 = vand.u32 %v2095, 3
        %vm2100 = vcmp.lt.s32.totalorder %v2099, 2
        %vm2101 = vcmp.eq.s32.totalorder %v2099, 0
        %v2102 = vxor.u32 %v2097, 2147483648
        %v2103 = vsel %vm2101, %v2096, %v2102
        %vm2104 = vcmp.eq.s32.totalorder %v2099, 2
        %v2105 = vxor.u32 %v2096, 2147483648
        %v2106 = vsel %vm2104, %v2105, %v2097
        %v2107 = vsel %vm2100, %v2103, %v2106
        %v2108 = vsel %vm2098, nan, %v2107
        %v2109 = vand.u32 2147483647, %v617
        %vm2110 = vcmp.le.f32.partialorder %v2109, 0.7853982
        %vm2111 = vcmp.lt.s32.totalorder %v617, 0
        %v2112 = vand.u32 %v617, 2139095040
        %v2113 = vshrl.u32 %v2112, 23
        %v2114 = vsub.s32 %v2113, 127
        %v2115 = vand.u32 2147483647, %v617
        %v2116 = vand.u32 %v2115, 8388607
        %v2117 = vor.u32 %v2116, 8388608
        %v2118 = vsub.s32 0, %v2117
        %v2119 = vadd.s32 %v2114, 1
        %vm2120 = vcmp.gt.s32.totalorder %v2119, 0
        %v2121 = vsel %vm2120, %v2119, 0
        %v2122 = vshrl.u32 %v2121, 5
        %v2123 = vand.u32 %v2121, 31
        %v2124 = vsub.s32 32, %v2123
        %v2125 = vshrl.u32 683565275, %v2124
        %v2126 = vshll.u32 683565275, %v2123
        %v2127 = vshrl.u32 2475754826, %v2124
        %v2128 = vor.u32 %v2126, %v2127
        %v2129 = vshll.u32 2475754826, %v2123
        %v2130 = vshrl.u32 2131351028, %v2124
        %v2131 = vor.u32 %v2129, %v2130
        %v2132 = vshll.u32 2131351028, %v2123
        %v2133 = vshrl.u32 2102212464, %v2124
        %v2134 = vor.u32 %v2132, %v2133
        %v2135 = vshll.u32 2102212464, %v2123
        %v2136 = vshrl.u32 920167782, %v2124
        %v2137 = vor.u32 %v2135, %v2136
        %v2138 = vshll.u32 920167782, %v2123
        %v2139 = vshrl.u32 1326507024, %v2124
        %v2140 = vor.u32 %v2138, %v2139
        %vm2141 = vcmp.lt.s32.totalorder %v2122, 1
        %vm2142 = vcmp.lt.s32.totalorder %v2122, 2
        %vm2143 = vcmp.lt.s32.totalorder %v2122, 3
        %vm2144 = vcmp.lt.s32.totalorder %v2122, 4
        %v2145 = vsel %vm2141, %v2125, %v2128
        %v2146 = vsel %vm2144, %v2134, 2102212464
        %v2147 = vsel %vm2143, %v2131, %v2146
        %v2148 = vsel %vm2142, %v2145, %v2147
        %v2149 = vsel %vm2141, %v2128, %v2131
        %v2150 = vsel %vm2144, %v2137, 920167782
        %v2151 = vsel %vm2143, %v2134, %v2150
        %v2152 = vsel %vm2142, %v2149, %v2151
        %v2153 = vsel %vm2141, %v2131, %v2134
        %v2154 = vsel %vm2144, %v2140, 1326507024
        %v2155 = vsel %vm2143, %v2137, %v2154
        %v2156 = vsel %vm2142, %v2153, %v2155
        %v2157 = vshll.u32 %v2117, 8
        %v2158 = vmul.u32.u64.compose %v2157, %v2156
        %v2159 = vextract.low.u32 %v2158
        %v2160 = vextract.high.u32 %v2158
        %v2161 = vmul.u32.u64.compose %v2157, %v2152
        %v2162 = vextract.low.u32 %v2161
        %v2163 = vextract.high.u32 %v2161
        %v2164 = vmul.u32 %v2157, %v2148
        %v2165 = vadd.s32 %v2160, %v2162
        %vm2166 = vc.u32 %v2160, %v2162
        %v2167 = vadd.s32 %v2163, 1
        %v2168 = vsel %vm2166, %v2167, %v2163
        %v2169 = vadd.s32 %v2164, %v2168
        %v2170 = vadd.s32 %v2169, 536870912
        %v2171 = vshrl.u32 %v2170, 30
        %v2172 = vshll.u32 %v2171, 30
        %v2173 = vsub.s32 %v2169, %v2172
        %vm2174 = vcmp.lt.s32.totalorder %v2173, 0
        %v2175 = vsub.s32 0, %v2173
        %v2176 = vsel %vm2174, %v2175, %v2173
        %v2177 = vclz %v2176
        %v2178 = vsub.s32 %v2177, 2
        %vm2179 = vcmp.gt.s32.totalorder 0, %v2178
        %v2180 = vsel %vm2179, 0, %v2178
        %v2181 = vsub.s32 32, %v2180
        %v2182 = vshll.u32 %v2173, %v2180
        %v2183 = vshrl.u32 %v2165, %v2181
        %v2184 = vor.u32 %v2182, %v2183
        %v2185 = vsub.s32 4294967266, %v2180
        %v2186 = vadd.s32 %v2185, 127
        %v2187 = vshll.u32 %v2186, 23
        %v2188 = vor.u32 4788187, %v2187
        %v2189 = vand.u32 2147483647, %v2188
        %v2191 = vcvt.s32.f32 %v2184
        %v2192 = vmul.f32 %v2191, %v2189
        %v2193 = vxor.u32 %v2192, 2147483648
        %v2194 = vsel %vm2111, %v2193, %v2192
        %v2195 = vsub.s32 4, %v2171
        %v2196 = vsel %vm2111, %v2195, %v2171
        %v2197 = vsel %vm2110, %v617, %v2194
        %v2198 = vsel %vm2110, 0, %v2196
        %v2199 = vcosq.f32.pop %v2197
        %v2200 = vsinq.f32.pop %v2197
        %vm2201 = vweird.f32 %v617
        %v2202 = vand.u32 %v2198, 3
        %vm2203 = vcmp.lt.s32.totalorder %v2202, 2
        %vm2204 = vcmp.eq.s32.totalorder %v2202, 0
        %v2205 = vxor.u32 %v2200, 2147483648
        %v2206 = vsel %vm2204, %v2199, %v2205
        %vm2207 = vcmp.eq.s32.totalorder %v2202, 2
        %v2208 = vxor.u32 %v2199, 2147483648
        %v2209 = vsel %vm2207, %v2208, %v2200
        %v2210 = vsel %vm2203, %v2206, %v2209
        %v2211 = vsel %vm2201, nan, %v2210
        %v2212 = vand.u32 2147483647, %v618
        %vm2213 = vcmp.le.f32.partialorder %v2212, 0.7853982
        %vm2214 = vcmp.lt.s32.totalorder %v618, 0
        %v2215 = vand.u32 %v618, 2139095040
        %v2216 = vshrl.u32 %v2215, 23
        %v2217 = vsub.s32 %v2216, 127
        %v2218 = vand.u32 2147483647, %v618
        %v2219 = vand.u32 %v2218, 8388607
        %v2220 = vor.u32 %v2219, 8388608
        %v2221 = vsub.s32 0, %v2220
        %v2222 = vadd.s32 %v2217, 1
        %vm2223 = vcmp.gt.s32.totalorder %v2222, 0
        %v2224 = vsel %vm2223, %v2222, 0
        %v2225 = vshrl.u32 %v2224, 5
        %v2226 = vand.u32 %v2224, 31
        %v2227 = vsub.s32 32, %v2226
        %v2228 = vshrl.u32 683565275, %v2227
        %v2229 = vshll.u32 683565275, %v2226
        %v2230 = vshrl.u32 2475754826, %v2227
        %v2231 = vor.u32 %v2229, %v2230
        %v2232 = vshll.u32 2475754826, %v2226
        %v2233 = vshrl.u32 2131351028, %v2227
        %v2234 = vor.u32 %v2232, %v2233
        %v2235 = vshll.u32 2131351028, %v2226
        %v2236 = vshrl.u32 2102212464, %v2227
        %v2237 = vor.u32 %v2235, %v2236
        %v2238 = vshll.u32 2102212464, %v2226
        %v2239 = vshrl.u32 920167782, %v2227
        %v2240 = vor.u32 %v2238, %v2239
        %v2241 = vshll.u32 920167782, %v2226
        %v2242 = vshrl.u32 1326507024, %v2227
        %v2243 = vor.u32 %v2241, %v2242
        %vm2244 = vcmp.lt.s32.totalorder %v2225, 1
        %vm2245 = vcmp.lt.s32.totalorder %v2225, 2
        %vm2246 = vcmp.lt.s32.totalorder %v2225, 3
        %vm2247 = vcmp.lt.s32.totalorder %v2225, 4
        %v2248 = vsel %vm2244, %v2228, %v2231
        %v2249 = vsel %vm2247, %v2237, 2102212464
        %v2250 = vsel %vm2246, %v2234, %v2249
        %v2251 = vsel %vm2245, %v2248, %v2250
        %v2252 = vsel %vm2244, %v2231, %v2234
        %v2253 = vsel %vm2247, %v2240, 920167782
        %v2254 = vsel %vm2246, %v2237, %v2253
        %v2255 = vsel %vm2245, %v2252, %v2254
        %v2256 = vsel %vm2244, %v2234, %v2237
        %v2257 = vsel %vm2247, %v2243, 1326507024
        %v2258 = vsel %vm2246, %v2240, %v2257
        %v2259 = vsel %vm2245, %v2256, %v2258
        %v2260 = vshll.u32 %v2220, 8
        %v2261 = vmul.u32.u64.compose %v2260, %v2259
        %v2262 = vextract.low.u32 %v2261
        %v2263 = vextract.high.u32 %v2261
        %v2264 = vmul.u32.u64.compose %v2260, %v2255
        %v2265 = vextract.low.u32 %v2264
        %v2266 = vextract.high.u32 %v2264
        %v2267 = vmul.u32 %v2260, %v2251
        %v2268 = vadd.s32 %v2263, %v2265
        %vm2269 = vc.u32 %v2263, %v2265
        %v2270 = vadd.s32 %v2266, 1
        %v2271 = vsel %vm2269, %v2270, %v2266
        %v2272 = vadd.s32 %v2267, %v2271
        %v2273 = vadd.s32 %v2272, 536870912
        %v2274 = vshrl.u32 %v2273, 30
        %v2275 = vshll.u32 %v2274, 30
        %v2276 = vsub.s32 %v2272, %v2275
        %vm2277 = vcmp.lt.s32.totalorder %v2276, 0
        %v2278 = vsub.s32 0, %v2276
        %v2279 = vsel %vm2277, %v2278, %v2276
        %v2280 = vclz %v2279
        %v2281 = vsub.s32 %v2280, 2
        %vm2282 = vcmp.gt.s32.totalorder 0, %v2281
        %v2283 = vsel %vm2282, 0, %v2281
        %v2284 = vsub.s32 32, %v2283
        %v2285 = vshll.u32 %v2276, %v2283
        %v2286 = vshrl.u32 %v2268, %v2284
        %v2287 = vor.u32 %v2285, %v2286
        %v2288 = vsub.s32 4294967266, %v2283
        %v2289 = vadd.s32 %v2288, 127
        %v2290 = vshll.u32 %v2289, 23
        %v2291 = vor.u32 4788187, %v2290
        %v2292 = vand.u32 2147483647, %v2291
        %v2294 = vcvt.s32.f32 %v2287
        %v2295 = vmul.f32 %v2294, %v2292
        %v2296 = vxor.u32 %v2295, 2147483648
        %v2297 = vsel %vm2214, %v2296, %v2295
        %v2298 = vsub.s32 4, %v2274
        %v2299 = vsel %vm2214, %v2298, %v2274
        %v2300 = vsel %vm2213, %v618, %v2297
        %v2301 = vsel %vm2213, 0, %v2299
        %v2302 = vcosq.f32.pop %v2300
        %v2303 = vsinq.f32.pop %v2300
        %vm2304 = vweird.f32 %v618
        %v2305 = vand.u32 %v2301, 3
        %vm2306 = vcmp.lt.s32.totalorder %v2305, 2
        %vm2307 = vcmp.eq.s32.totalorder %v2305, 0
        %v2308 = vxor.u32 %v2303, 2147483648
        %v2309 = vsel %vm2307, %v2302, %v2308
        %vm2310 = vcmp.eq.s32.totalorder %v2305, 2
        %v2311 = vxor.u32 %v2302, 2147483648
        %v2312 = vsel %vm2310, %v2311, %v2303
        %v2313 = vsel %vm2306, %v2309, %v2312
        %v2314 = vsel %vm2304, nan, %v2313
        %v2315 = vand.u32 2147483647, %v619
        %vm2316 = vcmp.le.f32.partialorder %v2315, 0.7853982
        %vm2317 = vcmp.lt.s32.totalorder %v619, 0
        %v2318 = vand.u32 %v619, 2139095040
        %v2319 = vshrl.u32 %v2318, 23
        %v2320 = vsub.s32 %v2319, 127
        %v2321 = vand.u32 2147483647, %v619
        %v2322 = vand.u32 %v2321, 8388607
        %v2323 = vor.u32 %v2322, 8388608
        %v2324 = vsub.s32 0, %v2323
        %v2325 = vadd.s32 %v2320, 1
        %vm2326 = vcmp.gt.s32.totalorder %v2325, 0
        %v2327 = vsel %vm2326, %v2325, 0
        %v2328 = vshrl.u32 %v2327, 5
        %v2329 = vand.u32 %v2327, 31
        %v2330 = vsub.s32 32, %v2329
        %v2331 = vshrl.u32 683565275, %v2330
        %v2332 = vshll.u32 683565275, %v2329
        %v2333 = vshrl.u32 2475754826, %v2330
        %v2334 = vor.u32 %v2332, %v2333
        %v2335 = vshll.u32 2475754826, %v2329
        %v2336 = vshrl.u32 2131351028, %v2330
        %v2337 = vor.u32 %v2335, %v2336
        %v2338 = vshll.u32 2131351028, %v2329
        %v2339 = vshrl.u32 2102212464, %v2330
        %v2340 = vor.u32 %v2338, %v2339
        %v2341 = vshll.u32 2102212464, %v2329
        %v2342 = vshrl.u32 920167782, %v2330
        %v2343 = vor.u32 %v2341, %v2342
        %v2344 = vshll.u32 920167782, %v2329
        %v2345 = vshrl.u32 1326507024, %v2330
        %v2346 = vor.u32 %v2344, %v2345
        %vm2347 = vcmp.lt.s32.totalorder %v2328, 1
        %vm2348 = vcmp.lt.s32.totalorder %v2328, 2
        %vm2349 = vcmp.lt.s32.totalorder %v2328, 3
        %vm2350 = vcmp.lt.s32.totalorder %v2328, 4
        %v2351 = vsel %vm2347, %v2331, %v2334
        %v2352 = vsel %vm2350, %v2340, 2102212464
        %v2353 = vsel %vm2349, %v2337, %v2352
        %v2354 = vsel %vm2348, %v2351, %v2353
        %v2355 = vsel %vm2347, %v2334, %v2337
        %v2356 = vsel %vm2350, %v2343, 920167782
        %v2357 = vsel %vm2349, %v2340, %v2356
        %v2358 = vsel %vm2348, %v2355, %v2357
        %v2359 = vsel %vm2347, %v2337, %v2340
        %v2360 = vsel %vm2350, %v2346, 1326507024
        %v2361 = vsel %vm2349, %v2343, %v2360
        %v2362 = vsel %vm2348, %v2359, %v2361
        %v2363 = vshll.u32 %v2323, 8
        %v2364 = vmul.u32.u64.compose %v2363, %v2362
        %v2365 = vextract.low.u32 %v2364
        %v2366 = vextract.high.u32 %v2364
        %v2367 = vmul.u32.u64.compose %v2363, %v2358
        %v2368 = vextract.low.u32 %v2367
        %v2369 = vextract.high.u32 %v2367
        %v2370 = vmul.u32 %v2363, %v2354
        %v2371 = vadd.s32 %v2366, %v2368
        %vm2372 = vc.u32 %v2366, %v2368
        %v2373 = vadd.s32 %v2369, 1
        %v2374 = vsel %vm2372, %v2373, %v2369
        %v2375 = vadd.s32 %v2370, %v2374
        %v2376 = vadd.s32 %v2375, 536870912
        %v2377 = vshrl.u32 %v2376, 30
        %v2378 = vshll.u32 %v2377, 30
        %v2379 = vsub.s32 %v2375, %v2378
        %vm2380 = vcmp.lt.s32.totalorder %v2379, 0
        %v2381 = vsub.s32 0, %v2379
        %v2382 = vsel %vm2380, %v2381, %v2379
        %v2383 = vclz %v2382
        %v2384 = vsub.s32 %v2383, 2
        %vm2385 = vcmp.gt.s32.totalorder 0, %v2384
        %v2386 = vsel %vm2385, 0, %v2384
        %v2387 = vsub.s32 32, %v2386
        %v2388 = vshll.u32 %v2379, %v2386
        %v2389 = vshrl.u32 %v2371, %v2387
        %v2390 = vor.u32 %v2388, %v2389
        %v2391 = vsub.s32 4294967266, %v2386
        %v2392 = vadd.s32 %v2391, 127
        %v2393 = vshll.u32 %v2392, 23
        %v2394 = vor.u32 4788187, %v2393
        %v2395 = vand.u32 2147483647, %v2394
        %v2397 = vcvt.s32.f32 %v2390
        %v2398 = vmul.f32 %v2397, %v2395
        %v2399 = vxor.u32 %v2398, 2147483648
        %v2400 = vsel %vm2317, %v2399, %v2398
        %v2401 = vsub.s32 4, %v2377
        %v2402 = vsel %vm2317, %v2401, %v2377
        %v2403 = vsel %vm2316, %v619, %v2400
        %v2404 = vsel %vm2316, 0, %v2402
        %v2405 = vcosq.f32.pop %v2403
        %v2406 = vsinq.f32.pop %v2403
        %vm2407 = vweird.f32 %v619
        %v2408 = vand.u32 %v2404, 3
        %vm2409 = vcmp.lt.s32.totalorder %v2408, 2
        %vm2410 = vcmp.eq.s32.totalorder %v2408, 0
        %v2411 = vxor.u32 %v2406, 2147483648
        %v2412 = vsel %vm2410, %v2405, %v2411
        %vm2413 = vcmp.eq.s32.totalorder %v2408, 2
        %v2414 = vxor.u32 %v2405, 2147483648
        %v2415 = vsel %vm2413, %v2414, %v2406
        %v2416 = vsel %vm2409, %v2412, %v2415
        %v2417 = vsel %vm2407, nan, %v2416
        %v2418 = vand.u32 2147483647, %v620
        %vm2419 = vcmp.le.f32.partialorder %v2418, 0.7853982
        %vm2420 = vcmp.lt.s32.totalorder %v620, 0
        %v2421 = vand.u32 %v620, 2139095040
        %v2422 = vshrl.u32 %v2421, 23
        %v2423 = vsub.s32 %v2422, 127
        %v2424 = vand.u32 2147483647, %v620
        %v2425 = vand.u32 %v2424, 8388607
        %v2426 = vor.u32 %v2425, 8388608
        %v2427 = vsub.s32 0, %v2426
        %v2428 = vadd.s32 %v2423, 1
        %vm2429 = vcmp.gt.s32.totalorder %v2428, 0
        %v2430 = vsel %vm2429, %v2428, 0
        %v2431 = vshrl.u32 %v2430, 5
        %v2432 = vand.u32 %v2430, 31
        %v2433 = vsub.s32 32, %v2432
        %v2434 = vshrl.u32 683565275, %v2433
        %v2435 = vshll.u32 683565275, %v2432
        %v2436 = vshrl.u32 2475754826, %v2433
        %v2437 = vor.u32 %v2435, %v2436
        %v2438 = vshll.u32 2475754826, %v2432
        %v2439 = vshrl.u32 2131351028, %v2433
        %v2440 = vor.u32 %v2438, %v2439
        %v2441 = vshll.u32 2131351028, %v2432
        %v2442 = vshrl.u32 2102212464, %v2433
        %v2443 = vor.u32 %v2441, %v2442
        %v2444 = vshll.u32 2102212464, %v2432
        %v2445 = vshrl.u32 920167782, %v2433
        %v2446 = vor.u32 %v2444, %v2445
        %v2447 = vshll.u32 920167782, %v2432
        %v2448 = vshrl.u32 1326507024, %v2433
        %v2449 = vor.u32 %v2447, %v2448
        %vm2450 = vcmp.lt.s32.totalorder %v2431, 1
        %vm2451 = vcmp.lt.s32.totalorder %v2431, 2
        %vm2452 = vcmp.lt.s32.totalorder %v2431, 3
        %vm2453 = vcmp.lt.s32.totalorder %v2431, 4
        %v2454 = vsel %vm2450, %v2434, %v2437
        %v2455 = vsel %vm2453, %v2443, 2102212464
        %v2456 = vsel %vm2452, %v2440, %v2455
        %v2457 = vsel %vm2451, %v2454, %v2456
        %v2458 = vsel %vm2450, %v2437, %v2440
        %v2459 = vsel %vm2453, %v2446, 920167782
        %v2460 = vsel %vm2452, %v2443, %v2459
        %v2461 = vsel %vm2451, %v2458, %v2460
        %v2462 = vsel %vm2450, %v2440, %v2443
        %v2463 = vsel %vm2453, %v2449, 1326507024
        %v2464 = vsel %vm2452, %v2446, %v2463
        %v2465 = vsel %vm2451, %v2462, %v2464
        %v2466 = vshll.u32 %v2426, 8
        %v2467 = vmul.u32.u64.compose %v2466, %v2465
        %v2468 = vextract.low.u32 %v2467
        %v2469 = vextract.high.u32 %v2467
        %v2470 = vmul.u32.u64.compose %v2466, %v2461
        %v2471 = vextract.low.u32 %v2470
        %v2472 = vextract.high.u32 %v2470
        %v2473 = vmul.u32 %v2466, %v2457
        %v2474 = vadd.s32 %v2469, %v2471
        %vm2475 = vc.u32 %v2469, %v2471
        %v2476 = vadd.s32 %v2472, 1
        %v2477 = vsel %vm2475, %v2476, %v2472
        %v2478 = vadd.s32 %v2473, %v2477
        %v2479 = vadd.s32 %v2478, 536870912
        %v2480 = vshrl.u32 %v2479, 30
        %v2481 = vshll.u32 %v2480, 30
        %v2482 = vsub.s32 %v2478, %v2481
        %vm2483 = vcmp.lt.s32.totalorder %v2482, 0
        %v2484 = vsub.s32 0, %v2482
        %v2485 = vsel %vm2483, %v2484, %v2482
        %v2486 = vclz %v2485
        %v2487 = vsub.s32 %v2486, 2
        %vm2488 = vcmp.gt.s32.totalorder 0, %v2487
        %v2489 = vsel %vm2488, 0, %v2487
        %v2490 = vsub.s32 32, %v2489
        %v2491 = vshll.u32 %v2482, %v2489
        %v2492 = vshrl.u32 %v2474, %v2490
        %v2493 = vor.u32 %v2491, %v2492
        %v2494 = vsub.s32 4294967266, %v2489
        %v2495 = vadd.s32 %v2494, 127
        %v2496 = vshll.u32 %v2495, 23
        %v2497 = vor.u32 4788187, %v2496
        %v2498 = vand.u32 2147483647, %v2497
        %v2500 = vcvt.s32.f32 %v2493
        %v2501 = vmul.f32 %v2500, %v2498
        %v2502 = vxor.u32 %v2501, 2147483648
        %v2503 = vsel %vm2420, %v2502, %v2501
        %v2504 = vsub.s32 4, %v2480
        %v2505 = vsel %vm2420, %v2504, %v2480
        %v2506 = vsel %vm2419, %v620, %v2503
        %v2507 = vsel %vm2419, 0, %v2505
        %v2508 = vcosq.f32.pop %v2506
        %v2509 = vsinq.f32.pop %v2506
        %vm2510 = vweird.f32 %v620
        %v2511 = vand.u32 %v2507, 3
        %vm2512 = vcmp.lt.s32.totalorder %v2511, 2
        %vm2513 = vcmp.eq.s32.totalorder %v2511, 0
        %v2514 = vxor.u32 %v2509, 2147483648
        %v2515 = vsel %vm2513, %v2508, %v2514
        %vm2516 = vcmp.eq.s32.totalorder %v2511, 2
        %v2517 = vxor.u32 %v2508, 2147483648
        %v2518 = vsel %vm2516, %v2517, %v2509
        %v2519 = vsel %vm2512, %v2515, %v2518
        %v2520 = vsel %vm2510, nan, %v2519
        %v2521 = vand.u32 2147483647, %v621
        %vm2522 = vcmp.le.f32.partialorder %v2521, 0.7853982
        %vm2523 = vcmp.lt.s32.totalorder %v621, 0
        %v2524 = vand.u32 %v621, 2139095040
        %v2525 = vshrl.u32 %v2524, 23
        %v2526 = vsub.s32 %v2525, 127
        %v2527 = vand.u32 2147483647, %v621
        %v2528 = vand.u32 %v2527, 8388607
        %v2529 = vor.u32 %v2528, 8388608
        %v2530 = vsub.s32 0, %v2529
        %v2531 = vadd.s32 %v2526, 1
        %vm2532 = vcmp.gt.s32.totalorder %v2531, 0
        %v2533 = vsel %vm2532, %v2531, 0
        %v2534 = vshrl.u32 %v2533, 5
        %v2535 = vand.u32 %v2533, 31
        %v2536 = vsub.s32 32, %v2535
        %v2537 = vshrl.u32 683565275, %v2536
        %v2538 = vshll.u32 683565275, %v2535
        %v2539 = vshrl.u32 2475754826, %v2536
        %v2540 = vor.u32 %v2538, %v2539
        %v2541 = vshll.u32 2475754826, %v2535
        %v2542 = vshrl.u32 2131351028, %v2536
        %v2543 = vor.u32 %v2541, %v2542
        %v2544 = vshll.u32 2131351028, %v2535
        %v2545 = vshrl.u32 2102212464, %v2536
        %v2546 = vor.u32 %v2544, %v2545
        %v2547 = vshll.u32 2102212464, %v2535
        %v2548 = vshrl.u32 920167782, %v2536
        %v2549 = vor.u32 %v2547, %v2548
        %v2550 = vshll.u32 920167782, %v2535
        %v2551 = vshrl.u32 1326507024, %v2536
        %v2552 = vor.u32 %v2550, %v2551
        %vm2553 = vcmp.lt.s32.totalorder %v2534, 1
        %vm2554 = vcmp.lt.s32.totalorder %v2534, 2
        %vm2555 = vcmp.lt.s32.totalorder %v2534, 3
        %vm2556 = vcmp.lt.s32.totalorder %v2534, 4
        %v2557 = vsel %vm2553, %v2537, %v2540
        %v2558 = vsel %vm2556, %v2546, 2102212464
        %v2559 = vsel %vm2555, %v2543, %v2558
        %v2560 = vsel %vm2554, %v2557, %v2559
        %v2561 = vsel %vm2553, %v2540, %v2543
        %v2562 = vsel %vm2556, %v2549, 920167782
        %v2563 = vsel %vm2555, %v2546, %v2562
        %v2564 = vsel %vm2554, %v2561, %v2563
        %v2565 = vsel %vm2553, %v2543, %v2546
        %v2566 = vsel %vm2556, %v2552, 1326507024
        %v2567 = vsel %vm2555, %v2549, %v2566
        %v2568 = vsel %vm2554, %v2565, %v2567
        %v2569 = vshll.u32 %v2529, 8
        %v2570 = vmul.u32.u64.compose %v2569, %v2568
        %v2571 = vextract.low.u32 %v2570
        %v2572 = vextract.high.u32 %v2570
        %v2573 = vmul.u32.u64.compose %v2569, %v2564
        %v2574 = vextract.low.u32 %v2573
        %v2575 = vextract.high.u32 %v2573
        %v2576 = vmul.u32 %v2569, %v2560
        %v2577 = vadd.s32 %v2572, %v2574
        %vm2578 = vc.u32 %v2572, %v2574
        %v2579 = vadd.s32 %v2575, 1
        %v2580 = vsel %vm2578, %v2579, %v2575
        %v2581 = vadd.s32 %v2576, %v2580
        %v2582 = vadd.s32 %v2581, 536870912
        %v2583 = vshrl.u32 %v2582, 30
        %v2584 = vshll.u32 %v2583, 30
        %v2585 = vsub.s32 %v2581, %v2584
        %vm2586 = vcmp.lt.s32.totalorder %v2585, 0
        %v2587 = vsub.s32 0, %v2585
        %v2588 = vsel %vm2586, %v2587, %v2585
        %v2589 = vclz %v2588
        %v2590 = vsub.s32 %v2589, 2
        %vm2591 = vcmp.gt.s32.totalorder 0, %v2590
        %v2592 = vsel %vm2591, 0, %v2590
        %v2593 = vsub.s32 32, %v2592
        %v2594 = vshll.u32 %v2585, %v2592
        %v2595 = vshrl.u32 %v2577, %v2593
        %v2596 = vor.u32 %v2594, %v2595
        %v2597 = vsub.s32 4294967266, %v2592
        %v2598 = vadd.s32 %v2597, 127
        %v2599 = vshll.u32 %v2598, 23
        %v2600 = vor.u32 4788187, %v2599
        %v2601 = vand.u32 2147483647, %v2600
        %v2603 = vcvt.s32.f32 %v2596
        %v2604 = vmul.f32 %v2603, %v2601
        %v2605 = vxor.u32 %v2604, 2147483648
        %v2606 = vsel %vm2523, %v2605, %v2604
        %v2607 = vsub.s32 4, %v2583
        %v2608 = vsel %vm2523, %v2607, %v2583
        %v2609 = vsel %vm2522, %v621, %v2606
        %v2610 = vsel %vm2522, 0, %v2608
        %v2611 = vcosq.f32.pop %v2609
        %v2612 = vsinq.f32.pop %v2609
        %vm2613 = vweird.f32 %v621
        %v2614 = vand.u32 %v2610, 3
        %vm2615 = vcmp.lt.s32.totalorder %v2614, 2
        %vm2616 = vcmp.eq.s32.totalorder %v2614, 0
        %v2617 = vxor.u32 %v2612, 2147483648
        %v2618 = vsel %vm2616, %v2611, %v2617
        %vm2619 = vcmp.eq.s32.totalorder %v2614, 2
        %v2620 = vxor.u32 %v2611, 2147483648
        %v2621 = vsel %vm2619, %v2620, %v2612
        %v2622 = vsel %vm2615, %v2618, %v2621
        %v2623 = vsel %vm2613, nan, %v2622
        %v2624 = vand.u32 2147483647, %v622
        %vm2625 = vcmp.le.f32.partialorder %v2624, 0.7853982
        %vm2626 = vcmp.lt.s32.totalorder %v622, 0
        %v2627 = vand.u32 %v622, 2139095040
        %v2628 = vshrl.u32 %v2627, 23
        %v2629 = vsub.s32 %v2628, 127
        %v2630 = vand.u32 2147483647, %v622
        %v2631 = vand.u32 %v2630, 8388607
        %v2632 = vor.u32 %v2631, 8388608
        %v2633 = vsub.s32 0, %v2632
        %v2634 = vadd.s32 %v2629, 1
        %vm2635 = vcmp.gt.s32.totalorder %v2634, 0
        %v2636 = vsel %vm2635, %v2634, 0
        %v2637 = vshrl.u32 %v2636, 5
        %v2638 = vand.u32 %v2636, 31
        %v2639 = vsub.s32 32, %v2638
        %v2640 = vshrl.u32 683565275, %v2639
        %v2641 = vshll.u32 683565275, %v2638
        %v2642 = vshrl.u32 2475754826, %v2639
        %v2643 = vor.u32 %v2641, %v2642
        %v2644 = vshll.u32 2475754826, %v2638
        %v2645 = vshrl.u32 2131351028, %v2639
        %v2646 = vor.u32 %v2644, %v2645
        %v2647 = vshll.u32 2131351028, %v2638
        %v2648 = vshrl.u32 2102212464, %v2639
        %v2649 = vor.u32 %v2647, %v2648
        %v2650 = vshll.u32 2102212464, %v2638
        %v2651 = vshrl.u32 920167782, %v2639
        %v2652 = vor.u32 %v2650, %v2651
        %v2653 = vshll.u32 920167782, %v2638
        %v2654 = vshrl.u32 1326507024, %v2639
        %v2655 = vor.u32 %v2653, %v2654
        %vm2656 = vcmp.lt.s32.totalorder %v2637, 1
        %vm2657 = vcmp.lt.s32.totalorder %v2637, 2
        %vm2658 = vcmp.lt.s32.totalorder %v2637, 3
        %vm2659 = vcmp.lt.s32.totalorder %v2637, 4
        %v2660 = vsel %vm2656, %v2640, %v2643
        %v2661 = vsel %vm2659, %v2649, 2102212464
        %v2662 = vsel %vm2658, %v2646, %v2661
        %v2663 = vsel %vm2657, %v2660, %v2662
        %v2664 = vsel %vm2656, %v2643, %v2646
        %v2665 = vsel %vm2659, %v2652, 920167782
        %v2666 = vsel %vm2658, %v2649, %v2665
        %v2667 = vsel %vm2657, %v2664, %v2666
        %v2668 = vsel %vm2656, %v2646, %v2649
        %v2669 = vsel %vm2659, %v2655, 1326507024
        %v2670 = vsel %vm2658, %v2652, %v2669
        %v2671 = vsel %vm2657, %v2668, %v2670
        %v2672 = vshll.u32 %v2632, 8
        %v2673 = vmul.u32.u64.compose %v2672, %v2671
        %v2674 = vextract.low.u32 %v2673
        %v2675 = vextract.high.u32 %v2673
        %v2676 = vmul.u32.u64.compose %v2672, %v2667
        %v2677 = vextract.low.u32 %v2676
        %v2678 = vextract.high.u32 %v2676
        %v2679 = vmul.u32 %v2672, %v2663
        %v2680 = vadd.s32 %v2675, %v2677
        %vm2681 = vc.u32 %v2675, %v2677
        %v2682 = vadd.s32 %v2678, 1
        %v2683 = vsel %vm2681, %v2682, %v2678
        %v2684 = vadd.s32 %v2679, %v2683
        %v2685 = vadd.s32 %v2684, 536870912
        %v2686 = vshrl.u32 %v2685, 30
        %v2687 = vshll.u32 %v2686, 30
        %v2688 = vsub.s32 %v2684, %v2687
        %vm2689 = vcmp.lt.s32.totalorder %v2688, 0
        %v2690 = vsub.s32 0, %v2688
        %v2691 = vsel %vm2689, %v2690, %v2688
        %v2692 = vclz %v2691
        %v2693 = vsub.s32 %v2692, 2
        %vm2694 = vcmp.gt.s32.totalorder 0, %v2693
        %v2695 = vsel %vm2694, 0, %v2693
        %v2696 = vsub.s32 32, %v2695
        %v2697 = vshll.u32 %v2688, %v2695
        %v2698 = vshrl.u32 %v2680, %v2696
        %v2699 = vor.u32 %v2697, %v2698
        %v2700 = vsub.s32 4294967266, %v2695
        %v2701 = vadd.s32 %v2700, 127
        %v2702 = vshll.u32 %v2701, 23
        %v2703 = vor.u32 4788187, %v2702
        %v2704 = vand.u32 2147483647, %v2703
        %v2706 = vcvt.s32.f32 %v2699
        %v2707 = vmul.f32 %v2706, %v2704
        %v2708 = vxor.u32 %v2707, 2147483648
        %v2709 = vsel %vm2626, %v2708, %v2707
        %v2710 = vsub.s32 4, %v2686
        %v2711 = vsel %vm2626, %v2710, %v2686
        %v2712 = vsel %vm2625, %v622, %v2709
        %v2713 = vsel %vm2625, 0, %v2711
        %v2714 = vcosq.f32.pop %v2712
        %v2715 = vsinq.f32.pop %v2712
        %vm2716 = vweird.f32 %v622
        %v2717 = vand.u32 %v2713, 3
        %vm2718 = vcmp.lt.s32.totalorder %v2717, 2
        %vm2719 = vcmp.eq.s32.totalorder %v2717, 0
        %v2720 = vxor.u32 %v2715, 2147483648
        %v2721 = vsel %vm2719, %v2714, %v2720
        %vm2722 = vcmp.eq.s32.totalorder %v2717, 2
        %v2723 = vxor.u32 %v2714, 2147483648
        %v2724 = vsel %vm2722, %v2723, %v2715
        %v2725 = vsel %vm2718, %v2721, %v2724
        %v2726 = vsel %vm2716, nan, %v2725
        %v2727 = vand.u32 2147483647, %v623
        %vm2728 = vcmp.le.f32.partialorder %v2727, 0.7853982
        %vm2729 = vcmp.lt.s32.totalorder %v623, 0
        %v2730 = vand.u32 %v623, 2139095040
        %v2731 = vshrl.u32 %v2730, 23
        %v2732 = vsub.s32 %v2731, 127
        %v2733 = vand.u32 2147483647, %v623
        %v2734 = vand.u32 %v2733, 8388607
        %v2735 = vor.u32 %v2734, 8388608
        %v2736 = vsub.s32 0, %v2735
        %v2737 = vadd.s32 %v2732, 1
        %vm2738 = vcmp.gt.s32.totalorder %v2737, 0
        %v2739 = vsel %vm2738, %v2737, 0
        %v2740 = vshrl.u32 %v2739, 5
        %v2741 = vand.u32 %v2739, 31
        %v2742 = vsub.s32 32, %v2741
        %v2743 = vshrl.u32 683565275, %v2742
        %v2744 = vshll.u32 683565275, %v2741
        %v2745 = vshrl.u32 2475754826, %v2742
        %v2746 = vor.u32 %v2744, %v2745
        %v2747 = vshll.u32 2475754826, %v2741
        %v2748 = vshrl.u32 2131351028, %v2742
        %v2749 = vor.u32 %v2747, %v2748
        %v2750 = vshll.u32 2131351028, %v2741
        %v2751 = vshrl.u32 2102212464, %v2742
        %v2752 = vor.u32 %v2750, %v2751
        %v2753 = vshll.u32 2102212464, %v2741
        %v2754 = vshrl.u32 920167782, %v2742
        %v2755 = vor.u32 %v2753, %v2754
        %v2756 = vshll.u32 920167782, %v2741
        %v2757 = vshrl.u32 1326507024, %v2742
        %v2758 = vor.u32 %v2756, %v2757
        %vm2759 = vcmp.lt.s32.totalorder %v2740, 1
        %vm2760 = vcmp.lt.s32.totalorder %v2740, 2
        %vm2761 = vcmp.lt.s32.totalorder %v2740, 3
        %vm2762 = vcmp.lt.s32.totalorder %v2740, 4
        %v2763 = vsel %vm2759, %v2743, %v2746
        %v2764 = vsel %vm2762, %v2752, 2102212464
        %v2765 = vsel %vm2761, %v2749, %v2764
        %v2766 = vsel %vm2760, %v2763, %v2765
        %v2767 = vsel %vm2759, %v2746, %v2749
        %v2768 = vsel %vm2762, %v2755, 920167782
        %v2769 = vsel %vm2761, %v2752, %v2768
        %v2770 = vsel %vm2760, %v2767, %v2769
        %v2771 = vsel %vm2759, %v2749, %v2752
        %v2772 = vsel %vm2762, %v2758, 1326507024
        %v2773 = vsel %vm2761, %v2755, %v2772
        %v2774 = vsel %vm2760, %v2771, %v2773
        %v2775 = vshll.u32 %v2735, 8
        %v2776 = vmul.u32.u64.compose %v2775, %v2774
        %v2777 = vextract.low.u32 %v2776
        %v2778 = vextract.high.u32 %v2776
        %v2779 = vmul.u32.u64.compose %v2775, %v2770
        %v2780 = vextract.low.u32 %v2779
        %v2781 = vextract.high.u32 %v2779
        %v2782 = vmul.u32 %v2775, %v2766
        %v2783 = vadd.s32 %v2778, %v2780
        %vm2784 = vc.u32 %v2778, %v2780
        %v2785 = vadd.s32 %v2781, 1
        %v2786 = vsel %vm2784, %v2785, %v2781
        %v2787 = vadd.s32 %v2782, %v2786
        %v2788 = vadd.s32 %v2787, 536870912
        %v2789 = vshrl.u32 %v2788, 30
        %v2790 = vshll.u32 %v2789, 30
        %v2791 = vsub.s32 %v2787, %v2790
        %vm2792 = vcmp.lt.s32.totalorder %v2791, 0
        %v2793 = vsub.s32 0, %v2791
        %v2794 = vsel %vm2792, %v2793, %v2791
        %v2795 = vclz %v2794
        %v2796 = vsub.s32 %v2795, 2
        %vm2797 = vcmp.gt.s32.totalorder 0, %v2796
        %v2798 = vsel %vm2797, 0, %v2796
        %v2799 = vsub.s32 32, %v2798
        %v2800 = vshll.u32 %v2791, %v2798
        %v2801 = vshrl.u32 %v2783, %v2799
        %v2802 = vor.u32 %v2800, %v2801
        %v2803 = vsub.s32 4294967266, %v2798
        %v2804 = vadd.s32 %v2803, 127
        %v2805 = vshll.u32 %v2804, 23
        %v2806 = vor.u32 4788187, %v2805
        %v2807 = vand.u32 2147483647, %v2806
        %v2809 = vcvt.s32.f32 %v2802
        %v2810 = vmul.f32 %v2809, %v2807
        %v2811 = vxor.u32 %v2810, 2147483648
        %v2812 = vsel %vm2729, %v2811, %v2810
        %v2813 = vsub.s32 4, %v2789
        %v2814 = vsel %vm2729, %v2813, %v2789
        %v2815 = vsel %vm2728, %v623, %v2812
        %v2816 = vsel %vm2728, 0, %v2814
        %v2817 = vcosq.f32.pop %v2815
        %v2818 = vsinq.f32.pop %v2815
        %vm2819 = vweird.f32 %v623
        %v2820 = vand.u32 %v2816, 3
        %vm2821 = vcmp.lt.s32.totalorder %v2820, 2
        %vm2822 = vcmp.eq.s32.totalorder %v2820, 0
        %v2823 = vxor.u32 %v2818, 2147483648
        %v2824 = vsel %vm2822, %v2817, %v2823
        %vm2825 = vcmp.eq.s32.totalorder %v2820, 2
        %v2826 = vxor.u32 %v2817, 2147483648
        %v2827 = vsel %vm2825, %v2826, %v2818
        %v2828 = vsel %vm2821, %v2824, %v2827
        %v2829 = vsel %vm2819, nan, %v2828
        %v2830 = vand.u32 2147483647, %v624
        %vm2831 = vcmp.le.f32.partialorder %v2830, 0.7853982
        %vm2832 = vcmp.lt.s32.totalorder %v624, 0
        %v2833 = vand.u32 %v624, 2139095040
        %v2834 = vshrl.u32 %v2833, 23
        %v2835 = vsub.s32 %v2834, 127
        %v2836 = vand.u32 2147483647, %v624
        %v2837 = vand.u32 %v2836, 8388607
        %v2838 = vor.u32 %v2837, 8388608
        %v2839 = vsub.s32 0, %v2838
        %v2840 = vadd.s32 %v2835, 1
        %vm2841 = vcmp.gt.s32.totalorder %v2840, 0
        %v2842 = vsel %vm2841, %v2840, 0
        %v2843 = vshrl.u32 %v2842, 5
        %v2844 = vand.u32 %v2842, 31
        %v2845 = vsub.s32 32, %v2844
        %v2846 = vshrl.u32 683565275, %v2845
        %v2847 = vshll.u32 683565275, %v2844
        %v2848 = vshrl.u32 2475754826, %v2845
        %v2849 = vor.u32 %v2847, %v2848
        %v2850 = vshll.u32 2475754826, %v2844
        %v2851 = vshrl.u32 2131351028, %v2845
        %v2852 = vor.u32 %v2850, %v2851
        %v2853 = vshll.u32 2131351028, %v2844
        %v2854 = vshrl.u32 2102212464, %v2845
        %v2855 = vor.u32 %v2853, %v2854
        %v2856 = vshll.u32 2102212464, %v2844
        %v2857 = vshrl.u32 920167782, %v2845
        %v2858 = vor.u32 %v2856, %v2857
        %v2859 = vshll.u32 920167782, %v2844
        %v2860 = vshrl.u32 1326507024, %v2845
        %v2861 = vor.u32 %v2859, %v2860
        %vm2862 = vcmp.lt.s32.totalorder %v2843, 1
        %vm2863 = vcmp.lt.s32.totalorder %v2843, 2
        %vm2864 = vcmp.lt.s32.totalorder %v2843, 3
        %vm2865 = vcmp.lt.s32.totalorder %v2843, 4
        %v2866 = vsel %vm2862, %v2846, %v2849
        %v2867 = vsel %vm2865, %v2855, 2102212464
        %v2868 = vsel %vm2864, %v2852, %v2867
        %v2869 = vsel %vm2863, %v2866, %v2868
        %v2870 = vsel %vm2862, %v2849, %v2852
        %v2871 = vsel %vm2865, %v2858, 920167782
        %v2872 = vsel %vm2864, %v2855, %v2871
        %v2873 = vsel %vm2863, %v2870, %v2872
        %v2874 = vsel %vm2862, %v2852, %v2855
        %v2875 = vsel %vm2865, %v2861, 1326507024
        %v2876 = vsel %vm2864, %v2858, %v2875
        %v2877 = vsel %vm2863, %v2874, %v2876
        %v2878 = vshll.u32 %v2838, 8
        %v2879 = vmul.u32.u64.compose %v2878, %v2877
        %v2880 = vextract.low.u32 %v2879
        %v2881 = vextract.high.u32 %v2879
        %v2882 = vmul.u32.u64.compose %v2878, %v2873
        %v2883 = vextract.low.u32 %v2882
        %v2884 = vextract.high.u32 %v2882
        %v2885 = vmul.u32 %v2878, %v2869
        %v2886 = vadd.s32 %v2881, %v2883
        %vm2887 = vc.u32 %v2881, %v2883
        %v2888 = vadd.s32 %v2884, 1
        %v2889 = vsel %vm2887, %v2888, %v2884
        %v2890 = vadd.s32 %v2885, %v2889
        %v2891 = vadd.s32 %v2890, 536870912
        %v2892 = vshrl.u32 %v2891, 30
        %v2893 = vshll.u32 %v2892, 30
        %v2894 = vsub.s32 %v2890, %v2893
        %vm2895 = vcmp.lt.s32.totalorder %v2894, 0
        %v2896 = vsub.s32 0, %v2894
        %v2897 = vsel %vm2895, %v2896, %v2894
        %v2898 = vclz %v2897
        %v2899 = vsub.s32 %v2898, 2
        %vm2900 = vcmp.gt.s32.totalorder 0, %v2899
        %v2901 = vsel %vm2900, 0, %v2899
        %v2902 = vsub.s32 32, %v2901
        %v2903 = vshll.u32 %v2894, %v2901
        %v2904 = vshrl.u32 %v2886, %v2902
        %v2905 = vor.u32 %v2903, %v2904
        %v2906 = vsub.s32 4294967266, %v2901
        %v2907 = vadd.s32 %v2906, 127
        %v2908 = vshll.u32 %v2907, 23
        %v2909 = vor.u32 4788187, %v2908
        %v2910 = vand.u32 2147483647, %v2909
        %v2912 = vcvt.s32.f32 %v2905
        %v2913 = vmul.f32 %v2912, %v2910
        %v2914 = vxor.u32 %v2913, 2147483648
        %v2915 = vsel %vm2832, %v2914, %v2913
        %v2916 = vsub.s32 4, %v2892
        %v2917 = vsel %vm2832, %v2916, %v2892
        %v2918 = vsel %vm2831, %v624, %v2915
        %v2919 = vsel %vm2831, 0, %v2917
        %v2920 = vcosq.f32.pop %v2918
        %v2921 = vsinq.f32.pop %v2918
        %vm2922 = vweird.f32 %v624
        %v2923 = vand.u32 %v2919, 3
        %vm2924 = vcmp.lt.s32.totalorder %v2923, 2
        %vm2925 = vcmp.eq.s32.totalorder %v2923, 0
        %v2926 = vxor.u32 %v2921, 2147483648
        %v2927 = vsel %vm2925, %v2920, %v2926
        %vm2928 = vcmp.eq.s32.totalorder %v2923, 2
        %v2929 = vxor.u32 %v2920, 2147483648
        %v2930 = vsel %vm2928, %v2929, %v2921
        %v2931 = vsel %vm2924, %v2927, %v2930
        %v2932 = vsel %vm2922, nan, %v2931
        %v2933 = vand.u32 2147483647, %v625
        %vm2934 = vcmp.le.f32.partialorder %v2933, 0.7853982
        %vm2935 = vcmp.lt.s32.totalorder %v625, 0
        %v2936 = vand.u32 %v625, 2139095040
        %v2937 = vshrl.u32 %v2936, 23
        %v2938 = vsub.s32 %v2937, 127
        %v2939 = vand.u32 2147483647, %v625
        %v2940 = vand.u32 %v2939, 8388607
        %v2941 = vor.u32 %v2940, 8388608
        %v2942 = vsub.s32 0, %v2941
        %v2943 = vadd.s32 %v2938, 1
        %vm2944 = vcmp.gt.s32.totalorder %v2943, 0
        %v2945 = vsel %vm2944, %v2943, 0
        %v2946 = vshrl.u32 %v2945, 5
        %v2947 = vand.u32 %v2945, 31
        %v2948 = vsub.s32 32, %v2947
        %v2949 = vshrl.u32 683565275, %v2948
        %v2950 = vshll.u32 683565275, %v2947
        %v2951 = vshrl.u32 2475754826, %v2948
        %v2952 = vor.u32 %v2950, %v2951
        %v2953 = vshll.u32 2475754826, %v2947
        %v2954 = vshrl.u32 2131351028, %v2948
        %v2955 = vor.u32 %v2953, %v2954
        %v2956 = vshll.u32 2131351028, %v2947
        %v2957 = vshrl.u32 2102212464, %v2948
        %v2958 = vor.u32 %v2956, %v2957
        %v2959 = vshll.u32 2102212464, %v2947
        %v2960 = vshrl.u32 920167782, %v2948
        %v2961 = vor.u32 %v2959, %v2960
        %v2962 = vshll.u32 920167782, %v2947
        %v2963 = vshrl.u32 1326507024, %v2948
        %v2964 = vor.u32 %v2962, %v2963
        %vm2965 = vcmp.lt.s32.totalorder %v2946, 1
        %vm2966 = vcmp.lt.s32.totalorder %v2946, 2
        %vm2967 = vcmp.lt.s32.totalorder %v2946, 3
        %vm2968 = vcmp.lt.s32.totalorder %v2946, 4
        %v2969 = vsel %vm2965, %v2949, %v2952
        %v2970 = vsel %vm2968, %v2958, 2102212464
        %v2971 = vsel %vm2967, %v2955, %v2970
        %v2972 = vsel %vm2966, %v2969, %v2971
        %v2973 = vsel %vm2965, %v2952, %v2955
        %v2974 = vsel %vm2968, %v2961, 920167782
        %v2975 = vsel %vm2967, %v2958, %v2974
        %v2976 = vsel %vm2966, %v2973, %v2975
        %v2977 = vsel %vm2965, %v2955, %v2958
        %v2978 = vsel %vm2968, %v2964, 1326507024
        %v2979 = vsel %vm2967, %v2961, %v2978
        %v2980 = vsel %vm2966, %v2977, %v2979
        %v2981 = vshll.u32 %v2941, 8
        %v2982 = vmul.u32.u64.compose %v2981, %v2980
        %v2983 = vextract.low.u32 %v2982
        %v2984 = vextract.high.u32 %v2982
        %v2985 = vmul.u32.u64.compose %v2981, %v2976
        %v2986 = vextract.low.u32 %v2985
        %v2987 = vextract.high.u32 %v2985
        %v2988 = vmul.u32 %v2981, %v2972
        %v2989 = vadd.s32 %v2984, %v2986
        %vm2990 = vc.u32 %v2984, %v2986
        %v2991 = vadd.s32 %v2987, 1
        %v2992 = vsel %vm2990, %v2991, %v2987
        %v2993 = vadd.s32 %v2988, %v2992
        %v2994 = vadd.s32 %v2993, 536870912
        %v2995 = vshrl.u32 %v2994, 30
        %v2996 = vshll.u32 %v2995, 30
        %v2997 = vsub.s32 %v2993, %v2996
        %vm2998 = vcmp.lt.s32.totalorder %v2997, 0
        %v2999 = vsub.s32 0, %v2997
        %v3000 = vsel %vm2998, %v2999, %v2997
        %v3001 = vclz %v3000
        %v3002 = vsub.s32 %v3001, 2
        %vm3003 = vcmp.gt.s32.totalorder 0, %v3002
        %v3004 = vsel %vm3003, 0, %v3002
        %v3005 = vsub.s32 32, %v3004
        %v3006 = vshll.u32 %v2997, %v3004
        %v3007 = vshrl.u32 %v2989, %v3005
        %v3008 = vor.u32 %v3006, %v3007
        %v3009 = vsub.s32 4294967266, %v3004
        %v3010 = vadd.s32 %v3009, 127
        %v3011 = vshll.u32 %v3010, 23
        %v3012 = vor.u32 4788187, %v3011
        %v3013 = vand.u32 2147483647, %v3012
        %v3015 = vcvt.s32.f32 %v3008
        %v3016 = vmul.f32 %v3015, %v3013
        %v3017 = vxor.u32 %v3016, 2147483648
        %v3018 = vsel %vm2935, %v3017, %v3016
        %v3019 = vsub.s32 4, %v2995
        %v3020 = vsel %vm2935, %v3019, %v2995
        %v3021 = vsel %vm2934, %v625, %v3018
        %v3022 = vsel %vm2934, 0, %v3020
        %v3023 = vcosq.f32.pop %v3021
        %v3024 = vsinq.f32.pop %v3021
        %vm3025 = vweird.f32 %v625
        %v3026 = vand.u32 %v3022, 3
        %vm3027 = vcmp.lt.s32.totalorder %v3026, 2
        %vm3028 = vcmp.eq.s32.totalorder %v3026, 0
        %v3029 = vxor.u32 %v3024, 2147483648
        %v3030 = vsel %vm3028, %v3023, %v3029
        %vm3031 = vcmp.eq.s32.totalorder %v3026, 2
        %v3032 = vxor.u32 %v3023, 2147483648
        %v3033 = vsel %vm3031, %v3032, %v3024
        %v3034 = vsel %vm3027, %v3030, %v3033
        %v3035 = vsel %vm3025, nan, %v3034
        %v3036 = vand.u32 2147483647, %v626
        %vm3037 = vcmp.le.f32.partialorder %v3036, 0.7853982
        %vm3038 = vcmp.lt.s32.totalorder %v626, 0
        %v3039 = vand.u32 %v626, 2139095040
        %v3040 = vshrl.u32 %v3039, 23
        %v3041 = vsub.s32 %v3040, 127
        %v3042 = vand.u32 2147483647, %v626
        %v3043 = vand.u32 %v3042, 8388607
        %v3044 = vor.u32 %v3043, 8388608
        %v3045 = vsub.s32 0, %v3044
        %v3046 = vadd.s32 %v3041, 1
        %vm3047 = vcmp.gt.s32.totalorder %v3046, 0
        %v3048 = vsel %vm3047, %v3046, 0
        %v3049 = vshrl.u32 %v3048, 5
        %v3050 = vand.u32 %v3048, 31
        %v3051 = vsub.s32 32, %v3050
        %v3052 = vshrl.u32 683565275, %v3051
        %v3053 = vshll.u32 683565275, %v3050
        %v3054 = vshrl.u32 2475754826, %v3051
        %v3055 = vor.u32 %v3053, %v3054
        %v3056 = vshll.u32 2475754826, %v3050
        %v3057 = vshrl.u32 2131351028, %v3051
        %v3058 = vor.u32 %v3056, %v3057
        %v3059 = vshll.u32 2131351028, %v3050
        %v3060 = vshrl.u32 2102212464, %v3051
        %v3061 = vor.u32 %v3059, %v3060
        %v3062 = vshll.u32 2102212464, %v3050
        %v3063 = vshrl.u32 920167782, %v3051
        %v3064 = vor.u32 %v3062, %v3063
        %v3065 = vshll.u32 920167782, %v3050
        %v3066 = vshrl.u32 1326507024, %v3051
        %v3067 = vor.u32 %v3065, %v3066
        %vm3068 = vcmp.lt.s32.totalorder %v3049, 1
        %vm3069 = vcmp.lt.s32.totalorder %v3049, 2
        %vm3070 = vcmp.lt.s32.totalorder %v3049, 3
        %vm3071 = vcmp.lt.s32.totalorder %v3049, 4
        %v3072 = vsel %vm3068, %v3052, %v3055
        %v3073 = vsel %vm3071, %v3061, 2102212464
        %v3074 = vsel %vm3070, %v3058, %v3073
        %v3075 = vsel %vm3069, %v3072, %v3074
        %v3076 = vsel %vm3068, %v3055, %v3058
        %v3077 = vsel %vm3071, %v3064, 920167782
        %v3078 = vsel %vm3070, %v3061, %v3077
        %v3079 = vsel %vm3069, %v3076, %v3078
        %v3080 = vsel %vm3068, %v3058, %v3061
        %v3081 = vsel %vm3071, %v3067, 1326507024
        %v3082 = vsel %vm3070, %v3064, %v3081
        %v3083 = vsel %vm3069, %v3080, %v3082
        %v3084 = vshll.u32 %v3044, 8
        %v3085 = vmul.u32.u64.compose %v3084, %v3083
        %v3086 = vextract.low.u32 %v3085
        %v3087 = vextract.high.u32 %v3085
        %v3088 = vmul.u32.u64.compose %v3084, %v3079
        %v3089 = vextract.low.u32 %v3088
        %v3090 = vextract.high.u32 %v3088
        %v3091 = vmul.u32 %v3084, %v3075
        %v3092 = vadd.s32 %v3087, %v3089
        %vm3093 = vc.u32 %v3087, %v3089
        %v3094 = vadd.s32 %v3090, 1
        %v3095 = vsel %vm3093, %v3094, %v3090
        %v3096 = vadd.s32 %v3091, %v3095
        %v3097 = vadd.s32 %v3096, 536870912
        %v3098 = vshrl.u32 %v3097, 30
        %v3099 = vshll.u32 %v3098, 30
        %v3100 = vsub.s32 %v3096, %v3099
        %vm3101 = vcmp.lt.s32.totalorder %v3100, 0
        %v3102 = vsub.s32 0, %v3100
        %v3103 = vsel %vm3101, %v3102, %v3100
        %v3104 = vclz %v3103
        %v3105 = vsub.s32 %v3104, 2
        %vm3106 = vcmp.gt.s32.totalorder 0, %v3105
        %v3107 = vsel %vm3106, 0, %v3105
        %v3108 = vsub.s32 32, %v3107
        %v3109 = vshll.u32 %v3100, %v3107
        %v3110 = vshrl.u32 %v3092, %v3108
        %v3111 = vor.u32 %v3109, %v3110
        %v3112 = vsub.s32 4294967266, %v3107
        %v3113 = vadd.s32 %v3112, 127
        %v3114 = vshll.u32 %v3113, 23
        %v3115 = vor.u32 4788187, %v3114
        %v3116 = vand.u32 2147483647, %v3115
        %v3118 = vcvt.s32.f32 %v3111
        %v3119 = vmul.f32 %v3118, %v3116
        %v3120 = vxor.u32 %v3119, 2147483648
        %v3121 = vsel %vm3038, %v3120, %v3119
        %v3122 = vsub.s32 4, %v3098
        %v3123 = vsel %vm3038, %v3122, %v3098
        %v3124 = vsel %vm3037, %v626, %v3121
        %v3125 = vsel %vm3037, 0, %v3123
        %v3126 = vcosq.f32.pop %v3124
        %v3127 = vsinq.f32.pop %v3124
        %vm3128 = vweird.f32 %v626
        %v3129 = vand.u32 %v3125, 3
        %vm3130 = vcmp.lt.s32.totalorder %v3129, 2
        %vm3131 = vcmp.eq.s32.totalorder %v3129, 0
        %v3132 = vxor.u32 %v3127, 2147483648
        %v3133 = vsel %vm3131, %v3126, %v3132
        %vm3134 = vcmp.eq.s32.totalorder %v3129, 2
        %v3135 = vxor.u32 %v3126, 2147483648
        %v3136 = vsel %vm3134, %v3135, %v3127
        %v3137 = vsel %vm3130, %v3133, %v3136
        %v3138 = vsel %vm3128, nan, %v3137
        %v3139 = vand.u32 2147483647, %v627
        %vm3140 = vcmp.le.f32.partialorder %v3139, 0.7853982
        %vm3141 = vcmp.lt.s32.totalorder %v627, 0
        %v3142 = vand.u32 %v627, 2139095040
        %v3143 = vshrl.u32 %v3142, 23
        %v3144 = vsub.s32 %v3143, 127
        %v3145 = vand.u32 2147483647, %v627
        %v3146 = vand.u32 %v3145, 8388607
        %v3147 = vor.u32 %v3146, 8388608
        %v3148 = vsub.s32 0, %v3147
        %v3149 = vadd.s32 %v3144, 1
        %vm3150 = vcmp.gt.s32.totalorder %v3149, 0
        %v3151 = vsel %vm3150, %v3149, 0
        %v3152 = vshrl.u32 %v3151, 5
        %v3153 = vand.u32 %v3151, 31
        %v3154 = vsub.s32 32, %v3153
        %v3155 = vshrl.u32 683565275, %v3154
        %v3156 = vshll.u32 683565275, %v3153
        %v3157 = vshrl.u32 2475754826, %v3154
        %v3158 = vor.u32 %v3156, %v3157
        %v3159 = vshll.u32 2475754826, %v3153
        %v3160 = vshrl.u32 2131351028, %v3154
        %v3161 = vor.u32 %v3159, %v3160
        %v3162 = vshll.u32 2131351028, %v3153
        %v3163 = vshrl.u32 2102212464, %v3154
        %v3164 = vor.u32 %v3162, %v3163
        %v3165 = vshll.u32 2102212464, %v3153
        %v3166 = vshrl.u32 920167782, %v3154
        %v3167 = vor.u32 %v3165, %v3166
        %v3168 = vshll.u32 920167782, %v3153
        %v3169 = vshrl.u32 1326507024, %v3154
        %v3170 = vor.u32 %v3168, %v3169
        %vm3171 = vcmp.lt.s32.totalorder %v3152, 1
        %vm3172 = vcmp.lt.s32.totalorder %v3152, 2
        %vm3173 = vcmp.lt.s32.totalorder %v3152, 3
        %vm3174 = vcmp.lt.s32.totalorder %v3152, 4
        %v3175 = vsel %vm3171, %v3155, %v3158
        %v3176 = vsel %vm3174, %v3164, 2102212464
        %v3177 = vsel %vm3173, %v3161, %v3176
        %v3178 = vsel %vm3172, %v3175, %v3177
        %v3179 = vsel %vm3171, %v3158, %v3161
        %v3180 = vsel %vm3174, %v3167, 920167782
        %v3181 = vsel %vm3173, %v3164, %v3180
        %v3182 = vsel %vm3172, %v3179, %v3181
        %v3183 = vsel %vm3171, %v3161, %v3164
        %v3184 = vsel %vm3174, %v3170, 1326507024
        %v3185 = vsel %vm3173, %v3167, %v3184
        %v3186 = vsel %vm3172, %v3183, %v3185
        %v3187 = vshll.u32 %v3147, 8
        %v3188 = vmul.u32.u64.compose %v3187, %v3186
        %v3189 = vextract.low.u32 %v3188
        %v3190 = vextract.high.u32 %v3188
        %v3191 = vmul.u32.u64.compose %v3187, %v3182
        %v3192 = vextract.low.u32 %v3191
        %v3193 = vextract.high.u32 %v3191
        %v3194 = vmul.u32 %v3187, %v3178
        %v3195 = vadd.s32 %v3190, %v3192
        %vm3196 = vc.u32 %v3190, %v3192
        %v3197 = vadd.s32 %v3193, 1
        %v3198 = vsel %vm3196, %v3197, %v3193
        %v3199 = vadd.s32 %v3194, %v3198
        %v3200 = vadd.s32 %v3199, 536870912
        %v3201 = vshrl.u32 %v3200, 30
        %v3202 = vshll.u32 %v3201, 30
        %v3203 = vsub.s32 %v3199, %v3202
        %vm3204 = vcmp.lt.s32.totalorder %v3203, 0
        %v3205 = vsub.s32 0, %v3203
        %v3206 = vsel %vm3204, %v3205, %v3203
        %v3207 = vclz %v3206
        %v3208 = vsub.s32 %v3207, 2
        %vm3209 = vcmp.gt.s32.totalorder 0, %v3208
        %v3210 = vsel %vm3209, 0, %v3208
        %v3211 = vsub.s32 32, %v3210
        %v3212 = vshll.u32 %v3203, %v3210
        %v3213 = vshrl.u32 %v3195, %v3211
        %v3214 = vor.u32 %v3212, %v3213
        %v3215 = vsub.s32 4294967266, %v3210
        %v3216 = vadd.s32 %v3215, 127
        %v3217 = vshll.u32 %v3216, 23
        %v3218 = vor.u32 4788187, %v3217
        %v3219 = vand.u32 2147483647, %v3218
        %v3221 = vcvt.s32.f32 %v3214
        %v3222 = vmul.f32 %v3221, %v3219
        %v3223 = vxor.u32 %v3222, 2147483648
        %v3224 = vsel %vm3141, %v3223, %v3222
        %v3225 = vsub.s32 4, %v3201
        %v3226 = vsel %vm3141, %v3225, %v3201
        %v3227 = vsel %vm3140, %v627, %v3224
        %v3228 = vsel %vm3140, 0, %v3226
        %v3229 = vcosq.f32.pop %v3227
        %v3230 = vsinq.f32.pop %v3227
        %vm3231 = vweird.f32 %v627
        %v3232 = vand.u32 %v3228, 3
        %vm3233 = vcmp.lt.s32.totalorder %v3232, 2
        %vm3234 = vcmp.eq.s32.totalorder %v3232, 0
        %v3235 = vxor.u32 %v3230, 2147483648
        %v3236 = vsel %vm3234, %v3229, %v3235
        %vm3237 = vcmp.eq.s32.totalorder %v3232, 2
        %v3238 = vxor.u32 %v3229, 2147483648
        %v3239 = vsel %vm3237, %v3238, %v3230
        %v3240 = vsel %vm3233, %v3236, %v3239
        %v3241 = vsel %vm3231, nan, %v3240
        %v3242 = vand.u32 2147483647, %v628
        %vm3243 = vcmp.le.f32.partialorder %v3242, 0.7853982
        %vm3244 = vcmp.lt.s32.totalorder %v628, 0
        %v3245 = vand.u32 %v628, 2139095040
        %v3246 = vshrl.u32 %v3245, 23
        %v3247 = vsub.s32 %v3246, 127
        %v3248 = vand.u32 2147483647, %v628
        %v3249 = vand.u32 %v3248, 8388607
        %v3250 = vor.u32 %v3249, 8388608
        %v3251 = vsub.s32 0, %v3250
        %v3252 = vadd.s32 %v3247, 1
        %vm3253 = vcmp.gt.s32.totalorder %v3252, 0
        %v3254 = vsel %vm3253, %v3252, 0
        %v3255 = vshrl.u32 %v3254, 5
        %v3256 = vand.u32 %v3254, 31
        %v3257 = vsub.s32 32, %v3256
        %v3258 = vshrl.u32 683565275, %v3257
        %v3259 = vshll.u32 683565275, %v3256
        %v3260 = vshrl.u32 2475754826, %v3257
        %v3261 = vor.u32 %v3259, %v3260
        %v3262 = vshll.u32 2475754826, %v3256
        %v3263 = vshrl.u32 2131351028, %v3257
        %v3264 = vor.u32 %v3262, %v3263
        %v3265 = vshll.u32 2131351028, %v3256
        %v3266 = vshrl.u32 2102212464, %v3257
        %v3267 = vor.u32 %v3265, %v3266
        %v3268 = vshll.u32 2102212464, %v3256
        %v3269 = vshrl.u32 920167782, %v3257
        %v3270 = vor.u32 %v3268, %v3269
        %v3271 = vshll.u32 920167782, %v3256
        %v3272 = vshrl.u32 1326507024, %v3257
        %v3273 = vor.u32 %v3271, %v3272
        %vm3274 = vcmp.lt.s32.totalorder %v3255, 1
        %vm3275 = vcmp.lt.s32.totalorder %v3255, 2
        %vm3276 = vcmp.lt.s32.totalorder %v3255, 3
        %vm3277 = vcmp.lt.s32.totalorder %v3255, 4
        %v3278 = vsel %vm3274, %v3258, %v3261
        %v3279 = vsel %vm3277, %v3267, 2102212464
        %v3280 = vsel %vm3276, %v3264, %v3279
        %v3281 = vsel %vm3275, %v3278, %v3280
        %v3282 = vsel %vm3274, %v3261, %v3264
        %v3283 = vsel %vm3277, %v3270, 920167782
        %v3284 = vsel %vm3276, %v3267, %v3283
        %v3285 = vsel %vm3275, %v3282, %v3284
        %v3286 = vsel %vm3274, %v3264, %v3267
        %v3287 = vsel %vm3277, %v3273, 1326507024
        %v3288 = vsel %vm3276, %v3270, %v3287
        %v3289 = vsel %vm3275, %v3286, %v3288
        %v3290 = vshll.u32 %v3250, 8
        %v3291 = vmul.u32.u64.compose %v3290, %v3289
        %v3292 = vextract.low.u32 %v3291
        %v3293 = vextract.high.u32 %v3291
        %v3294 = vmul.u32.u64.compose %v3290, %v3285
        %v3295 = vextract.low.u32 %v3294
        %v3296 = vextract.high.u32 %v3294
        %v3297 = vmul.u32 %v3290, %v3281
        %v3298 = vadd.s32 %v3293, %v3295
        %vm3299 = vc.u32 %v3293, %v3295
        %v3300 = vadd.s32 %v3296, 1
        %v3301 = vsel %vm3299, %v3300, %v3296
        %v3302 = vadd.s32 %v3297, %v3301
        %v3303 = vadd.s32 %v3302, 536870912
        %v3304 = vshrl.u32 %v3303, 30
        %v3305 = vshll.u32 %v3304, 30
        %v3306 = vsub.s32 %v3302, %v3305
        %vm3307 = vcmp.lt.s32.totalorder %v3306, 0
        %v3308 = vsub.s32 0, %v3306
        %v3309 = vsel %vm3307, %v3308, %v3306
        %v3310 = vclz %v3309
        %v3311 = vsub.s32 %v3310, 2
        %vm3312 = vcmp.gt.s32.totalorder 0, %v3311
        %v3313 = vsel %vm3312, 0, %v3311
        %v3314 = vsub.s32 32, %v3313
        %v3315 = vshll.u32 %v3306, %v3313
        %v3316 = vshrl.u32 %v3298, %v3314
        %v3317 = vor.u32 %v3315, %v3316
        %v3318 = vsub.s32 4294967266, %v3313
        %v3319 = vadd.s32 %v3318, 127
        %v3320 = vshll.u32 %v3319, 23
        %v3321 = vor.u32 4788187, %v3320
        %v3322 = vand.u32 2147483647, %v3321
        %v3324 = vcvt.s32.f32 %v3317
        %v3325 = vmul.f32 %v3324, %v3322
        %v3326 = vxor.u32 %v3325, 2147483648
        %v3327 = vsel %vm3244, %v3326, %v3325
        %v3328 = vsub.s32 4, %v3304
        %v3329 = vsel %vm3244, %v3328, %v3304
        %v3330 = vsel %vm3243, %v628, %v3327
        %v3331 = vsel %vm3243, 0, %v3329
        %v3332 = vcosq.f32.pop %v3330
        %v3333 = vsinq.f32.pop %v3330
        %vm3334 = vweird.f32 %v628
        %v3335 = vand.u32 %v3331, 3
        %vm3336 = vcmp.lt.s32.totalorder %v3335, 2
        %vm3337 = vcmp.eq.s32.totalorder %v3335, 0
        %v3338 = vxor.u32 %v3333, 2147483648
        %v3339 = vsel %vm3337, %v3332, %v3338
        %vm3340 = vcmp.eq.s32.totalorder %v3335, 2
        %v3341 = vxor.u32 %v3332, 2147483648
        %v3342 = vsel %vm3340, %v3341, %v3333
        %v3343 = vsel %vm3336, %v3339, %v3342
        %v3344 = vsel %vm3334, nan, %v3343
        %v3345 = vand.u32 2147483647, %v629
        %vm3346 = vcmp.le.f32.partialorder %v3345, 0.7853982
        %vm3347 = vcmp.lt.s32.totalorder %v629, 0
        %v3348 = vand.u32 %v629, 2139095040
        %v3349 = vshrl.u32 %v3348, 23
        %v3350 = vsub.s32 %v3349, 127
        %v3351 = vand.u32 2147483647, %v629
        %v3352 = vand.u32 %v3351, 8388607
        %v3353 = vor.u32 %v3352, 8388608
        %v3354 = vsub.s32 0, %v3353
        %v3355 = vadd.s32 %v3350, 1
        %vm3356 = vcmp.gt.s32.totalorder %v3355, 0
        %v3357 = vsel %vm3356, %v3355, 0
        %v3358 = vshrl.u32 %v3357, 5
        %v3359 = vand.u32 %v3357, 31
        %v3360 = vsub.s32 32, %v3359
        %v3361 = vshrl.u32 683565275, %v3360
        %v3362 = vshll.u32 683565275, %v3359
        %v3363 = vshrl.u32 2475754826, %v3360
        %v3364 = vor.u32 %v3362, %v3363
        %v3365 = vshll.u32 2475754826, %v3359
        %v3366 = vshrl.u32 2131351028, %v3360
        %v3367 = vor.u32 %v3365, %v3366
        %v3368 = vshll.u32 2131351028, %v3359
        %v3369 = vshrl.u32 2102212464, %v3360
        %v3370 = vor.u32 %v3368, %v3369
        %v3371 = vshll.u32 2102212464, %v3359
        %v3372 = vshrl.u32 920167782, %v3360
        %v3373 = vor.u32 %v3371, %v3372
        %v3374 = vshll.u32 920167782, %v3359
        %v3375 = vshrl.u32 1326507024, %v3360
        %v3376 = vor.u32 %v3374, %v3375
        %vm3377 = vcmp.lt.s32.totalorder %v3358, 1
        %vm3378 = vcmp.lt.s32.totalorder %v3358, 2
        %vm3379 = vcmp.lt.s32.totalorder %v3358, 3
        %vm3380 = vcmp.lt.s32.totalorder %v3358, 4
        %v3381 = vsel %vm3377, %v3361, %v3364
        %v3382 = vsel %vm3380, %v3370, 2102212464
        %v3383 = vsel %vm3379, %v3367, %v3382
        %v3384 = vsel %vm3378, %v3381, %v3383
        %v3385 = vsel %vm3377, %v3364, %v3367
        %v3386 = vsel %vm3380, %v3373, 920167782
        %v3387 = vsel %vm3379, %v3370, %v3386
        %v3388 = vsel %vm3378, %v3385, %v3387
        %v3389 = vsel %vm3377, %v3367, %v3370
        %v3390 = vsel %vm3380, %v3376, 1326507024
        %v3391 = vsel %vm3379, %v3373, %v3390
        %v3392 = vsel %vm3378, %v3389, %v3391
        %v3393 = vshll.u32 %v3353, 8
        %v3394 = vmul.u32.u64.compose %v3393, %v3392
        %v3395 = vextract.low.u32 %v3394
        %v3396 = vextract.high.u32 %v3394
        %v3397 = vmul.u32.u64.compose %v3393, %v3388
        %v3398 = vextract.low.u32 %v3397
        %v3399 = vextract.high.u32 %v3397
        %v3400 = vmul.u32 %v3393, %v3384
        %v3401 = vadd.s32 %v3396, %v3398
        %vm3402 = vc.u32 %v3396, %v3398
        %v3403 = vadd.s32 %v3399, 1
        %v3404 = vsel %vm3402, %v3403, %v3399
        %v3405 = vadd.s32 %v3400, %v3404
        %v3406 = vadd.s32 %v3405, 536870912
        %v3407 = vshrl.u32 %v3406, 30
        %v3408 = vshll.u32 %v3407, 30
        %v3409 = vsub.s32 %v3405, %v3408
        %vm3410 = vcmp.lt.s32.totalorder %v3409, 0
        %v3411 = vsub.s32 0, %v3409
        %v3412 = vsel %vm3410, %v3411, %v3409
        %v3413 = vclz %v3412
        %v3414 = vsub.s32 %v3413, 2
        %vm3415 = vcmp.gt.s32.totalorder 0, %v3414
        %v3416 = vsel %vm3415, 0, %v3414
        %v3417 = vsub.s32 32, %v3416
        %v3418 = vshll.u32 %v3409, %v3416
        %v3419 = vshrl.u32 %v3401, %v3417
        %v3420 = vor.u32 %v3418, %v3419
        %v3421 = vsub.s32 4294967266, %v3416
        %v3422 = vadd.s32 %v3421, 127
        %v3423 = vshll.u32 %v3422, 23
        %v3424 = vor.u32 4788187, %v3423
        %v3425 = vand.u32 2147483647, %v3424
        %v3427 = vcvt.s32.f32 %v3420
        %v3428 = vmul.f32 %v3427, %v3425
        %v3429 = vxor.u32 %v3428, 2147483648
        %v3430 = vsel %vm3347, %v3429, %v3428
        %v3431 = vsub.s32 4, %v3407
        %v3432 = vsel %vm3347, %v3431, %v3407
        %v3433 = vsel %vm3346, %v629, %v3430
        %v3434 = vsel %vm3346, 0, %v3432
        %v3435 = vcosq.f32.pop %v3433
        %v3436 = vsinq.f32.pop %v3433
        %vm3437 = vweird.f32 %v629
        %v3438 = vand.u32 %v3434, 3
        %vm3439 = vcmp.lt.s32.totalorder %v3438, 2
        %vm3440 = vcmp.eq.s32.totalorder %v3438, 0
        %v3441 = vxor.u32 %v3436, 2147483648
        %v3442 = vsel %vm3440, %v3435, %v3441
        %vm3443 = vcmp.eq.s32.totalorder %v3438, 2
        %v3444 = vxor.u32 %v3435, 2147483648
        %v3445 = vsel %vm3443, %v3444, %v3436
        %v3446 = vsel %vm3439, %v3442, %v3445
        %v3447 = vsel %vm3437, nan, %v3446
        %v3448 = vand.u32 2147483647, %v630
        %vm3449 = vcmp.le.f32.partialorder %v3448, 0.7853982
        %vm3450 = vcmp.lt.s32.totalorder %v630, 0
        %v3451 = vand.u32 %v630, 2139095040
        %v3452 = vshrl.u32 %v3451, 23
        %v3453 = vsub.s32 %v3452, 127
        %v3454 = vand.u32 2147483647, %v630
        %v3455 = vand.u32 %v3454, 8388607
        %v3456 = vor.u32 %v3455, 8388608
        %v3457 = vsub.s32 0, %v3456
        %v3458 = vadd.s32 %v3453, 1
        %vm3459 = vcmp.gt.s32.totalorder %v3458, 0
        %v3460 = vsel %vm3459, %v3458, 0
        %v3461 = vshrl.u32 %v3460, 5
        %v3462 = vand.u32 %v3460, 31
        %v3463 = vsub.s32 32, %v3462
        %v3464 = vshrl.u32 683565275, %v3463
        %v3465 = vshll.u32 683565275, %v3462
        %v3466 = vshrl.u32 2475754826, %v3463
        %v3467 = vor.u32 %v3465, %v3466
        %v3468 = vshll.u32 2475754826, %v3462
        %v3469 = vshrl.u32 2131351028, %v3463
        %v3470 = vor.u32 %v3468, %v3469
        %v3471 = vshll.u32 2131351028, %v3462
        %v3472 = vshrl.u32 2102212464, %v3463
        %v3473 = vor.u32 %v3471, %v3472
        %v3474 = vshll.u32 2102212464, %v3462
        %v3475 = vshrl.u32 920167782, %v3463
        %v3476 = vor.u32 %v3474, %v3475
        %v3477 = vshll.u32 920167782, %v3462
        %v3478 = vshrl.u32 1326507024, %v3463
        %v3479 = vor.u32 %v3477, %v3478
        %vm3480 = vcmp.lt.s32.totalorder %v3461, 1
        %vm3481 = vcmp.lt.s32.totalorder %v3461, 2
        %vm3482 = vcmp.lt.s32.totalorder %v3461, 3
        %vm3483 = vcmp.lt.s32.totalorder %v3461, 4
        %v3484 = vsel %vm3480, %v3464, %v3467
        %v3485 = vsel %vm3483, %v3473, 2102212464
        %v3486 = vsel %vm3482, %v3470, %v3485
        %v3487 = vsel %vm3481, %v3484, %v3486
        %v3488 = vsel %vm3480, %v3467, %v3470
        %v3489 = vsel %vm3483, %v3476, 920167782
        %v3490 = vsel %vm3482, %v3473, %v3489
        %v3491 = vsel %vm3481, %v3488, %v3490
        %v3492 = vsel %vm3480, %v3470, %v3473
        %v3493 = vsel %vm3483, %v3479, 1326507024
        %v3494 = vsel %vm3482, %v3476, %v3493
        %v3495 = vsel %vm3481, %v3492, %v3494
        %v3496 = vshll.u32 %v3456, 8
        %v3497 = vmul.u32.u64.compose %v3496, %v3495
        %v3498 = vextract.low.u32 %v3497
        %v3499 = vextract.high.u32 %v3497
        %v3500 = vmul.u32.u64.compose %v3496, %v3491
        %v3501 = vextract.low.u32 %v3500
        %v3502 = vextract.high.u32 %v3500
        %v3503 = vmul.u32 %v3496, %v3487
        %v3504 = vadd.s32 %v3499, %v3501
        %vm3505 = vc.u32 %v3499, %v3501
        %v3506 = vadd.s32 %v3502, 1
        %v3507 = vsel %vm3505, %v3506, %v3502
        %v3508 = vadd.s32 %v3503, %v3507
        %v3509 = vadd.s32 %v3508, 536870912
        %v3510 = vshrl.u32 %v3509, 30
        %v3511 = vshll.u32 %v3510, 30
        %v3512 = vsub.s32 %v3508, %v3511
        %vm3513 = vcmp.lt.s32.totalorder %v3512, 0
        %v3514 = vsub.s32 0, %v3512
        %v3515 = vsel %vm3513, %v3514, %v3512
        %v3516 = vclz %v3515
        %v3517 = vsub.s32 %v3516, 2
        %vm3518 = vcmp.gt.s32.totalorder 0, %v3517
        %v3519 = vsel %vm3518, 0, %v3517
        %v3520 = vsub.s32 32, %v3519
        %v3521 = vshll.u32 %v3512, %v3519
        %v3522 = vshrl.u32 %v3504, %v3520
        %v3523 = vor.u32 %v3521, %v3522
        %v3524 = vsub.s32 4294967266, %v3519
        %v3525 = vadd.s32 %v3524, 127
        %v3526 = vshll.u32 %v3525, 23
        %v3527 = vor.u32 4788187, %v3526
        %v3528 = vand.u32 2147483647, %v3527
        %v3530 = vcvt.s32.f32 %v3523
        %v3531 = vmul.f32 %v3530, %v3528
        %v3532 = vxor.u32 %v3531, 2147483648
        %v3533 = vsel %vm3450, %v3532, %v3531
        %v3534 = vsub.s32 4, %v3510
        %v3535 = vsel %vm3450, %v3534, %v3510
        %v3536 = vsel %vm3449, %v630, %v3533
        %v3537 = vsel %vm3449, 0, %v3535
        %v3538 = vcosq.f32.pop %v3536
        %v3539 = vsinq.f32.pop %v3536
        %vm3540 = vweird.f32 %v630
        %v3541 = vand.u32 %v3537, 3
        %vm3542 = vcmp.lt.s32.totalorder %v3541, 2
        %vm3543 = vcmp.eq.s32.totalorder %v3541, 0
        %v3544 = vxor.u32 %v3539, 2147483648
        %v3545 = vsel %vm3543, %v3538, %v3544
        %vm3546 = vcmp.eq.s32.totalorder %v3541, 2
        %v3547 = vxor.u32 %v3538, 2147483648
        %v3548 = vsel %vm3546, %v3547, %v3539
        %v3549 = vsel %vm3542, %v3545, %v3548
        %v3550 = vsel %vm3540, nan, %v3549
        %v3551 = vand.u32 2147483647, %v631
        %vm3552 = vcmp.le.f32.partialorder %v3551, 0.7853982
        %vm3553 = vcmp.lt.s32.totalorder %v631, 0
        %v3554 = vand.u32 %v631, 2139095040
        %v3555 = vshrl.u32 %v3554, 23
        %v3556 = vsub.s32 %v3555, 127
        %v3557 = vand.u32 2147483647, %v631
        %v3558 = vand.u32 %v3557, 8388607
        %v3559 = vor.u32 %v3558, 8388608
        %v3560 = vsub.s32 0, %v3559
        %v3561 = vadd.s32 %v3556, 1
        %vm3562 = vcmp.gt.s32.totalorder %v3561, 0
        %v3563 = vsel %vm3562, %v3561, 0
        %v3564 = vshrl.u32 %v3563, 5
        %v3565 = vand.u32 %v3563, 31
        %v3566 = vsub.s32 32, %v3565
        %v3567 = vshrl.u32 683565275, %v3566
        %v3568 = vshll.u32 683565275, %v3565
        %v3569 = vshrl.u32 2475754826, %v3566
        %v3570 = vor.u32 %v3568, %v3569
        %v3571 = vshll.u32 2475754826, %v3565
        %v3572 = vshrl.u32 2131351028, %v3566
        %v3573 = vor.u32 %v3571, %v3572
        %v3574 = vshll.u32 2131351028, %v3565
        %v3575 = vshrl.u32 2102212464, %v3566
        %v3576 = vor.u32 %v3574, %v3575
        %v3577 = vshll.u32 2102212464, %v3565
        %v3578 = vshrl.u32 920167782, %v3566
        %v3579 = vor.u32 %v3577, %v3578
        %v3580 = vshll.u32 920167782, %v3565
        %v3581 = vshrl.u32 1326507024, %v3566
        %v3582 = vor.u32 %v3580, %v3581
        %vm3583 = vcmp.lt.s32.totalorder %v3564, 1
        %vm3584 = vcmp.lt.s32.totalorder %v3564, 2
        %vm3585 = vcmp.lt.s32.totalorder %v3564, 3
        %vm3586 = vcmp.lt.s32.totalorder %v3564, 4
        %v3587 = vsel %vm3583, %v3567, %v3570
        %v3588 = vsel %vm3586, %v3576, 2102212464
        %v3589 = vsel %vm3585, %v3573, %v3588
        %v3590 = vsel %vm3584, %v3587, %v3589
        %v3591 = vsel %vm3583, %v3570, %v3573
        %v3592 = vsel %vm3586, %v3579, 920167782
        %v3593 = vsel %vm3585, %v3576, %v3592
        %v3594 = vsel %vm3584, %v3591, %v3593
        %v3595 = vsel %vm3583, %v3573, %v3576
        %v3596 = vsel %vm3586, %v3582, 1326507024
        %v3597 = vsel %vm3585, %v3579, %v3596
        %v3598 = vsel %vm3584, %v3595, %v3597
        %v3599 = vshll.u32 %v3559, 8
        %v3600 = vmul.u32.u64.compose %v3599, %v3598
        %v3601 = vextract.low.u32 %v3600
        %v3602 = vextract.high.u32 %v3600
        %v3603 = vmul.u32.u64.compose %v3599, %v3594
        %v3604 = vextract.low.u32 %v3603
        %v3605 = vextract.high.u32 %v3603
        %v3606 = vmul.u32 %v3599, %v3590
        %v3607 = vadd.s32 %v3602, %v3604
        %vm3608 = vc.u32 %v3602, %v3604
        %v3609 = vadd.s32 %v3605, 1
        %v3610 = vsel %vm3608, %v3609, %v3605
        %v3611 = vadd.s32 %v3606, %v3610
        %v3612 = vadd.s32 %v3611, 536870912
        %v3613 = vshrl.u32 %v3612, 30
        %v3614 = vshll.u32 %v3613, 30
        %v3615 = vsub.s32 %v3611, %v3614
        %vm3616 = vcmp.lt.s32.totalorder %v3615, 0
        %v3617 = vsub.s32 0, %v3615
        %v3618 = vsel %vm3616, %v3617, %v3615
        %v3619 = vclz %v3618
        %v3620 = vsub.s32 %v3619, 2
        %vm3621 = vcmp.gt.s32.totalorder 0, %v3620
        %v3622 = vsel %vm3621, 0, %v3620
        %v3623 = vsub.s32 32, %v3622
        %v3624 = vshll.u32 %v3615, %v3622
        %v3625 = vshrl.u32 %v3607, %v3623
        %v3626 = vor.u32 %v3624, %v3625
        %v3627 = vsub.s32 4294967266, %v3622
        %v3628 = vadd.s32 %v3627, 127
        %v3629 = vshll.u32 %v3628, 23
        %v3630 = vor.u32 4788187, %v3629
        %v3631 = vand.u32 2147483647, %v3630
        %v3633 = vcvt.s32.f32 %v3626
        %v3634 = vmul.f32 %v3633, %v3631
        %v3635 = vxor.u32 %v3634, 2147483648
        %v3636 = vsel %vm3553, %v3635, %v3634
        %v3637 = vsub.s32 4, %v3613
        %v3638 = vsel %vm3553, %v3637, %v3613
        %v3639 = vsel %vm3552, %v631, %v3636
        %v3640 = vsel %vm3552, 0, %v3638
        %v3641 = vcosq.f32.pop %v3639
        %v3642 = vsinq.f32.pop %v3639
        %vm3643 = vweird.f32 %v631
        %v3644 = vand.u32 %v3640, 3
        %vm3645 = vcmp.lt.s32.totalorder %v3644, 2
        %vm3646 = vcmp.eq.s32.totalorder %v3644, 0
        %v3647 = vxor.u32 %v3642, 2147483648
        %v3648 = vsel %vm3646, %v3641, %v3647
        %vm3649 = vcmp.eq.s32.totalorder %v3644, 2
        %v3650 = vxor.u32 %v3641, 2147483648
        %v3651 = vsel %vm3649, %v3650, %v3642
        %v3652 = vsel %vm3645, %v3648, %v3651
        %v3653 = vsel %vm3643, nan, %v3652
        %v3654 = vand.u32 2147483647, %v632
        %vm3655 = vcmp.le.f32.partialorder %v3654, 0.7853982
        %vm3656 = vcmp.lt.s32.totalorder %v632, 0
        %v3657 = vand.u32 %v632, 2139095040
        %v3658 = vshrl.u32 %v3657, 23
        %v3659 = vsub.s32 %v3658, 127
        %v3660 = vand.u32 2147483647, %v632
        %v3661 = vand.u32 %v3660, 8388607
        %v3662 = vor.u32 %v3661, 8388608
        %v3663 = vsub.s32 0, %v3662
        %v3664 = vadd.s32 %v3659, 1
        %vm3665 = vcmp.gt.s32.totalorder %v3664, 0
        %v3666 = vsel %vm3665, %v3664, 0
        %v3667 = vshrl.u32 %v3666, 5
        %v3668 = vand.u32 %v3666, 31
        %v3669 = vsub.s32 32, %v3668
        %v3670 = vshrl.u32 683565275, %v3669
        %v3671 = vshll.u32 683565275, %v3668
        %v3672 = vshrl.u32 2475754826, %v3669
        %v3673 = vor.u32 %v3671, %v3672
        %v3674 = vshll.u32 2475754826, %v3668
        %v3675 = vshrl.u32 2131351028, %v3669
        %v3676 = vor.u32 %v3674, %v3675
        %v3677 = vshll.u32 2131351028, %v3668
        %v3678 = vshrl.u32 2102212464, %v3669
        %v3679 = vor.u32 %v3677, %v3678
        %v3680 = vshll.u32 2102212464, %v3668
        %v3681 = vshrl.u32 920167782, %v3669
        %v3682 = vor.u32 %v3680, %v3681
        %v3683 = vshll.u32 920167782, %v3668
        %v3684 = vshrl.u32 1326507024, %v3669
        %v3685 = vor.u32 %v3683, %v3684
        %vm3686 = vcmp.lt.s32.totalorder %v3667, 1
        %vm3687 = vcmp.lt.s32.totalorder %v3667, 2
        %vm3688 = vcmp.lt.s32.totalorder %v3667, 3
        %vm3689 = vcmp.lt.s32.totalorder %v3667, 4
        %v3690 = vsel %vm3686, %v3670, %v3673
        %v3691 = vsel %vm3689, %v3679, 2102212464
        %v3692 = vsel %vm3688, %v3676, %v3691
        %v3693 = vsel %vm3687, %v3690, %v3692
        %v3694 = vsel %vm3686, %v3673, %v3676
        %v3695 = vsel %vm3689, %v3682, 920167782
        %v3696 = vsel %vm3688, %v3679, %v3695
        %v3697 = vsel %vm3687, %v3694, %v3696
        %v3698 = vsel %vm3686, %v3676, %v3679
        %v3699 = vsel %vm3689, %v3685, 1326507024
        %v3700 = vsel %vm3688, %v3682, %v3699
        %v3701 = vsel %vm3687, %v3698, %v3700
        %v3702 = vshll.u32 %v3662, 8
        %v3703 = vmul.u32.u64.compose %v3702, %v3701
        %v3704 = vextract.low.u32 %v3703
        %v3705 = vextract.high.u32 %v3703
        %v3706 = vmul.u32.u64.compose %v3702, %v3697
        %v3707 = vextract.low.u32 %v3706
        %v3708 = vextract.high.u32 %v3706
        %v3709 = vmul.u32 %v3702, %v3693
        %v3710 = vadd.s32 %v3705, %v3707
        %vm3711 = vc.u32 %v3705, %v3707
        %v3712 = vadd.s32 %v3708, 1
        %v3713 = vsel %vm3711, %v3712, %v3708
        %v3714 = vadd.s32 %v3709, %v3713
        %v3715 = vadd.s32 %v3714, 536870912
        %v3716 = vshrl.u32 %v3715, 30
        %v3717 = vshll.u32 %v3716, 30
        %v3718 = vsub.s32 %v3714, %v3717
        %vm3719 = vcmp.lt.s32.totalorder %v3718, 0
        %v3720 = vsub.s32 0, %v3718
        %v3721 = vsel %vm3719, %v3720, %v3718
        %v3722 = vclz %v3721
        %v3723 = vsub.s32 %v3722, 2
        %vm3724 = vcmp.gt.s32.totalorder 0, %v3723
        %v3725 = vsel %vm3724, 0, %v3723
        %v3726 = vsub.s32 32, %v3725
        %v3727 = vshll.u32 %v3718, %v3725
        %v3728 = vshrl.u32 %v3710, %v3726
        %v3729 = vor.u32 %v3727, %v3728
        %v3730 = vsub.s32 4294967266, %v3725
        %v3731 = vadd.s32 %v3730, 127
        %v3732 = vshll.u32 %v3731, 23
        %v3733 = vor.u32 4788187, %v3732
        %v3734 = vand.u32 2147483647, %v3733
        %v3736 = vcvt.s32.f32 %v3729
        %v3737 = vmul.f32 %v3736, %v3734
        %v3738 = vxor.u32 %v3737, 2147483648
        %v3739 = vsel %vm3656, %v3738, %v3737
        %v3740 = vsub.s32 4, %v3716
        %v3741 = vsel %vm3656, %v3740, %v3716
        %v3742 = vsel %vm3655, %v632, %v3739
        %v3743 = vsel %vm3655, 0, %v3741
        %v3744 = vcosq.f32.pop %v3742
        %v3745 = vsinq.f32.pop %v3742
        %vm3746 = vweird.f32 %v632
        %v3747 = vand.u32 %v3743, 3
        %vm3748 = vcmp.lt.s32.totalorder %v3747, 2
        %vm3749 = vcmp.eq.s32.totalorder %v3747, 0
        %v3750 = vxor.u32 %v3745, 2147483648
        %v3751 = vsel %vm3749, %v3744, %v3750
        %vm3752 = vcmp.eq.s32.totalorder %v3747, 2
        %v3753 = vxor.u32 %v3744, 2147483648
        %v3754 = vsel %vm3752, %v3753, %v3745
        %v3755 = vsel %vm3748, %v3751, %v3754
        %v3756 = vsel %vm3746, nan, %v3755
        %v3757 = vand.u32 2147483647, %v633
        %vm3758 = vcmp.le.f32.partialorder %v3757, 0.7853982
        %vm3759 = vcmp.lt.s32.totalorder %v633, 0
        %v3760 = vand.u32 %v633, 2139095040
        %v3761 = vshrl.u32 %v3760, 23
        %v3762 = vsub.s32 %v3761, 127
        %v3763 = vand.u32 2147483647, %v633
        %v3764 = vand.u32 %v3763, 8388607
        %v3765 = vor.u32 %v3764, 8388608
        %v3766 = vsub.s32 0, %v3765
        %v3767 = vadd.s32 %v3762, 1
        %vm3768 = vcmp.gt.s32.totalorder %v3767, 0
        %v3769 = vsel %vm3768, %v3767, 0
        %v3770 = vshrl.u32 %v3769, 5
        %v3771 = vand.u32 %v3769, 31
        %v3772 = vsub.s32 32, %v3771
        %v3773 = vshrl.u32 683565275, %v3772
        %v3774 = vshll.u32 683565275, %v3771
        %v3775 = vshrl.u32 2475754826, %v3772
        %v3776 = vor.u32 %v3774, %v3775
        %v3777 = vshll.u32 2475754826, %v3771
        %v3778 = vshrl.u32 2131351028, %v3772
        %v3779 = vor.u32 %v3777, %v3778
        %v3780 = vshll.u32 2131351028, %v3771
        %v3781 = vshrl.u32 2102212464, %v3772
        %v3782 = vor.u32 %v3780, %v3781
        %v3783 = vshll.u32 2102212464, %v3771
        %v3784 = vshrl.u32 920167782, %v3772
        %v3785 = vor.u32 %v3783, %v3784
        %v3786 = vshll.u32 920167782, %v3771
        %v3787 = vshrl.u32 1326507024, %v3772
        %v3788 = vor.u32 %v3786, %v3787
        %vm3789 = vcmp.lt.s32.totalorder %v3770, 1
        %vm3790 = vcmp.lt.s32.totalorder %v3770, 2
        %vm3791 = vcmp.lt.s32.totalorder %v3770, 3
        %vm3792 = vcmp.lt.s32.totalorder %v3770, 4
        %v3793 = vsel %vm3789, %v3773, %v3776
        %v3794 = vsel %vm3792, %v3782, 2102212464
        %v3795 = vsel %vm3791, %v3779, %v3794
        %v3796 = vsel %vm3790, %v3793, %v3795
        %v3797 = vsel %vm3789, %v3776, %v3779
        %v3798 = vsel %vm3792, %v3785, 920167782
        %v3799 = vsel %vm3791, %v3782, %v3798
        %v3800 = vsel %vm3790, %v3797, %v3799
        %v3801 = vsel %vm3789, %v3779, %v3782
        %v3802 = vsel %vm3792, %v3788, 1326507024
        %v3803 = vsel %vm3791, %v3785, %v3802
        %v3804 = vsel %vm3790, %v3801, %v3803
        %v3805 = vshll.u32 %v3765, 8
        %v3806 = vmul.u32.u64.compose %v3805, %v3804
        %v3807 = vextract.low.u32 %v3806
        %v3808 = vextract.high.u32 %v3806
        %v3809 = vmul.u32.u64.compose %v3805, %v3800
        %v3810 = vextract.low.u32 %v3809
        %v3811 = vextract.high.u32 %v3809
        %v3812 = vmul.u32 %v3805, %v3796
        %v3813 = vadd.s32 %v3808, %v3810
        %vm3814 = vc.u32 %v3808, %v3810
        %v3815 = vadd.s32 %v3811, 1
        %v3816 = vsel %vm3814, %v3815, %v3811
        %v3817 = vadd.s32 %v3812, %v3816
        %v3818 = vadd.s32 %v3817, 536870912
        %v3819 = vshrl.u32 %v3818, 30
        %v3820 = vshll.u32 %v3819, 30
        %v3821 = vsub.s32 %v3817, %v3820
        %vm3822 = vcmp.lt.s32.totalorder %v3821, 0
        %v3823 = vsub.s32 0, %v3821
        %v3824 = vsel %vm3822, %v3823, %v3821
        %v3825 = vclz %v3824
        %v3826 = vsub.s32 %v3825, 2
        %vm3827 = vcmp.gt.s32.totalorder 0, %v3826
        %v3828 = vsel %vm3827, 0, %v3826
        %v3829 = vsub.s32 32, %v3828
        %v3830 = vshll.u32 %v3821, %v3828
        %v3831 = vshrl.u32 %v3813, %v3829
        %v3832 = vor.u32 %v3830, %v3831
        %v3833 = vsub.s32 4294967266, %v3828
        %v3834 = vadd.s32 %v3833, 127
        %v3835 = vshll.u32 %v3834, 23
        %v3836 = vor.u32 4788187, %v3835
        %v3837 = vand.u32 2147483647, %v3836
        %v3839 = vcvt.s32.f32 %v3832
        %v3840 = vmul.f32 %v3839, %v3837
        %v3841 = vxor.u32 %v3840, 2147483648
        %v3842 = vsel %vm3759, %v3841, %v3840
        %v3843 = vsub.s32 4, %v3819
        %v3844 = vsel %vm3759, %v3843, %v3819
        %v3845 = vsel %vm3758, %v633, %v3842
        %v3846 = vsel %vm3758, 0, %v3844
        %v3847 = vcosq.f32.pop %v3845
        %v3848 = vsinq.f32.pop %v3845
        %vm3849 = vweird.f32 %v633
        %v3850 = vand.u32 %v3846, 3
        %vm3851 = vcmp.lt.s32.totalorder %v3850, 2
        %vm3852 = vcmp.eq.s32.totalorder %v3850, 0
        %v3853 = vxor.u32 %v3848, 2147483648
        %v3854 = vsel %vm3852, %v3847, %v3853
        %vm3855 = vcmp.eq.s32.totalorder %v3850, 2
        %v3856 = vxor.u32 %v3847, 2147483648
        %v3857 = vsel %vm3855, %v3856, %v3848
        %v3858 = vsel %vm3851, %v3854, %v3857
        %v3859 = vsel %vm3849, nan, %v3858
        %v3860 = vand.u32 2147483647, %v634
        %vm3861 = vcmp.le.f32.partialorder %v3860, 0.7853982
        %vm3862 = vcmp.lt.s32.totalorder %v634, 0
        %v3863 = vand.u32 %v634, 2139095040
        %v3864 = vshrl.u32 %v3863, 23
        %v3865 = vsub.s32 %v3864, 127
        %v3866 = vand.u32 2147483647, %v634
        %v3867 = vand.u32 %v3866, 8388607
        %v3868 = vor.u32 %v3867, 8388608
        %v3869 = vsub.s32 0, %v3868
        %v3870 = vadd.s32 %v3865, 1
        %vm3871 = vcmp.gt.s32.totalorder %v3870, 0
        %v3872 = vsel %vm3871, %v3870, 0
        %v3873 = vshrl.u32 %v3872, 5
        %v3874 = vand.u32 %v3872, 31
        %v3875 = vsub.s32 32, %v3874
        %v3876 = vshrl.u32 683565275, %v3875
        %v3877 = vshll.u32 683565275, %v3874
        %v3878 = vshrl.u32 2475754826, %v3875
        %v3879 = vor.u32 %v3877, %v3878
        %v3880 = vshll.u32 2475754826, %v3874
        %v3881 = vshrl.u32 2131351028, %v3875
        %v3882 = vor.u32 %v3880, %v3881
        %v3883 = vshll.u32 2131351028, %v3874
        %v3884 = vshrl.u32 2102212464, %v3875
        %v3885 = vor.u32 %v3883, %v3884
        %v3886 = vshll.u32 2102212464, %v3874
        %v3887 = vshrl.u32 920167782, %v3875
        %v3888 = vor.u32 %v3886, %v3887
        %v3889 = vshll.u32 920167782, %v3874
        %v3890 = vshrl.u32 1326507024, %v3875
        %v3891 = vor.u32 %v3889, %v3890
        %vm3892 = vcmp.lt.s32.totalorder %v3873, 1
        %vm3893 = vcmp.lt.s32.totalorder %v3873, 2
        %vm3894 = vcmp.lt.s32.totalorder %v3873, 3
        %vm3895 = vcmp.lt.s32.totalorder %v3873, 4
        %v3896 = vsel %vm3892, %v3876, %v3879
        %v3897 = vsel %vm3895, %v3885, 2102212464
        %v3898 = vsel %vm3894, %v3882, %v3897
        %v3899 = vsel %vm3893, %v3896, %v3898
        %v3900 = vsel %vm3892, %v3879, %v3882
        %v3901 = vsel %vm3895, %v3888, 920167782
        %v3902 = vsel %vm3894, %v3885, %v3901
        %v3903 = vsel %vm3893, %v3900, %v3902
        %v3904 = vsel %vm3892, %v3882, %v3885
        %v3905 = vsel %vm3895, %v3891, 1326507024
        %v3906 = vsel %vm3894, %v3888, %v3905
        %v3907 = vsel %vm3893, %v3904, %v3906
        %v3908 = vshll.u32 %v3868, 8
        %v3909 = vmul.u32.u64.compose %v3908, %v3907
        %v3910 = vextract.low.u32 %v3909
        %v3911 = vextract.high.u32 %v3909
        %v3912 = vmul.u32.u64.compose %v3908, %v3903
        %v3913 = vextract.low.u32 %v3912
        %v3914 = vextract.high.u32 %v3912
        %v3915 = vmul.u32 %v3908, %v3899
        %v3916 = vadd.s32 %v3911, %v3913
        %vm3917 = vc.u32 %v3911, %v3913
        %v3918 = vadd.s32 %v3914, 1
        %v3919 = vsel %vm3917, %v3918, %v3914
        %v3920 = vadd.s32 %v3915, %v3919
        %v3921 = vadd.s32 %v3920, 536870912
        %v3922 = vshrl.u32 %v3921, 30
        %v3923 = vshll.u32 %v3922, 30
        %v3924 = vsub.s32 %v3920, %v3923
        %vm3925 = vcmp.lt.s32.totalorder %v3924, 0
        %v3926 = vsub.s32 0, %v3924
        %v3927 = vsel %vm3925, %v3926, %v3924
        %v3928 = vclz %v3927
        %v3929 = vsub.s32 %v3928, 2
        %vm3930 = vcmp.gt.s32.totalorder 0, %v3929
        %v3931 = vsel %vm3930, 0, %v3929
        %v3932 = vsub.s32 32, %v3931
        %v3933 = vshll.u32 %v3924, %v3931
        %v3934 = vshrl.u32 %v3916, %v3932
        %v3935 = vor.u32 %v3933, %v3934
        %v3936 = vsub.s32 4294967266, %v3931
        %v3937 = vadd.s32 %v3936, 127
        %v3938 = vshll.u32 %v3937, 23
        %v3939 = vor.u32 4788187, %v3938
        %v3940 = vand.u32 2147483647, %v3939
        %v3942 = vcvt.s32.f32 %v3935
        %v3943 = vmul.f32 %v3942, %v3940
        %v3944 = vxor.u32 %v3943, 2147483648
        %v3945 = vsel %vm3862, %v3944, %v3943
        %v3946 = vsub.s32 4, %v3922
        %v3947 = vsel %vm3862, %v3946, %v3922
        %v3948 = vsel %vm3861, %v634, %v3945
        %v3949 = vsel %vm3861, 0, %v3947
        %v3950 = vcosq.f32.pop %v3948
        %v3951 = vsinq.f32.pop %v3948
        %vm3952 = vweird.f32 %v634
        %v3953 = vand.u32 %v3949, 3
        %vm3954 = vcmp.lt.s32.totalorder %v3953, 2
        %vm3955 = vcmp.eq.s32.totalorder %v3953, 0
        %v3956 = vxor.u32 %v3951, 2147483648
        %v3957 = vsel %vm3955, %v3950, %v3956
        %vm3958 = vcmp.eq.s32.totalorder %v3953, 2
        %v3959 = vxor.u32 %v3950, 2147483648
        %v3960 = vsel %vm3958, %v3959, %v3951
        %v3961 = vsel %vm3954, %v3957, %v3960
        %v3962 = vsel %vm3952, nan, %v3961
        %v3963 = vand.u32 2147483647, %v635
        %vm3964 = vcmp.le.f32.partialorder %v3963, 0.7853982
        %vm3965 = vcmp.lt.s32.totalorder %v635, 0
        %v3966 = vand.u32 %v635, 2139095040
        %v3967 = vshrl.u32 %v3966, 23
        %v3968 = vsub.s32 %v3967, 127
        %v3969 = vand.u32 2147483647, %v635
        %v3970 = vand.u32 %v3969, 8388607
        %v3971 = vor.u32 %v3970, 8388608
        %v3972 = vsub.s32 0, %v3971
        %v3973 = vadd.s32 %v3968, 1
        %vm3974 = vcmp.gt.s32.totalorder %v3973, 0
        %v3975 = vsel %vm3974, %v3973, 0
        %v3976 = vshrl.u32 %v3975, 5
        %v3977 = vand.u32 %v3975, 31
        %v3978 = vsub.s32 32, %v3977
        %v3979 = vshrl.u32 683565275, %v3978
        %v3980 = vshll.u32 683565275, %v3977
        %v3981 = vshrl.u32 2475754826, %v3978
        %v3982 = vor.u32 %v3980, %v3981
        %v3983 = vshll.u32 2475754826, %v3977
        %v3984 = vshrl.u32 2131351028, %v3978
        %v3985 = vor.u32 %v3983, %v3984
        %v3986 = vshll.u32 2131351028, %v3977
        %v3987 = vshrl.u32 2102212464, %v3978
        %v3988 = vor.u32 %v3986, %v3987
        %v3989 = vshll.u32 2102212464, %v3977
        %v3990 = vshrl.u32 920167782, %v3978
        %v3991 = vor.u32 %v3989, %v3990
        %v3992 = vshll.u32 920167782, %v3977
        %v3993 = vshrl.u32 1326507024, %v3978
        %v3994 = vor.u32 %v3992, %v3993
        %vm3995 = vcmp.lt.s32.totalorder %v3976, 1
        %vm3996 = vcmp.lt.s32.totalorder %v3976, 2
        %vm3997 = vcmp.lt.s32.totalorder %v3976, 3
        %vm3998 = vcmp.lt.s32.totalorder %v3976, 4
        %v3999 = vsel %vm3995, %v3979, %v3982
        %v4000 = vsel %vm3998, %v3988, 2102212464
        %v4001 = vsel %vm3997, %v3985, %v4000
        %v4002 = vsel %vm3996, %v3999, %v4001
        %v4003 = vsel %vm3995, %v3982, %v3985
        %v4004 = vsel %vm3998, %v3991, 920167782
        %v4005 = vsel %vm3997, %v3988, %v4004
        %v4006 = vsel %vm3996, %v4003, %v4005
        %v4007 = vsel %vm3995, %v3985, %v3988
        %v4008 = vsel %vm3998, %v3994, 1326507024
        %v4009 = vsel %vm3997, %v3991, %v4008
        %v4010 = vsel %vm3996, %v4007, %v4009
        %v4011 = vshll.u32 %v3971, 8
        %v4012 = vmul.u32.u64.compose %v4011, %v4010
        %v4013 = vextract.low.u32 %v4012
        %v4014 = vextract.high.u32 %v4012
        %v4015 = vmul.u32.u64.compose %v4011, %v4006
        %v4016 = vextract.low.u32 %v4015
        %v4017 = vextract.high.u32 %v4015
        %v4018 = vmul.u32 %v4011, %v4002
        %v4019 = vadd.s32 %v4014, %v4016
        %vm4020 = vc.u32 %v4014, %v4016
        %v4021 = vadd.s32 %v4017, 1
        %v4022 = vsel %vm4020, %v4021, %v4017
        %v4023 = vadd.s32 %v4018, %v4022
        %v4024 = vadd.s32 %v4023, 536870912
        %v4025 = vshrl.u32 %v4024, 30
        %v4026 = vshll.u32 %v4025, 30
        %v4027 = vsub.s32 %v4023, %v4026
        %vm4028 = vcmp.lt.s32.totalorder %v4027, 0
        %v4029 = vsub.s32 0, %v4027
        %v4030 = vsel %vm4028, %v4029, %v4027
        %v4031 = vclz %v4030
        %v4032 = vsub.s32 %v4031, 2
        %vm4033 = vcmp.gt.s32.totalorder 0, %v4032
        %v4034 = vsel %vm4033, 0, %v4032
        %v4035 = vsub.s32 32, %v4034
        %v4036 = vshll.u32 %v4027, %v4034
        %v4037 = vshrl.u32 %v4019, %v4035
        %v4038 = vor.u32 %v4036, %v4037
        %v4039 = vsub.s32 4294967266, %v4034
        %v4040 = vadd.s32 %v4039, 127
        %v4041 = vshll.u32 %v4040, 23
        %v4042 = vor.u32 4788187, %v4041
        %v4043 = vand.u32 2147483647, %v4042
        %v4045 = vcvt.s32.f32 %v4038
        %v4046 = vmul.f32 %v4045, %v4043
        %v4047 = vxor.u32 %v4046, 2147483648
        %v4048 = vsel %vm3965, %v4047, %v4046
        %v4049 = vsub.s32 4, %v4025
        %v4050 = vsel %vm3965, %v4049, %v4025
        %v4051 = vsel %vm3964, %v635, %v4048
        %v4052 = vsel %vm3964, 0, %v4050
        %v4053 = vcosq.f32.pop %v4051
        %v4054 = vsinq.f32.pop %v4051
        %vm4055 = vweird.f32 %v635
        %v4056 = vand.u32 %v4052, 3
        %vm4057 = vcmp.lt.s32.totalorder %v4056, 2
        %vm4058 = vcmp.eq.s32.totalorder %v4056, 0
        %v4059 = vxor.u32 %v4054, 2147483648
        %v4060 = vsel %vm4058, %v4053, %v4059
        %vm4061 = vcmp.eq.s32.totalorder %v4056, 2
        %v4062 = vxor.u32 %v4053, 2147483648
        %v4063 = vsel %vm4061, %v4062, %v4054
        %v4064 = vsel %vm4057, %v4060, %v4063
        %v4065 = vsel %vm4055, nan, %v4064
        %v4066 = vand.u32 2147483647, %v636
        %vm4067 = vcmp.le.f32.partialorder %v4066, 0.7853982
        %vm4068 = vcmp.lt.s32.totalorder %v636, 0
        %v4069 = vand.u32 %v636, 2139095040
        %v4070 = vshrl.u32 %v4069, 23
        %v4071 = vsub.s32 %v4070, 127
        %v4072 = vand.u32 2147483647, %v636
        %v4073 = vand.u32 %v4072, 8388607
        %v4074 = vor.u32 %v4073, 8388608
        %v4075 = vsub.s32 0, %v4074
        %v4076 = vadd.s32 %v4071, 1
        %vm4077 = vcmp.gt.s32.totalorder %v4076, 0
        %v4078 = vsel %vm4077, %v4076, 0
        %v4079 = vshrl.u32 %v4078, 5
        %v4080 = vand.u32 %v4078, 31
        %v4081 = vsub.s32 32, %v4080
        %v4082 = vshrl.u32 683565275, %v4081
        %v4083 = vshll.u32 683565275, %v4080
        %v4084 = vshrl.u32 2475754826, %v4081
        %v4085 = vor.u32 %v4083, %v4084
        %v4086 = vshll.u32 2475754826, %v4080
        %v4087 = vshrl.u32 2131351028, %v4081
        %v4088 = vor.u32 %v4086, %v4087
        %v4089 = vshll.u32 2131351028, %v4080
        %v4090 = vshrl.u32 2102212464, %v4081
        %v4091 = vor.u32 %v4089, %v4090
        %v4092 = vshll.u32 2102212464, %v4080
        %v4093 = vshrl.u32 920167782, %v4081
        %v4094 = vor.u32 %v4092, %v4093
        %v4095 = vshll.u32 920167782, %v4080
        %v4096 = vshrl.u32 1326507024, %v4081
        %v4097 = vor.u32 %v4095, %v4096
        %vm4098 = vcmp.lt.s32.totalorder %v4079, 1
        %vm4099 = vcmp.lt.s32.totalorder %v4079, 2
        %vm4100 = vcmp.lt.s32.totalorder %v4079, 3
        %vm4101 = vcmp.lt.s32.totalorder %v4079, 4
        %v4102 = vsel %vm4098, %v4082, %v4085
        %v4103 = vsel %vm4101, %v4091, 2102212464
        %v4104 = vsel %vm4100, %v4088, %v4103
        %v4105 = vsel %vm4099, %v4102, %v4104
        %v4106 = vsel %vm4098, %v4085, %v4088
        %v4107 = vsel %vm4101, %v4094, 920167782
        %v4108 = vsel %vm4100, %v4091, %v4107
        %v4109 = vsel %vm4099, %v4106, %v4108
        %v4110 = vsel %vm4098, %v4088, %v4091
        %v4111 = vsel %vm4101, %v4097, 1326507024
        %v4112 = vsel %vm4100, %v4094, %v4111
        %v4113 = vsel %vm4099, %v4110, %v4112
        %v4114 = vshll.u32 %v4074, 8
        %v4115 = vmul.u32.u64.compose %v4114, %v4113
        %v4116 = vextract.low.u32 %v4115
        %v4117 = vextract.high.u32 %v4115
        %v4118 = vmul.u32.u64.compose %v4114, %v4109
        %v4119 = vextract.low.u32 %v4118
        %v4120 = vextract.high.u32 %v4118
        %v4121 = vmul.u32 %v4114, %v4105
        %v4122 = vadd.s32 %v4117, %v4119
        %vm4123 = vc.u32 %v4117, %v4119
        %v4124 = vadd.s32 %v4120, 1
        %v4125 = vsel %vm4123, %v4124, %v4120
        %v4126 = vadd.s32 %v4121, %v4125
        %v4127 = vadd.s32 %v4126, 536870912
        %v4128 = vshrl.u32 %v4127, 30
        %v4129 = vshll.u32 %v4128, 30
        %v4130 = vsub.s32 %v4126, %v4129
        %vm4131 = vcmp.lt.s32.totalorder %v4130, 0
        %v4132 = vsub.s32 0, %v4130
        %v4133 = vsel %vm4131, %v4132, %v4130
        %v4134 = vclz %v4133
        %v4135 = vsub.s32 %v4134, 2
        %vm4136 = vcmp.gt.s32.totalorder 0, %v4135
        %v4137 = vsel %vm4136, 0, %v4135
        %v4138 = vsub.s32 32, %v4137
        %v4139 = vshll.u32 %v4130, %v4137
        %v4140 = vshrl.u32 %v4122, %v4138
        %v4141 = vor.u32 %v4139, %v4140
        %v4142 = vsub.s32 4294967266, %v4137
        %v4143 = vadd.s32 %v4142, 127
        %v4144 = vshll.u32 %v4143, 23
        %v4145 = vor.u32 4788187, %v4144
        %v4146 = vand.u32 2147483647, %v4145
        %v4148 = vcvt.s32.f32 %v4141
        %v4149 = vmul.f32 %v4148, %v4146
        %v4150 = vxor.u32 %v4149, 2147483648
        %v4151 = vsel %vm4068, %v4150, %v4149
        %v4152 = vsub.s32 4, %v4128
        %v4153 = vsel %vm4068, %v4152, %v4128
        %v4154 = vsel %vm4067, %v636, %v4151
        %v4155 = vsel %vm4067, 0, %v4153
        %v4156 = vcosq.f32.pop %v4154
        %v4157 = vsinq.f32.pop %v4154
        %vm4158 = vweird.f32 %v636
        %v4159 = vand.u32 %v4155, 3
        %vm4160 = vcmp.lt.s32.totalorder %v4159, 2
        %vm4161 = vcmp.eq.s32.totalorder %v4159, 0
        %v4162 = vxor.u32 %v4157, 2147483648
        %v4163 = vsel %vm4161, %v4156, %v4162
        %vm4164 = vcmp.eq.s32.totalorder %v4159, 2
        %v4165 = vxor.u32 %v4156, 2147483648
        %v4166 = vsel %vm4164, %v4165, %v4157
        %v4167 = vsel %vm4160, %v4163, %v4166
        %v4168 = vsel %vm4158, nan, %v4167
        %v4169 = vand.u32 2147483647, %v637
        %vm4170 = vcmp.le.f32.partialorder %v4169, 0.7853982
        %vm4171 = vcmp.lt.s32.totalorder %v637, 0
        %v4172 = vand.u32 %v637, 2139095040
        %v4173 = vshrl.u32 %v4172, 23
        %v4174 = vsub.s32 %v4173, 127
        %v4175 = vand.u32 2147483647, %v637
        %v4176 = vand.u32 %v4175, 8388607
        %v4177 = vor.u32 %v4176, 8388608
        %v4178 = vsub.s32 0, %v4177
        %v4179 = vadd.s32 %v4174, 1
        %vm4180 = vcmp.gt.s32.totalorder %v4179, 0
        %v4181 = vsel %vm4180, %v4179, 0
        %v4182 = vshrl.u32 %v4181, 5
        %v4183 = vand.u32 %v4181, 31
        %v4184 = vsub.s32 32, %v4183
        %v4185 = vshrl.u32 683565275, %v4184
        %v4186 = vshll.u32 683565275, %v4183
        %v4187 = vshrl.u32 2475754826, %v4184
        %v4188 = vor.u32 %v4186, %v4187
        %v4189 = vshll.u32 2475754826, %v4183
        %v4190 = vshrl.u32 2131351028, %v4184
        %v4191 = vor.u32 %v4189, %v4190
        %v4192 = vshll.u32 2131351028, %v4183
        %v4193 = vshrl.u32 2102212464, %v4184
        %v4194 = vor.u32 %v4192, %v4193
        %v4195 = vshll.u32 2102212464, %v4183
        %v4196 = vshrl.u32 920167782, %v4184
        %v4197 = vor.u32 %v4195, %v4196
        %v4198 = vshll.u32 920167782, %v4183
        %v4199 = vshrl.u32 1326507024, %v4184
        %v4200 = vor.u32 %v4198, %v4199
        %vm4201 = vcmp.lt.s32.totalorder %v4182, 1
        %vm4202 = vcmp.lt.s32.totalorder %v4182, 2
        %vm4203 = vcmp.lt.s32.totalorder %v4182, 3
        %vm4204 = vcmp.lt.s32.totalorder %v4182, 4
        %v4205 = vsel %vm4201, %v4185, %v4188
        %v4206 = vsel %vm4204, %v4194, 2102212464
        %v4207 = vsel %vm4203, %v4191, %v4206
        %v4208 = vsel %vm4202, %v4205, %v4207
        %v4209 = vsel %vm4201, %v4188, %v4191
        %v4210 = vsel %vm4204, %v4197, 920167782
        %v4211 = vsel %vm4203, %v4194, %v4210
        %v4212 = vsel %vm4202, %v4209, %v4211
        %v4213 = vsel %vm4201, %v4191, %v4194
        %v4214 = vsel %vm4204, %v4200, 1326507024
        %v4215 = vsel %vm4203, %v4197, %v4214
        %v4216 = vsel %vm4202, %v4213, %v4215
        %v4217 = vshll.u32 %v4177, 8
        %v4218 = vmul.u32.u64.compose %v4217, %v4216
        %v4219 = vextract.low.u32 %v4218
        %v4220 = vextract.high.u32 %v4218
        %v4221 = vmul.u32.u64.compose %v4217, %v4212
        %v4222 = vextract.low.u32 %v4221
        %v4223 = vextract.high.u32 %v4221
        %v4224 = vmul.u32 %v4217, %v4208
        %v4225 = vadd.s32 %v4220, %v4222
        %vm4226 = vc.u32 %v4220, %v4222
        %v4227 = vadd.s32 %v4223, 1
        %v4228 = vsel %vm4226, %v4227, %v4223
        %v4229 = vadd.s32 %v4224, %v4228
        %v4230 = vadd.s32 %v4229, 536870912
        %v4231 = vshrl.u32 %v4230, 30
        %v4232 = vshll.u32 %v4231, 30
        %v4233 = vsub.s32 %v4229, %v4232
        %vm4234 = vcmp.lt.s32.totalorder %v4233, 0
        %v4235 = vsub.s32 0, %v4233
        %v4236 = vsel %vm4234, %v4235, %v4233
        %v4237 = vclz %v4236
        %v4238 = vsub.s32 %v4237, 2
        %vm4239 = vcmp.gt.s32.totalorder 0, %v4238
        %v4240 = vsel %vm4239, 0, %v4238
        %v4241 = vsub.s32 32, %v4240
        %v4242 = vshll.u32 %v4233, %v4240
        %v4243 = vshrl.u32 %v4225, %v4241
        %v4244 = vor.u32 %v4242, %v4243
        %v4245 = vsub.s32 4294967266, %v4240
        %v4246 = vadd.s32 %v4245, 127
        %v4247 = vshll.u32 %v4246, 23
        %v4248 = vor.u32 4788187, %v4247
        %v4249 = vand.u32 2147483647, %v4248
        %v4251 = vcvt.s32.f32 %v4244
        %v4252 = vmul.f32 %v4251, %v4249
        %v4253 = vxor.u32 %v4252, 2147483648
        %v4254 = vsel %vm4171, %v4253, %v4252
        %v4255 = vsub.s32 4, %v4231
        %v4256 = vsel %vm4171, %v4255, %v4231
        %v4257 = vsel %vm4170, %v637, %v4254
        %v4258 = vsel %vm4170, 0, %v4256
        %v4259 = vcosq.f32.pop %v4257
        %v4260 = vsinq.f32.pop %v4257
        %vm4261 = vweird.f32 %v637
        %v4262 = vand.u32 %v4258, 3
        %vm4263 = vcmp.lt.s32.totalorder %v4262, 2
        %vm4264 = vcmp.eq.s32.totalorder %v4262, 0
        %v4265 = vxor.u32 %v4260, 2147483648
        %v4266 = vsel %vm4264, %v4259, %v4265
        %vm4267 = vcmp.eq.s32.totalorder %v4262, 2
        %v4268 = vxor.u32 %v4259, 2147483648
        %v4269 = vsel %vm4267, %v4268, %v4260
        %v4270 = vsel %vm4263, %v4266, %v4269
        %v4271 = vsel %vm4261, nan, %v4270
        %v4272 = vand.u32 2147483647, %v638
        %vm4273 = vcmp.le.f32.partialorder %v4272, 0.7853982
        %vm4274 = vcmp.lt.s32.totalorder %v638, 0
        %v4275 = vand.u32 %v638, 2139095040
        %v4276 = vshrl.u32 %v4275, 23
        %v4277 = vsub.s32 %v4276, 127
        %v4278 = vand.u32 2147483647, %v638
        %v4279 = vand.u32 %v4278, 8388607
        %v4280 = vor.u32 %v4279, 8388608
        %v4281 = vsub.s32 0, %v4280
        %v4282 = vadd.s32 %v4277, 1
        %vm4283 = vcmp.gt.s32.totalorder %v4282, 0
        %v4284 = vsel %vm4283, %v4282, 0
        %v4285 = vshrl.u32 %v4284, 5
        %v4286 = vand.u32 %v4284, 31
        %v4287 = vsub.s32 32, %v4286
        %v4288 = vshrl.u32 683565275, %v4287
        %v4289 = vshll.u32 683565275, %v4286
        %v4290 = vshrl.u32 2475754826, %v4287
        %v4291 = vor.u32 %v4289, %v4290
        %v4292 = vshll.u32 2475754826, %v4286
        %v4293 = vshrl.u32 2131351028, %v4287
        %v4294 = vor.u32 %v4292, %v4293
        %v4295 = vshll.u32 2131351028, %v4286
        %v4296 = vshrl.u32 2102212464, %v4287
        %v4297 = vor.u32 %v4295, %v4296
        %v4298 = vshll.u32 2102212464, %v4286
        %v4299 = vshrl.u32 920167782, %v4287
        %v4300 = vor.u32 %v4298, %v4299
        %v4301 = vshll.u32 920167782, %v4286
        %v4302 = vshrl.u32 1326507024, %v4287
        %v4303 = vor.u32 %v4301, %v4302
        %vm4304 = vcmp.lt.s32.totalorder %v4285, 1
        %vm4305 = vcmp.lt.s32.totalorder %v4285, 2
        %vm4306 = vcmp.lt.s32.totalorder %v4285, 3
        %vm4307 = vcmp.lt.s32.totalorder %v4285, 4
        %v4308 = vsel %vm4304, %v4288, %v4291
        %v4309 = vsel %vm4307, %v4297, 2102212464
        %v4310 = vsel %vm4306, %v4294, %v4309
        %v4311 = vsel %vm4305, %v4308, %v4310
        %v4312 = vsel %vm4304, %v4291, %v4294
        %v4313 = vsel %vm4307, %v4300, 920167782
        %v4314 = vsel %vm4306, %v4297, %v4313
        %v4315 = vsel %vm4305, %v4312, %v4314
        %v4316 = vsel %vm4304, %v4294, %v4297
        %v4317 = vsel %vm4307, %v4303, 1326507024
        %v4318 = vsel %vm4306, %v4300, %v4317
        %v4319 = vsel %vm4305, %v4316, %v4318
        %v4320 = vshll.u32 %v4280, 8
        %v4321 = vmul.u32.u64.compose %v4320, %v4319
        %v4322 = vextract.low.u32 %v4321
        %v4323 = vextract.high.u32 %v4321
        %v4324 = vmul.u32.u64.compose %v4320, %v4315
        %v4325 = vextract.low.u32 %v4324
        %v4326 = vextract.high.u32 %v4324
        %v4327 = vmul.u32 %v4320, %v4311
        %v4328 = vadd.s32 %v4323, %v4325
        %vm4329 = vc.u32 %v4323, %v4325
        %v4330 = vadd.s32 %v4326, 1
        %v4331 = vsel %vm4329, %v4330, %v4326
        %v4332 = vadd.s32 %v4327, %v4331
        %v4333 = vadd.s32 %v4332, 536870912
        %v4334 = vshrl.u32 %v4333, 30
        %v4335 = vshll.u32 %v4334, 30
        %v4336 = vsub.s32 %v4332, %v4335
        %vm4337 = vcmp.lt.s32.totalorder %v4336, 0
        %v4338 = vsub.s32 0, %v4336
        %v4339 = vsel %vm4337, %v4338, %v4336
        %v4340 = vclz %v4339
        %v4341 = vsub.s32 %v4340, 2
        %vm4342 = vcmp.gt.s32.totalorder 0, %v4341
        %v4343 = vsel %vm4342, 0, %v4341
        %v4344 = vsub.s32 32, %v4343
        %v4345 = vshll.u32 %v4336, %v4343
        %v4346 = vshrl.u32 %v4328, %v4344
        %v4347 = vor.u32 %v4345, %v4346
        %v4348 = vsub.s32 4294967266, %v4343
        %v4349 = vadd.s32 %v4348, 127
        %v4350 = vshll.u32 %v4349, 23
        %v4351 = vor.u32 4788187, %v4350
        %v4352 = vand.u32 2147483647, %v4351
        %v4354 = vcvt.s32.f32 %v4347
        %v4355 = vmul.f32 %v4354, %v4352
        %v4356 = vxor.u32 %v4355, 2147483648
        %v4357 = vsel %vm4274, %v4356, %v4355
        %v4358 = vsub.s32 4, %v4334
        %v4359 = vsel %vm4274, %v4358, %v4334
        %v4360 = vsel %vm4273, %v638, %v4357
        %v4361 = vsel %vm4273, 0, %v4359
        %v4362 = vcosq.f32.pop %v4360
        %v4363 = vsinq.f32.pop %v4360
        %vm4364 = vweird.f32 %v638
        %v4365 = vand.u32 %v4361, 3
        %vm4366 = vcmp.lt.s32.totalorder %v4365, 2
        %vm4367 = vcmp.eq.s32.totalorder %v4365, 0
        %v4368 = vxor.u32 %v4363, 2147483648
        %v4369 = vsel %vm4367, %v4362, %v4368
        %vm4370 = vcmp.eq.s32.totalorder %v4365, 2
        %v4371 = vxor.u32 %v4362, 2147483648
        %v4372 = vsel %vm4370, %v4371, %v4363
        %v4373 = vsel %vm4366, %v4369, %v4372
        %v4374 = vsel %vm4364, nan, %v4373
        %v4375 = vand.u32 2147483647, %v639
        %vm4376 = vcmp.le.f32.partialorder %v4375, 0.7853982
        %vm4377 = vcmp.lt.s32.totalorder %v639, 0
        %v4378 = vand.u32 %v639, 2139095040
        %v4379 = vshrl.u32 %v4378, 23
        %v4380 = vsub.s32 %v4379, 127
        %v4381 = vand.u32 2147483647, %v639
        %v4382 = vand.u32 %v4381, 8388607
        %v4383 = vor.u32 %v4382, 8388608
        %v4384 = vsub.s32 0, %v4383
        %v4385 = vadd.s32 %v4380, 1
        %vm4386 = vcmp.gt.s32.totalorder %v4385, 0
        %v4387 = vsel %vm4386, %v4385, 0
        %v4388 = vshrl.u32 %v4387, 5
        %v4389 = vand.u32 %v4387, 31
        %v4390 = vsub.s32 32, %v4389
        %v4391 = vshrl.u32 683565275, %v4390
        %v4392 = vshll.u32 683565275, %v4389
        %v4393 = vshrl.u32 2475754826, %v4390
        %v4394 = vor.u32 %v4392, %v4393
        %v4395 = vshll.u32 2475754826, %v4389
        %v4396 = vshrl.u32 2131351028, %v4390
        %v4397 = vor.u32 %v4395, %v4396
        %v4398 = vshll.u32 2131351028, %v4389
        %v4399 = vshrl.u32 2102212464, %v4390
        %v4400 = vor.u32 %v4398, %v4399
        %v4401 = vshll.u32 2102212464, %v4389
        %v4402 = vshrl.u32 920167782, %v4390
        %v4403 = vor.u32 %v4401, %v4402
        %v4404 = vshll.u32 920167782, %v4389
        %v4405 = vshrl.u32 1326507024, %v4390
        %v4406 = vor.u32 %v4404, %v4405
        %vm4407 = vcmp.lt.s32.totalorder %v4388, 1
        %vm4408 = vcmp.lt.s32.totalorder %v4388, 2
        %vm4409 = vcmp.lt.s32.totalorder %v4388, 3
        %vm4410 = vcmp.lt.s32.totalorder %v4388, 4
        %v4411 = vsel %vm4407, %v4391, %v4394
        %v4412 = vsel %vm4410, %v4400, 2102212464
        %v4413 = vsel %vm4409, %v4397, %v4412
        %v4414 = vsel %vm4408, %v4411, %v4413
        %v4415 = vsel %vm4407, %v4394, %v4397
        %v4416 = vsel %vm4410, %v4403, 920167782
        %v4417 = vsel %vm4409, %v4400, %v4416
        %v4418 = vsel %vm4408, %v4415, %v4417
        %v4419 = vsel %vm4407, %v4397, %v4400
        %v4420 = vsel %vm4410, %v4406, 1326507024
        %v4421 = vsel %vm4409, %v4403, %v4420
        %v4422 = vsel %vm4408, %v4419, %v4421
        %v4423 = vshll.u32 %v4383, 8
        %v4424 = vmul.u32.u64.compose %v4423, %v4422
        %v4425 = vextract.low.u32 %v4424
        %v4426 = vextract.high.u32 %v4424
        %v4427 = vmul.u32.u64.compose %v4423, %v4418
        %v4428 = vextract.low.u32 %v4427
        %v4429 = vextract.high.u32 %v4427
        %v4430 = vmul.u32 %v4423, %v4414
        %v4431 = vadd.s32 %v4426, %v4428
        %vm4432 = vc.u32 %v4426, %v4428
        %v4433 = vadd.s32 %v4429, 1
        %v4434 = vsel %vm4432, %v4433, %v4429
        %v4435 = vadd.s32 %v4430, %v4434
        %v4436 = vadd.s32 %v4435, 536870912
        %v4437 = vshrl.u32 %v4436, 30
        %v4438 = vshll.u32 %v4437, 30
        %v4439 = vsub.s32 %v4435, %v4438
        %vm4440 = vcmp.lt.s32.totalorder %v4439, 0
        %v4441 = vsub.s32 0, %v4439
        %v4442 = vsel %vm4440, %v4441, %v4439
        %v4443 = vclz %v4442
        %v4444 = vsub.s32 %v4443, 2
        %vm4445 = vcmp.gt.s32.totalorder 0, %v4444
        %v4446 = vsel %vm4445, 0, %v4444
        %v4447 = vsub.s32 32, %v4446
        %v4448 = vshll.u32 %v4439, %v4446
        %v4449 = vshrl.u32 %v4431, %v4447
        %v4450 = vor.u32 %v4448, %v4449
        %v4451 = vsub.s32 4294967266, %v4446
        %v4452 = vadd.s32 %v4451, 127
        %v4453 = vshll.u32 %v4452, 23
        %v4454 = vor.u32 4788187, %v4453
        %v4455 = vand.u32 2147483647, %v4454
        %v4457 = vcvt.s32.f32 %v4450
        %v4458 = vmul.f32 %v4457, %v4455
        %v4459 = vxor.u32 %v4458, 2147483648
        %v4460 = vsel %vm4377, %v4459, %v4458
        %v4461 = vsub.s32 4, %v4437
        %v4462 = vsel %vm4377, %v4461, %v4437
        %v4463 = vsel %vm4376, %v639, %v4460
        %v4464 = vsel %vm4376, 0, %v4462
        %v4465 = vcosq.f32.pop %v4463
        %v4466 = vsinq.f32.pop %v4463
        %vm4467 = vweird.f32 %v639
        %v4468 = vand.u32 %v4464, 3
        %vm4469 = vcmp.lt.s32.totalorder %v4468, 2
        %vm4470 = vcmp.eq.s32.totalorder %v4468, 0
        %v4471 = vxor.u32 %v4466, 2147483648
        %v4472 = vsel %vm4470, %v4465, %v4471
        %vm4473 = vcmp.eq.s32.totalorder %v4468, 2
        %v4474 = vxor.u32 %v4465, 2147483648
        %v4475 = vsel %vm4473, %v4474, %v4466
        %v4476 = vsel %vm4469, %v4472, %v4475
        %v4477 = vsel %vm4467, nan, %v4476
        %v4478 = vand.u32 2147483647, %v640
        %vm4479 = vcmp.le.f32.partialorder %v4478, 0.7853982
        %vm4480 = vcmp.lt.s32.totalorder %v640, 0
        %v4481 = vand.u32 %v640, 2139095040
        %v4482 = vshrl.u32 %v4481, 23
        %v4483 = vsub.s32 %v4482, 127
        %v4484 = vand.u32 2147483647, %v640
        %v4485 = vand.u32 %v4484, 8388607
        %v4486 = vor.u32 %v4485, 8388608
        %v4487 = vsub.s32 0, %v4486
        %v4488 = vadd.s32 %v4483, 1
        %vm4489 = vcmp.gt.s32.totalorder %v4488, 0
        %v4490 = vsel %vm4489, %v4488, 0
        %v4491 = vshrl.u32 %v4490, 5
        %v4492 = vand.u32 %v4490, 31
        %v4493 = vsub.s32 32, %v4492
        %v4494 = vshrl.u32 683565275, %v4493
        %v4495 = vshll.u32 683565275, %v4492
        %v4496 = vshrl.u32 2475754826, %v4493
        %v4497 = vor.u32 %v4495, %v4496
        %v4498 = vshll.u32 2475754826, %v4492
        %v4499 = vshrl.u32 2131351028, %v4493
        %v4500 = vor.u32 %v4498, %v4499
        %v4501 = vshll.u32 2131351028, %v4492
        %v4502 = vshrl.u32 2102212464, %v4493
        %v4503 = vor.u32 %v4501, %v4502
        %v4504 = vshll.u32 2102212464, %v4492
        %v4505 = vshrl.u32 920167782, %v4493
        %v4506 = vor.u32 %v4504, %v4505
        %v4507 = vshll.u32 920167782, %v4492
        %v4508 = vshrl.u32 1326507024, %v4493
        %v4509 = vor.u32 %v4507, %v4508
        %vm4510 = vcmp.lt.s32.totalorder %v4491, 1
        %vm4511 = vcmp.lt.s32.totalorder %v4491, 2
        %vm4512 = vcmp.lt.s32.totalorder %v4491, 3
        %vm4513 = vcmp.lt.s32.totalorder %v4491, 4
        %v4514 = vsel %vm4510, %v4494, %v4497
        %v4515 = vsel %vm4513, %v4503, 2102212464
        %v4516 = vsel %vm4512, %v4500, %v4515
        %v4517 = vsel %vm4511, %v4514, %v4516
        %v4518 = vsel %vm4510, %v4497, %v4500
        %v4519 = vsel %vm4513, %v4506, 920167782
        %v4520 = vsel %vm4512, %v4503, %v4519
        %v4521 = vsel %vm4511, %v4518, %v4520
        %v4522 = vsel %vm4510, %v4500, %v4503
        %v4523 = vsel %vm4513, %v4509, 1326507024
        %v4524 = vsel %vm4512, %v4506, %v4523
        %v4525 = vsel %vm4511, %v4522, %v4524
        %v4526 = vshll.u32 %v4486, 8
        %v4527 = vmul.u32.u64.compose %v4526, %v4525
        %v4528 = vextract.low.u32 %v4527
        %v4529 = vextract.high.u32 %v4527
        %v4530 = vmul.u32.u64.compose %v4526, %v4521
        %v4531 = vextract.low.u32 %v4530
        %v4532 = vextract.high.u32 %v4530
        %v4533 = vmul.u32 %v4526, %v4517
        %v4534 = vadd.s32 %v4529, %v4531
        %vm4535 = vc.u32 %v4529, %v4531
        %v4536 = vadd.s32 %v4532, 1
        %v4537 = vsel %vm4535, %v4536, %v4532
        %v4538 = vadd.s32 %v4533, %v4537
        %v4539 = vadd.s32 %v4538, 536870912
        %v4540 = vshrl.u32 %v4539, 30
        %v4541 = vshll.u32 %v4540, 30
        %v4542 = vsub.s32 %v4538, %v4541
        %vm4543 = vcmp.lt.s32.totalorder %v4542, 0
        %v4544 = vsub.s32 0, %v4542
        %v4545 = vsel %vm4543, %v4544, %v4542
        %v4546 = vclz %v4545
        %v4547 = vsub.s32 %v4546, 2
        %vm4548 = vcmp.gt.s32.totalorder 0, %v4547
        %v4549 = vsel %vm4548, 0, %v4547
        %v4550 = vsub.s32 32, %v4549
        %v4551 = vshll.u32 %v4542, %v4549
        %v4552 = vshrl.u32 %v4534, %v4550
        %v4553 = vor.u32 %v4551, %v4552
        %v4554 = vsub.s32 4294967266, %v4549
        %v4555 = vadd.s32 %v4554, 127
        %v4556 = vshll.u32 %v4555, 23
        %v4557 = vor.u32 4788187, %v4556
        %v4558 = vand.u32 2147483647, %v4557
        %v4560 = vcvt.s32.f32 %v4553
        %v4561 = vmul.f32 %v4560, %v4558
        %v4562 = vxor.u32 %v4561, 2147483648
        %v4563 = vsel %vm4480, %v4562, %v4561
        %v4564 = vsub.s32 4, %v4540
        %v4565 = vsel %vm4480, %v4564, %v4540
        %v4566 = vsel %vm4479, %v640, %v4563
        %v4567 = vsel %vm4479, 0, %v4565
        %v4568 = vcosq.f32.pop %v4566
        %v4569 = vsinq.f32.pop %v4566
        %vm4570 = vweird.f32 %v640
        %v4571 = vand.u32 %v4567, 3
        %vm4572 = vcmp.lt.s32.totalorder %v4571, 2
        %vm4573 = vcmp.eq.s32.totalorder %v4571, 0
        %v4574 = vxor.u32 %v4569, 2147483648
        %v4575 = vsel %vm4573, %v4568, %v4574
        %vm4576 = vcmp.eq.s32.totalorder %v4571, 2
        %v4577 = vxor.u32 %v4568, 2147483648
        %v4578 = vsel %vm4576, %v4577, %v4569
        %v4579 = vsel %vm4572, %v4575, %v4578
        %v4580 = vsel %vm4570, nan, %v4579
        %v4581 = vand.u32 2147483647, %v641
        %vm4582 = vcmp.le.f32.partialorder %v4581, 0.7853982
        %vm4583 = vcmp.lt.s32.totalorder %v641, 0
        %v4584 = vand.u32 %v641, 2139095040
        %v4585 = vshrl.u32 %v4584, 23
        %v4586 = vsub.s32 %v4585, 127
        %v4587 = vand.u32 2147483647, %v641
        %v4588 = vand.u32 %v4587, 8388607
        %v4589 = vor.u32 %v4588, 8388608
        %v4590 = vsub.s32 0, %v4589
        %v4591 = vadd.s32 %v4586, 1
        %vm4592 = vcmp.gt.s32.totalorder %v4591, 0
        %v4593 = vsel %vm4592, %v4591, 0
        %v4594 = vshrl.u32 %v4593, 5
        %v4595 = vand.u32 %v4593, 31
        %v4596 = vsub.s32 32, %v4595
        %v4597 = vshrl.u32 683565275, %v4596
        %v4598 = vshll.u32 683565275, %v4595
        %v4599 = vshrl.u32 2475754826, %v4596
        %v4600 = vor.u32 %v4598, %v4599
        %v4601 = vshll.u32 2475754826, %v4595
        %v4602 = vshrl.u32 2131351028, %v4596
        %v4603 = vor.u32 %v4601, %v4602
        %v4604 = vshll.u32 2131351028, %v4595
        %v4605 = vshrl.u32 2102212464, %v4596
        %v4606 = vor.u32 %v4604, %v4605
        %v4607 = vshll.u32 2102212464, %v4595
        %v4608 = vshrl.u32 920167782, %v4596
        %v4609 = vor.u32 %v4607, %v4608
        %v4610 = vshll.u32 920167782, %v4595
        %v4611 = vshrl.u32 1326507024, %v4596
        %v4612 = vor.u32 %v4610, %v4611
        %vm4613 = vcmp.lt.s32.totalorder %v4594, 1
        %vm4614 = vcmp.lt.s32.totalorder %v4594, 2
        %vm4615 = vcmp.lt.s32.totalorder %v4594, 3
        %vm4616 = vcmp.lt.s32.totalorder %v4594, 4
        %v4617 = vsel %vm4613, %v4597, %v4600
        %v4618 = vsel %vm4616, %v4606, 2102212464
        %v4619 = vsel %vm4615, %v4603, %v4618
        %v4620 = vsel %vm4614, %v4617, %v4619
        %v4621 = vsel %vm4613, %v4600, %v4603
        %v4622 = vsel %vm4616, %v4609, 920167782
        %v4623 = vsel %vm4615, %v4606, %v4622
        %v4624 = vsel %vm4614, %v4621, %v4623
        %v4625 = vsel %vm4613, %v4603, %v4606
        %v4626 = vsel %vm4616, %v4612, 1326507024
        %v4627 = vsel %vm4615, %v4609, %v4626
        %v4628 = vsel %vm4614, %v4625, %v4627
        %v4629 = vshll.u32 %v4589, 8
        %v4630 = vmul.u32.u64.compose %v4629, %v4628
        %v4631 = vextract.low.u32 %v4630
        %v4632 = vextract.high.u32 %v4630
        %v4633 = vmul.u32.u64.compose %v4629, %v4624
        %v4634 = vextract.low.u32 %v4633
        %v4635 = vextract.high.u32 %v4633
        %v4636 = vmul.u32 %v4629, %v4620
        %v4637 = vadd.s32 %v4632, %v4634
        %vm4638 = vc.u32 %v4632, %v4634
        %v4639 = vadd.s32 %v4635, 1
        %v4640 = vsel %vm4638, %v4639, %v4635
        %v4641 = vadd.s32 %v4636, %v4640
        %v4642 = vadd.s32 %v4641, 536870912
        %v4643 = vshrl.u32 %v4642, 30
        %v4644 = vshll.u32 %v4643, 30
        %v4645 = vsub.s32 %v4641, %v4644
        %vm4646 = vcmp.lt.s32.totalorder %v4645, 0
        %v4647 = vsub.s32 0, %v4645
        %v4648 = vsel %vm4646, %v4647, %v4645
        %v4649 = vclz %v4648
        %v4650 = vsub.s32 %v4649, 2
        %vm4651 = vcmp.gt.s32.totalorder 0, %v4650
        %v4652 = vsel %vm4651, 0, %v4650
        %v4653 = vsub.s32 32, %v4652
        %v4654 = vshll.u32 %v4645, %v4652
        %v4655 = vshrl.u32 %v4637, %v4653
        %v4656 = vor.u32 %v4654, %v4655
        %v4657 = vsub.s32 4294967266, %v4652
        %v4658 = vadd.s32 %v4657, 127
        %v4659 = vshll.u32 %v4658, 23
        %v4660 = vor.u32 4788187, %v4659
        %v4661 = vand.u32 2147483647, %v4660
        %v4663 = vcvt.s32.f32 %v4656
        %v4664 = vmul.f32 %v4663, %v4661
        %v4665 = vxor.u32 %v4664, 2147483648
        %v4666 = vsel %vm4583, %v4665, %v4664
        %v4667 = vsub.s32 4, %v4643
        %v4668 = vsel %vm4583, %v4667, %v4643
        %v4669 = vsel %vm4582, %v641, %v4666
        %v4670 = vsel %vm4582, 0, %v4668
        %v4671 = vcosq.f32.pop %v4669
        %v4672 = vsinq.f32.pop %v4669
        %vm4673 = vweird.f32 %v641
        %v4674 = vand.u32 %v4670, 3
        %vm4675 = vcmp.lt.s32.totalorder %v4674, 2
        %vm4676 = vcmp.eq.s32.totalorder %v4674, 0
        %v4677 = vxor.u32 %v4672, 2147483648
        %v4678 = vsel %vm4676, %v4671, %v4677
        %vm4679 = vcmp.eq.s32.totalorder %v4674, 2
        %v4680 = vxor.u32 %v4671, 2147483648
        %v4681 = vsel %vm4679, %v4680, %v4672
        %v4682 = vsel %vm4675, %v4678, %v4681
        %v4683 = vsel %vm4673, nan, %v4682
        %v4684 = vand.u32 2147483647, %v642
        %vm4685 = vcmp.le.f32.partialorder %v4684, 0.7853982
        %vm4686 = vcmp.lt.s32.totalorder %v642, 0
        %v4687 = vand.u32 %v642, 2139095040
        %v4688 = vshrl.u32 %v4687, 23
        %v4689 = vsub.s32 %v4688, 127
        %v4690 = vand.u32 2147483647, %v642
        %v4691 = vand.u32 %v4690, 8388607
        %v4692 = vor.u32 %v4691, 8388608
        %v4693 = vsub.s32 0, %v4692
        %v4694 = vadd.s32 %v4689, 1
        %vm4695 = vcmp.gt.s32.totalorder %v4694, 0
        %v4696 = vsel %vm4695, %v4694, 0
        %v4697 = vshrl.u32 %v4696, 5
        %v4698 = vand.u32 %v4696, 31
        %v4699 = vsub.s32 32, %v4698
        %v4700 = vshrl.u32 683565275, %v4699
        %v4701 = vshll.u32 683565275, %v4698
        %v4702 = vshrl.u32 2475754826, %v4699
        %v4703 = vor.u32 %v4701, %v4702
        %v4704 = vshll.u32 2475754826, %v4698
        %v4705 = vshrl.u32 2131351028, %v4699
        %v4706 = vor.u32 %v4704, %v4705
        %v4707 = vshll.u32 2131351028, %v4698
        %v4708 = vshrl.u32 2102212464, %v4699
        %v4709 = vor.u32 %v4707, %v4708
        %v4710 = vshll.u32 2102212464, %v4698
        %v4711 = vshrl.u32 920167782, %v4699
        %v4712 = vor.u32 %v4710, %v4711
        %v4713 = vshll.u32 920167782, %v4698
        %v4714 = vshrl.u32 1326507024, %v4699
        %v4715 = vor.u32 %v4713, %v4714
        %vm4716 = vcmp.lt.s32.totalorder %v4697, 1
        %vm4717 = vcmp.lt.s32.totalorder %v4697, 2
        %vm4718 = vcmp.lt.s32.totalorder %v4697, 3
        %vm4719 = vcmp.lt.s32.totalorder %v4697, 4
        %v4720 = vsel %vm4716, %v4700, %v4703
        %v4721 = vsel %vm4719, %v4709, 2102212464
        %v4722 = vsel %vm4718, %v4706, %v4721
        %v4723 = vsel %vm4717, %v4720, %v4722
        %v4724 = vsel %vm4716, %v4703, %v4706
        %v4725 = vsel %vm4719, %v4712, 920167782
        %v4726 = vsel %vm4718, %v4709, %v4725
        %v4727 = vsel %vm4717, %v4724, %v4726
        %v4728 = vsel %vm4716, %v4706, %v4709
        %v4729 = vsel %vm4719, %v4715, 1326507024
        %v4730 = vsel %vm4718, %v4712, %v4729
        %v4731 = vsel %vm4717, %v4728, %v4730
        %v4732 = vshll.u32 %v4692, 8
        %v4733 = vmul.u32.u64.compose %v4732, %v4731
        %v4734 = vextract.low.u32 %v4733
        %v4735 = vextract.high.u32 %v4733
        %v4736 = vmul.u32.u64.compose %v4732, %v4727
        %v4737 = vextract.low.u32 %v4736
        %v4738 = vextract.high.u32 %v4736
        %v4739 = vmul.u32 %v4732, %v4723
        %v4740 = vadd.s32 %v4735, %v4737
        %vm4741 = vc.u32 %v4735, %v4737
        %v4742 = vadd.s32 %v4738, 1
        %v4743 = vsel %vm4741, %v4742, %v4738
        %v4744 = vadd.s32 %v4739, %v4743
        %v4745 = vadd.s32 %v4744, 536870912
        %v4746 = vshrl.u32 %v4745, 30
        %v4747 = vshll.u32 %v4746, 30
        %v4748 = vsub.s32 %v4744, %v4747
        %vm4749 = vcmp.lt.s32.totalorder %v4748, 0
        %v4750 = vsub.s32 0, %v4748
        %v4751 = vsel %vm4749, %v4750, %v4748
        %v4752 = vclz %v4751
        %v4753 = vsub.s32 %v4752, 2
        %vm4754 = vcmp.gt.s32.totalorder 0, %v4753
        %v4755 = vsel %vm4754, 0, %v4753
        %v4756 = vsub.s32 32, %v4755
        %v4757 = vshll.u32 %v4748, %v4755
        %v4758 = vshrl.u32 %v4740, %v4756
        %v4759 = vor.u32 %v4757, %v4758
        %v4760 = vsub.s32 4294967266, %v4755
        %v4761 = vadd.s32 %v4760, 127
        %v4762 = vshll.u32 %v4761, 23
        %v4763 = vor.u32 4788187, %v4762
        %v4764 = vand.u32 2147483647, %v4763
        %v4766 = vcvt.s32.f32 %v4759
        %v4767 = vmul.f32 %v4766, %v4764
        %v4768 = vxor.u32 %v4767, 2147483648
        %v4769 = vsel %vm4686, %v4768, %v4767
        %v4770 = vsub.s32 4, %v4746
        %v4771 = vsel %vm4686, %v4770, %v4746
        %v4772 = vsel %vm4685, %v642, %v4769
        %v4773 = vsel %vm4685, 0, %v4771
        %v4774 = vcosq.f32.pop %v4772
        %v4775 = vsinq.f32.pop %v4772
        %vm4776 = vweird.f32 %v642
        %v4777 = vand.u32 %v4773, 3
        %vm4778 = vcmp.lt.s32.totalorder %v4777, 2
        %vm4779 = vcmp.eq.s32.totalorder %v4777, 0
        %v4780 = vxor.u32 %v4775, 2147483648
        %v4781 = vsel %vm4779, %v4774, %v4780
        %vm4782 = vcmp.eq.s32.totalorder %v4777, 2
        %v4783 = vxor.u32 %v4774, 2147483648
        %v4784 = vsel %vm4782, %v4783, %v4775
        %v4785 = vsel %vm4778, %v4781, %v4784
        %v4786 = vsel %vm4776, nan, %v4785
        %v4787 = vand.u32 2147483647, %v643
        %vm4788 = vcmp.le.f32.partialorder %v4787, 0.7853982
        %vm4789 = vcmp.lt.s32.totalorder %v643, 0
        %v4790 = vand.u32 %v643, 2139095040
        %v4791 = vshrl.u32 %v4790, 23
        %v4792 = vsub.s32 %v4791, 127
        %v4793 = vand.u32 2147483647, %v643
        %v4794 = vand.u32 %v4793, 8388607
        %v4795 = vor.u32 %v4794, 8388608
        %v4796 = vsub.s32 0, %v4795
        %v4797 = vadd.s32 %v4792, 1
        %vm4798 = vcmp.gt.s32.totalorder %v4797, 0
        %v4799 = vsel %vm4798, %v4797, 0
        %v4800 = vshrl.u32 %v4799, 5
        %v4801 = vand.u32 %v4799, 31
        %v4802 = vsub.s32 32, %v4801
        %v4803 = vshrl.u32 683565275, %v4802
        %v4804 = vshll.u32 683565275, %v4801
        %v4805 = vshrl.u32 2475754826, %v4802
        %v4806 = vor.u32 %v4804, %v4805
        %v4807 = vshll.u32 2475754826, %v4801
        %v4808 = vshrl.u32 2131351028, %v4802
        %v4809 = vor.u32 %v4807, %v4808
        %v4810 = vshll.u32 2131351028, %v4801
        %v4811 = vshrl.u32 2102212464, %v4802
        %v4812 = vor.u32 %v4810, %v4811
        %v4813 = vshll.u32 2102212464, %v4801
        %v4814 = vshrl.u32 920167782, %v4802
        %v4815 = vor.u32 %v4813, %v4814
        %v4816 = vshll.u32 920167782, %v4801
        %v4817 = vshrl.u32 1326507024, %v4802
        %v4818 = vor.u32 %v4816, %v4817
        %vm4819 = vcmp.lt.s32.totalorder %v4800, 1
        %vm4820 = vcmp.lt.s32.totalorder %v4800, 2
        %vm4821 = vcmp.lt.s32.totalorder %v4800, 3
        %vm4822 = vcmp.lt.s32.totalorder %v4800, 4
        %v4823 = vsel %vm4819, %v4803, %v4806
        %v4824 = vsel %vm4822, %v4812, 2102212464
        %v4825 = vsel %vm4821, %v4809, %v4824
        %v4826 = vsel %vm4820, %v4823, %v4825
        %v4827 = vsel %vm4819, %v4806, %v4809
        %v4828 = vsel %vm4822, %v4815, 920167782
        %v4829 = vsel %vm4821, %v4812, %v4828
        %v4830 = vsel %vm4820, %v4827, %v4829
        %v4831 = vsel %vm4819, %v4809, %v4812
        %v4832 = vsel %vm4822, %v4818, 1326507024
        %v4833 = vsel %vm4821, %v4815, %v4832
        %v4834 = vsel %vm4820, %v4831, %v4833
        %v4835 = vshll.u32 %v4795, 8
        %v4836 = vmul.u32.u64.compose %v4835, %v4834
        %v4837 = vextract.low.u32 %v4836
        %v4838 = vextract.high.u32 %v4836
        %v4839 = vmul.u32.u64.compose %v4835, %v4830
        %v4840 = vextract.low.u32 %v4839
        %v4841 = vextract.high.u32 %v4839
        %v4842 = vmul.u32 %v4835, %v4826
        %v4843 = vadd.s32 %v4838, %v4840
        %vm4844 = vc.u32 %v4838, %v4840
        %v4845 = vadd.s32 %v4841, 1
        %v4846 = vsel %vm4844, %v4845, %v4841
        %v4847 = vadd.s32 %v4842, %v4846
        %v4848 = vadd.s32 %v4847, 536870912
        %v4849 = vshrl.u32 %v4848, 30
        %v4850 = vshll.u32 %v4849, 30
        %v4851 = vsub.s32 %v4847, %v4850
        %vm4852 = vcmp.lt.s32.totalorder %v4851, 0
        %v4853 = vsub.s32 0, %v4851
        %v4854 = vsel %vm4852, %v4853, %v4851
        %v4855 = vclz %v4854
        %v4856 = vsub.s32 %v4855, 2
        %vm4857 = vcmp.gt.s32.totalorder 0, %v4856
        %v4858 = vsel %vm4857, 0, %v4856
        %v4859 = vsub.s32 32, %v4858
        %v4860 = vshll.u32 %v4851, %v4858
        %v4861 = vshrl.u32 %v4843, %v4859
        %v4862 = vor.u32 %v4860, %v4861
        %v4863 = vsub.s32 4294967266, %v4858
        %v4864 = vadd.s32 %v4863, 127
        %v4865 = vshll.u32 %v4864, 23
        %v4866 = vor.u32 4788187, %v4865
        %v4867 = vand.u32 2147483647, %v4866
        %v4869 = vcvt.s32.f32 %v4862
        %v4870 = vmul.f32 %v4869, %v4867
        %v4871 = vxor.u32 %v4870, 2147483648
        %v4872 = vsel %vm4789, %v4871, %v4870
        %v4873 = vsub.s32 4, %v4849
        %v4874 = vsel %vm4789, %v4873, %v4849
        %v4875 = vsel %vm4788, %v643, %v4872
        %v4876 = vsel %vm4788, 0, %v4874
        %v4877 = vcosq.f32.pop %v4875
        %v4878 = vsinq.f32.pop %v4875
        %vm4879 = vweird.f32 %v643
        %v4880 = vand.u32 %v4876, 3
        %vm4881 = vcmp.lt.s32.totalorder %v4880, 2
        %vm4882 = vcmp.eq.s32.totalorder %v4880, 0
        %v4883 = vxor.u32 %v4878, 2147483648
        %v4884 = vsel %vm4882, %v4877, %v4883
        %vm4885 = vcmp.eq.s32.totalorder %v4880, 2
        %v4886 = vxor.u32 %v4877, 2147483648
        %v4887 = vsel %vm4885, %v4886, %v4878
        %v4888 = vsel %vm4881, %v4884, %v4887
        %v4889 = vsel %vm4879, nan, %v4888
        %v4890 = vand.u32 2147483647, %v644
        %vm4891 = vcmp.le.f32.partialorder %v4890, 0.7853982
        %vm4892 = vcmp.lt.s32.totalorder %v644, 0
        %v4893 = vand.u32 %v644, 2139095040
        %v4894 = vshrl.u32 %v4893, 23
        %v4895 = vsub.s32 %v4894, 127
        %v4896 = vand.u32 2147483647, %v644
        %v4897 = vand.u32 %v4896, 8388607
        %v4898 = vor.u32 %v4897, 8388608
        %v4899 = vsub.s32 0, %v4898
        %v4900 = vadd.s32 %v4895, 1
        %vm4901 = vcmp.gt.s32.totalorder %v4900, 0
        %v4902 = vsel %vm4901, %v4900, 0
        %v4903 = vshrl.u32 %v4902, 5
        %v4904 = vand.u32 %v4902, 31
        %v4905 = vsub.s32 32, %v4904
        %v4906 = vshrl.u32 683565275, %v4905
        %v4907 = vshll.u32 683565275, %v4904
        %v4908 = vshrl.u32 2475754826, %v4905
        %v4909 = vor.u32 %v4907, %v4908
        %v4910 = vshll.u32 2475754826, %v4904
        %v4911 = vshrl.u32 2131351028, %v4905
        %v4912 = vor.u32 %v4910, %v4911
        %v4913 = vshll.u32 2131351028, %v4904
        %v4914 = vshrl.u32 2102212464, %v4905
        %v4915 = vor.u32 %v4913, %v4914
        %v4916 = vshll.u32 2102212464, %v4904
        %v4917 = vshrl.u32 920167782, %v4905
        %v4918 = vor.u32 %v4916, %v4917
        %v4919 = vshll.u32 920167782, %v4904
        %v4920 = vshrl.u32 1326507024, %v4905
        %v4921 = vor.u32 %v4919, %v4920
        %vm4922 = vcmp.lt.s32.totalorder %v4903, 1
        %vm4923 = vcmp.lt.s32.totalorder %v4903, 2
        %vm4924 = vcmp.lt.s32.totalorder %v4903, 3
        %vm4925 = vcmp.lt.s32.totalorder %v4903, 4
        %v4926 = vsel %vm4922, %v4906, %v4909
        %v4927 = vsel %vm4925, %v4915, 2102212464
        %v4928 = vsel %vm4924, %v4912, %v4927
        %v4929 = vsel %vm4923, %v4926, %v4928
        %v4930 = vsel %vm4922, %v4909, %v4912
        %v4931 = vsel %vm4925, %v4918, 920167782
        %v4932 = vsel %vm4924, %v4915, %v4931
        %v4933 = vsel %vm4923, %v4930, %v4932
        %v4934 = vsel %vm4922, %v4912, %v4915
        %v4935 = vsel %vm4925, %v4921, 1326507024
        %v4936 = vsel %vm4924, %v4918, %v4935
        %v4937 = vsel %vm4923, %v4934, %v4936
        %v4938 = vshll.u32 %v4898, 8
        %v4939 = vmul.u32.u64.compose %v4938, %v4937
        %v4940 = vextract.low.u32 %v4939
        %v4941 = vextract.high.u32 %v4939
        %v4942 = vmul.u32.u64.compose %v4938, %v4933
        %v4943 = vextract.low.u32 %v4942
        %v4944 = vextract.high.u32 %v4942
        %v4945 = vmul.u32 %v4938, %v4929
        %v4946 = vadd.s32 %v4941, %v4943
        %vm4947 = vc.u32 %v4941, %v4943
        %v4948 = vadd.s32 %v4944, 1
        %v4949 = vsel %vm4947, %v4948, %v4944
        %v4950 = vadd.s32 %v4945, %v4949
        %v4951 = vadd.s32 %v4950, 536870912
        %v4952 = vshrl.u32 %v4951, 30
        %v4953 = vshll.u32 %v4952, 30
        %v4954 = vsub.s32 %v4950, %v4953
        %vm4955 = vcmp.lt.s32.totalorder %v4954, 0
        %v4956 = vsub.s32 0, %v4954
        %v4957 = vsel %vm4955, %v4956, %v4954
        %v4958 = vclz %v4957
        %v4959 = vsub.s32 %v4958, 2
        %vm4960 = vcmp.gt.s32.totalorder 0, %v4959
        %v4961 = vsel %vm4960, 0, %v4959
        %v4962 = vsub.s32 32, %v4961
        %v4963 = vshll.u32 %v4954, %v4961
        %v4964 = vshrl.u32 %v4946, %v4962
        %v4965 = vor.u32 %v4963, %v4964
        %v4966 = vsub.s32 4294967266, %v4961
        %v4967 = vadd.s32 %v4966, 127
        %v4968 = vshll.u32 %v4967, 23
        %v4969 = vor.u32 4788187, %v4968
        %v4970 = vand.u32 2147483647, %v4969
        %v4972 = vcvt.s32.f32 %v4965
        %v4973 = vmul.f32 %v4972, %v4970
        %v4974 = vxor.u32 %v4973, 2147483648
        %v4975 = vsel %vm4892, %v4974, %v4973
        %v4976 = vsub.s32 4, %v4952
        %v4977 = vsel %vm4892, %v4976, %v4952
        %v4978 = vsel %vm4891, %v644, %v4975
        %v4979 = vsel %vm4891, 0, %v4977
        %v4980 = vcosq.f32.pop %v4978
        %v4981 = vsinq.f32.pop %v4978
        %vm4982 = vweird.f32 %v644
        %v4983 = vand.u32 %v4979, 3
        %vm4984 = vcmp.lt.s32.totalorder %v4983, 2
        %vm4985 = vcmp.eq.s32.totalorder %v4983, 0
        %v4986 = vxor.u32 %v4981, 2147483648
        %v4987 = vsel %vm4985, %v4980, %v4986
        %vm4988 = vcmp.eq.s32.totalorder %v4983, 2
        %v4989 = vxor.u32 %v4980, 2147483648
        %v4990 = vsel %vm4988, %v4989, %v4981
        %v4991 = vsel %vm4984, %v4987, %v4990
        %v4992 = vsel %vm4982, nan, %v4991
        %v4993 = vand.u32 2147483647, %v645
        %vm4994 = vcmp.le.f32.partialorder %v4993, 0.7853982
        %vm4995 = vcmp.lt.s32.totalorder %v645, 0
        %v4996 = vand.u32 %v645, 2139095040
        %v4997 = vshrl.u32 %v4996, 23
        %v4998 = vsub.s32 %v4997, 127
        %v4999 = vand.u32 2147483647, %v645
        %v5000 = vand.u32 %v4999, 8388607
        %v5001 = vor.u32 %v5000, 8388608
        %v5002 = vsub.s32 0, %v5001
        %v5003 = vadd.s32 %v4998, 1
        %vm5004 = vcmp.gt.s32.totalorder %v5003, 0
        %v5005 = vsel %vm5004, %v5003, 0
        %v5006 = vshrl.u32 %v5005, 5
        %v5007 = vand.u32 %v5005, 31
        %v5008 = vsub.s32 32, %v5007
        %v5009 = vshrl.u32 683565275, %v5008
        %v5010 = vshll.u32 683565275, %v5007
        %v5011 = vshrl.u32 2475754826, %v5008
        %v5012 = vor.u32 %v5010, %v5011
        %v5013 = vshll.u32 2475754826, %v5007
        %v5014 = vshrl.u32 2131351028, %v5008
        %v5015 = vor.u32 %v5013, %v5014
        %v5016 = vshll.u32 2131351028, %v5007
        %v5017 = vshrl.u32 2102212464, %v5008
        %v5018 = vor.u32 %v5016, %v5017
        %v5019 = vshll.u32 2102212464, %v5007
        %v5020 = vshrl.u32 920167782, %v5008
        %v5021 = vor.u32 %v5019, %v5020
        %v5022 = vshll.u32 920167782, %v5007
        %v5023 = vshrl.u32 1326507024, %v5008
        %v5024 = vor.u32 %v5022, %v5023
        %vm5025 = vcmp.lt.s32.totalorder %v5006, 1
        %vm5026 = vcmp.lt.s32.totalorder %v5006, 2
        %vm5027 = vcmp.lt.s32.totalorder %v5006, 3
        %vm5028 = vcmp.lt.s32.totalorder %v5006, 4
        %v5029 = vsel %vm5025, %v5009, %v5012
        %v5030 = vsel %vm5028, %v5018, 2102212464
        %v5031 = vsel %vm5027, %v5015, %v5030
        %v5032 = vsel %vm5026, %v5029, %v5031
        %v5033 = vsel %vm5025, %v5012, %v5015
        %v5034 = vsel %vm5028, %v5021, 920167782
        %v5035 = vsel %vm5027, %v5018, %v5034
        %v5036 = vsel %vm5026, %v5033, %v5035
        %v5037 = vsel %vm5025, %v5015, %v5018
        %v5038 = vsel %vm5028, %v5024, 1326507024
        %v5039 = vsel %vm5027, %v5021, %v5038
        %v5040 = vsel %vm5026, %v5037, %v5039
        %v5041 = vshll.u32 %v5001, 8
        %v5042 = vmul.u32.u64.compose %v5041, %v5040
        %v5043 = vextract.low.u32 %v5042
        %v5044 = vextract.high.u32 %v5042
        %v5045 = vmul.u32.u64.compose %v5041, %v5036
        %v5046 = vextract.low.u32 %v5045
        %v5047 = vextract.high.u32 %v5045
        %v5048 = vmul.u32 %v5041, %v5032
        %v5049 = vadd.s32 %v5044, %v5046
        %vm5050 = vc.u32 %v5044, %v5046
        %v5051 = vadd.s32 %v5047, 1
        %v5052 = vsel %vm5050, %v5051, %v5047
        %v5053 = vadd.s32 %v5048, %v5052
        %v5054 = vadd.s32 %v5053, 536870912
        %v5055 = vshrl.u32 %v5054, 30
        %v5056 = vshll.u32 %v5055, 30
        %v5057 = vsub.s32 %v5053, %v5056
        %vm5058 = vcmp.lt.s32.totalorder %v5057, 0
        %v5059 = vsub.s32 0, %v5057
        %v5060 = vsel %vm5058, %v5059, %v5057
        %v5061 = vclz %v5060
        %v5062 = vsub.s32 %v5061, 2
        %vm5063 = vcmp.gt.s32.totalorder 0, %v5062
        %v5064 = vsel %vm5063, 0, %v5062
        %v5065 = vsub.s32 32, %v5064
        %v5066 = vshll.u32 %v5057, %v5064
        %v5067 = vshrl.u32 %v5049, %v5065
        %v5068 = vor.u32 %v5066, %v5067
        %v5069 = vsub.s32 4294967266, %v5064
        %v5070 = vadd.s32 %v5069, 127
        %v5071 = vshll.u32 %v5070, 23
        %v5072 = vor.u32 4788187, %v5071
        %v5073 = vand.u32 2147483647, %v5072
        %v5075 = vcvt.s32.f32 %v5068
        %v5076 = vmul.f32 %v5075, %v5073
        %v5077 = vxor.u32 %v5076, 2147483648
        %v5078 = vsel %vm4995, %v5077, %v5076
        %v5079 = vsub.s32 4, %v5055
        %v5080 = vsel %vm4995, %v5079, %v5055
        %v5081 = vsel %vm4994, %v645, %v5078
        %v5082 = vsel %vm4994, 0, %v5080
        %v5083 = vcosq.f32.pop %v5081
        %v5084 = vsinq.f32.pop %v5081
        %vm5085 = vweird.f32 %v645
        %v5086 = vand.u32 %v5082, 3
        %vm5087 = vcmp.lt.s32.totalorder %v5086, 2
        %vm5088 = vcmp.eq.s32.totalorder %v5086, 0
        %v5089 = vxor.u32 %v5084, 2147483648
        %v5090 = vsel %vm5088, %v5083, %v5089
        %vm5091 = vcmp.eq.s32.totalorder %v5086, 2
        %v5092 = vxor.u32 %v5083, 2147483648
        %v5093 = vsel %vm5091, %v5092, %v5084
        %v5094 = vsel %vm5087, %v5090, %v5093
        %v5095 = vsel %vm5085, nan, %v5094
        %v5096 = vand.u32 2147483647, %v646
        %vm5097 = vcmp.le.f32.partialorder %v5096, 0.7853982
        %vm5098 = vcmp.lt.s32.totalorder %v646, 0
        %v5099 = vand.u32 %v646, 2139095040
        %v5100 = vshrl.u32 %v5099, 23
        %v5101 = vsub.s32 %v5100, 127
        %v5102 = vand.u32 2147483647, %v646
        %v5103 = vand.u32 %v5102, 8388607
        %v5104 = vor.u32 %v5103, 8388608
        %v5105 = vsub.s32 0, %v5104
        %v5106 = vadd.s32 %v5101, 1
        %vm5107 = vcmp.gt.s32.totalorder %v5106, 0
        %v5108 = vsel %vm5107, %v5106, 0
        %v5109 = vshrl.u32 %v5108, 5
        %v5110 = vand.u32 %v5108, 31
        %v5111 = vsub.s32 32, %v5110
        %v5112 = vshrl.u32 683565275, %v5111
        %v5113 = vshll.u32 683565275, %v5110
        %v5114 = vshrl.u32 2475754826, %v5111
        %v5115 = vor.u32 %v5113, %v5114
        %v5116 = vshll.u32 2475754826, %v5110
        %v5117 = vshrl.u32 2131351028, %v5111
        %v5118 = vor.u32 %v5116, %v5117
        %v5119 = vshll.u32 2131351028, %v5110
        %v5120 = vshrl.u32 2102212464, %v5111
        %v5121 = vor.u32 %v5119, %v5120
        %v5122 = vshll.u32 2102212464, %v5110
        %v5123 = vshrl.u32 920167782, %v5111
        %v5124 = vor.u32 %v5122, %v5123
        %v5125 = vshll.u32 920167782, %v5110
        %v5126 = vshrl.u32 1326507024, %v5111
        %v5127 = vor.u32 %v5125, %v5126
        %vm5128 = vcmp.lt.s32.totalorder %v5109, 1
        %vm5129 = vcmp.lt.s32.totalorder %v5109, 2
        %vm5130 = vcmp.lt.s32.totalorder %v5109, 3
        %vm5131 = vcmp.lt.s32.totalorder %v5109, 4
        %v5132 = vsel %vm5128, %v5112, %v5115
        %v5133 = vsel %vm5131, %v5121, 2102212464
        %v5134 = vsel %vm5130, %v5118, %v5133
        %v5135 = vsel %vm5129, %v5132, %v5134
        %v5136 = vsel %vm5128, %v5115, %v5118
        %v5137 = vsel %vm5131, %v5124, 920167782
        %v5138 = vsel %vm5130, %v5121, %v5137
        %v5139 = vsel %vm5129, %v5136, %v5138
        %v5140 = vsel %vm5128, %v5118, %v5121
        %v5141 = vsel %vm5131, %v5127, 1326507024
        %v5142 = vsel %vm5130, %v5124, %v5141
        %v5143 = vsel %vm5129, %v5140, %v5142
        %v5144 = vshll.u32 %v5104, 8
        %v5145 = vmul.u32.u64.compose %v5144, %v5143
        %v5146 = vextract.low.u32 %v5145
        %v5147 = vextract.high.u32 %v5145
        %v5148 = vmul.u32.u64.compose %v5144, %v5139
        %v5149 = vextract.low.u32 %v5148
        %v5150 = vextract.high.u32 %v5148
        %v5151 = vmul.u32 %v5144, %v5135
        %v5152 = vadd.s32 %v5147, %v5149
        %vm5153 = vc.u32 %v5147, %v5149
        %v5154 = vadd.s32 %v5150, 1
        %v5155 = vsel %vm5153, %v5154, %v5150
        %v5156 = vadd.s32 %v5151, %v5155
        %v5157 = vadd.s32 %v5156, 536870912
        %v5158 = vshrl.u32 %v5157, 30
        %v5159 = vshll.u32 %v5158, 30
        %v5160 = vsub.s32 %v5156, %v5159
        %vm5161 = vcmp.lt.s32.totalorder %v5160, 0
        %v5162 = vsub.s32 0, %v5160
        %v5163 = vsel %vm5161, %v5162, %v5160
        %v5164 = vclz %v5163
        %v5165 = vsub.s32 %v5164, 2
        %vm5166 = vcmp.gt.s32.totalorder 0, %v5165
        %v5167 = vsel %vm5166, 0, %v5165
        %v5168 = vsub.s32 32, %v5167
        %v5169 = vshll.u32 %v5160, %v5167
        %v5170 = vshrl.u32 %v5152, %v5168
        %v5171 = vor.u32 %v5169, %v5170
        %v5172 = vsub.s32 4294967266, %v5167
        %v5173 = vadd.s32 %v5172, 127
        %v5174 = vshll.u32 %v5173, 23
        %v5175 = vor.u32 4788187, %v5174
        %v5176 = vand.u32 2147483647, %v5175
        %v5178 = vcvt.s32.f32 %v5171
        %v5179 = vmul.f32 %v5178, %v5176
        %v5180 = vxor.u32 %v5179, 2147483648
        %v5181 = vsel %vm5098, %v5180, %v5179
        %v5182 = vsub.s32 4, %v5158
        %v5183 = vsel %vm5098, %v5182, %v5158
        %v5184 = vsel %vm5097, %v646, %v5181
        %v5185 = vsel %vm5097, 0, %v5183
        %v5186 = vcosq.f32.pop %v5184
        %v5187 = vsinq.f32.pop %v5184
        %vm5188 = vweird.f32 %v646
        %v5189 = vand.u32 %v5185, 3
        %vm5190 = vcmp.lt.s32.totalorder %v5189, 2
        %vm5191 = vcmp.eq.s32.totalorder %v5189, 0
        %v5192 = vxor.u32 %v5187, 2147483648
        %v5193 = vsel %vm5191, %v5186, %v5192
        %vm5194 = vcmp.eq.s32.totalorder %v5189, 2
        %v5195 = vxor.u32 %v5186, 2147483648
        %v5196 = vsel %vm5194, %v5195, %v5187
        %v5197 = vsel %vm5190, %v5193, %v5196
        %v5198 = vsel %vm5188, nan, %v5197
        %v5199 = vand.u32 2147483647, %v647
        %vm5200 = vcmp.le.f32.partialorder %v5199, 0.7853982
        %vm5201 = vcmp.lt.s32.totalorder %v647, 0
        %v5202 = vand.u32 %v647, 2139095040
        %v5203 = vshrl.u32 %v5202, 23
        %v5204 = vsub.s32 %v5203, 127
        %v5205 = vand.u32 2147483647, %v647
        %v5206 = vand.u32 %v5205, 8388607
        %v5207 = vor.u32 %v5206, 8388608
        %v5208 = vsub.s32 0, %v5207
        %v5209 = vadd.s32 %v5204, 1
        %vm5210 = vcmp.gt.s32.totalorder %v5209, 0
        %v5211 = vsel %vm5210, %v5209, 0
        %v5212 = vshrl.u32 %v5211, 5
        %v5213 = vand.u32 %v5211, 31
        %v5214 = vsub.s32 32, %v5213
        %v5215 = vshrl.u32 683565275, %v5214
        %v5216 = vshll.u32 683565275, %v5213
        %v5217 = vshrl.u32 2475754826, %v5214
        %v5218 = vor.u32 %v5216, %v5217
        %v5219 = vshll.u32 2475754826, %v5213
        %v5220 = vshrl.u32 2131351028, %v5214
        %v5221 = vor.u32 %v5219, %v5220
        %v5222 = vshll.u32 2131351028, %v5213
        %v5223 = vshrl.u32 2102212464, %v5214
        %v5224 = vor.u32 %v5222, %v5223
        %v5225 = vshll.u32 2102212464, %v5213
        %v5226 = vshrl.u32 920167782, %v5214
        %v5227 = vor.u32 %v5225, %v5226
        %v5228 = vshll.u32 920167782, %v5213
        %v5229 = vshrl.u32 1326507024, %v5214
        %v5230 = vor.u32 %v5228, %v5229
        %vm5231 = vcmp.lt.s32.totalorder %v5212, 1
        %vm5232 = vcmp.lt.s32.totalorder %v5212, 2
        %vm5233 = vcmp.lt.s32.totalorder %v5212, 3
        %vm5234 = vcmp.lt.s32.totalorder %v5212, 4
        %v5235 = vsel %vm5231, %v5215, %v5218
        %v5236 = vsel %vm5234, %v5224, 2102212464
        %v5237 = vsel %vm5233, %v5221, %v5236
        %v5238 = vsel %vm5232, %v5235, %v5237
        %v5239 = vsel %vm5231, %v5218, %v5221
        %v5240 = vsel %vm5234, %v5227, 920167782
        %v5241 = vsel %vm5233, %v5224, %v5240
        %v5242 = vsel %vm5232, %v5239, %v5241
        %v5243 = vsel %vm5231, %v5221, %v5224
        %v5244 = vsel %vm5234, %v5230, 1326507024
        %v5245 = vsel %vm5233, %v5227, %v5244
        %v5246 = vsel %vm5232, %v5243, %v5245
        %v5247 = vshll.u32 %v5207, 8
        %v5248 = vmul.u32.u64.compose %v5247, %v5246
        %v5249 = vextract.low.u32 %v5248
        %v5250 = vextract.high.u32 %v5248
        %v5251 = vmul.u32.u64.compose %v5247, %v5242
        %v5252 = vextract.low.u32 %v5251
        %v5253 = vextract.high.u32 %v5251
        %v5254 = vmul.u32 %v5247, %v5238
        %v5255 = vadd.s32 %v5250, %v5252
        %vm5256 = vc.u32 %v5250, %v5252
        %v5257 = vadd.s32 %v5253, 1
        %v5258 = vsel %vm5256, %v5257, %v5253
        %v5259 = vadd.s32 %v5254, %v5258
        %v5260 = vadd.s32 %v5259, 536870912
        %v5261 = vshrl.u32 %v5260, 30
        %v5262 = vshll.u32 %v5261, 30
        %v5263 = vsub.s32 %v5259, %v5262
        %vm5264 = vcmp.lt.s32.totalorder %v5263, 0
        %v5265 = vsub.s32 0, %v5263
        %v5266 = vsel %vm5264, %v5265, %v5263
        %v5267 = vclz %v5266
        %v5268 = vsub.s32 %v5267, 2
        %vm5269 = vcmp.gt.s32.totalorder 0, %v5268
        %v5270 = vsel %vm5269, 0, %v5268
        %v5271 = vsub.s32 32, %v5270
        %v5272 = vshll.u32 %v5263, %v5270
        %v5273 = vshrl.u32 %v5255, %v5271
        %v5274 = vor.u32 %v5272, %v5273
        %v5275 = vsub.s32 4294967266, %v5270
        %v5276 = vadd.s32 %v5275, 127
        %v5277 = vshll.u32 %v5276, 23
        %v5278 = vor.u32 4788187, %v5277
        %v5279 = vand.u32 2147483647, %v5278
        %v5281 = vcvt.s32.f32 %v5274
        %v5282 = vmul.f32 %v5281, %v5279
        %v5283 = vxor.u32 %v5282, 2147483648
        %v5284 = vsel %vm5201, %v5283, %v5282
        %v5285 = vsub.s32 4, %v5261
        %v5286 = vsel %vm5201, %v5285, %v5261
        %v5287 = vsel %vm5200, %v647, %v5284
        %v5288 = vsel %vm5200, 0, %v5286
        %v5289 = vcosq.f32.pop %v5287
        %v5290 = vsinq.f32.pop %v5287
        %vm5291 = vweird.f32 %v647
        %v5292 = vand.u32 %v5288, 3
        %vm5293 = vcmp.lt.s32.totalorder %v5292, 2
        %vm5294 = vcmp.eq.s32.totalorder %v5292, 0
        %v5295 = vxor.u32 %v5290, 2147483648
        %v5296 = vsel %vm5294, %v5289, %v5295
        %vm5297 = vcmp.eq.s32.totalorder %v5292, 2
        %v5298 = vxor.u32 %v5289, 2147483648
        %v5299 = vsel %vm5297, %v5298, %v5290
        %v5300 = vsel %vm5293, %v5296, %v5299
        %v5301 = vsel %vm5291, nan, %v5300
        %v5302 = vand.u32 2147483647, %v648
        %vm5303 = vcmp.le.f32.partialorder %v5302, 0.7853982
        %vm5304 = vcmp.lt.s32.totalorder %v648, 0
        %v5305 = vand.u32 %v648, 2139095040
        %v5306 = vshrl.u32 %v5305, 23
        %v5307 = vsub.s32 %v5306, 127
        %v5308 = vand.u32 2147483647, %v648
        %v5309 = vand.u32 %v5308, 8388607
        %v5310 = vor.u32 %v5309, 8388608
        %v5311 = vsub.s32 0, %v5310
        %v5312 = vadd.s32 %v5307, 1
        %vm5313 = vcmp.gt.s32.totalorder %v5312, 0
        %v5314 = vsel %vm5313, %v5312, 0
        %v5315 = vshrl.u32 %v5314, 5
        %v5316 = vand.u32 %v5314, 31
        %v5317 = vsub.s32 32, %v5316
        %v5318 = vshrl.u32 683565275, %v5317
        %v5319 = vshll.u32 683565275, %v5316
        %v5320 = vshrl.u32 2475754826, %v5317
        %v5321 = vor.u32 %v5319, %v5320
        %v5322 = vshll.u32 2475754826, %v5316
        %v5323 = vshrl.u32 2131351028, %v5317
        %v5324 = vor.u32 %v5322, %v5323
        %v5325 = vshll.u32 2131351028, %v5316
        %v5326 = vshrl.u32 2102212464, %v5317
        %v5327 = vor.u32 %v5325, %v5326
        %v5328 = vshll.u32 2102212464, %v5316
        %v5329 = vshrl.u32 920167782, %v5317
        %v5330 = vor.u32 %v5328, %v5329
        %v5331 = vshll.u32 920167782, %v5316
        %v5332 = vshrl.u32 1326507024, %v5317
        %v5333 = vor.u32 %v5331, %v5332
        %vm5334 = vcmp.lt.s32.totalorder %v5315, 1
        %vm5335 = vcmp.lt.s32.totalorder %v5315, 2
        %vm5336 = vcmp.lt.s32.totalorder %v5315, 3
        %vm5337 = vcmp.lt.s32.totalorder %v5315, 4
        %v5338 = vsel %vm5334, %v5318, %v5321
        %v5339 = vsel %vm5337, %v5327, 2102212464
        %v5340 = vsel %vm5336, %v5324, %v5339
        %v5341 = vsel %vm5335, %v5338, %v5340
        %v5342 = vsel %vm5334, %v5321, %v5324
        %v5343 = vsel %vm5337, %v5330, 920167782
        %v5344 = vsel %vm5336, %v5327, %v5343
        %v5345 = vsel %vm5335, %v5342, %v5344
        %v5346 = vsel %vm5334, %v5324, %v5327
        %v5347 = vsel %vm5337, %v5333, 1326507024
        %v5348 = vsel %vm5336, %v5330, %v5347
        %v5349 = vsel %vm5335, %v5346, %v5348
        %v5350 = vshll.u32 %v5310, 8
        %v5351 = vmul.u32.u64.compose %v5350, %v5349
        %v5352 = vextract.low.u32 %v5351
        %v5353 = vextract.high.u32 %v5351
        %v5354 = vmul.u32.u64.compose %v5350, %v5345
        %v5355 = vextract.low.u32 %v5354
        %v5356 = vextract.high.u32 %v5354
        %v5357 = vmul.u32 %v5350, %v5341
        %v5358 = vadd.s32 %v5353, %v5355
        %vm5359 = vc.u32 %v5353, %v5355
        %v5360 = vadd.s32 %v5356, 1
        %v5361 = vsel %vm5359, %v5360, %v5356
        %v5362 = vadd.s32 %v5357, %v5361
        %v5363 = vadd.s32 %v5362, 536870912
        %v5364 = vshrl.u32 %v5363, 30
        %v5365 = vshll.u32 %v5364, 30
        %v5366 = vsub.s32 %v5362, %v5365
        %vm5367 = vcmp.lt.s32.totalorder %v5366, 0
        %v5368 = vsub.s32 0, %v5366
        %v5369 = vsel %vm5367, %v5368, %v5366
        %v5370 = vclz %v5369
        %v5371 = vsub.s32 %v5370, 2
        %vm5372 = vcmp.gt.s32.totalorder 0, %v5371
        %v5373 = vsel %vm5372, 0, %v5371
        %v5374 = vsub.s32 32, %v5373
        %v5375 = vshll.u32 %v5366, %v5373
        %v5376 = vshrl.u32 %v5358, %v5374
        %v5377 = vor.u32 %v5375, %v5376
        %v5378 = vsub.s32 4294967266, %v5373
        %v5379 = vadd.s32 %v5378, 127
        %v5380 = vshll.u32 %v5379, 23
        %v5381 = vor.u32 4788187, %v5380
        %v5382 = vand.u32 2147483647, %v5381
        %v5384 = vcvt.s32.f32 %v5377
        %v5385 = vmul.f32 %v5384, %v5382
        %v5386 = vxor.u32 %v5385, 2147483648
        %v5387 = vsel %vm5304, %v5386, %v5385
        %v5388 = vsub.s32 4, %v5364
        %v5389 = vsel %vm5304, %v5388, %v5364
        %v5390 = vsel %vm5303, %v648, %v5387
        %v5391 = vsel %vm5303, 0, %v5389
        %v5392 = vcosq.f32.pop %v5390
        %v5393 = vsinq.f32.pop %v5390
        %vm5394 = vweird.f32 %v648
        %v5395 = vand.u32 %v5391, 3
        %vm5396 = vcmp.lt.s32.totalorder %v5395, 2
        %vm5397 = vcmp.eq.s32.totalorder %v5395, 0
        %v5398 = vxor.u32 %v5393, 2147483648
        %v5399 = vsel %vm5397, %v5392, %v5398
        %vm5400 = vcmp.eq.s32.totalorder %v5395, 2
        %v5401 = vxor.u32 %v5392, 2147483648
        %v5402 = vsel %vm5400, %v5401, %v5393
        %v5403 = vsel %vm5396, %v5399, %v5402
        %v5404 = vsel %vm5394, nan, %v5403
        %v5405 = vand.u32 2147483647, %v649
        %vm5406 = vcmp.le.f32.partialorder %v5405, 0.7853982
        %vm5407 = vcmp.lt.s32.totalorder %v649, 0
        %v5408 = vand.u32 %v649, 2139095040
        %v5409 = vshrl.u32 %v5408, 23
        %v5410 = vsub.s32 %v5409, 127
        %v5411 = vand.u32 2147483647, %v649
        %v5412 = vand.u32 %v5411, 8388607
        %v5413 = vor.u32 %v5412, 8388608
        %v5414 = vsub.s32 0, %v5413
        %v5415 = vadd.s32 %v5410, 1
        %vm5416 = vcmp.gt.s32.totalorder %v5415, 0
        %v5417 = vsel %vm5416, %v5415, 0
        %v5418 = vshrl.u32 %v5417, 5
        %v5419 = vand.u32 %v5417, 31
        %v5420 = vsub.s32 32, %v5419
        %v5421 = vshrl.u32 683565275, %v5420
        %v5422 = vshll.u32 683565275, %v5419
        %v5423 = vshrl.u32 2475754826, %v5420
        %v5424 = vor.u32 %v5422, %v5423
        %v5425 = vshll.u32 2475754826, %v5419
        %v5426 = vshrl.u32 2131351028, %v5420
        %v5427 = vor.u32 %v5425, %v5426
        %v5428 = vshll.u32 2131351028, %v5419
        %v5429 = vshrl.u32 2102212464, %v5420
        %v5430 = vor.u32 %v5428, %v5429
        %v5431 = vshll.u32 2102212464, %v5419
        %v5432 = vshrl.u32 920167782, %v5420
        %v5433 = vor.u32 %v5431, %v5432
        %v5434 = vshll.u32 920167782, %v5419
        %v5435 = vshrl.u32 1326507024, %v5420
        %v5436 = vor.u32 %v5434, %v5435
        %vm5437 = vcmp.lt.s32.totalorder %v5418, 1
        %vm5438 = vcmp.lt.s32.totalorder %v5418, 2
        %vm5439 = vcmp.lt.s32.totalorder %v5418, 3
        %vm5440 = vcmp.lt.s32.totalorder %v5418, 4
        %v5441 = vsel %vm5437, %v5421, %v5424
        %v5442 = vsel %vm5440, %v5430, 2102212464
        %v5443 = vsel %vm5439, %v5427, %v5442
        %v5444 = vsel %vm5438, %v5441, %v5443
        %v5445 = vsel %vm5437, %v5424, %v5427
        %v5446 = vsel %vm5440, %v5433, 920167782
        %v5447 = vsel %vm5439, %v5430, %v5446
        %v5448 = vsel %vm5438, %v5445, %v5447
        %v5449 = vsel %vm5437, %v5427, %v5430
        %v5450 = vsel %vm5440, %v5436, 1326507024
        %v5451 = vsel %vm5439, %v5433, %v5450
        %v5452 = vsel %vm5438, %v5449, %v5451
        %v5453 = vshll.u32 %v5413, 8
        %v5454 = vmul.u32.u64.compose %v5453, %v5452
        %v5455 = vextract.low.u32 %v5454
        %v5456 = vextract.high.u32 %v5454
        %v5457 = vmul.u32.u64.compose %v5453, %v5448
        %v5458 = vextract.low.u32 %v5457
        %v5459 = vextract.high.u32 %v5457
        %v5460 = vmul.u32 %v5453, %v5444
        %v5461 = vadd.s32 %v5456, %v5458
        %vm5462 = vc.u32 %v5456, %v5458
        %v5463 = vadd.s32 %v5459, 1
        %v5464 = vsel %vm5462, %v5463, %v5459
        %v5465 = vadd.s32 %v5460, %v5464
        %v5466 = vadd.s32 %v5465, 536870912
        %v5467 = vshrl.u32 %v5466, 30
        %v5468 = vshll.u32 %v5467, 30
        %v5469 = vsub.s32 %v5465, %v5468
        %vm5470 = vcmp.lt.s32.totalorder %v5469, 0
        %v5471 = vsub.s32 0, %v5469
        %v5472 = vsel %vm5470, %v5471, %v5469
        %v5473 = vclz %v5472
        %v5474 = vsub.s32 %v5473, 2
        %vm5475 = vcmp.gt.s32.totalorder 0, %v5474
        %v5476 = vsel %vm5475, 0, %v5474
        %v5477 = vsub.s32 32, %v5476
        %v5478 = vshll.u32 %v5469, %v5476
        %v5479 = vshrl.u32 %v5461, %v5477
        %v5480 = vor.u32 %v5478, %v5479
        %v5481 = vsub.s32 4294967266, %v5476
        %v5482 = vadd.s32 %v5481, 127
        %v5483 = vshll.u32 %v5482, 23
        %v5484 = vor.u32 4788187, %v5483
        %v5485 = vand.u32 2147483647, %v5484
        %v5487 = vcvt.s32.f32 %v5480
        %v5488 = vmul.f32 %v5487, %v5485
        %v5489 = vxor.u32 %v5488, 2147483648
        %v5490 = vsel %vm5407, %v5489, %v5488
        %v5491 = vsub.s32 4, %v5467
        %v5492 = vsel %vm5407, %v5491, %v5467
        %v5493 = vsel %vm5406, %v649, %v5490
        %v5494 = vsel %vm5406, 0, %v5492
        %v5495 = vcosq.f32.pop %v5493
        %v5496 = vsinq.f32.pop %v5493
        %vm5497 = vweird.f32 %v649
        %v5498 = vand.u32 %v5494, 3
        %vm5499 = vcmp.lt.s32.totalorder %v5498, 2
        %vm5500 = vcmp.eq.s32.totalorder %v5498, 0
        %v5501 = vxor.u32 %v5496, 2147483648
        %v5502 = vsel %vm5500, %v5495, %v5501
        %vm5503 = vcmp.eq.s32.totalorder %v5498, 2
        %v5504 = vxor.u32 %v5495, 2147483648
        %v5505 = vsel %vm5503, %v5504, %v5496
        %v5506 = vsel %vm5499, %v5502, %v5505
        %v5507 = vsel %vm5497, nan, %v5506
        %v5508 = vand.u32 2147483647, %v650
        %vm5509 = vcmp.le.f32.partialorder %v5508, 0.7853982
        %vm5510 = vcmp.lt.s32.totalorder %v650, 0
        %v5511 = vand.u32 %v650, 2139095040
        %v5512 = vshrl.u32 %v5511, 23
        %v5513 = vsub.s32 %v5512, 127
        %v5514 = vand.u32 2147483647, %v650
        %v5515 = vand.u32 %v5514, 8388607
        %v5516 = vor.u32 %v5515, 8388608
        %v5517 = vsub.s32 0, %v5516
        %v5518 = vadd.s32 %v5513, 1
        %vm5519 = vcmp.gt.s32.totalorder %v5518, 0
        %v5520 = vsel %vm5519, %v5518, 0
        %v5521 = vshrl.u32 %v5520, 5
        %v5522 = vand.u32 %v5520, 31
        %v5523 = vsub.s32 32, %v5522
        %v5524 = vshrl.u32 683565275, %v5523
        %v5525 = vshll.u32 683565275, %v5522
        %v5526 = vshrl.u32 2475754826, %v5523
        %v5527 = vor.u32 %v5525, %v5526
        %v5528 = vshll.u32 2475754826, %v5522
        %v5529 = vshrl.u32 2131351028, %v5523
        %v5530 = vor.u32 %v5528, %v5529
        %v5531 = vshll.u32 2131351028, %v5522
        %v5532 = vshrl.u32 2102212464, %v5523
        %v5533 = vor.u32 %v5531, %v5532
        %v5534 = vshll.u32 2102212464, %v5522
        %v5535 = vshrl.u32 920167782, %v5523
        %v5536 = vor.u32 %v5534, %v5535
        %v5537 = vshll.u32 920167782, %v5522
        %v5538 = vshrl.u32 1326507024, %v5523
        %v5539 = vor.u32 %v5537, %v5538
        %vm5540 = vcmp.lt.s32.totalorder %v5521, 1
        %vm5541 = vcmp.lt.s32.totalorder %v5521, 2
        %vm5542 = vcmp.lt.s32.totalorder %v5521, 3
        %vm5543 = vcmp.lt.s32.totalorder %v5521, 4
        %v5544 = vsel %vm5540, %v5524, %v5527
        %v5545 = vsel %vm5543, %v5533, 2102212464
        %v5546 = vsel %vm5542, %v5530, %v5545
        %v5547 = vsel %vm5541, %v5544, %v5546
        %v5548 = vsel %vm5540, %v5527, %v5530
        %v5549 = vsel %vm5543, %v5536, 920167782
        %v5550 = vsel %vm5542, %v5533, %v5549
        %v5551 = vsel %vm5541, %v5548, %v5550
        %v5552 = vsel %vm5540, %v5530, %v5533
        %v5553 = vsel %vm5543, %v5539, 1326507024
        %v5554 = vsel %vm5542, %v5536, %v5553
        %v5555 = vsel %vm5541, %v5552, %v5554
        %v5556 = vshll.u32 %v5516, 8
        %v5557 = vmul.u32.u64.compose %v5556, %v5555
        %v5558 = vextract.low.u32 %v5557
        %v5559 = vextract.high.u32 %v5557
        %v5560 = vmul.u32.u64.compose %v5556, %v5551
        %v5561 = vextract.low.u32 %v5560
        %v5562 = vextract.high.u32 %v5560
        %v5563 = vmul.u32 %v5556, %v5547
        %v5564 = vadd.s32 %v5559, %v5561
        %vm5565 = vc.u32 %v5559, %v5561
        %v5566 = vadd.s32 %v5562, 1
        %v5567 = vsel %vm5565, %v5566, %v5562
        %v5568 = vadd.s32 %v5563, %v5567
        %v5569 = vadd.s32 %v5568, 536870912
        %v5570 = vshrl.u32 %v5569, 30
        %v5571 = vshll.u32 %v5570, 30
        %v5572 = vsub.s32 %v5568, %v5571
        %vm5573 = vcmp.lt.s32.totalorder %v5572, 0
        %v5574 = vsub.s32 0, %v5572
        %v5575 = vsel %vm5573, %v5574, %v5572
        %v5576 = vclz %v5575
        %v5577 = vsub.s32 %v5576, 2
        %vm5578 = vcmp.gt.s32.totalorder 0, %v5577
        %v5579 = vsel %vm5578, 0, %v5577
        %v5580 = vsub.s32 32, %v5579
        %v5581 = vshll.u32 %v5572, %v5579
        %v5582 = vshrl.u32 %v5564, %v5580
        %v5583 = vor.u32 %v5581, %v5582
        %v5584 = vsub.s32 4294967266, %v5579
        %v5585 = vadd.s32 %v5584, 127
        %v5586 = vshll.u32 %v5585, 23
        %v5587 = vor.u32 4788187, %v5586
        %v5588 = vand.u32 2147483647, %v5587
        %v5590 = vcvt.s32.f32 %v5583
        %v5591 = vmul.f32 %v5590, %v5588
        %v5592 = vxor.u32 %v5591, 2147483648
        %v5593 = vsel %vm5510, %v5592, %v5591
        %v5594 = vsub.s32 4, %v5570
        %v5595 = vsel %vm5510, %v5594, %v5570
        %v5596 = vsel %vm5509, %v650, %v5593
        %v5597 = vsel %vm5509, 0, %v5595
        %v5598 = vcosq.f32.pop %v5596
        %v5599 = vsinq.f32.pop %v5596
        %vm5600 = vweird.f32 %v650
        %v5601 = vand.u32 %v5597, 3
        %vm5602 = vcmp.lt.s32.totalorder %v5601, 2
        %vm5603 = vcmp.eq.s32.totalorder %v5601, 0
        %v5604 = vxor.u32 %v5599, 2147483648
        %v5605 = vsel %vm5603, %v5598, %v5604
        %vm5606 = vcmp.eq.s32.totalorder %v5601, 2
        %v5607 = vxor.u32 %v5598, 2147483648
        %v5608 = vsel %vm5606, %v5607, %v5599
        %v5609 = vsel %vm5602, %v5605, %v5608
        %v5610 = vsel %vm5600, nan, %v5609
        %v5611 = vand.u32 2147483647, %v651
        %vm5612 = vcmp.le.f32.partialorder %v5611, 0.7853982
        %vm5613 = vcmp.lt.s32.totalorder %v651, 0
        %v5614 = vand.u32 %v651, 2139095040
        %v5615 = vshrl.u32 %v5614, 23
        %v5616 = vsub.s32 %v5615, 127
        %v5617 = vand.u32 2147483647, %v651
        %v5618 = vand.u32 %v5617, 8388607
        %v5619 = vor.u32 %v5618, 8388608
        %v5620 = vsub.s32 0, %v5619
        %v5621 = vadd.s32 %v5616, 1
        %vm5622 = vcmp.gt.s32.totalorder %v5621, 0
        %v5623 = vsel %vm5622, %v5621, 0
        %v5624 = vshrl.u32 %v5623, 5
        %v5625 = vand.u32 %v5623, 31
        %v5626 = vsub.s32 32, %v5625
        %v5627 = vshrl.u32 683565275, %v5626
        %v5628 = vshll.u32 683565275, %v5625
        %v5629 = vshrl.u32 2475754826, %v5626
        %v5630 = vor.u32 %v5628, %v5629
        %v5631 = vshll.u32 2475754826, %v5625
        %v5632 = vshrl.u32 2131351028, %v5626
        %v5633 = vor.u32 %v5631, %v5632
        %v5634 = vshll.u32 2131351028, %v5625
        %v5635 = vshrl.u32 2102212464, %v5626
        %v5636 = vor.u32 %v5634, %v5635
        %v5637 = vshll.u32 2102212464, %v5625
        %v5638 = vshrl.u32 920167782, %v5626
        %v5639 = vor.u32 %v5637, %v5638
        %v5640 = vshll.u32 920167782, %v5625
        %v5641 = vshrl.u32 1326507024, %v5626
        %v5642 = vor.u32 %v5640, %v5641
        %vm5643 = vcmp.lt.s32.totalorder %v5624, 1
        %vm5644 = vcmp.lt.s32.totalorder %v5624, 2
        %vm5645 = vcmp.lt.s32.totalorder %v5624, 3
        %vm5646 = vcmp.lt.s32.totalorder %v5624, 4
        %v5647 = vsel %vm5643, %v5627, %v5630
        %v5648 = vsel %vm5646, %v5636, 2102212464
        %v5649 = vsel %vm5645, %v5633, %v5648
        %v5650 = vsel %vm5644, %v5647, %v5649
        %v5651 = vsel %vm5643, %v5630, %v5633
        %v5652 = vsel %vm5646, %v5639, 920167782
        %v5653 = vsel %vm5645, %v5636, %v5652
        %v5654 = vsel %vm5644, %v5651, %v5653
        %v5655 = vsel %vm5643, %v5633, %v5636
        %v5656 = vsel %vm5646, %v5642, 1326507024
        %v5657 = vsel %vm5645, %v5639, %v5656
        %v5658 = vsel %vm5644, %v5655, %v5657
        %v5659 = vshll.u32 %v5619, 8
        %v5660 = vmul.u32.u64.compose %v5659, %v5658
        %v5661 = vextract.low.u32 %v5660
        %v5662 = vextract.high.u32 %v5660
        %v5663 = vmul.u32.u64.compose %v5659, %v5654
        %v5664 = vextract.low.u32 %v5663
        %v5665 = vextract.high.u32 %v5663
        %v5666 = vmul.u32 %v5659, %v5650
        %v5667 = vadd.s32 %v5662, %v5664
        %vm5668 = vc.u32 %v5662, %v5664
        %v5669 = vadd.s32 %v5665, 1
        %v5670 = vsel %vm5668, %v5669, %v5665
        %v5671 = vadd.s32 %v5666, %v5670
        %v5672 = vadd.s32 %v5671, 536870912
        %v5673 = vshrl.u32 %v5672, 30
        %v5674 = vshll.u32 %v5673, 30
        %v5675 = vsub.s32 %v5671, %v5674
        %vm5676 = vcmp.lt.s32.totalorder %v5675, 0
        %v5677 = vsub.s32 0, %v5675
        %v5678 = vsel %vm5676, %v5677, %v5675
        %v5679 = vclz %v5678
        %v5680 = vsub.s32 %v5679, 2
        %vm5681 = vcmp.gt.s32.totalorder 0, %v5680
        %v5682 = vsel %vm5681, 0, %v5680
        %v5683 = vsub.s32 32, %v5682
        %v5684 = vshll.u32 %v5675, %v5682
        %v5685 = vshrl.u32 %v5667, %v5683
        %v5686 = vor.u32 %v5684, %v5685
        %v5687 = vsub.s32 4294967266, %v5682
        %v5688 = vadd.s32 %v5687, 127
        %v5689 = vshll.u32 %v5688, 23
        %v5690 = vor.u32 4788187, %v5689
        %v5691 = vand.u32 2147483647, %v5690
        %v5693 = vcvt.s32.f32 %v5686
        %v5694 = vmul.f32 %v5693, %v5691
        %v5695 = vxor.u32 %v5694, 2147483648
        %v5696 = vsel %vm5613, %v5695, %v5694
        %v5697 = vsub.s32 4, %v5673
        %v5698 = vsel %vm5613, %v5697, %v5673
        %v5699 = vsel %vm5612, %v651, %v5696
        %v5700 = vsel %vm5612, 0, %v5698
        %v5701 = vcosq.f32.pop %v5699
        %v5702 = vsinq.f32.pop %v5699
        %vm5703 = vweird.f32 %v651
        %v5704 = vand.u32 %v5700, 3
        %vm5705 = vcmp.lt.s32.totalorder %v5704, 2
        %vm5706 = vcmp.eq.s32.totalorder %v5704, 0
        %v5707 = vxor.u32 %v5702, 2147483648
        %v5708 = vsel %vm5706, %v5701, %v5707
        %vm5709 = vcmp.eq.s32.totalorder %v5704, 2
        %v5710 = vxor.u32 %v5701, 2147483648
        %v5711 = vsel %vm5709, %v5710, %v5702
        %v5712 = vsel %vm5705, %v5708, %v5711
        %v5713 = vsel %vm5703, nan, %v5712
        %v5714 = vand.u32 2147483647, %v652
        %vm5715 = vcmp.le.f32.partialorder %v5714, 0.7853982
        %vm5716 = vcmp.lt.s32.totalorder %v652, 0
        %v5717 = vand.u32 %v652, 2139095040
        %v5718 = vshrl.u32 %v5717, 23
        %v5719 = vsub.s32 %v5718, 127
        %v5720 = vand.u32 2147483647, %v652
        %v5721 = vand.u32 %v5720, 8388607
        %v5722 = vor.u32 %v5721, 8388608
        %v5723 = vsub.s32 0, %v5722
        %v5724 = vadd.s32 %v5719, 1
        %vm5725 = vcmp.gt.s32.totalorder %v5724, 0
        %v5726 = vsel %vm5725, %v5724, 0
        %v5727 = vshrl.u32 %v5726, 5
        %v5728 = vand.u32 %v5726, 31
        %v5729 = vsub.s32 32, %v5728
        %v5730 = vshrl.u32 683565275, %v5729
        %v5731 = vshll.u32 683565275, %v5728
        %v5732 = vshrl.u32 2475754826, %v5729
        %v5733 = vor.u32 %v5731, %v5732
        %v5734 = vshll.u32 2475754826, %v5728
        %v5735 = vshrl.u32 2131351028, %v5729
        %v5736 = vor.u32 %v5734, %v5735
        %v5737 = vshll.u32 2131351028, %v5728
        %v5738 = vshrl.u32 2102212464, %v5729
        %v5739 = vor.u32 %v5737, %v5738
        %v5740 = vshll.u32 2102212464, %v5728
        %v5741 = vshrl.u32 920167782, %v5729
        %v5742 = vor.u32 %v5740, %v5741
        %v5743 = vshll.u32 920167782, %v5728
        %v5744 = vshrl.u32 1326507024, %v5729
        %v5745 = vor.u32 %v5743, %v5744
        %vm5746 = vcmp.lt.s32.totalorder %v5727, 1
        %vm5747 = vcmp.lt.s32.totalorder %v5727, 2
        %vm5748 = vcmp.lt.s32.totalorder %v5727, 3
        %vm5749 = vcmp.lt.s32.totalorder %v5727, 4
        %v5750 = vsel %vm5746, %v5730, %v5733
        %v5751 = vsel %vm5749, %v5739, 2102212464
        %v5752 = vsel %vm5748, %v5736, %v5751
        %v5753 = vsel %vm5747, %v5750, %v5752
        %v5754 = vsel %vm5746, %v5733, %v5736
        %v5755 = vsel %vm5749, %v5742, 920167782
        %v5756 = vsel %vm5748, %v5739, %v5755
        %v5757 = vsel %vm5747, %v5754, %v5756
        %v5758 = vsel %vm5746, %v5736, %v5739
        %v5759 = vsel %vm5749, %v5745, 1326507024
        %v5760 = vsel %vm5748, %v5742, %v5759
        %v5761 = vsel %vm5747, %v5758, %v5760
        %v5762 = vshll.u32 %v5722, 8
        %v5763 = vmul.u32.u64.compose %v5762, %v5761
        %v5764 = vextract.low.u32 %v5763
        %v5765 = vextract.high.u32 %v5763
        %v5766 = vmul.u32.u64.compose %v5762, %v5757
        %v5767 = vextract.low.u32 %v5766
        %v5768 = vextract.high.u32 %v5766
        %v5769 = vmul.u32 %v5762, %v5753
        %v5770 = vadd.s32 %v5765, %v5767
        %vm5771 = vc.u32 %v5765, %v5767
        %v5772 = vadd.s32 %v5768, 1
        %v5773 = vsel %vm5771, %v5772, %v5768
        %v5774 = vadd.s32 %v5769, %v5773
        %v5775 = vadd.s32 %v5774, 536870912
        %v5776 = vshrl.u32 %v5775, 30
        %v5777 = vshll.u32 %v5776, 30
        %v5778 = vsub.s32 %v5774, %v5777
        %vm5779 = vcmp.lt.s32.totalorder %v5778, 0
        %v5780 = vsub.s32 0, %v5778
        %v5781 = vsel %vm5779, %v5780, %v5778
        %v5782 = vclz %v5781
        %v5783 = vsub.s32 %v5782, 2
        %vm5784 = vcmp.gt.s32.totalorder 0, %v5783
        %v5785 = vsel %vm5784, 0, %v5783
        %v5786 = vsub.s32 32, %v5785
        %v5787 = vshll.u32 %v5778, %v5785
        %v5788 = vshrl.u32 %v5770, %v5786
        %v5789 = vor.u32 %v5787, %v5788
        %v5790 = vsub.s32 4294967266, %v5785
        %v5791 = vadd.s32 %v5790, 127
        %v5792 = vshll.u32 %v5791, 23
        %v5793 = vor.u32 4788187, %v5792
        %v5794 = vand.u32 2147483647, %v5793
        %v5796 = vcvt.s32.f32 %v5789
        %v5797 = vmul.f32 %v5796, %v5794
        %v5798 = vxor.u32 %v5797, 2147483648
        %v5799 = vsel %vm5716, %v5798, %v5797
        %v5800 = vsub.s32 4, %v5776
        %v5801 = vsel %vm5716, %v5800, %v5776
        %v5802 = vsel %vm5715, %v652, %v5799
        %v5803 = vsel %vm5715, 0, %v5801
        %v5804 = vcosq.f32.pop %v5802
        %v5805 = vsinq.f32.pop %v5802
        %vm5806 = vweird.f32 %v652
        %v5807 = vand.u32 %v5803, 3
        %vm5808 = vcmp.lt.s32.totalorder %v5807, 2
        %vm5809 = vcmp.eq.s32.totalorder %v5807, 0
        %v5810 = vxor.u32 %v5805, 2147483648
        %v5811 = vsel %vm5809, %v5804, %v5810
        %vm5812 = vcmp.eq.s32.totalorder %v5807, 2
        %v5813 = vxor.u32 %v5804, 2147483648
        %v5814 = vsel %vm5812, %v5813, %v5805
        %v5815 = vsel %vm5808, %v5811, %v5814
        %v5816 = vsel %vm5806, nan, %v5815
        %v5817 = vand.u32 2147483647, %v653
        %vm5818 = vcmp.le.f32.partialorder %v5817, 0.7853982
        %vm5819 = vcmp.lt.s32.totalorder %v653, 0
        %v5820 = vand.u32 %v653, 2139095040
        %v5821 = vshrl.u32 %v5820, 23
        %v5822 = vsub.s32 %v5821, 127
        %v5823 = vand.u32 2147483647, %v653
        %v5824 = vand.u32 %v5823, 8388607
        %v5825 = vor.u32 %v5824, 8388608
        %v5826 = vsub.s32 0, %v5825
        %v5827 = vadd.s32 %v5822, 1
        %vm5828 = vcmp.gt.s32.totalorder %v5827, 0
        %v5829 = vsel %vm5828, %v5827, 0
        %v5830 = vshrl.u32 %v5829, 5
        %v5831 = vand.u32 %v5829, 31
        %v5832 = vsub.s32 32, %v5831
        %v5833 = vshrl.u32 683565275, %v5832
        %v5834 = vshll.u32 683565275, %v5831
        %v5835 = vshrl.u32 2475754826, %v5832
        %v5836 = vor.u32 %v5834, %v5835
        %v5837 = vshll.u32 2475754826, %v5831
        %v5838 = vshrl.u32 2131351028, %v5832
        %v5839 = vor.u32 %v5837, %v5838
        %v5840 = vshll.u32 2131351028, %v5831
        %v5841 = vshrl.u32 2102212464, %v5832
        %v5842 = vor.u32 %v5840, %v5841
        %v5843 = vshll.u32 2102212464, %v5831
        %v5844 = vshrl.u32 920167782, %v5832
        %v5845 = vor.u32 %v5843, %v5844
        %v5846 = vshll.u32 920167782, %v5831
        %v5847 = vshrl.u32 1326507024, %v5832
        %v5848 = vor.u32 %v5846, %v5847
        %vm5849 = vcmp.lt.s32.totalorder %v5830, 1
        %vm5850 = vcmp.lt.s32.totalorder %v5830, 2
        %vm5851 = vcmp.lt.s32.totalorder %v5830, 3
        %vm5852 = vcmp.lt.s32.totalorder %v5830, 4
        %v5853 = vsel %vm5849, %v5833, %v5836
        %v5854 = vsel %vm5852, %v5842, 2102212464
        %v5855 = vsel %vm5851, %v5839, %v5854
        %v5856 = vsel %vm5850, %v5853, %v5855
        %v5857 = vsel %vm5849, %v5836, %v5839
        %v5858 = vsel %vm5852, %v5845, 920167782
        %v5859 = vsel %vm5851, %v5842, %v5858
        %v5860 = vsel %vm5850, %v5857, %v5859
        %v5861 = vsel %vm5849, %v5839, %v5842
        %v5862 = vsel %vm5852, %v5848, 1326507024
        %v5863 = vsel %vm5851, %v5845, %v5862
        %v5864 = vsel %vm5850, %v5861, %v5863
        %v5865 = vshll.u32 %v5825, 8
        %v5866 = vmul.u32.u64.compose %v5865, %v5864
        %v5867 = vextract.low.u32 %v5866
        %v5868 = vextract.high.u32 %v5866
        %v5869 = vmul.u32.u64.compose %v5865, %v5860
        %v5870 = vextract.low.u32 %v5869
        %v5871 = vextract.high.u32 %v5869
        %v5872 = vmul.u32 %v5865, %v5856
        %v5873 = vadd.s32 %v5868, %v5870
        %vm5874 = vc.u32 %v5868, %v5870
        %v5875 = vadd.s32 %v5871, 1
        %v5876 = vsel %vm5874, %v5875, %v5871
        %v5877 = vadd.s32 %v5872, %v5876
        %v5878 = vadd.s32 %v5877, 536870912
        %v5879 = vshrl.u32 %v5878, 30
        %v5880 = vshll.u32 %v5879, 30
        %v5881 = vsub.s32 %v5877, %v5880
        %vm5882 = vcmp.lt.s32.totalorder %v5881, 0
        %v5883 = vsub.s32 0, %v5881
        %v5884 = vsel %vm5882, %v5883, %v5881
        %v5885 = vclz %v5884
        %v5886 = vsub.s32 %v5885, 2
        %vm5887 = vcmp.gt.s32.totalorder 0, %v5886
        %v5888 = vsel %vm5887, 0, %v5886
        %v5889 = vsub.s32 32, %v5888
        %v5890 = vshll.u32 %v5881, %v5888
        %v5891 = vshrl.u32 %v5873, %v5889
        %v5892 = vor.u32 %v5890, %v5891
        %v5893 = vsub.s32 4294967266, %v5888
        %v5894 = vadd.s32 %v5893, 127
        %v5895 = vshll.u32 %v5894, 23
        %v5896 = vor.u32 4788187, %v5895
        %v5897 = vand.u32 2147483647, %v5896
        %v5899 = vcvt.s32.f32 %v5892
        %v5900 = vmul.f32 %v5899, %v5897
        %v5901 = vxor.u32 %v5900, 2147483648
        %v5902 = vsel %vm5819, %v5901, %v5900
        %v5903 = vsub.s32 4, %v5879
        %v5904 = vsel %vm5819, %v5903, %v5879
        %v5905 = vsel %vm5818, %v653, %v5902
        %v5906 = vsel %vm5818, 0, %v5904
        %v5907 = vcosq.f32.pop %v5905
        %v5908 = vsinq.f32.pop %v5905
        %vm5909 = vweird.f32 %v653
        %v5910 = vand.u32 %v5906, 3
        %vm5911 = vcmp.lt.s32.totalorder %v5910, 2
        %vm5912 = vcmp.eq.s32.totalorder %v5910, 0
        %v5913 = vxor.u32 %v5908, 2147483648
        %v5914 = vsel %vm5912, %v5907, %v5913
        %vm5915 = vcmp.eq.s32.totalorder %v5910, 2
        %v5916 = vxor.u32 %v5907, 2147483648
        %v5917 = vsel %vm5915, %v5916, %v5908
        %v5918 = vsel %vm5911, %v5914, %v5917
        %v5919 = vsel %vm5909, nan, %v5918
        %v5920 = vand.u32 2147483647, %v654
        %vm5921 = vcmp.le.f32.partialorder %v5920, 0.7853982
        %vm5922 = vcmp.lt.s32.totalorder %v654, 0
        %v5923 = vand.u32 %v654, 2139095040
        %v5924 = vshrl.u32 %v5923, 23
        %v5925 = vsub.s32 %v5924, 127
        %v5926 = vand.u32 2147483647, %v654
        %v5927 = vand.u32 %v5926, 8388607
        %v5928 = vor.u32 %v5927, 8388608
        %v5929 = vsub.s32 0, %v5928
        %v5930 = vadd.s32 %v5925, 1
        %vm5931 = vcmp.gt.s32.totalorder %v5930, 0
        %v5932 = vsel %vm5931, %v5930, 0
        %v5933 = vshrl.u32 %v5932, 5
        %v5934 = vand.u32 %v5932, 31
        %v5935 = vsub.s32 32, %v5934
        %v5936 = vshrl.u32 683565275, %v5935
        %v5937 = vshll.u32 683565275, %v5934
        %v5938 = vshrl.u32 2475754826, %v5935
        %v5939 = vor.u32 %v5937, %v5938
        %v5940 = vshll.u32 2475754826, %v5934
        %v5941 = vshrl.u32 2131351028, %v5935
        %v5942 = vor.u32 %v5940, %v5941
        %v5943 = vshll.u32 2131351028, %v5934
        %v5944 = vshrl.u32 2102212464, %v5935
        %v5945 = vor.u32 %v5943, %v5944
        %v5946 = vshll.u32 2102212464, %v5934
        %v5947 = vshrl.u32 920167782, %v5935
        %v5948 = vor.u32 %v5946, %v5947
        %v5949 = vshll.u32 920167782, %v5934
        %v5950 = vshrl.u32 1326507024, %v5935
        %v5951 = vor.u32 %v5949, %v5950
        %vm5952 = vcmp.lt.s32.totalorder %v5933, 1
        %vm5953 = vcmp.lt.s32.totalorder %v5933, 2
        %vm5954 = vcmp.lt.s32.totalorder %v5933, 3
        %vm5955 = vcmp.lt.s32.totalorder %v5933, 4
        %v5956 = vsel %vm5952, %v5936, %v5939
        %v5957 = vsel %vm5955, %v5945, 2102212464
        %v5958 = vsel %vm5954, %v5942, %v5957
        %v5959 = vsel %vm5953, %v5956, %v5958
        %v5960 = vsel %vm5952, %v5939, %v5942
        %v5961 = vsel %vm5955, %v5948, 920167782
        %v5962 = vsel %vm5954, %v5945, %v5961
        %v5963 = vsel %vm5953, %v5960, %v5962
        %v5964 = vsel %vm5952, %v5942, %v5945
        %v5965 = vsel %vm5955, %v5951, 1326507024
        %v5966 = vsel %vm5954, %v5948, %v5965
        %v5967 = vsel %vm5953, %v5964, %v5966
        %v5968 = vshll.u32 %v5928, 8
        %v5969 = vmul.u32.u64.compose %v5968, %v5967
        %v5970 = vextract.low.u32 %v5969
        %v5971 = vextract.high.u32 %v5969
        %v5972 = vmul.u32.u64.compose %v5968, %v5963
        %v5973 = vextract.low.u32 %v5972
        %v5974 = vextract.high.u32 %v5972
        %v5975 = vmul.u32 %v5968, %v5959
        %v5976 = vadd.s32 %v5971, %v5973
        %vm5977 = vc.u32 %v5971, %v5973
        %v5978 = vadd.s32 %v5974, 1
        %v5979 = vsel %vm5977, %v5978, %v5974
        %v5980 = vadd.s32 %v5975, %v5979
        %v5981 = vadd.s32 %v5980, 536870912
        %v5982 = vshrl.u32 %v5981, 30
        %v5983 = vshll.u32 %v5982, 30
        %v5984 = vsub.s32 %v5980, %v5983
        %vm5985 = vcmp.lt.s32.totalorder %v5984, 0
        %v5986 = vsub.s32 0, %v5984
        %v5987 = vsel %vm5985, %v5986, %v5984
        %v5988 = vclz %v5987
        %v5989 = vsub.s32 %v5988, 2
        %vm5990 = vcmp.gt.s32.totalorder 0, %v5989
        %v5991 = vsel %vm5990, 0, %v5989
        %v5992 = vsub.s32 32, %v5991
        %v5993 = vshll.u32 %v5984, %v5991
        %v5994 = vshrl.u32 %v5976, %v5992
        %v5995 = vor.u32 %v5993, %v5994
        %v5996 = vsub.s32 4294967266, %v5991
        %v5997 = vadd.s32 %v5996, 127
        %v5998 = vshll.u32 %v5997, 23
        %v5999 = vor.u32 4788187, %v5998
        %v6000 = vand.u32 2147483647, %v5999
        %v6002 = vcvt.s32.f32 %v5995
        %v6003 = vmul.f32 %v6002, %v6000
        %v6004 = vxor.u32 %v6003, 2147483648
        %v6005 = vsel %vm5922, %v6004, %v6003
        %v6006 = vsub.s32 4, %v5982
        %v6007 = vsel %vm5922, %v6006, %v5982
        %v6008 = vsel %vm5921, %v654, %v6005
        %v6009 = vsel %vm5921, 0, %v6007
        %v6010 = vcosq.f32.pop %v6008
        %v6011 = vsinq.f32.pop %v6008
        %vm6012 = vweird.f32 %v654
        %v6013 = vand.u32 %v6009, 3
        %vm6014 = vcmp.lt.s32.totalorder %v6013, 2
        %vm6015 = vcmp.eq.s32.totalorder %v6013, 0
        %v6016 = vxor.u32 %v6011, 2147483648
        %v6017 = vsel %vm6015, %v6010, %v6016
        %vm6018 = vcmp.eq.s32.totalorder %v6013, 2
        %v6019 = vxor.u32 %v6010, 2147483648
        %v6020 = vsel %vm6018, %v6019, %v6011
        %v6021 = vsel %vm6014, %v6017, %v6020
        %v6022 = vsel %vm6012, nan, %v6021
        %v6023 = vand.u32 2147483647, %v655
        %vm6024 = vcmp.le.f32.partialorder %v6023, 0.7853982
        %vm6025 = vcmp.lt.s32.totalorder %v655, 0
        %v6026 = vand.u32 %v655, 2139095040
        %v6027 = vshrl.u32 %v6026, 23
        %v6028 = vsub.s32 %v6027, 127
        %v6029 = vand.u32 2147483647, %v655
        %v6030 = vand.u32 %v6029, 8388607
        %v6031 = vor.u32 %v6030, 8388608
        %v6032 = vsub.s32 0, %v6031
        %v6033 = vadd.s32 %v6028, 1
        %vm6034 = vcmp.gt.s32.totalorder %v6033, 0
        %v6035 = vsel %vm6034, %v6033, 0
        %v6036 = vshrl.u32 %v6035, 5
        %v6037 = vand.u32 %v6035, 31
        %v6038 = vsub.s32 32, %v6037
        %v6039 = vshrl.u32 683565275, %v6038
        %v6040 = vshll.u32 683565275, %v6037
        %v6041 = vshrl.u32 2475754826, %v6038
        %v6042 = vor.u32 %v6040, %v6041
        %v6043 = vshll.u32 2475754826, %v6037
        %v6044 = vshrl.u32 2131351028, %v6038
        %v6045 = vor.u32 %v6043, %v6044
        %v6046 = vshll.u32 2131351028, %v6037
        %v6047 = vshrl.u32 2102212464, %v6038
        %v6048 = vor.u32 %v6046, %v6047
        %v6049 = vshll.u32 2102212464, %v6037
        %v6050 = vshrl.u32 920167782, %v6038
        %v6051 = vor.u32 %v6049, %v6050
        %v6052 = vshll.u32 920167782, %v6037
        %v6053 = vshrl.u32 1326507024, %v6038
        %v6054 = vor.u32 %v6052, %v6053
        %vm6055 = vcmp.lt.s32.totalorder %v6036, 1
        %vm6056 = vcmp.lt.s32.totalorder %v6036, 2
        %vm6057 = vcmp.lt.s32.totalorder %v6036, 3
        %vm6058 = vcmp.lt.s32.totalorder %v6036, 4
        %v6059 = vsel %vm6055, %v6039, %v6042
        %v6060 = vsel %vm6058, %v6048, 2102212464
        %v6061 = vsel %vm6057, %v6045, %v6060
        %v6062 = vsel %vm6056, %v6059, %v6061
        %v6063 = vsel %vm6055, %v6042, %v6045
        %v6064 = vsel %vm6058, %v6051, 920167782
        %v6065 = vsel %vm6057, %v6048, %v6064
        %v6066 = vsel %vm6056, %v6063, %v6065
        %v6067 = vsel %vm6055, %v6045, %v6048
        %v6068 = vsel %vm6058, %v6054, 1326507024
        %v6069 = vsel %vm6057, %v6051, %v6068
        %v6070 = vsel %vm6056, %v6067, %v6069
        %v6071 = vshll.u32 %v6031, 8
        %v6072 = vmul.u32.u64.compose %v6071, %v6070
        %v6073 = vextract.low.u32 %v6072
        %v6074 = vextract.high.u32 %v6072
        %v6075 = vmul.u32.u64.compose %v6071, %v6066
        %v6076 = vextract.low.u32 %v6075
        %v6077 = vextract.high.u32 %v6075
        %v6078 = vmul.u32 %v6071, %v6062
        %v6079 = vadd.s32 %v6074, %v6076
        %vm6080 = vc.u32 %v6074, %v6076
        %v6081 = vadd.s32 %v6077, 1
        %v6082 = vsel %vm6080, %v6081, %v6077
        %v6083 = vadd.s32 %v6078, %v6082
        %v6084 = vadd.s32 %v6083, 536870912
        %v6085 = vshrl.u32 %v6084, 30
        %v6086 = vshll.u32 %v6085, 30
        %v6087 = vsub.s32 %v6083, %v6086
        %vm6088 = vcmp.lt.s32.totalorder %v6087, 0
        %v6089 = vsub.s32 0, %v6087
        %v6090 = vsel %vm6088, %v6089, %v6087
        %v6091 = vclz %v6090
        %v6092 = vsub.s32 %v6091, 2
        %vm6093 = vcmp.gt.s32.totalorder 0, %v6092
        %v6094 = vsel %vm6093, 0, %v6092
        %v6095 = vsub.s32 32, %v6094
        %v6096 = vshll.u32 %v6087, %v6094
        %v6097 = vshrl.u32 %v6079, %v6095
        %v6098 = vor.u32 %v6096, %v6097
        %v6099 = vsub.s32 4294967266, %v6094
        %v6100 = vadd.s32 %v6099, 127
        %v6101 = vshll.u32 %v6100, 23
        %v6102 = vor.u32 4788187, %v6101
        %v6103 = vand.u32 2147483647, %v6102
        %v6105 = vcvt.s32.f32 %v6098
        %v6106 = vmul.f32 %v6105, %v6103
        %v6107 = vxor.u32 %v6106, 2147483648
        %v6108 = vsel %vm6025, %v6107, %v6106
        %v6109 = vsub.s32 4, %v6085
        %v6110 = vsel %vm6025, %v6109, %v6085
        %v6111 = vsel %vm6024, %v655, %v6108
        %v6112 = vsel %vm6024, 0, %v6110
        %v6113 = vcosq.f32.pop %v6111
        %v6114 = vsinq.f32.pop %v6111
        %vm6115 = vweird.f32 %v655
        %v6116 = vand.u32 %v6112, 3
        %vm6117 = vcmp.lt.s32.totalorder %v6116, 2
        %vm6118 = vcmp.eq.s32.totalorder %v6116, 0
        %v6119 = vxor.u32 %v6114, 2147483648
        %v6120 = vsel %vm6118, %v6113, %v6119
        %vm6121 = vcmp.eq.s32.totalorder %v6116, 2
        %v6122 = vxor.u32 %v6113, 2147483648
        %v6123 = vsel %vm6121, %v6122, %v6114
        %v6124 = vsel %vm6117, %v6120, %v6123
        %v6125 = vsel %vm6115, nan, %v6124
        %v6126 = vand.u32 2147483647, %v656
        %vm6127 = vcmp.le.f32.partialorder %v6126, 0.7853982
        %vm6128 = vcmp.lt.s32.totalorder %v656, 0
        %v6129 = vand.u32 %v656, 2139095040
        %v6130 = vshrl.u32 %v6129, 23
        %v6131 = vsub.s32 %v6130, 127
        %v6132 = vand.u32 2147483647, %v656
        %v6133 = vand.u32 %v6132, 8388607
        %v6134 = vor.u32 %v6133, 8388608
        %v6135 = vsub.s32 0, %v6134
        %v6136 = vadd.s32 %v6131, 1
        %vm6137 = vcmp.gt.s32.totalorder %v6136, 0
        %v6138 = vsel %vm6137, %v6136, 0
        %v6139 = vshrl.u32 %v6138, 5
        %v6140 = vand.u32 %v6138, 31
        %v6141 = vsub.s32 32, %v6140
        %v6142 = vshrl.u32 683565275, %v6141
        %v6143 = vshll.u32 683565275, %v6140
        %v6144 = vshrl.u32 2475754826, %v6141
        %v6145 = vor.u32 %v6143, %v6144
        %v6146 = vshll.u32 2475754826, %v6140
        %v6147 = vshrl.u32 2131351028, %v6141
        %v6148 = vor.u32 %v6146, %v6147
        %v6149 = vshll.u32 2131351028, %v6140
        %v6150 = vshrl.u32 2102212464, %v6141
        %v6151 = vor.u32 %v6149, %v6150
        %v6152 = vshll.u32 2102212464, %v6140
        %v6153 = vshrl.u32 920167782, %v6141
        %v6154 = vor.u32 %v6152, %v6153
        %v6155 = vshll.u32 920167782, %v6140
        %v6156 = vshrl.u32 1326507024, %v6141
        %v6157 = vor.u32 %v6155, %v6156
        %vm6158 = vcmp.lt.s32.totalorder %v6139, 1
        %vm6159 = vcmp.lt.s32.totalorder %v6139, 2
        %vm6160 = vcmp.lt.s32.totalorder %v6139, 3
        %vm6161 = vcmp.lt.s32.totalorder %v6139, 4
        %v6162 = vsel %vm6158, %v6142, %v6145
        %v6163 = vsel %vm6161, %v6151, 2102212464
        %v6164 = vsel %vm6160, %v6148, %v6163
        %v6165 = vsel %vm6159, %v6162, %v6164
        %v6166 = vsel %vm6158, %v6145, %v6148
        %v6167 = vsel %vm6161, %v6154, 920167782
        %v6168 = vsel %vm6160, %v6151, %v6167
        %v6169 = vsel %vm6159, %v6166, %v6168
        %v6170 = vsel %vm6158, %v6148, %v6151
        %v6171 = vsel %vm6161, %v6157, 1326507024
        %v6172 = vsel %vm6160, %v6154, %v6171
        %v6173 = vsel %vm6159, %v6170, %v6172
        %v6174 = vshll.u32 %v6134, 8
        %v6175 = vmul.u32.u64.compose %v6174, %v6173
        %v6176 = vextract.low.u32 %v6175
        %v6177 = vextract.high.u32 %v6175
        %v6178 = vmul.u32.u64.compose %v6174, %v6169
        %v6179 = vextract.low.u32 %v6178
        %v6180 = vextract.high.u32 %v6178
        %v6181 = vmul.u32 %v6174, %v6165
        %v6182 = vadd.s32 %v6177, %v6179
        %vm6183 = vc.u32 %v6177, %v6179
        %v6184 = vadd.s32 %v6180, 1
        %v6185 = vsel %vm6183, %v6184, %v6180
        %v6186 = vadd.s32 %v6181, %v6185
        %v6187 = vadd.s32 %v6186, 536870912
        %v6188 = vshrl.u32 %v6187, 30
        %v6189 = vshll.u32 %v6188, 30
        %v6190 = vsub.s32 %v6186, %v6189
        %vm6191 = vcmp.lt.s32.totalorder %v6190, 0
        %v6192 = vsub.s32 0, %v6190
        %v6193 = vsel %vm6191, %v6192, %v6190
        %v6194 = vclz %v6193
        %v6195 = vsub.s32 %v6194, 2
        %vm6196 = vcmp.gt.s32.totalorder 0, %v6195
        %v6197 = vsel %vm6196, 0, %v6195
        %v6198 = vsub.s32 32, %v6197
        %v6199 = vshll.u32 %v6190, %v6197
        %v6200 = vshrl.u32 %v6182, %v6198
        %v6201 = vor.u32 %v6199, %v6200
        %v6202 = vsub.s32 4294967266, %v6197
        %v6203 = vadd.s32 %v6202, 127
        %v6204 = vshll.u32 %v6203, 23
        %v6205 = vor.u32 4788187, %v6204
        %v6206 = vand.u32 2147483647, %v6205
        %v6208 = vcvt.s32.f32 %v6201
        %v6209 = vmul.f32 %v6208, %v6206
        %v6210 = vxor.u32 %v6209, 2147483648
        %v6211 = vsel %vm6128, %v6210, %v6209
        %v6212 = vsub.s32 4, %v6188
        %v6213 = vsel %vm6128, %v6212, %v6188
        %v6214 = vsel %vm6127, %v656, %v6211
        %v6215 = vsel %vm6127, 0, %v6213
        %v6216 = vcosq.f32.pop %v6214
        %v6217 = vsinq.f32.pop %v6214
        %vm6218 = vweird.f32 %v656
        %v6219 = vand.u32 %v6215, 3
        %vm6220 = vcmp.lt.s32.totalorder %v6219, 2
        %vm6221 = vcmp.eq.s32.totalorder %v6219, 0
        %v6222 = vxor.u32 %v6217, 2147483648
        %v6223 = vsel %vm6221, %v6216, %v6222
        %vm6224 = vcmp.eq.s32.totalorder %v6219, 2
        %v6225 = vxor.u32 %v6216, 2147483648
        %v6226 = vsel %vm6224, %v6225, %v6217
        %v6227 = vsel %vm6220, %v6223, %v6226
        %v6228 = vsel %vm6218, nan, %v6227
        %v6229 = vand.u32 2147483647, %v657
        %vm6230 = vcmp.le.f32.partialorder %v6229, 0.7853982
        %vm6231 = vcmp.lt.s32.totalorder %v657, 0
        %v6232 = vand.u32 %v657, 2139095040
        %v6233 = vshrl.u32 %v6232, 23
        %v6234 = vsub.s32 %v6233, 127
        %v6235 = vand.u32 2147483647, %v657
        %v6236 = vand.u32 %v6235, 8388607
        %v6237 = vor.u32 %v6236, 8388608
        %v6238 = vsub.s32 0, %v6237
        %v6239 = vadd.s32 %v6234, 1
        %vm6240 = vcmp.gt.s32.totalorder %v6239, 0
        %v6241 = vsel %vm6240, %v6239, 0
        %v6242 = vshrl.u32 %v6241, 5
        %v6243 = vand.u32 %v6241, 31
        %v6244 = vsub.s32 32, %v6243
        %v6245 = vshrl.u32 683565275, %v6244
        %v6246 = vshll.u32 683565275, %v6243
        %v6247 = vshrl.u32 2475754826, %v6244
        %v6248 = vor.u32 %v6246, %v6247
        %v6249 = vshll.u32 2475754826, %v6243
        %v6250 = vshrl.u32 2131351028, %v6244
        %v6251 = vor.u32 %v6249, %v6250
        %v6252 = vshll.u32 2131351028, %v6243
        %v6253 = vshrl.u32 2102212464, %v6244
        %v6254 = vor.u32 %v6252, %v6253
        %v6255 = vshll.u32 2102212464, %v6243
        %v6256 = vshrl.u32 920167782, %v6244
        %v6257 = vor.u32 %v6255, %v6256
        %v6258 = vshll.u32 920167782, %v6243
        %v6259 = vshrl.u32 1326507024, %v6244
        %v6260 = vor.u32 %v6258, %v6259
        %vm6261 = vcmp.lt.s32.totalorder %v6242, 1
        %vm6262 = vcmp.lt.s32.totalorder %v6242, 2
        %vm6263 = vcmp.lt.s32.totalorder %v6242, 3
        %vm6264 = vcmp.lt.s32.totalorder %v6242, 4
        %v6265 = vsel %vm6261, %v6245, %v6248
        %v6266 = vsel %vm6264, %v6254, 2102212464
        %v6267 = vsel %vm6263, %v6251, %v6266
        %v6268 = vsel %vm6262, %v6265, %v6267
        %v6269 = vsel %vm6261, %v6248, %v6251
        %v6270 = vsel %vm6264, %v6257, 920167782
        %v6271 = vsel %vm6263, %v6254, %v6270
        %v6272 = vsel %vm6262, %v6269, %v6271
        %v6273 = vsel %vm6261, %v6251, %v6254
        %v6274 = vsel %vm6264, %v6260, 1326507024
        %v6275 = vsel %vm6263, %v6257, %v6274
        %v6276 = vsel %vm6262, %v6273, %v6275
        %v6277 = vshll.u32 %v6237, 8
        %v6278 = vmul.u32.u64.compose %v6277, %v6276
        %v6279 = vextract.low.u32 %v6278
        %v6280 = vextract.high.u32 %v6278
        %v6281 = vmul.u32.u64.compose %v6277, %v6272
        %v6282 = vextract.low.u32 %v6281
        %v6283 = vextract.high.u32 %v6281
        %v6284 = vmul.u32 %v6277, %v6268
        %v6285 = vadd.s32 %v6280, %v6282
        %vm6286 = vc.u32 %v6280, %v6282
        %v6287 = vadd.s32 %v6283, 1
        %v6288 = vsel %vm6286, %v6287, %v6283
        %v6289 = vadd.s32 %v6284, %v6288
        %v6290 = vadd.s32 %v6289, 536870912
        %v6291 = vshrl.u32 %v6290, 30
        %v6292 = vshll.u32 %v6291, 30
        %v6293 = vsub.s32 %v6289, %v6292
        %vm6294 = vcmp.lt.s32.totalorder %v6293, 0
        %v6295 = vsub.s32 0, %v6293
        %v6296 = vsel %vm6294, %v6295, %v6293
        %v6297 = vclz %v6296
        %v6298 = vsub.s32 %v6297, 2
        %vm6299 = vcmp.gt.s32.totalorder 0, %v6298
        %v6300 = vsel %vm6299, 0, %v6298
        %v6301 = vsub.s32 32, %v6300
        %v6302 = vshll.u32 %v6293, %v6300
        %v6303 = vshrl.u32 %v6285, %v6301
        %v6304 = vor.u32 %v6302, %v6303
        %v6305 = vsub.s32 4294967266, %v6300
        %v6306 = vadd.s32 %v6305, 127
        %v6307 = vshll.u32 %v6306, 23
        %v6308 = vor.u32 4788187, %v6307
        %v6309 = vand.u32 2147483647, %v6308
        %v6311 = vcvt.s32.f32 %v6304
        %v6312 = vmul.f32 %v6311, %v6309
        %v6313 = vxor.u32 %v6312, 2147483648
        %v6314 = vsel %vm6231, %v6313, %v6312
        %v6315 = vsub.s32 4, %v6291
        %v6316 = vsel %vm6231, %v6315, %v6291
        %v6317 = vsel %vm6230, %v657, %v6314
        %v6318 = vsel %vm6230, 0, %v6316
        %v6319 = vcosq.f32.pop %v6317
        %v6320 = vsinq.f32.pop %v6317
        %vm6321 = vweird.f32 %v657
        %v6322 = vand.u32 %v6318, 3
        %vm6323 = vcmp.lt.s32.totalorder %v6322, 2
        %vm6324 = vcmp.eq.s32.totalorder %v6322, 0
        %v6325 = vxor.u32 %v6320, 2147483648
        %v6326 = vsel %vm6324, %v6319, %v6325
        %vm6327 = vcmp.eq.s32.totalorder %v6322, 2
        %v6328 = vxor.u32 %v6319, 2147483648
        %v6329 = vsel %vm6327, %v6328, %v6320
        %v6330 = vsel %vm6323, %v6326, %v6329
        %v6331 = vsel %vm6321, nan, %v6330
        %v6332 = vand.u32 2147483647, %v658
        %vm6333 = vcmp.le.f32.partialorder %v6332, 0.7853982
        %vm6334 = vcmp.lt.s32.totalorder %v658, 0
        %v6335 = vand.u32 %v658, 2139095040
        %v6336 = vshrl.u32 %v6335, 23
        %v6337 = vsub.s32 %v6336, 127
        %v6338 = vand.u32 2147483647, %v658
        %v6339 = vand.u32 %v6338, 8388607
        %v6340 = vor.u32 %v6339, 8388608
        %v6341 = vsub.s32 0, %v6340
        %v6342 = vadd.s32 %v6337, 1
        %vm6343 = vcmp.gt.s32.totalorder %v6342, 0
        %v6344 = vsel %vm6343, %v6342, 0
        %v6345 = vshrl.u32 %v6344, 5
        %v6346 = vand.u32 %v6344, 31
        %v6347 = vsub.s32 32, %v6346
        %v6348 = vshrl.u32 683565275, %v6347
        %v6349 = vshll.u32 683565275, %v6346
        %v6350 = vshrl.u32 2475754826, %v6347
        %v6351 = vor.u32 %v6349, %v6350
        %v6352 = vshll.u32 2475754826, %v6346
        %v6353 = vshrl.u32 2131351028, %v6347
        %v6354 = vor.u32 %v6352, %v6353
        %v6355 = vshll.u32 2131351028, %v6346
        %v6356 = vshrl.u32 2102212464, %v6347
        %v6357 = vor.u32 %v6355, %v6356
        %v6358 = vshll.u32 2102212464, %v6346
        %v6359 = vshrl.u32 920167782, %v6347
        %v6360 = vor.u32 %v6358, %v6359
        %v6361 = vshll.u32 920167782, %v6346
        %v6362 = vshrl.u32 1326507024, %v6347
        %v6363 = vor.u32 %v6361, %v6362
        %vm6364 = vcmp.lt.s32.totalorder %v6345, 1
        %vm6365 = vcmp.lt.s32.totalorder %v6345, 2
        %vm6366 = vcmp.lt.s32.totalorder %v6345, 3
        %vm6367 = vcmp.lt.s32.totalorder %v6345, 4
        %v6368 = vsel %vm6364, %v6348, %v6351
        %v6369 = vsel %vm6367, %v6357, 2102212464
        %v6370 = vsel %vm6366, %v6354, %v6369
        %v6371 = vsel %vm6365, %v6368, %v6370
        %v6372 = vsel %vm6364, %v6351, %v6354
        %v6373 = vsel %vm6367, %v6360, 920167782
        %v6374 = vsel %vm6366, %v6357, %v6373
        %v6375 = vsel %vm6365, %v6372, %v6374
        %v6376 = vsel %vm6364, %v6354, %v6357
        %v6377 = vsel %vm6367, %v6363, 1326507024
        %v6378 = vsel %vm6366, %v6360, %v6377
        %v6379 = vsel %vm6365, %v6376, %v6378
        %v6380 = vshll.u32 %v6340, 8
        %v6381 = vmul.u32.u64.compose %v6380, %v6379
        %v6382 = vextract.low.u32 %v6381
        %v6383 = vextract.high.u32 %v6381
        %v6384 = vmul.u32.u64.compose %v6380, %v6375
        %v6385 = vextract.low.u32 %v6384
        %v6386 = vextract.high.u32 %v6384
        %v6387 = vmul.u32 %v6380, %v6371
        %v6388 = vadd.s32 %v6383, %v6385
        %vm6389 = vc.u32 %v6383, %v6385
        %v6390 = vadd.s32 %v6386, 1
        %v6391 = vsel %vm6389, %v6390, %v6386
        %v6392 = vadd.s32 %v6387, %v6391
        %v6393 = vadd.s32 %v6392, 536870912
        %v6394 = vshrl.u32 %v6393, 30
        %v6395 = vshll.u32 %v6394, 30
        %v6396 = vsub.s32 %v6392, %v6395
        %vm6397 = vcmp.lt.s32.totalorder %v6396, 0
        %v6398 = vsub.s32 0, %v6396
        %v6399 = vsel %vm6397, %v6398, %v6396
        %v6400 = vclz %v6399
        %v6401 = vsub.s32 %v6400, 2
        %vm6402 = vcmp.gt.s32.totalorder 0, %v6401
        %v6403 = vsel %vm6402, 0, %v6401
        %v6404 = vsub.s32 32, %v6403
        %v6405 = vshll.u32 %v6396, %v6403
        %v6406 = vshrl.u32 %v6388, %v6404
        %v6407 = vor.u32 %v6405, %v6406
        %v6408 = vsub.s32 4294967266, %v6403
        %v6409 = vadd.s32 %v6408, 127
        %v6410 = vshll.u32 %v6409, 23
        %v6411 = vor.u32 4788187, %v6410
        %v6412 = vand.u32 2147483647, %v6411
        %v6414 = vcvt.s32.f32 %v6407
        %v6415 = vmul.f32 %v6414, %v6412
        %v6416 = vxor.u32 %v6415, 2147483648
        %v6417 = vsel %vm6334, %v6416, %v6415
        %v6418 = vsub.s32 4, %v6394
        %v6419 = vsel %vm6334, %v6418, %v6394
        %v6420 = vsel %vm6333, %v658, %v6417
        %v6421 = vsel %vm6333, 0, %v6419
        %v6422 = vcosq.f32.pop %v6420
        %v6423 = vsinq.f32.pop %v6420
        %vm6424 = vweird.f32 %v658
        %v6425 = vand.u32 %v6421, 3
        %vm6426 = vcmp.lt.s32.totalorder %v6425, 2
        %vm6427 = vcmp.eq.s32.totalorder %v6425, 0
        %v6428 = vxor.u32 %v6423, 2147483648
        %v6429 = vsel %vm6427, %v6422, %v6428
        %vm6430 = vcmp.eq.s32.totalorder %v6425, 2
        %v6431 = vxor.u32 %v6422, 2147483648
        %v6432 = vsel %vm6430, %v6431, %v6423
        %v6433 = vsel %vm6426, %v6429, %v6432
        %v6434 = vsel %vm6424, nan, %v6433
        %v6435 = vand.u32 2147483647, %v659
        %vm6436 = vcmp.le.f32.partialorder %v6435, 0.7853982
        %vm6437 = vcmp.lt.s32.totalorder %v659, 0
        %v6438 = vand.u32 %v659, 2139095040
        %v6439 = vshrl.u32 %v6438, 23
        %v6440 = vsub.s32 %v6439, 127
        %v6441 = vand.u32 2147483647, %v659
        %v6442 = vand.u32 %v6441, 8388607
        %v6443 = vor.u32 %v6442, 8388608
        %v6444 = vsub.s32 0, %v6443
        %v6445 = vadd.s32 %v6440, 1
        %vm6446 = vcmp.gt.s32.totalorder %v6445, 0
        %v6447 = vsel %vm6446, %v6445, 0
        %v6448 = vshrl.u32 %v6447, 5
        %v6449 = vand.u32 %v6447, 31
        %v6450 = vsub.s32 32, %v6449
        %v6451 = vshrl.u32 683565275, %v6450
        %v6452 = vshll.u32 683565275, %v6449
        %v6453 = vshrl.u32 2475754826, %v6450
        %v6454 = vor.u32 %v6452, %v6453
        %v6455 = vshll.u32 2475754826, %v6449
        %v6456 = vshrl.u32 2131351028, %v6450
        %v6457 = vor.u32 %v6455, %v6456
        %v6458 = vshll.u32 2131351028, %v6449
        %v6459 = vshrl.u32 2102212464, %v6450
        %v6460 = vor.u32 %v6458, %v6459
        %v6461 = vshll.u32 2102212464, %v6449
        %v6462 = vshrl.u32 920167782, %v6450
        %v6463 = vor.u32 %v6461, %v6462
        %v6464 = vshll.u32 920167782, %v6449
        %v6465 = vshrl.u32 1326507024, %v6450
        %v6466 = vor.u32 %v6464, %v6465
        %vm6467 = vcmp.lt.s32.totalorder %v6448, 1
        %vm6468 = vcmp.lt.s32.totalorder %v6448, 2
        %vm6469 = vcmp.lt.s32.totalorder %v6448, 3
        %vm6470 = vcmp.lt.s32.totalorder %v6448, 4
        %v6471 = vsel %vm6467, %v6451, %v6454
        %v6472 = vsel %vm6470, %v6460, 2102212464
        %v6473 = vsel %vm6469, %v6457, %v6472
        %v6474 = vsel %vm6468, %v6471, %v6473
        %v6475 = vsel %vm6467, %v6454, %v6457
        %v6476 = vsel %vm6470, %v6463, 920167782
        %v6477 = vsel %vm6469, %v6460, %v6476
        %v6478 = vsel %vm6468, %v6475, %v6477
        %v6479 = vsel %vm6467, %v6457, %v6460
        %v6480 = vsel %vm6470, %v6466, 1326507024
        %v6481 = vsel %vm6469, %v6463, %v6480
        %v6482 = vsel %vm6468, %v6479, %v6481
        %v6483 = vshll.u32 %v6443, 8
        %v6484 = vmul.u32.u64.compose %v6483, %v6482
        %v6485 = vextract.low.u32 %v6484
        %v6486 = vextract.high.u32 %v6484
        %v6487 = vmul.u32.u64.compose %v6483, %v6478
        %v6488 = vextract.low.u32 %v6487
        %v6489 = vextract.high.u32 %v6487
        %v6490 = vmul.u32 %v6483, %v6474
        %v6491 = vadd.s32 %v6486, %v6488
        %vm6492 = vc.u32 %v6486, %v6488
        %v6493 = vadd.s32 %v6489, 1
        %v6494 = vsel %vm6492, %v6493, %v6489
        %v6495 = vadd.s32 %v6490, %v6494
        %v6496 = vadd.s32 %v6495, 536870912
        %v6497 = vshrl.u32 %v6496, 30
        %v6498 = vshll.u32 %v6497, 30
        %v6499 = vsub.s32 %v6495, %v6498
        %vm6500 = vcmp.lt.s32.totalorder %v6499, 0
        %v6501 = vsub.s32 0, %v6499
        %v6502 = vsel %vm6500, %v6501, %v6499
        %v6503 = vclz %v6502
        %v6504 = vsub.s32 %v6503, 2
        %vm6505 = vcmp.gt.s32.totalorder 0, %v6504
        %v6506 = vsel %vm6505, 0, %v6504
        %v6507 = vsub.s32 32, %v6506
        %v6508 = vshll.u32 %v6499, %v6506
        %v6509 = vshrl.u32 %v6491, %v6507
        %v6510 = vor.u32 %v6508, %v6509
        %v6511 = vsub.s32 4294967266, %v6506
        %v6512 = vadd.s32 %v6511, 127
        %v6513 = vshll.u32 %v6512, 23
        %v6514 = vor.u32 4788187, %v6513
        %v6515 = vand.u32 2147483647, %v6514
        %v6517 = vcvt.s32.f32 %v6510
        %v6518 = vmul.f32 %v6517, %v6515
        %v6519 = vxor.u32 %v6518, 2147483648
        %v6520 = vsel %vm6437, %v6519, %v6518
        %v6521 = vsub.s32 4, %v6497
        %v6522 = vsel %vm6437, %v6521, %v6497
        %v6523 = vsel %vm6436, %v659, %v6520
        %v6524 = vsel %vm6436, 0, %v6522
        %v6525 = vcosq.f32.pop %v6523
        %v6526 = vsinq.f32.pop %v6523
        %vm6527 = vweird.f32 %v659
        %v6528 = vand.u32 %v6524, 3
        %vm6529 = vcmp.lt.s32.totalorder %v6528, 2
        %vm6530 = vcmp.eq.s32.totalorder %v6528, 0
        %v6531 = vxor.u32 %v6526, 2147483648
        %v6532 = vsel %vm6530, %v6525, %v6531
        %vm6533 = vcmp.eq.s32.totalorder %v6528, 2
        %v6534 = vxor.u32 %v6525, 2147483648
        %v6535 = vsel %vm6533, %v6534, %v6526
        %v6536 = vsel %vm6529, %v6532, %v6535
        %v6537 = vsel %vm6527, nan, %v6536
        %v6538 = vand.u32 2147483647, %v660
        %vm6539 = vcmp.le.f32.partialorder %v6538, 0.7853982
        %vm6540 = vcmp.lt.s32.totalorder %v660, 0
        %v6541 = vand.u32 %v660, 2139095040
        %v6542 = vshrl.u32 %v6541, 23
        %v6543 = vsub.s32 %v6542, 127
        %v6544 = vand.u32 2147483647, %v660
        %v6545 = vand.u32 %v6544, 8388607
        %v6546 = vor.u32 %v6545, 8388608
        %v6547 = vsub.s32 0, %v6546
        %v6548 = vadd.s32 %v6543, 1
        %vm6549 = vcmp.gt.s32.totalorder %v6548, 0
        %v6550 = vsel %vm6549, %v6548, 0
        %v6551 = vshrl.u32 %v6550, 5
        %v6552 = vand.u32 %v6550, 31
        %v6553 = vsub.s32 32, %v6552
        %v6554 = vshrl.u32 683565275, %v6553
        %v6555 = vshll.u32 683565275, %v6552
        %v6556 = vshrl.u32 2475754826, %v6553
        %v6557 = vor.u32 %v6555, %v6556
        %v6558 = vshll.u32 2475754826, %v6552
        %v6559 = vshrl.u32 2131351028, %v6553
        %v6560 = vor.u32 %v6558, %v6559
        %v6561 = vshll.u32 2131351028, %v6552
        %v6562 = vshrl.u32 2102212464, %v6553
        %v6563 = vor.u32 %v6561, %v6562
        %v6564 = vshll.u32 2102212464, %v6552
        %v6565 = vshrl.u32 920167782, %v6553
        %v6566 = vor.u32 %v6564, %v6565
        %v6567 = vshll.u32 920167782, %v6552
        %v6568 = vshrl.u32 1326507024, %v6553
        %v6569 = vor.u32 %v6567, %v6568
        %vm6570 = vcmp.lt.s32.totalorder %v6551, 1
        %vm6571 = vcmp.lt.s32.totalorder %v6551, 2
        %vm6572 = vcmp.lt.s32.totalorder %v6551, 3
        %vm6573 = vcmp.lt.s32.totalorder %v6551, 4
        %v6574 = vsel %vm6570, %v6554, %v6557
        %v6575 = vsel %vm6573, %v6563, 2102212464
        %v6576 = vsel %vm6572, %v6560, %v6575
        %v6577 = vsel %vm6571, %v6574, %v6576
        %v6578 = vsel %vm6570, %v6557, %v6560
        %v6579 = vsel %vm6573, %v6566, 920167782
        %v6580 = vsel %vm6572, %v6563, %v6579
        %v6581 = vsel %vm6571, %v6578, %v6580
        %v6582 = vsel %vm6570, %v6560, %v6563
        %v6583 = vsel %vm6573, %v6569, 1326507024
        %v6584 = vsel %vm6572, %v6566, %v6583
        %v6585 = vsel %vm6571, %v6582, %v6584
        %v6586 = vshll.u32 %v6546, 8
        %v6587 = vmul.u32.u64.compose %v6586, %v6585
        %v6588 = vextract.low.u32 %v6587
        %v6589 = vextract.high.u32 %v6587
        %v6590 = vmul.u32.u64.compose %v6586, %v6581
        %v6591 = vextract.low.u32 %v6590
        %v6592 = vextract.high.u32 %v6590
        %v6593 = vmul.u32 %v6586, %v6577
        %v6594 = vadd.s32 %v6589, %v6591
        %vm6595 = vc.u32 %v6589, %v6591
        %v6596 = vadd.s32 %v6592, 1
        %v6597 = vsel %vm6595, %v6596, %v6592
        %v6598 = vadd.s32 %v6593, %v6597
        %v6599 = vadd.s32 %v6598, 536870912
        %v6600 = vshrl.u32 %v6599, 30
        %v6601 = vshll.u32 %v6600, 30
        %v6602 = vsub.s32 %v6598, %v6601
        %vm6603 = vcmp.lt.s32.totalorder %v6602, 0
        %v6604 = vsub.s32 0, %v6602
        %v6605 = vsel %vm6603, %v6604, %v6602
        %v6606 = vclz %v6605
        %v6607 = vsub.s32 %v6606, 2
        %vm6608 = vcmp.gt.s32.totalorder 0, %v6607
        %v6609 = vsel %vm6608, 0, %v6607
        %v6610 = vsub.s32 32, %v6609
        %v6611 = vshll.u32 %v6602, %v6609
        %v6612 = vshrl.u32 %v6594, %v6610
        %v6613 = vor.u32 %v6611, %v6612
        %v6614 = vsub.s32 4294967266, %v6609
        %v6615 = vadd.s32 %v6614, 127
        %v6616 = vshll.u32 %v6615, 23
        %v6617 = vor.u32 4788187, %v6616
        %v6618 = vand.u32 2147483647, %v6617
        %v6620 = vcvt.s32.f32 %v6613
        %v6621 = vmul.f32 %v6620, %v6618
        %v6622 = vxor.u32 %v6621, 2147483648
        %v6623 = vsel %vm6540, %v6622, %v6621
        %v6624 = vsub.s32 4, %v6600
        %v6625 = vsel %vm6540, %v6624, %v6600
        %v6626 = vsel %vm6539, %v660, %v6623
        %v6627 = vsel %vm6539, 0, %v6625
        %v6628 = vcosq.f32.pop %v6626
        %v6629 = vsinq.f32.pop %v6626
        %vm6630 = vweird.f32 %v660
        %v6631 = vand.u32 %v6627, 3
        %vm6632 = vcmp.lt.s32.totalorder %v6631, 2
        %vm6633 = vcmp.eq.s32.totalorder %v6631, 0
        %v6634 = vxor.u32 %v6629, 2147483648
        %v6635 = vsel %vm6633, %v6628, %v6634
        %vm6636 = vcmp.eq.s32.totalorder %v6631, 2
        %v6637 = vxor.u32 %v6628, 2147483648
        %v6638 = vsel %vm6636, %v6637, %v6629
        %v6639 = vsel %vm6632, %v6635, %v6638
        %v6640 = vsel %vm6630, nan, %v6639
        %v6641 = vand.u32 2147483647, %v661
        %vm6642 = vcmp.le.f32.partialorder %v6641, 0.7853982
        %vm6643 = vcmp.lt.s32.totalorder %v661, 0
        %v6644 = vand.u32 %v661, 2139095040
        %v6645 = vshrl.u32 %v6644, 23
        %v6646 = vsub.s32 %v6645, 127
        %v6647 = vand.u32 2147483647, %v661
        %v6648 = vand.u32 %v6647, 8388607
        %v6649 = vor.u32 %v6648, 8388608
        %v6650 = vsub.s32 0, %v6649
        %v6651 = vadd.s32 %v6646, 1
        %vm6652 = vcmp.gt.s32.totalorder %v6651, 0
        %v6653 = vsel %vm6652, %v6651, 0
        %v6654 = vshrl.u32 %v6653, 5
        %v6655 = vand.u32 %v6653, 31
        %v6656 = vsub.s32 32, %v6655
        %v6657 = vshrl.u32 683565275, %v6656
        %v6658 = vshll.u32 683565275, %v6655
        %v6659 = vshrl.u32 2475754826, %v6656
        %v6660 = vor.u32 %v6658, %v6659
        %v6661 = vshll.u32 2475754826, %v6655
        %v6662 = vshrl.u32 2131351028, %v6656
        %v6663 = vor.u32 %v6661, %v6662
        %v6664 = vshll.u32 2131351028, %v6655
        %v6665 = vshrl.u32 2102212464, %v6656
        %v6666 = vor.u32 %v6664, %v6665
        %v6667 = vshll.u32 2102212464, %v6655
        %v6668 = vshrl.u32 920167782, %v6656
        %v6669 = vor.u32 %v6667, %v6668
        %v6670 = vshll.u32 920167782, %v6655
        %v6671 = vshrl.u32 1326507024, %v6656
        %v6672 = vor.u32 %v6670, %v6671
        %vm6673 = vcmp.lt.s32.totalorder %v6654, 1
        %vm6674 = vcmp.lt.s32.totalorder %v6654, 2
        %vm6675 = vcmp.lt.s32.totalorder %v6654, 3
        %vm6676 = vcmp.lt.s32.totalorder %v6654, 4
        %v6677 = vsel %vm6673, %v6657, %v6660
        %v6678 = vsel %vm6676, %v6666, 2102212464
        %v6679 = vsel %vm6675, %v6663, %v6678
        %v6680 = vsel %vm6674, %v6677, %v6679
        %v6681 = vsel %vm6673, %v6660, %v6663
        %v6682 = vsel %vm6676, %v6669, 920167782
        %v6683 = vsel %vm6675, %v6666, %v6682
        %v6684 = vsel %vm6674, %v6681, %v6683
        %v6685 = vsel %vm6673, %v6663, %v6666
        %v6686 = vsel %vm6676, %v6672, 1326507024
        %v6687 = vsel %vm6675, %v6669, %v6686
        %v6688 = vsel %vm6674, %v6685, %v6687
        %v6689 = vshll.u32 %v6649, 8
        %v6690 = vmul.u32.u64.compose %v6689, %v6688
        %v6691 = vextract.low.u32 %v6690
        %v6692 = vextract.high.u32 %v6690
        %v6693 = vmul.u32.u64.compose %v6689, %v6684
        %v6694 = vextract.low.u32 %v6693
        %v6695 = vextract.high.u32 %v6693
        %v6696 = vmul.u32 %v6689, %v6680
        %v6697 = vadd.s32 %v6692, %v6694
        %vm6698 = vc.u32 %v6692, %v6694
        %v6699 = vadd.s32 %v6695, 1
        %v6700 = vsel %vm6698, %v6699, %v6695
        %v6701 = vadd.s32 %v6696, %v6700
        %v6702 = vadd.s32 %v6701, 536870912
        %v6703 = vshrl.u32 %v6702, 30
        %v6704 = vshll.u32 %v6703, 30
        %v6705 = vsub.s32 %v6701, %v6704
        %vm6706 = vcmp.lt.s32.totalorder %v6705, 0
        %v6707 = vsub.s32 0, %v6705
        %v6708 = vsel %vm6706, %v6707, %v6705
        %v6709 = vclz %v6708
        %v6710 = vsub.s32 %v6709, 2
        %vm6711 = vcmp.gt.s32.totalorder 0, %v6710
        %v6712 = vsel %vm6711, 0, %v6710
        %v6713 = vsub.s32 32, %v6712
        %v6714 = vshll.u32 %v6705, %v6712
        %v6715 = vshrl.u32 %v6697, %v6713
        %v6716 = vor.u32 %v6714, %v6715
        %v6717 = vsub.s32 4294967266, %v6712
        %v6718 = vadd.s32 %v6717, 127
        %v6719 = vshll.u32 %v6718, 23
        %v6720 = vor.u32 4788187, %v6719
        %v6721 = vand.u32 2147483647, %v6720
        %v6723 = vcvt.s32.f32 %v6716
        %v6724 = vmul.f32 %v6723, %v6721
        %v6725 = vxor.u32 %v6724, 2147483648
        %v6726 = vsel %vm6643, %v6725, %v6724
        %v6727 = vsub.s32 4, %v6703
        %v6728 = vsel %vm6643, %v6727, %v6703
        %v6729 = vsel %vm6642, %v661, %v6726
        %v6730 = vsel %vm6642, 0, %v6728
        %v6731 = vcosq.f32.pop %v6729
        %v6732 = vsinq.f32.pop %v6729
        %vm6733 = vweird.f32 %v661
        %v6734 = vand.u32 %v6730, 3
        %vm6735 = vcmp.lt.s32.totalorder %v6734, 2
        %vm6736 = vcmp.eq.s32.totalorder %v6734, 0
        %v6737 = vxor.u32 %v6732, 2147483648
        %v6738 = vsel %vm6736, %v6731, %v6737
        %vm6739 = vcmp.eq.s32.totalorder %v6734, 2
        %v6740 = vxor.u32 %v6731, 2147483648
        %v6741 = vsel %vm6739, %v6740, %v6732
        %v6742 = vsel %vm6735, %v6738, %v6741
        %v6743 = vsel %vm6733, nan, %v6742
        %v6744 = vand.u32 2147483647, %v662
        %vm6745 = vcmp.le.f32.partialorder %v6744, 0.7853982
        %vm6746 = vcmp.lt.s32.totalorder %v662, 0
        %v6747 = vand.u32 %v662, 2139095040
        %v6748 = vshrl.u32 %v6747, 23
        %v6749 = vsub.s32 %v6748, 127
        %v6750 = vand.u32 2147483647, %v662
        %v6751 = vand.u32 %v6750, 8388607
        %v6752 = vor.u32 %v6751, 8388608
        %v6753 = vsub.s32 0, %v6752
        %v6754 = vadd.s32 %v6749, 1
        %vm6755 = vcmp.gt.s32.totalorder %v6754, 0
        %v6756 = vsel %vm6755, %v6754, 0
        %v6757 = vshrl.u32 %v6756, 5
        %v6758 = vand.u32 %v6756, 31
        %v6759 = vsub.s32 32, %v6758
        %v6760 = vshrl.u32 683565275, %v6759
        %v6761 = vshll.u32 683565275, %v6758
        %v6762 = vshrl.u32 2475754826, %v6759
        %v6763 = vor.u32 %v6761, %v6762
        %v6764 = vshll.u32 2475754826, %v6758
        %v6765 = vshrl.u32 2131351028, %v6759
        %v6766 = vor.u32 %v6764, %v6765
        %v6767 = vshll.u32 2131351028, %v6758
        %v6768 = vshrl.u32 2102212464, %v6759
        %v6769 = vor.u32 %v6767, %v6768
        %v6770 = vshll.u32 2102212464, %v6758
        %v6771 = vshrl.u32 920167782, %v6759
        %v6772 = vor.u32 %v6770, %v6771
        %v6773 = vshll.u32 920167782, %v6758
        %v6774 = vshrl.u32 1326507024, %v6759
        %v6775 = vor.u32 %v6773, %v6774
        %vm6776 = vcmp.lt.s32.totalorder %v6757, 1
        %vm6777 = vcmp.lt.s32.totalorder %v6757, 2
        %vm6778 = vcmp.lt.s32.totalorder %v6757, 3
        %vm6779 = vcmp.lt.s32.totalorder %v6757, 4
        %v6780 = vsel %vm6776, %v6760, %v6763
        %v6781 = vsel %vm6779, %v6769, 2102212464
        %v6782 = vsel %vm6778, %v6766, %v6781
        %v6783 = vsel %vm6777, %v6780, %v6782
        %v6784 = vsel %vm6776, %v6763, %v6766
        %v6785 = vsel %vm6779, %v6772, 920167782
        %v6786 = vsel %vm6778, %v6769, %v6785
        %v6787 = vsel %vm6777, %v6784, %v6786
        %v6788 = vsel %vm6776, %v6766, %v6769
        %v6789 = vsel %vm6779, %v6775, 1326507024
        %v6790 = vsel %vm6778, %v6772, %v6789
        %v6791 = vsel %vm6777, %v6788, %v6790
        %v6792 = vshll.u32 %v6752, 8
        %v6793 = vmul.u32.u64.compose %v6792, %v6791
        %v6794 = vextract.low.u32 %v6793
        %v6795 = vextract.high.u32 %v6793
        %v6796 = vmul.u32.u64.compose %v6792, %v6787
        %v6797 = vextract.low.u32 %v6796
        %v6798 = vextract.high.u32 %v6796
        %v6799 = vmul.u32 %v6792, %v6783
        %v6800 = vadd.s32 %v6795, %v6797
        %vm6801 = vc.u32 %v6795, %v6797
        %v6802 = vadd.s32 %v6798, 1
        %v6803 = vsel %vm6801, %v6802, %v6798
        %v6804 = vadd.s32 %v6799, %v6803
        %v6805 = vadd.s32 %v6804, 536870912
        %v6806 = vshrl.u32 %v6805, 30
        %v6807 = vshll.u32 %v6806, 30
        %v6808 = vsub.s32 %v6804, %v6807
        %vm6809 = vcmp.lt.s32.totalorder %v6808, 0
        %v6810 = vsub.s32 0, %v6808
        %v6811 = vsel %vm6809, %v6810, %v6808
        %v6812 = vclz %v6811
        %v6813 = vsub.s32 %v6812, 2
        %vm6814 = vcmp.gt.s32.totalorder 0, %v6813
        %v6815 = vsel %vm6814, 0, %v6813
        %v6816 = vsub.s32 32, %v6815
        %v6817 = vshll.u32 %v6808, %v6815
        %v6818 = vshrl.u32 %v6800, %v6816
        %v6819 = vor.u32 %v6817, %v6818
        %v6820 = vsub.s32 4294967266, %v6815
        %v6821 = vadd.s32 %v6820, 127
        %v6822 = vshll.u32 %v6821, 23
        %v6823 = vor.u32 4788187, %v6822
        %v6824 = vand.u32 2147483647, %v6823
        %v6826 = vcvt.s32.f32 %v6819
        %v6827 = vmul.f32 %v6826, %v6824
        %v6828 = vxor.u32 %v6827, 2147483648
        %v6829 = vsel %vm6746, %v6828, %v6827
        %v6830 = vsub.s32 4, %v6806
        %v6831 = vsel %vm6746, %v6830, %v6806
        %v6832 = vsel %vm6745, %v662, %v6829
        %v6833 = vsel %vm6745, 0, %v6831
        %v6834 = vcosq.f32.pop %v6832
        %v6835 = vsinq.f32.pop %v6832
        %vm6836 = vweird.f32 %v662
        %v6837 = vand.u32 %v6833, 3
        %vm6838 = vcmp.lt.s32.totalorder %v6837, 2
        %vm6839 = vcmp.eq.s32.totalorder %v6837, 0
        %v6840 = vxor.u32 %v6835, 2147483648
        %v6841 = vsel %vm6839, %v6834, %v6840
        %vm6842 = vcmp.eq.s32.totalorder %v6837, 2
        %v6843 = vxor.u32 %v6834, 2147483648
        %v6844 = vsel %vm6842, %v6843, %v6835
        %v6845 = vsel %vm6838, %v6841, %v6844
        %v6846 = vsel %vm6836, nan, %v6845
        %v6847 = vand.u32 2147483647, %v663
        %vm6848 = vcmp.le.f32.partialorder %v6847, 0.7853982
        %vm6849 = vcmp.lt.s32.totalorder %v663, 0
        %v6850 = vand.u32 %v663, 2139095040
        %v6851 = vshrl.u32 %v6850, 23
        %v6852 = vsub.s32 %v6851, 127
        %v6853 = vand.u32 2147483647, %v663
        %v6854 = vand.u32 %v6853, 8388607
        %v6855 = vor.u32 %v6854, 8388608
        %v6856 = vsub.s32 0, %v6855
        %v6857 = vadd.s32 %v6852, 1
        %vm6858 = vcmp.gt.s32.totalorder %v6857, 0
        %v6859 = vsel %vm6858, %v6857, 0
        %v6860 = vshrl.u32 %v6859, 5
        %v6861 = vand.u32 %v6859, 31
        %v6862 = vsub.s32 32, %v6861
        %v6863 = vshrl.u32 683565275, %v6862
        %v6864 = vshll.u32 683565275, %v6861
        %v6865 = vshrl.u32 2475754826, %v6862
        %v6866 = vor.u32 %v6864, %v6865
        %v6867 = vshll.u32 2475754826, %v6861
        %v6868 = vshrl.u32 2131351028, %v6862
        %v6869 = vor.u32 %v6867, %v6868
        %v6870 = vshll.u32 2131351028, %v6861
        %v6871 = vshrl.u32 2102212464, %v6862
        %v6872 = vor.u32 %v6870, %v6871
        %v6873 = vshll.u32 2102212464, %v6861
        %v6874 = vshrl.u32 920167782, %v6862
        %v6875 = vor.u32 %v6873, %v6874
        %v6876 = vshll.u32 920167782, %v6861
        %v6877 = vshrl.u32 1326507024, %v6862
        %v6878 = vor.u32 %v6876, %v6877
        %vm6879 = vcmp.lt.s32.totalorder %v6860, 1
        %vm6880 = vcmp.lt.s32.totalorder %v6860, 2
        %vm6881 = vcmp.lt.s32.totalorder %v6860, 3
        %vm6882 = vcmp.lt.s32.totalorder %v6860, 4
        %v6883 = vsel %vm6879, %v6863, %v6866
        %v6884 = vsel %vm6882, %v6872, 2102212464
        %v6885 = vsel %vm6881, %v6869, %v6884
        %v6886 = vsel %vm6880, %v6883, %v6885
        %v6887 = vsel %vm6879, %v6866, %v6869
        %v6888 = vsel %vm6882, %v6875, 920167782
        %v6889 = vsel %vm6881, %v6872, %v6888
        %v6890 = vsel %vm6880, %v6887, %v6889
        %v6891 = vsel %vm6879, %v6869, %v6872
        %v6892 = vsel %vm6882, %v6878, 1326507024
        %v6893 = vsel %vm6881, %v6875, %v6892
        %v6894 = vsel %vm6880, %v6891, %v6893
        %v6895 = vshll.u32 %v6855, 8
        %v6896 = vmul.u32.u64.compose %v6895, %v6894
        %v6897 = vextract.low.u32 %v6896
        %v6898 = vextract.high.u32 %v6896
        %v6899 = vmul.u32.u64.compose %v6895, %v6890
        %v6900 = vextract.low.u32 %v6899
        %v6901 = vextract.high.u32 %v6899
        %v6902 = vmul.u32 %v6895, %v6886
        %v6903 = vadd.s32 %v6898, %v6900
        %vm6904 = vc.u32 %v6898, %v6900
        %v6905 = vadd.s32 %v6901, 1
        %v6906 = vsel %vm6904, %v6905, %v6901
        %v6907 = vadd.s32 %v6902, %v6906
        %v6908 = vadd.s32 %v6907, 536870912
        %v6909 = vshrl.u32 %v6908, 30
        %v6910 = vshll.u32 %v6909, 30
        %v6911 = vsub.s32 %v6907, %v6910
        %vm6912 = vcmp.lt.s32.totalorder %v6911, 0
        %v6913 = vsub.s32 0, %v6911
        %v6914 = vsel %vm6912, %v6913, %v6911
        %v6915 = vclz %v6914
        %v6916 = vsub.s32 %v6915, 2
        %vm6917 = vcmp.gt.s32.totalorder 0, %v6916
        %v6918 = vsel %vm6917, 0, %v6916
        %v6919 = vsub.s32 32, %v6918
        %v6920 = vshll.u32 %v6911, %v6918
        %v6921 = vshrl.u32 %v6903, %v6919
        %v6922 = vor.u32 %v6920, %v6921
        %v6923 = vsub.s32 4294967266, %v6918
        %v6924 = vadd.s32 %v6923, 127
        %v6925 = vshll.u32 %v6924, 23
        %v6926 = vor.u32 4788187, %v6925
        %v6927 = vand.u32 2147483647, %v6926
        %v6929 = vcvt.s32.f32 %v6922
        %v6930 = vmul.f32 %v6929, %v6927
        %v6931 = vxor.u32 %v6930, 2147483648
        %v6932 = vsel %vm6849, %v6931, %v6930
        %v6933 = vsub.s32 4, %v6909
        %v6934 = vsel %vm6849, %v6933, %v6909
        %v6935 = vsel %vm6848, %v663, %v6932
        %v6936 = vsel %vm6848, 0, %v6934
        %v6937 = vcosq.f32.pop %v6935
        %v6938 = vsinq.f32.pop %v6935
        %vm6939 = vweird.f32 %v663
        %v6940 = vand.u32 %v6936, 3
        %vm6941 = vcmp.lt.s32.totalorder %v6940, 2
        %vm6942 = vcmp.eq.s32.totalorder %v6940, 0
        %v6943 = vxor.u32 %v6938, 2147483648
        %v6944 = vsel %vm6942, %v6937, %v6943
        %vm6945 = vcmp.eq.s32.totalorder %v6940, 2
        %v6946 = vxor.u32 %v6937, 2147483648
        %v6947 = vsel %vm6945, %v6946, %v6938
        %v6948 = vsel %vm6941, %v6944, %v6947
        %v6949 = vsel %vm6939, nan, %v6948
        %v6950 = vand.u32 2147483647, %v664
        %vm6951 = vcmp.le.f32.partialorder %v6950, 0.7853982
        %vm6952 = vcmp.lt.s32.totalorder %v664, 0
        %v6953 = vand.u32 %v664, 2139095040
        %v6954 = vshrl.u32 %v6953, 23
        %v6955 = vsub.s32 %v6954, 127
        %v6956 = vand.u32 2147483647, %v664
        %v6957 = vand.u32 %v6956, 8388607
        %v6958 = vor.u32 %v6957, 8388608
        %v6959 = vsub.s32 0, %v6958
        %v6960 = vadd.s32 %v6955, 1
        %vm6961 = vcmp.gt.s32.totalorder %v6960, 0
        %v6962 = vsel %vm6961, %v6960, 0
        %v6963 = vshrl.u32 %v6962, 5
        %v6964 = vand.u32 %v6962, 31
        %v6965 = vsub.s32 32, %v6964
        %v6966 = vshrl.u32 683565275, %v6965
        %v6967 = vshll.u32 683565275, %v6964
        %v6968 = vshrl.u32 2475754826, %v6965
        %v6969 = vor.u32 %v6967, %v6968
        %v6970 = vshll.u32 2475754826, %v6964
        %v6971 = vshrl.u32 2131351028, %v6965
        %v6972 = vor.u32 %v6970, %v6971
        %v6973 = vshll.u32 2131351028, %v6964
        %v6974 = vshrl.u32 2102212464, %v6965
        %v6975 = vor.u32 %v6973, %v6974
        %v6976 = vshll.u32 2102212464, %v6964
        %v6977 = vshrl.u32 920167782, %v6965
        %v6978 = vor.u32 %v6976, %v6977
        %v6979 = vshll.u32 920167782, %v6964
        %v6980 = vshrl.u32 1326507024, %v6965
        %v6981 = vor.u32 %v6979, %v6980
        %vm6982 = vcmp.lt.s32.totalorder %v6963, 1
        %vm6983 = vcmp.lt.s32.totalorder %v6963, 2
        %vm6984 = vcmp.lt.s32.totalorder %v6963, 3
        %vm6985 = vcmp.lt.s32.totalorder %v6963, 4
        %v6986 = vsel %vm6982, %v6966, %v6969
        %v6987 = vsel %vm6985, %v6975, 2102212464
        %v6988 = vsel %vm6984, %v6972, %v6987
        %v6989 = vsel %vm6983, %v6986, %v6988
        %v6990 = vsel %vm6982, %v6969, %v6972
        %v6991 = vsel %vm6985, %v6978, 920167782
        %v6992 = vsel %vm6984, %v6975, %v6991
        %v6993 = vsel %vm6983, %v6990, %v6992
        %v6994 = vsel %vm6982, %v6972, %v6975
        %v6995 = vsel %vm6985, %v6981, 1326507024
        %v6996 = vsel %vm6984, %v6978, %v6995
        %v6997 = vsel %vm6983, %v6994, %v6996
        %v6998 = vshll.u32 %v6958, 8
        %v6999 = vmul.u32.u64.compose %v6998, %v6997
        %v7000 = vextract.low.u32 %v6999
        %v7001 = vextract.high.u32 %v6999
        %v7002 = vmul.u32.u64.compose %v6998, %v6993
        %v7003 = vextract.low.u32 %v7002
        %v7004 = vextract.high.u32 %v7002
        %v7005 = vmul.u32 %v6998, %v6989
        %v7006 = vadd.s32 %v7001, %v7003
        %vm7007 = vc.u32 %v7001, %v7003
        %v7008 = vadd.s32 %v7004, 1
        %v7009 = vsel %vm7007, %v7008, %v7004
        %v7010 = vadd.s32 %v7005, %v7009
        %v7011 = vadd.s32 %v7010, 536870912
        %v7012 = vshrl.u32 %v7011, 30
        %v7013 = vshll.u32 %v7012, 30
        %v7014 = vsub.s32 %v7010, %v7013
        %vm7015 = vcmp.lt.s32.totalorder %v7014, 0
        %v7016 = vsub.s32 0, %v7014
        %v7017 = vsel %vm7015, %v7016, %v7014
        %v7018 = vclz %v7017
        %v7019 = vsub.s32 %v7018, 2
        %vm7020 = vcmp.gt.s32.totalorder 0, %v7019
        %v7021 = vsel %vm7020, 0, %v7019
        %v7022 = vsub.s32 32, %v7021
        %v7023 = vshll.u32 %v7014, %v7021
        %v7024 = vshrl.u32 %v7006, %v7022
        %v7025 = vor.u32 %v7023, %v7024
        %v7026 = vsub.s32 4294967266, %v7021
        %v7027 = vadd.s32 %v7026, 127
        %v7028 = vshll.u32 %v7027, 23
        %v7029 = vor.u32 4788187, %v7028
        %v7030 = vand.u32 2147483647, %v7029
        %v7032 = vcvt.s32.f32 %v7025
        %v7033 = vmul.f32 %v7032, %v7030
        %v7034 = vxor.u32 %v7033, 2147483648
        %v7035 = vsel %vm6952, %v7034, %v7033
        %v7036 = vsub.s32 4, %v7012
        %v7037 = vsel %vm6952, %v7036, %v7012
        %v7038 = vsel %vm6951, %v664, %v7035
        %v7039 = vsel %vm6951, 0, %v7037
        %v7040 = vcosq.f32.pop %v7038
        %v7041 = vsinq.f32.pop %v7038
        %vm7042 = vweird.f32 %v664
        %v7043 = vand.u32 %v7039, 3
        %vm7044 = vcmp.lt.s32.totalorder %v7043, 2
        %vm7045 = vcmp.eq.s32.totalorder %v7043, 0
        %v7046 = vxor.u32 %v7041, 2147483648
        %v7047 = vsel %vm7045, %v7040, %v7046
        %vm7048 = vcmp.eq.s32.totalorder %v7043, 2
        %v7049 = vxor.u32 %v7040, 2147483648
        %v7050 = vsel %vm7048, %v7049, %v7041
        %v7051 = vsel %vm7044, %v7047, %v7050
        %v7052 = vsel %vm7042, nan, %v7051
        %v7053 = vand.u32 2147483647, %v665
        %vm7054 = vcmp.le.f32.partialorder %v7053, 0.7853982
        %vm7055 = vcmp.lt.s32.totalorder %v665, 0
        %v7056 = vand.u32 %v665, 2139095040
        %v7057 = vshrl.u32 %v7056, 23
        %v7058 = vsub.s32 %v7057, 127
        %v7059 = vand.u32 2147483647, %v665
        %v7060 = vand.u32 %v7059, 8388607
        %v7061 = vor.u32 %v7060, 8388608
        %v7062 = vsub.s32 0, %v7061
        %v7063 = vadd.s32 %v7058, 1
        %vm7064 = vcmp.gt.s32.totalorder %v7063, 0
        %v7065 = vsel %vm7064, %v7063, 0
        %v7066 = vshrl.u32 %v7065, 5
        %v7067 = vand.u32 %v7065, 31
        %v7068 = vsub.s32 32, %v7067
        %v7069 = vshrl.u32 683565275, %v7068
        %v7070 = vshll.u32 683565275, %v7067
        %v7071 = vshrl.u32 2475754826, %v7068
        %v7072 = vor.u32 %v7070, %v7071
        %v7073 = vshll.u32 2475754826, %v7067
        %v7074 = vshrl.u32 2131351028, %v7068
        %v7075 = vor.u32 %v7073, %v7074
        %v7076 = vshll.u32 2131351028, %v7067
        %v7077 = vshrl.u32 2102212464, %v7068
        %v7078 = vor.u32 %v7076, %v7077
        %v7079 = vshll.u32 2102212464, %v7067
        %v7080 = vshrl.u32 920167782, %v7068
        %v7081 = vor.u32 %v7079, %v7080
        %v7082 = vshll.u32 920167782, %v7067
        %v7083 = vshrl.u32 1326507024, %v7068
        %v7084 = vor.u32 %v7082, %v7083
        %vm7085 = vcmp.lt.s32.totalorder %v7066, 1
        %vm7086 = vcmp.lt.s32.totalorder %v7066, 2
        %vm7087 = vcmp.lt.s32.totalorder %v7066, 3
        %vm7088 = vcmp.lt.s32.totalorder %v7066, 4
        %v7089 = vsel %vm7085, %v7069, %v7072
        %v7090 = vsel %vm7088, %v7078, 2102212464
        %v7091 = vsel %vm7087, %v7075, %v7090
        %v7092 = vsel %vm7086, %v7089, %v7091
        %v7093 = vsel %vm7085, %v7072, %v7075
        %v7094 = vsel %vm7088, %v7081, 920167782
        %v7095 = vsel %vm7087, %v7078, %v7094
        %v7096 = vsel %vm7086, %v7093, %v7095
        %v7097 = vsel %vm7085, %v7075, %v7078
        %v7098 = vsel %vm7088, %v7084, 1326507024
        %v7099 = vsel %vm7087, %v7081, %v7098
        %v7100 = vsel %vm7086, %v7097, %v7099
        %v7101 = vshll.u32 %v7061, 8
        %v7102 = vmul.u32.u64.compose %v7101, %v7100
        %v7103 = vextract.low.u32 %v7102
        %v7104 = vextract.high.u32 %v7102
        %v7105 = vmul.u32.u64.compose %v7101, %v7096
        %v7106 = vextract.low.u32 %v7105
        %v7107 = vextract.high.u32 %v7105
        %v7108 = vmul.u32 %v7101, %v7092
        %v7109 = vadd.s32 %v7104, %v7106
        %vm7110 = vc.u32 %v7104, %v7106
        %v7111 = vadd.s32 %v7107, 1
        %v7112 = vsel %vm7110, %v7111, %v7107
        %v7113 = vadd.s32 %v7108, %v7112
        %v7114 = vadd.s32 %v7113, 536870912
        %v7115 = vshrl.u32 %v7114, 30
        %v7116 = vshll.u32 %v7115, 30
        %v7117 = vsub.s32 %v7113, %v7116
        %vm7118 = vcmp.lt.s32.totalorder %v7117, 0
        %v7119 = vsub.s32 0, %v7117
        %v7120 = vsel %vm7118, %v7119, %v7117
        %v7121 = vclz %v7120
        %v7122 = vsub.s32 %v7121, 2
        %vm7123 = vcmp.gt.s32.totalorder 0, %v7122
        %v7124 = vsel %vm7123, 0, %v7122
        %v7125 = vsub.s32 32, %v7124
        %v7126 = vshll.u32 %v7117, %v7124
        %v7127 = vshrl.u32 %v7109, %v7125
        %v7128 = vor.u32 %v7126, %v7127
        %v7129 = vsub.s32 4294967266, %v7124
        %v7130 = vadd.s32 %v7129, 127
        %v7131 = vshll.u32 %v7130, 23
        %v7132 = vor.u32 4788187, %v7131
        %v7133 = vand.u32 2147483647, %v7132
        %v7135 = vcvt.s32.f32 %v7128
        %v7136 = vmul.f32 %v7135, %v7133
        %v7137 = vxor.u32 %v7136, 2147483648
        %v7138 = vsel %vm7055, %v7137, %v7136
        %v7139 = vsub.s32 4, %v7115
        %v7140 = vsel %vm7055, %v7139, %v7115
        %v7141 = vsel %vm7054, %v665, %v7138
        %v7142 = vsel %vm7054, 0, %v7140
        %v7143 = vcosq.f32.pop %v7141
        %v7144 = vsinq.f32.pop %v7141
        %vm7145 = vweird.f32 %v665
        %v7146 = vand.u32 %v7142, 3
        %vm7147 = vcmp.lt.s32.totalorder %v7146, 2
        %vm7148 = vcmp.eq.s32.totalorder %v7146, 0
        %v7149 = vxor.u32 %v7144, 2147483648
        %v7150 = vsel %vm7148, %v7143, %v7149
        %vm7151 = vcmp.eq.s32.totalorder %v7146, 2
        %v7152 = vxor.u32 %v7143, 2147483648
        %v7153 = vsel %vm7151, %v7152, %v7144
        %v7154 = vsel %vm7147, %v7150, %v7153
        %v7155 = vsel %vm7145, nan, %v7154
        %v7156 = vand.u32 2147483647, %v666
        %vm7157 = vcmp.le.f32.partialorder %v7156, 0.7853982
        %vm7158 = vcmp.lt.s32.totalorder %v666, 0
        %v7159 = vand.u32 %v666, 2139095040
        %v7160 = vshrl.u32 %v7159, 23
        %v7161 = vsub.s32 %v7160, 127
        %v7162 = vand.u32 2147483647, %v666
        %v7163 = vand.u32 %v7162, 8388607
        %v7164 = vor.u32 %v7163, 8388608
        %v7165 = vsub.s32 0, %v7164
        %v7166 = vadd.s32 %v7161, 1
        %vm7167 = vcmp.gt.s32.totalorder %v7166, 0
        %v7168 = vsel %vm7167, %v7166, 0
        %v7169 = vshrl.u32 %v7168, 5
        %v7170 = vand.u32 %v7168, 31
        %v7171 = vsub.s32 32, %v7170
        %v7172 = vshrl.u32 683565275, %v7171
        %v7173 = vshll.u32 683565275, %v7170
        %v7174 = vshrl.u32 2475754826, %v7171
        %v7175 = vor.u32 %v7173, %v7174
        %v7176 = vshll.u32 2475754826, %v7170
        %v7177 = vshrl.u32 2131351028, %v7171
        %v7178 = vor.u32 %v7176, %v7177
        %v7179 = vshll.u32 2131351028, %v7170
        %v7180 = vshrl.u32 2102212464, %v7171
        %v7181 = vor.u32 %v7179, %v7180
        %v7182 = vshll.u32 2102212464, %v7170
        %v7183 = vshrl.u32 920167782, %v7171
        %v7184 = vor.u32 %v7182, %v7183
        %v7185 = vshll.u32 920167782, %v7170
        %v7186 = vshrl.u32 1326507024, %v7171
        %v7187 = vor.u32 %v7185, %v7186
        %vm7188 = vcmp.lt.s32.totalorder %v7169, 1
        %vm7189 = vcmp.lt.s32.totalorder %v7169, 2
        %vm7190 = vcmp.lt.s32.totalorder %v7169, 3
        %vm7191 = vcmp.lt.s32.totalorder %v7169, 4
        %v7192 = vsel %vm7188, %v7172, %v7175
        %v7193 = vsel %vm7191, %v7181, 2102212464
        %v7194 = vsel %vm7190, %v7178, %v7193
        %v7195 = vsel %vm7189, %v7192, %v7194
        %v7196 = vsel %vm7188, %v7175, %v7178
        %v7197 = vsel %vm7191, %v7184, 920167782
        %v7198 = vsel %vm7190, %v7181, %v7197
        %v7199 = vsel %vm7189, %v7196, %v7198
        %v7200 = vsel %vm7188, %v7178, %v7181
        %v7201 = vsel %vm7191, %v7187, 1326507024
        %v7202 = vsel %vm7190, %v7184, %v7201
        %v7203 = vsel %vm7189, %v7200, %v7202
        %v7204 = vshll.u32 %v7164, 8
        %v7205 = vmul.u32.u64.compose %v7204, %v7203
        %v7206 = vextract.low.u32 %v7205
        %v7207 = vextract.high.u32 %v7205
        %v7208 = vmul.u32.u64.compose %v7204, %v7199
        %v7209 = vextract.low.u32 %v7208
        %v7210 = vextract.high.u32 %v7208
        %v7211 = vmul.u32 %v7204, %v7195
        %v7212 = vadd.s32 %v7207, %v7209
        %vm7213 = vc.u32 %v7207, %v7209
        %v7214 = vadd.s32 %v7210, 1
        %v7215 = vsel %vm7213, %v7214, %v7210
        %v7216 = vadd.s32 %v7211, %v7215
        %v7217 = vadd.s32 %v7216, 536870912
        %v7218 = vshrl.u32 %v7217, 30
        %v7219 = vshll.u32 %v7218, 30
        %v7220 = vsub.s32 %v7216, %v7219
        %vm7221 = vcmp.lt.s32.totalorder %v7220, 0
        %v7222 = vsub.s32 0, %v7220
        %v7223 = vsel %vm7221, %v7222, %v7220
        %v7224 = vclz %v7223
        %v7225 = vsub.s32 %v7224, 2
        %vm7226 = vcmp.gt.s32.totalorder 0, %v7225
        %v7227 = vsel %vm7226, 0, %v7225
        %v7228 = vsub.s32 32, %v7227
        %v7229 = vshll.u32 %v7220, %v7227
        %v7230 = vshrl.u32 %v7212, %v7228
        %v7231 = vor.u32 %v7229, %v7230
        %v7232 = vsub.s32 4294967266, %v7227
        %v7233 = vadd.s32 %v7232, 127
        %v7234 = vshll.u32 %v7233, 23
        %v7235 = vor.u32 4788187, %v7234
        %v7236 = vand.u32 2147483647, %v7235
        %v7238 = vcvt.s32.f32 %v7231
        %v7239 = vmul.f32 %v7238, %v7236
        %v7240 = vxor.u32 %v7239, 2147483648
        %v7241 = vsel %vm7158, %v7240, %v7239
        %v7242 = vsub.s32 4, %v7218
        %v7243 = vsel %vm7158, %v7242, %v7218
        %v7244 = vsel %vm7157, %v666, %v7241
        %v7245 = vsel %vm7157, 0, %v7243
        %v7246 = vcosq.f32.pop %v7244
        %v7247 = vsinq.f32.pop %v7244
        %vm7248 = vweird.f32 %v666
        %v7249 = vand.u32 %v7245, 3
        %vm7250 = vcmp.lt.s32.totalorder %v7249, 2
        %vm7251 = vcmp.eq.s32.totalorder %v7249, 0
        %v7252 = vxor.u32 %v7247, 2147483648
        %v7253 = vsel %vm7251, %v7246, %v7252
        %vm7254 = vcmp.eq.s32.totalorder %v7249, 2
        %v7255 = vxor.u32 %v7246, 2147483648
        %v7256 = vsel %vm7254, %v7255, %v7247
        %v7257 = vsel %vm7250, %v7253, %v7256
        %v7258 = vsel %vm7248, nan, %v7257
        %7259 = vst [vmem:[%s137] sm:$0xff] %v769
        %7260 = vst [vmem:[%s137 + $0x8] sm:$0xff] %v872
        %7261 = vst [vmem:[%s137 + $0x10] sm:$0xff] %v975
        %7262 = vst [vmem:[%s137 + $0x18] sm:$0xff] %v1078
        %7263 = vst [vmem:[%s137 + $0x20] sm:$0xff] %v1181
        %7264 = vst [vmem:[%s137 + $0x28] sm:$0xff] %v1284
        %7265 = vst [vmem:[%s137 + $0x30] sm:$0xff] %v1387
        %7266 = vst [vmem:[%s137 + $0x38] sm:$0xff] %v1490
        %7267 = vst [vmem:[%s137 + $0x40] sm:$0xff] %v1593
        %7268 = vst [vmem:[%s137 + $0x48] sm:$0xff] %v1696
        %7269 = vst [vmem:[%s137 + $0x50] sm:$0xff] %v1799
        %7270 = vst [vmem:[%s137 + $0x58] sm:$0xff] %v1902
        %7271 = vst [vmem:[%s137 + $0x60] sm:$0xff] %v2005
        %7272 = vst [vmem:[%s137 + $0x68] sm:$0xff] %v2108
        %7273 = vst [vmem:[%s137 + $0x70] sm:$0xff] %v2211
        %7274 = vst [vmem:[%s137 + $0x78] sm:$0xff] %v2314
        %7275 = vst [vmem:[%s137 + $0x80] sm:$0xff] %v2417
        %7276 = vst [vmem:[%s137 + $0x88] sm:$0xff] %v2520
        %7277 = vst [vmem:[%s137 + $0x90] sm:$0xff] %v2623
        %7278 = vst [vmem:[%s137 + $0x98] sm:$0xff] %v2726
        %7279 = vst [vmem:[%s137 + $0xa0] sm:$0xff] %v2829
        %7280 = vst [vmem:[%s137 + $0xa8] sm:$0xff] %v2932
        %7281 = vst [vmem:[%s137 + $0xb0] sm:$0xff] %v3035
        %7282 = vst [vmem:[%s137 + $0xb8] sm:$0xff] %v3138
        %7283 = vst [vmem:[%s137 + $0xc0] sm:$0xff] %v3241
        %7284 = vst [vmem:[%s137 + $0xc8] sm:$0xff] %v3344
        %7285 = vst [vmem:[%s137 + $0xd0] sm:$0xff] %v3447
        %7286 = vst [vmem:[%s137 + $0xd8] sm:$0xff] %v3550
        %7287 = vst [vmem:[%s137 + $0xe0] sm:$0xff] %v3653
        %7288 = vst [vmem:[%s137 + $0xe8] sm:$0xff] %v3756
        %7289 = vst [vmem:[%s137 + $0xf0] sm:$0xff] %v3859
        %7290 = vst [vmem:[%s137 + $0xf8] sm:$0xff] %v3962
        %7291 = vst [vmem:[%s137 + $0x100] sm:$0xff] %v4065
        %7292 = vst [vmem:[%s137 + $0x108] sm:$0xff] %v4168
        %7293 = vst [vmem:[%s137 + $0x110] sm:$0xff] %v4271
        %7294 = vst [vmem:[%s137 + $0x118] sm:$0xff] %v4374
        %7295 = vst [vmem:[%s137 + $0x120] sm:$0xff] %v4477
        %7296 = vst [vmem:[%s137 + $0x128] sm:$0xff] %v4580
        %7297 = vst [vmem:[%s137 + $0x130] sm:$0xff] %v4683
        %7298 = vst [vmem:[%s137 + $0x138] sm:$0xff] %v4786
        %7299 = vst [vmem:[%s137 + $0x140] sm:$0xff] %v4889
        %7300 = vst [vmem:[%s137 + $0x148] sm:$0xff] %v4992
        %7301 = vst [vmem:[%s137 + $0x150] sm:$0xff] %v5095
        %7302 = vst [vmem:[%s137 + $0x158] sm:$0xff] %v5198
        %7303 = vst [vmem:[%s137 + $0x160] sm:$0xff] %v5301
        %7304 = vst [vmem:[%s137 + $0x168] sm:$0xff] %v5404
        %7305 = vst [vmem:[%s137 + $0x170] sm:$0xff] %v5507
        %7306 = vst [vmem:[%s137 + $0x178] sm:$0xff] %v5610
        %7307 = vst [vmem:[%s137 + $0x180] sm:$0xff] %v5713
        %7308 = vst [vmem:[%s137 + $0x188] sm:$0xff] %v5816
        %7309 = vst [vmem:[%s137 + $0x190] sm:$0xff] %v5919
        %7310 = vst [vmem:[%s137 + $0x198] sm:$0xff] %v6022
        %7311 = vst [vmem:[%s137 + $0x1a0] sm:$0xff] %v6125
        %7312 = vst [vmem:[%s137 + $0x1a8] sm:$0xff] %v6228
        %7313 = vst [vmem:[%s137 + $0x1b0] sm:$0xff] %v6331
        %7314 = vst [vmem:[%s137 + $0x1b8] sm:$0xff] %v6434
        %7315 = vst [vmem:[%s137 + $0x1c0] sm:$0xff] %v6537
        %7316 = vst [vmem:[%s137 + $0x1c8] sm:$0xff] %v6640
        %7317 = vst [vmem:[%s137 + $0x1d0] sm:$0xff] %v6743
        %7318 = vst [vmem:[%s137 + $0x1d8] sm:$0xff] %v6846
        %7319 = vst [vmem:[%s137 + $0x1e0] sm:$0xff] %v6949
        %7320 = vst [vmem:[%s137 + $0x1e8] sm:$0xff] %v7052
        %7321 = vst [vmem:[%s137 + $0x1f0] sm:$0xff] %v7155
        %7322 = vst [vmem:[%s137 + $0x1f8] sm:$0xff] %v7258
        %s7323 = sand.u32 %s71, 1
        %s7324 = scalar_lea.sflag [#allocation3], %s7323
        %s7325 = sand.u32 %s71, 1
        %s7326 = smul.addr %s7325, 512
        %s7327 = scalar_lea.vmem [#allocation2], %s7326
        // Predicated region
        $region29: #{tpu_custom_call.1} parent=27 // pred_check
          %p7328 = pneg %p81
        $region30: #{tpu_custom_call.1} parent=27 // pred_check_branch
          %7330 = sbr.rel (%p7328) target = $region32
        $region31: #{tpu_custom_call.1} parent=27 // pred_region
          %s7331 = smul.u32 64, %s16
          %s7333 = ssub.s32 8192, 8192
          %7334 = vsyncadd %s7324, %s7333
          %s7335 = smul.addr %s7331, 128
          %s7336 = scalar_lea.hbm %s2, %s7335
          %s7337 = sshll.u32 %s7327, 4
          %s7338 = int_to_ptr.vmem [resolvable:$true] %s7337
          %7343 = dma.vmem_to_hbm [thread:$0]  %s7338, 8192, %s7336, %s7324, 128, 128, 8
        $region32: #{tpu_custom_call.1} parent=27 // pred_fallthru
          _
      $region28: #{tpu_custom_call.1} parent=5 // pred_fallthru
        _
      %p7344 = scmp.le.s32.totalorder 2, %s11
      // Predicated region
      $region33: #{tpu_custom_call.1} parent=5 // pred_check
        %p7345 = pneg %p7344
      $region34: #{tpu_custom_call.1} parent=5 // pred_check_branch
        %7347 = sbr.rel (%p7345) target = $region36
      $region35: #{tpu_custom_call.1} parent=5 // pred_region
        %s7348 = ssub.s32 %s11, 2
        // Predicated region
        $region37: #{tpu_custom_call.1} parent=35 // pred_check
          %p7349 = pneg %p87
        $region38: #{tpu_custom_call.1} parent=35 // pred_check_branch
          %7351 = sbr.rel (%p7349) target = $region40
        $region39: #{tpu_custom_call.1} parent=35 // pred_region
          %s7352 = sand.u32 %s72, 1
          %s7353 = scalar_lea.sflag [#allocation3], %s7352
          %s7354 = sand.u32 %s72, 1
          %s7355 = smul.addr %s7354, 512
          %s7356 = scalar_lea.vmem [#allocation2], %s7355
          %7357 = dma.done %s7353, 8192
        $region40: #{tpu_custom_call.1} parent=35 // pred_fallthru
          _
      $region36: #{tpu_custom_call.1} parent=5 // pred_fallthru
        _
    $region6: #{tpu_custom_call.1} parent=1 // loop_footer
      %s15 = sadd.s32 1, %s11
    $region7: #{tpu_custom_call.1} parent=1 // loop_footer_branch
      %10 = sbr.rel target = $region3
    $region8: #{tpu_custom_call.1} parent=1 // loop_exit
      _
    %7358 = vsyncpa [#allocation3], 1
    %s7359 = scalar_lea.sflag [#allocation3], 1
    %7360 = vsyncpa %s7359, 1

</llo_original>
